<compile_context>
chip_gen: v7x
topology: tpu7x:2x2x1
jax: 0.10.0
libtpu: 0.0.40
codegen_flags: <defaults>
</compile_context>

<pallas_src>
import math

import jax
import jax.numpy as jnp
from jax.experimental import pallas as pl
from jax.experimental.pallas import tpu as pltpu

# ----------------------------- static configuration -----------------------------
B = 2                       # batch
S = 16                      # config.max_position_embeddings (Conv1d in_channels)
H = 32                      # config.hidden_size             (Conv1d out_channels & conv length)
K = 3                       # Conv1d kernel_size
L = H - K + 1               # conv output length (stride=1, no padding) -> 30
C = H                       # conv out_channels
KS = K * S                  # 48: flattened (kernel, in_channel) contraction dim
N_CLS = 18449               # Linear out_features (hardcoded in the module)
N_PAD = ((N_CLS + 255) // 256) * 256   # 18688 -> two 128-lane-aligned tiles
NT = 2                      # number of classifier weight tiles
TN = N_PAD // NT            # 9344 = 73 * 128
BN_EPS = 1e-5


# -------- fused kernel: conv + bn + relu + attention + pool + linear + sigmoid --------
def fused_kernel(xcol_ref, wconv_ref, shift_ref, b_ref, w_hbm, out_ref,
                 wbuf, sem, pooled_scr):
    # xcol_ref:   (B, KS, L)   im2col'd BERT last_hidden (f32)
    # wconv_ref:  (C, KS)      Conv1d weight, BN scale folded, flattened (f32)
    # shift_ref:  (C, 1)       folded shift = (conv_bias - running_mean) * scale + beta
    # b_ref:      (1, N_PAD)   classifier bias (f32, zero-padded)
    # w_hbm:      (NT, C, TN)  bf16 classifier weight tiles, raw HBM ref (manual DMA)
    # out_ref:    (B, N_PAD)   sigmoid(logits)
    # wbuf:       (NT, C, TN)  VMEM scratch for weight tiles
    # sem:        (NT,)        DMA semaphores
    # pooled_scr: (B, C)       VMEM scratch for pooled activations

    # Kick off both classifier weight-tile DMAs immediately: the ~1.2 MB bf16 stream
    # (the dominant HBM traffic) lands while the backbone below is computing.
    for t in range(NT):
        pltpu.make_async_copy(w_hbm.at[t], wbuf.at[t], sem.at[t]).start()

    # ---------------- backbone: computed exactly once ----------------
    wconv = wconv_ref[...]                                 # [C, KS]
    shift = shift_ref[...]                                 # [C, 1]
    for bi in range(B):                                    # static unroll, B = 2
        # Conv1d + folded BN as a single matmul on the im2col'd activation.
        conv = jnp.dot(wconv, xcol_ref[bi],
                       preferred_element_type=jnp.float32)            # [C, L]
        y = jnp.maximum(conv + shift, 0.0)                             # BN shift + ReLU

        # attention(y, y, y): scores = y @ y.T / sqrt(dim_k), softmax over last dim
        scores = jnp.dot(y, y.T, preferred_element_type=jnp.float32) * (1.0 / math.sqrt(L))
        scores = scores - jnp.max(scores, axis=-1, keepdims=True)
        p = jnp.exp(scores)
        p = p * pl.reciprocal(jnp.sum(p, axis=-1, keepdims=True), approx=True)   # [C, C]
        attn = jnp.dot(p, y, preferred_element_type=jnp.float32)                 # [C, L]

        # output.transpose(1, 2).mean(dim=1)  ==  mean over L
        pooled_scr[bi, :] = jnp.mean(attn, axis=1)

    # ---------------- head: Linear(H -> 18449) + sigmoid, per weight tile ----------------
    pooled = pooled_scr[...].astype(jnp.bfloat16)                      # [B, C]
    for t in range(NT):                                                # static unroll, NT = 2
        pltpu.make_async_copy(w_hbm.at[t], wbuf.at[t], sem.at[t]).wait()
        logits = jnp.dot(pooled, wbuf[t],
                         preferred_element_type=jnp.float32) + b_ref[:, t * TN:(t + 1) * TN]
        out_ref[:, t * TN:(t + 1) * TN] = jax.nn.sigmoid(logits)


def _fused_call(xcol, wconv_flat, shift2d, b_pad, w_tiles):
    return pl.pallas_call(
        fused_kernel,
        out_shape=jax.ShapeDtypeStruct((B, N_PAD), jnp.float32),
        grid_spec=pltpu.PrefetchScalarGridSpec(
            num_scalar_prefetch=0,
            grid=(1,),                                              # single step: backbone runs once
            in_specs=[
                pl.BlockSpec((B, KS, L), lambda i: (0, 0, 0)),      # im2col'd last_hidden
                pl.BlockSpec((C, KS), lambda i: (0, 0)),            # conv weight (BN-scale folded)
                pl.BlockSpec((C, 1), lambda i: (0, 0)),             # folded BN shift (+conv bias)
                pl.BlockSpec((1, N_PAD), lambda i: (0, 0)),         # classifier bias
                pl.BlockSpec(memory_space=pl.ANY),                  # bf16 weight tiles, manual DMA
            ],
            out_specs=pl.BlockSpec((B, N_PAD), lambda i: (0, 0)),
            scratch_shapes=[
                pltpu.VMEM((NT, C, TN), jnp.bfloat16),              # weight double-tile buffer
                pltpu.SemaphoreType.DMA((NT,)),
                pltpu.VMEM((B, C), jnp.float32),                    # pooled activations
            ],
        ),
        compiler_params=pltpu.CompilerParams(dimension_semantics=("arbitrary",)),
    )(xcol, wconv_flat, shift2d, b_pad, w_tiles)


@jax.jit
def forward(x, wconv_flat, shift2d, w_tiles, b_pad):
    # im2col of the tiny activation (~11 KB): xcol[b, k*S + s, l] = x[b, s, l + k]
    xcol = jnp.concatenate([x[:, :, k:k + L] for k in range(K)], axis=1)   # [B, KS, L]
    out = _fused_call(xcol, wconv_flat, shift2d, b_pad, w_tiles)
    # Padded columns [N_CLS:N_PAD] hold sigmoid(0) = 0.5; slice them off here.
    return out[:, :N_CLS]


def prepare_params(params):
    """One-time parameter re-layout / folding / padding (outside the per-call path)."""
    conv_w, conv_b, gamma, beta, rmean, rvar, lin_w, lin_b = params
    scale = gamma / jnp.sqrt(rvar + BN_EPS)                              # [C]
    # Fold BN scale into the conv weight; flatten (k, s) -> k*S + s to match im2col.
    wconv_flat = (jnp.transpose(conv_w, (0, 2, 1)) * scale[:, None, None]
                  ).reshape(C, KS).astype(jnp.float32)                   # [C, KS]
    shift2d = ((conv_b - rmean) * scale + beta)[:, None].astype(jnp.float32)   # [C, 1]
    # Classifier weight: pad to N_PAD lanes, bf16, split into NT contiguous tiles.
    w_pad = jnp.zeros((C, N_PAD), jnp.float32).at[:, :N_CLS].set(lin_w.T)
    w_tiles = jnp.transpose(w_pad.reshape(C, NT, TN), (1, 0, 2)).astype(jnp.bfloat16)  # [NT,C,TN]
    b_pad = jnp.zeros((1, N_PAD), jnp.float32).at[0, :N_CLS].set(
        lin_b.astype(jnp.float32))                                       # [1, N_PAD]
    return wconv_flat, shift2d, w_tiles, b_pad


# ----------------------------- pure-JAX reference -----------------------------
def reference(x, params):
    conv_w, conv_b, gamma, beta, rmean, rvar, lin_w, lin_b = params
    cols = jnp.stack([x[:, :, k:k + L] for k in range(K)], axis=-1)      # [B, S, L, K]
    conv = jnp.einsum('bslk,csk->bcl', cols, conv_w) + conv_b[None, :, None]
    y = (conv - rmean[None, :, None]) / jnp.sqrt(rvar[None, :, None] + BN_EPS)
    y = y * gamma[None, :, None] + beta[None, :, None]
    y = jnp.maximum(y, 0.0)
    scores = jnp.einsum('bcl,bdl->bcd', y, y) / math.sqrt(L)
    p = jax.nn.softmax(scores, axis=-1)
    attn = jnp.einsum('bcd,bdl->bcl', p, y)
    pooled = attn.mean(axis=2)
    logits = pooled @ lin_w.T + lin_b
    return jax.nn.sigmoid(logits)


if __name__ == "__main__":
    key = jax.random.PRNGKey(0)
    ks = jax.random.split(key, 9)

    # synthetic BERT last_hidden (the frozen front-end's output)
    x = jax.random.normal(ks[0], (B, S, H), jnp.float32)

    # deterministic parameter init (shapes per the module's __init__)
    conv_w = 0.1 * jax.random.normal(ks[1], (C, S, K), jnp.float32)      # Conv1d weight
    conv_b = 0.1 * jax.random.normal(ks[2], (C,), jnp.float32)           # Conv1d bias
    gamma = 1.0 + 0.1 * jax.random.normal(ks[3], (C,), jnp.float32)      # BN weight
    beta = 0.1 * jax.random.normal(ks[4], (C,), jnp.float32)             # BN bias
    rmean = 0.1 * jax.random.normal(ks[5], (C,), jnp.float32)            # BN running mean
    rvar = 1.0 + 0.1 * jax.random.uniform(ks[6], (C,), jnp.float32)      # BN running var
    lin_w = (1.0 / math.sqrt(C)) * jax.random.normal(ks[7], (N_CLS, C), jnp.float32)
    lin_b = 0.01 * jax.random.normal(ks[8], (N_CLS,), jnp.float32)

    params = (conv_w, conv_b, gamma, beta, rmean, rvar, lin_w, lin_b)

    # one-time parameter preparation (outside the per-call path)
    prepared = jax.block_until_ready(prepare_params(params))

    out = jax.block_until_ready(forward(x, *prepared))
    ref = jax.block_until_ready(reference(x, params))

    assert out.shape == (B, N_CLS), out.shape
    assert jnp.max(jnp.abs(out - ref)) < 5e-2, float(jnp.max(jnp.abs(out - ref)))
    print("KERNEL_OK")
</pallas_src>

<mosaic_0001>
module attributes {stable_mosaic.version = 11 : i64} {
  func.func @fused_kernel(%arg0: i32, %arg1: memref<2x48x30xf32, #tpu.memory_space<vmem>>, %arg2: memref<32x48xf32, #tpu.memory_space<vmem>>, %arg3: memref<32x1xf32, #tpu.memory_space<vmem>>, %arg4: memref<1x18688xf32, #tpu.memory_space<vmem>>, %arg5: memref<2x32x9344xbf16, #tpu.memory_space<any>>, %arg6: memref<2x18688xf32, #tpu.memory_space<vmem>>, %arg7: memref<2x32x9344xbf16, #tpu.memory_space<vmem>>, %arg8: memref<2x!tpu.dma_semaphore, #tpu.memory_space<semaphore_mem>>, %arg9: memref<2x32xf32, #tpu.memory_space<vmem>>) attributes {dimension_semantics = [#tpu.dimension_semantics<arbitrary>], iteration_bounds = array<i64: 1>, scalar_prefetch = 0 : i64, scratch_operands = 3 : i64, tpu.core_type = #tpu.core_type<tc>, window_params = [{pipeline_mode = #tpu.pipeline_mode<synchronous>, transform_indices = @transform_0, window_bounds = array<i64: 2, 48, 30>}, {pipeline_mode = #tpu.pipeline_mode<synchronous>, transform_indices = @transform_1, window_bounds = array<i64: 32, 48>}, {pipeline_mode = #tpu.pipeline_mode<synchronous>, transform_indices = @transform_2, window_bounds = array<i64: 32, 1>}, {pipeline_mode = #tpu.pipeline_mode<synchronous>, transform_indices = @transform_3, window_bounds = array<i64: 1, 18688>}, {}, {pipeline_mode = #tpu.pipeline_mode<synchronous>, transform_indices = @transform_5, window_bounds = array<i64: 2, 18688>}]} {
    %c0_i32 = arith.constant 0 : i32
    %c0_i32_0 = arith.constant 0 : i32
    %c0_i32_1 = arith.constant 0 : i32
    %c0_i32_2 = arith.constant 0 : i32
    %c0_i32_3 = arith.constant 0 : i32
    %0 = tpu.memref_slice %arg5[%c0_i32, %c0_i32_2, %c0_i32_3] : memref<2x32x9344xbf16, #tpu.memory_space<any>> -> memref<1x32x9344xbf16, #tpu.memory_space<any>>
    %1 = tpu.memref_squeeze %0 : memref<1x32x9344xbf16, #tpu.memory_space<any>> -> memref<32x9344xbf16, #tpu.memory_space<any>>
    %c0_i32_4 = arith.constant 0 : i32
    %c0_i32_5 = arith.constant 0 : i32
    %2 = tpu.memref_slice %arg7[%c0_i32_0, %c0_i32_4, %c0_i32_5] : memref<2x32x9344xbf16, #tpu.memory_space<vmem>> -> memref<1x32x9344xbf16, #tpu.memory_space<vmem>>
    %3 = tpu.memref_squeeze %2 : memref<1x32x9344xbf16, #tpu.memory_space<vmem>> -> memref<32x9344xbf16, #tpu.memory_space<vmem>>
    %4 = tpu.memref_slice %arg8[%c0_i32_1] : memref<2x!tpu.dma_semaphore, #tpu.memory_space<semaphore_mem>> -> memref<1x!tpu.dma_semaphore, #tpu.memory_space<semaphore_mem>>
    %5 = tpu.memref_squeeze %4 : memref<1x!tpu.dma_semaphore, #tpu.memory_space<semaphore_mem>> -> memref<!tpu.dma_semaphore, #tpu.memory_space<semaphore_mem>>
    tpu.enqueue_dma source(%1 : memref<32x9344xbf16, #tpu.memory_space<any>>) target(%3 : memref<32x9344xbf16, #tpu.memory_space<vmem>>) target_semaphore(%5 : memref<!tpu.dma_semaphore, #tpu.memory_space<semaphore_mem>>)
    %c1_i32 = arith.constant 1 : i32
    %c1_i32_6 = arith.constant 1 : i32
    %c1_i32_7 = arith.constant 1 : i32
    %c0_i32_8 = arith.constant 0 : i32
    %c0_i32_9 = arith.constant 0 : i32
    %6 = tpu.memref_slice %arg5[%c1_i32, %c0_i32_8, %c0_i32_9] : memref<2x32x9344xbf16, #tpu.memory_space<any>> -> memref<1x32x9344xbf16, #tpu.memory_space<any>>
    %7 = tpu.memref_squeeze %6 : memref<1x32x9344xbf16, #tpu.memory_space<any>> -> memref<32x9344xbf16, #tpu.memory_space<any>>
    %c0_i32_10 = arith.constant 0 : i32
    %c0_i32_11 = arith.constant 0 : i32
    %8 = tpu.memref_slice %arg7[%c1_i32_6, %c0_i32_10, %c0_i32_11] : memref<2x32x9344xbf16, #tpu.memory_space<vmem>> -> memref<1x32x9344xbf16, #tpu.memory_space<vmem>>
    %9 = tpu.memref_squeeze %8 : memref<1x32x9344xbf16, #tpu.memory_space<vmem>> -> memref<32x9344xbf16, #tpu.memory_space<vmem>>
    %10 = tpu.memref_slice %arg8[%c1_i32_7] : memref<2x!tpu.dma_semaphore, #tpu.memory_space<semaphore_mem>> -> memref<1x!tpu.dma_semaphore, #tpu.memory_space<semaphore_mem>>
    %11 = tpu.memref_squeeze %10 : memref<1x!tpu.dma_semaphore, #tpu.memory_space<semaphore_mem>> -> memref<!tpu.dma_semaphore, #tpu.memory_space<semaphore_mem>>
    tpu.enqueue_dma source(%7 : memref<32x9344xbf16, #tpu.memory_space<any>>) target(%9 : memref<32x9344xbf16, #tpu.memory_space<vmem>>) target_semaphore(%11 : memref<!tpu.dma_semaphore, #tpu.memory_space<semaphore_mem>>)
    %c0 = arith.constant 0 : index
    %c0_12 = arith.constant 0 : index
    %12 = vector.load %arg2[%c0, %c0_12] : memref<32x48xf32, #tpu.memory_space<vmem>>, vector<32x48xf32>
    %c0_13 = arith.constant 0 : index
    %c0_14 = arith.constant 0 : index
    %13 = vector.load %arg3[%c0_13, %c0_14] : memref<32x1xf32, #tpu.memory_space<vmem>>, vector<32x1xf32>
    %c0_15 = arith.constant 0 : index
    %c0_16 = arith.constant 0 : index
    %c0_17 = arith.constant 0 : index
    %14 = vector.load %arg1[%c0_15, %c0_16, %c0_17] : memref<2x48x30xf32, #tpu.memory_space<vmem>>, vector<1x48x30xf32>
    %15 = vector.shape_cast %14 : vector<1x48x30xf32> to vector<48x30xf32>
    %cst = arith.constant dense<0.000000e+00> : vector<32x30xf32>
    %16 = tpu.matmul %12, %15, %cst {dimension_numbers = #tpu.dot_dimension_numbers<[1], [0], [0], [1], [0, 0, 1, 1], [], []>} : vector<32x48xf32>, vector<48x30xf32>, vector<32x30xf32> -> vector<32x30xf32>
    %17 = vector.broadcast %13 : vector<32x1xf32> to vector<32x30xf32>
    %18 = arith.addf %16, %17 : vector<32x30xf32>
    %cst_18 = arith.constant 0.000000e+00 : f32
    %19 = vector.broadcast %cst_18 : f32 to vector<32x30xf32>
    %20 = arith.maximumf %18, %19 : vector<32x30xf32>
    %21 = tpu.transpose %20, [1, 0] : vector<32x30xf32> -> vector<30x32xf32>
    %cst_19 = arith.constant dense<0.000000e+00> : vector<32x32xf32>
    %22 = tpu.matmul %20, %21, %cst_19 {dimension_numbers = #tpu.dot_dimension_numbers<[1], [0], [0], [1], [0, 0, 1, 1], [], []>} : vector<32x30xf32>, vector<30x32xf32>, vector<32x32xf32> -> vector<32x32xf32>
    %cst_20 = arith.constant 0.182574183 : f32
    %23 = vector.broadcast %cst_20 : f32 to vector<32x32xf32>
    %24 = arith.mulf %22, %23 : vector<32x32xf32>
    %cst_21 = arith.constant dense<0xFF800000> : vector<32xf32>
    %25 = vector.multi_reduction <maximumf>, %24, %cst_21 [1] : vector<32x32xf32> to vector<32xf32>
    %26 = vector.shape_cast %25 : vector<32xf32> to vector<32x1xf32>
    %27 = vector.broadcast %26 : vector<32x1xf32> to vector<32x32xf32>
    %28 = arith.subf %24, %27 : vector<32x32xf32>
    %29 = math.exp %28 : vector<32x32xf32>
    %cst_22 = arith.constant dense<0.000000e+00> : vector<32xf32>
    %30 = vector.multi_reduction <add>, %29, %cst_22 [1] : vector<32x32xf32> to vector<32xf32>
    %31 = vector.shape_cast %30 : vector<32xf32> to vector<32x1xf32>
    %32 = tpu.reciprocal %31 {approx = true} : vector<32x1xf32> -> vector<32x1xf32>
    %33 = vector.broadcast %32 : vector<32x1xf32> to vector<32x32xf32>
    %34 = arith.mulf %29, %33 : vector<32x32xf32>
    %cst_23 = arith.constant dense<0.000000e+00> : vector<32x30xf32>
    %35 = tpu.matmul %34, %20, %cst_23 {dimension_numbers = #tpu.dot_dimension_numbers<[1], [0], [0], [1], [0, 0, 1, 1], [], []>} : vector<32x32xf32>, vector<32x30xf32>, vector<32x30xf32> -> vector<32x30xf32>
    %cst_24 = arith.constant dense<0.000000e+00> : vector<32xf32>
    %36 = vector.multi_reduction <add>, %35, %cst_24 [1] : vector<32x30xf32> to vector<32xf32>
    %cst_25 = arith.constant 3.000000e+01 : f32
    %37 = vector.broadcast %cst_25 : f32 to vector<32xf32>
    %38 = arith.divf %36, %37 : vector<32xf32>
    %c0_26 = arith.constant 0 : index
    %c0_27 = arith.constant 0 : index
    %39 = vector.load %arg9[%c0_26, %c0_27] : memref<2x32xf32, #tpu.memory_space<vmem>>, vector<1x32xf32>
    %40 = vector.shape_cast %39 : vector<1x32xf32> to vector<32xf32>
    %41 = vector.shape_cast %38 : vector<32xf32> to vector<1x32xf32>
    tpu.vector_store %arg9[%c0_26, %c0_27], %41 {strides = array<i32>} : memref<2x32xf32, #tpu.memory_space<vmem>>, vector<1x32xf32>,
    %c1 = arith.constant 1 : index
    %c0_28 = arith.constant 0 : index
    %c0_29 = arith.constant 0 : index
    %42 = vector.load %arg1[%c1, %c0_28, %c0_29] : memref<2x48x30xf32, #tpu.memory_space<vmem>>, vector<1x48x30xf32>
    %43 = vector.shape_cast %42 : vector<1x48x30xf32> to vector<48x30xf32>
    %cst_30 = arith.constant dense<0.000000e+00> : vector<32x30xf32>
    %44 = tpu.matmul %12, %43, %cst_30 {dimension_numbers = #tpu.dot_dimension_numbers<[1], [0], [0], [1], [0, 0, 1, 1], [], []>} : vector<32x48xf32>, vector<48x30xf32>, vector<32x30xf32> -> vector<32x30xf32>
    %45 = vector.broadcast %13 : vector<32x1xf32> to vector<32x30xf32>
    %46 = arith.addf %44, %45 : vector<32x30xf32>
    %cst_31 = arith.constant 0.000000e+00 : f32
    %47 = vector.broadcast %cst_31 : f32 to vector<32x30xf32>
    %48 = arith.maximumf %46, %47 : vector<32x30xf32>
    %49 = tpu.transpose %48, [1, 0] : vector<32x30xf32> -> vector<30x32xf32>
    %cst_32 = arith.constant dense<0.000000e+00> : vector<32x32xf32>
    %50 = tpu.matmul %48, %49, %cst_32 {dimension_numbers = #tpu.dot_dimension_numbers<[1], [0], [0], [1], [0, 0, 1, 1], [], []>} : vector<32x30xf32>, vector<30x32xf32>, vector<32x32xf32> -> vector<32x32xf32>
    %cst_33 = arith.constant 0.182574183 : f32
    %51 = vector.broadcast %cst_33 : f32 to vector<32x32xf32>
    %52 = arith.mulf %50, %51 : vector<32x32xf32>
    %cst_34 = arith.constant dense<0xFF800000> : vector<32xf32>
    %53 = vector.multi_reduction <maximumf>, %52, %cst_34 [1] : vector<32x32xf32> to vector<32xf32>
    %54 = vector.shape_cast %53 : vector<32xf32> to vector<32x1xf32>
    %55 = vector.broadcast %54 : vector<32x1xf32> to vector<32x32xf32>
    %56 = arith.subf %52, %55 : vector<32x32xf32>
    %57 = math.exp %56 : vector<32x32xf32>
    %cst_35 = arith.constant dense<0.000000e+00> : vector<32xf32>
    %58 = vector.multi_reduction <add>, %57, %cst_35 [1] : vector<32x32xf32> to vector<32xf32>
    %59 = vector.shape_cast %58 : vector<32xf32> to vector<32x1xf32>
    %60 = tpu.reciprocal %59 {approx = true} : vector<32x1xf32> -> vector<32x1xf32>
    %61 = vector.broadcast %60 : vector<32x1xf32> to vector<32x32xf32>
    %62 = arith.mulf %57, %61 : vector<32x32xf32>
    %cst_36 = arith.constant dense<0.000000e+00> : vector<32x30xf32>
    %63 = tpu.matmul %62, %48, %cst_36 {dimension_numbers = #tpu.dot_dimension_numbers<[1], [0], [0], [1], [0, 0, 1, 1], [], []>} : vector<32x32xf32>, vector<32x30xf32>, vector<32x30xf32> -> vector<32x30xf32>
    %cst_37 = arith.constant dense<0.000000e+00> : vector<32xf32>
    %64 = vector.multi_reduction <add>, %63, %cst_37 [1] : vector<32x30xf32> to vector<32xf32>
    %cst_38 = arith.constant 3.000000e+01 : f32
    %65 = vector.broadcast %cst_38 : f32 to vector<32xf32>
    %66 = arith.divf %64, %65 : vector<32xf32>
    %c1_39 = arith.constant 1 : index
    %c0_40 = arith.constant 0 : index
    %67 = vector.load %arg9[%c1_39, %c0_40] : memref<2x32xf32, #tpu.memory_space<vmem>>, vector<1x32xf32>
    %68 = vector.shape_cast %67 : vector<1x32xf32> to vector<32xf32>
    %69 = vector.shape_cast %66 : vector<32xf32> to vector<1x32xf32>
    tpu.vector_store %arg9[%c1_39, %c0_40], %69 {strides = array<i32>} : memref<2x32xf32, #tpu.memory_space<vmem>>, vector<1x32xf32>,
    %c0_41 = arith.constant 0 : index
    %c0_42 = arith.constant 0 : index
    %70 = vector.load %arg9[%c0_41, %c0_42] : memref<2x32xf32, #tpu.memory_space<vmem>>, vector<2x32xf32>
    %71 = arith.truncf %70 : vector<2x32xf32> to vector<2x32xbf16>
    %c0_i32_43 = arith.constant 0 : i32
    %c0_i32_44 = arith.constant 0 : i32
    %c0_i32_45 = arith.constant 0 : i32
    %c0_i32_46 = arith.constant 0 : i32
    %c0_i32_47 = arith.constant 0 : i32
    %72 = tpu.memref_slice %arg5[%c0_i32_43, %c0_i32_46, %c0_i32_47] : memref<2x32x9344xbf16, #tpu.memory_space<any>> -> memref<1x32x9344xbf16, #tpu.memory_space<any>>
    %73 = tpu.memref_squeeze %72 : memref<1x32x9344xbf16, #tpu.memory_space<any>> -> memref<32x9344xbf16, #tpu.memory_space<any>>
    %c0_i32_48 = arith.constant 0 : i32
    %c0_i32_49 = arith.constant 0 : i32
    %74 = tpu.memref_slice %arg7[%c0_i32_44, %c0_i32_48, %c0_i32_49] : memref<2x32x9344xbf16, #tpu.memory_space<vmem>> -> memref<1x32x9344xbf16, #tpu.memory_space<vmem>>
    %75 = tpu.memref_squeeze %74 : memref<1x32x9344xbf16, #tpu.memory_space<vmem>> -> memref<32x9344xbf16, #tpu.memory_space<vmem>>
    %76 = tpu.memref_slice %arg8[%c0_i32_45] : memref<2x!tpu.dma_semaphore, #tpu.memory_space<semaphore_mem>> -> memref<1x!tpu.dma_semaphore, #tpu.memory_space<semaphore_mem>>
    %77 = tpu.memref_squeeze %76 : memref<1x!tpu.dma_semaphore, #tpu.memory_space<semaphore_mem>> -> memref<!tpu.dma_semaphore, #tpu.memory_space<semaphore_mem>>
    tpu.wait_dma2 semaphore(%77 : memref<!tpu.dma_semaphore, #tpu.memory_space<semaphore_mem>>) src(%73 : memref<32x9344xbf16, #tpu.memory_space<any>>) dst(%75 : memref<32x9344xbf16, #tpu.memory_space<vmem>>)
    %c0_50 = arith.constant 0 : index
    %c0_51 = arith.constant 0 : index
    %c0_52 = arith.constant 0 : index
    %78 = vector.load %arg7[%c0_50, %c0_51, %c0_52] : memref<2x32x9344xbf16, #tpu.memory_space<vmem>>, vector<1x32x9344xbf16>
    %79 = vector.shape_cast %78 : vector<1x32x9344xbf16> to vector<32x9344xbf16>
    %cst_53 = arith.constant dense<0.000000e+00> : vector<2x9344xf32>
    %80 = tpu.matmul %71, %79, %cst_53 {dimension_numbers = #tpu.dot_dimension_numbers<[1], [0], [0], [1], [0, 0, 1, 1], [], []>} : vector<2x32xbf16>, vector<32x9344xbf16>, vector<2x9344xf32> -> vector<2x9344xf32>
    %c0_54 = arith.constant 0 : index
    %c0_55 = arith.constant 0 : index
    %81 = vector.load %arg4[%c0_54, %c0_55] : memref<1x18688xf32, #tpu.memory_space<vmem>>, vector<1x9344xf32>
    %82 = vector.broadcast %81 : vector<1x9344xf32> to vector<2x9344xf32>
    %83 = arith.addf %80, %82 : vector<2x9344xf32>
    %84 = arith.negf %83 : vector<2x9344xf32>
    %85 = math.exp %84 : vector<2x9344xf32>
    %cst_56 = arith.constant 1.000000e+00 : f32
    %86 = vector.broadcast %cst_56 : f32 to vector<2x9344xf32>
    %87 = arith.addf %86, %85 : vector<2x9344xf32>
    %88 = arith.divf %86, %87 : vector<2x9344xf32>
    %c0_57 = arith.constant 0 : index
    %c0_58 = arith.constant 0 : index
    %89 = vector.load %arg6[%c0_57, %c0_58] : memref<2x18688xf32, #tpu.memory_space<vmem>>, vector<2x9344xf32>
    tpu.vector_store %arg6[%c0_57, %c0_58], %88 {strides = array<i32>} : memref<2x18688xf32, #tpu.memory_space<vmem>>, vector<2x9344xf32>,
    %c1_i32_59 = arith.constant 1 : i32
    %c1_i32_60 = arith.constant 1 : i32
    %c1_i32_61 = arith.constant 1 : i32
    %c0_i32_62 = arith.constant 0 : i32
    %c0_i32_63 = arith.constant 0 : i32
    %90 = tpu.memref_slice %arg5[%c1_i32_59, %c0_i32_62, %c0_i32_63] : memref<2x32x9344xbf16, #tpu.memory_space<any>> -> memref<1x32x9344xbf16, #tpu.memory_space<any>>
    %91 = tpu.memref_squeeze %90 : memref<1x32x9344xbf16, #tpu.memory_space<any>> -> memref<32x9344xbf16, #tpu.memory_space<any>>
    %c0_i32_64 = arith.constant 0 : i32
    %c0_i32_65 = arith.constant 0 : i32
    %92 = tpu.memref_slice %arg7[%c1_i32_60, %c0_i32_64, %c0_i32_65] : memref<2x32x9344xbf16, #tpu.memory_space<vmem>> -> memref<1x32x9344xbf16, #tpu.memory_space<vmem>>
    %93 = tpu.memref_squeeze %92 : memref<1x32x9344xbf16, #tpu.memory_space<vmem>> -> memref<32x9344xbf16, #tpu.memory_space<vmem>>
    %94 = tpu.memref_slice %arg8[%c1_i32_61] : memref<2x!tpu.dma_semaphore, #tpu.memory_space<semaphore_mem>> -> memref<1x!tpu.dma_semaphore, #tpu.memory_space<semaphore_mem>>
    %95 = tpu.memref_squeeze %94 : memref<1x!tpu.dma_semaphore, #tpu.memory_space<semaphore_mem>> -> memref<!tpu.dma_semaphore, #tpu.memory_space<semaphore_mem>>
    tpu.wait_dma2 semaphore(%95 : memref<!tpu.dma_semaphore, #tpu.memory_space<semaphore_mem>>) src(%91 : memref<32x9344xbf16, #tpu.memory_space<any>>) dst(%93 : memref<32x9344xbf16, #tpu.memory_space<vmem>>)
    %c1_66 = arith.constant 1 : index
    %c0_67 = arith.constant 0 : index
    %c0_68 = arith.constant 0 : index
    %96 = vector.load %arg7[%c1_66, %c0_67, %c0_68] : memref<2x32x9344xbf16, #tpu.memory_space<vmem>>, vector<1x32x9344xbf16>
    %97 = vector.shape_cast %96 : vector<1x32x9344xbf16> to vector<32x9344xbf16>
    %cst_69 = arith.constant dense<0.000000e+00> : vector<2x9344xf32>
    %98 = tpu.matmul %71, %97, %cst_69 {dimension_numbers = #tpu.dot_dimension_numbers<[1], [0], [0], [1], [0, 0, 1, 1], [], []>} : vector<2x32xbf16>, vector<32x9344xbf16>, vector<2x9344xf32> -> vector<2x9344xf32>
    %c0_70 = arith.constant 0 : index
    %c9344 = arith.constant 9344 : index
    %99 = vector.load %arg4[%c0_70, %c9344] : memref<1x18688xf32, #tpu.memory_space<vmem>>, vector<1x9344xf32>
    %100 = vector.broadcast %99 : vector<1x9344xf32> to vector<2x9344xf32>
    %101 = arith.addf %98, %100 : vector<2x9344xf32>
    %102 = arith.negf %101 : vector<2x9344xf32>
    %103 = math.exp %102 : vector<2x9344xf32>
    %cst_71 = arith.constant 1.000000e+00 : f32
    %104 = vector.broadcast %cst_71 : f32 to vector<2x9344xf32>
    %105 = arith.addf %104, %103 : vector<2x9344xf32>
    %106 = arith.divf %104, %105 : vector<2x9344xf32>
    %c0_72 = arith.constant 0 : index
    %c9344_73 = arith.constant 9344 : index
    %107 = vector.load %arg6[%c0_72, %c9344_73] : memref<2x18688xf32, #tpu.memory_space<vmem>>, vector<2x9344xf32>
    tpu.vector_store %arg6[%c0_72, %c9344_73], %106 {strides = array<i32>} : memref<2x18688xf32, #tpu.memory_space<vmem>>, vector<2x9344xf32>,
    return
  }
  func.func @transform_0(%arg0: i32) -> (i32, i32, i32) {
    %c0_i32 = arith.constant 0 : i32
    %c0_i32_0 = arith.constant 0 : i32
    %c0_i32_1 = arith.constant 0 : i32
    %c0_i32_2 = arith.constant 0 : i32
    return %c0_i32, %c0_i32_0, %c0_i32_1 : i32, i32, i32
  }
  func.func @transform_1(%arg0: i32) -> (i32, i32) {
    %c0_i32 = arith.constant 0 : i32
    %c0_i32_0 = arith.constant 0 : i32
    %c0_i32_1 = arith.constant 0 : i32
    return %c0_i32, %c0_i32_0 : i32, i32
  }
  func.func @transform_2(%arg0: i32) -> (i32, i32) {
    %c0_i32 = arith.constant 0 : i32
    %c0_i32_0 = arith.constant 0 : i32
    %c0_i32_1 = arith.constant 0 : i32
    return %c0_i32, %c0_i32_0 : i32, i32
  }
  func.func @transform_3(%arg0: i32) -> (i32, i32) {
    %c0_i32 = arith.constant 0 : i32
    %c0_i32_0 = arith.constant 0 : i32
    %c0_i32_1 = arith.constant 0 : i32
    return %c0_i32, %c0_i32_0 : i32, i32
  }
  func.func @transform_5(%arg0: i32) -> (i32, i32) {
    %c0_i32 = arith.constant 0 : i32
    %c0_i32_0 = arith.constant 0 : i32
    %c0_i32_1 = arith.constant 0 : i32
    return %c0_i32, %c0_i32_0 : i32, i32
  }
}

</mosaic_0001>

<llo_original>
// kernel: forward.1
$region0: #{forward.1}
  #allocation0 [shape = 'u32[]', space=smem, size = 0x4, offset = 0x4, fixed_abs, tag = 'smem constant byte address 0x4 - core index']
  #allocation1 [shape = 'u32[144,128]{1,0:T(1,128)}', space=vmem, size = 0x12000, scoped, tag = 'internal scratch']
  #allocation2 [shape = 'bf16[2,32,9344]{2,1,0:T(16,128)(2,1)}', space=vmem, size = 0x124000, scoped, tag = 'scratch operand']
  #allocation3 [shape = 's32[2]{0}', space=sflag, size = 0x8, scoped, tag = 'scratch operand']
  #allocation4 [shape = 'f32[2,32]{1,0:T(2,128)}', space=vmem, size = 0x400, scoped, tag = 'scratch operand']
  #allocation9 [shape = 's32[]', space=sflag, size = 0x4, offset = 0, fixed_abs, tag = 'sflag constant byte address 0x0 - dummy sync flag']
  #allocation11 [shape = 's32[]', space=sflag, size = 0x4, offset = 0, fixed_abs, tag = 'sflag constant byte address 0x0 - dummy sync flag']
  %s0 = inlined_call_operand.vmem [shape: f32[2,48,30], index: 0, kind: input, shape index: {}]
  %s1 = inlined_call_operand.hbm [shape: f32[32,48], index: 1, kind: input, shape index: {}]
  %s2 = inlined_call_operand.vmem [shape: f32[32,1], index: 2, kind: input, shape index: {}]
  %s3 = inlined_call_operand.hbm [shape: f32[1,18688], index: 3, kind: input, shape index: {}]
  %s4 = inlined_call_operand.hbm [shape: bf16[2,32,9344], index: 4, kind: input, shape index: {}]
  %s5 = inlined_call_operand.vmem [shape: f32[2,18688], index: 5, kind: output, shape index: {}]
  %s6 = sld [smem:[#allocation0]]
  $region34: #{forward.1} parent=0
    _
  %s8 = ssub.s32 1, %s6
  %s9 = scalar_select 0, %s8, %s6
  $region1: #{forward.1} parent=0
    #allocation5 [shape = 'u8[16384]{0}', space=vmem, size = 0x4000, scoped, tag = 'input window, operand 1, single buffered']
    #allocation6 [shape = 's32[1]{0}', space=sflag, size = 0x4, scoped, tag = 'scoped memory for forward.1']
    #allocation7 [shape = 'u8[74752]{0}', space=vmem, size = 0x12400, scoped, tag = 'input window, operand 3, single buffered']
    #allocation8 [shape = 's32[1]{0}', space=sflag, size = 0x4, scoped, tag = 'scoped memory for forward.1']
    #allocation10 [shape = 'u32[9]{0}', space=smem, size = 0x24, scoped, tag = 'DMA stride descriptor']
    #allocation12 [shape = 'u32[9]{0}', space=smem, size = 0x24, scoped, tag = 'DMA stride descriptor']
    %10 = vsyncpa [#allocation6], 0
    %11 = vsyncpa [#allocation8], 0
    // Predicated region
    $region2: #{forward.1} parent=1 // pred_check
      _
    $region3: #{forward.1} parent=1 // pred_check_branch
      %13 = sbr.rel (0) target = $region5
    $region4: #{forward.1} parent=1 // pred_region
      _
    $region5: #{forward.1} parent=1 // pred_fallthru
      _
    // Predicated region
    $region6: #{forward.1} parent=1 // pred_check
      _
    $region7: #{forward.1} parent=1 // pred_check_branch
      %15 = sbr.rel (0) target = $region9
    $region8: #{forward.1} parent=1 // pred_region
      %s17 = ssub.s32 512, 512
      %18 = vsyncadd [#allocation6], %s17
      %s19 = sshll.u32 [#allocation5], 4
      %s20 = int_to_ptr.vmem [resolvable:$true] %s19
      %25 = dma.hbm_to_vmem [thread:$0]  %s1, 512, %s20, [#allocation6], 128, 128, 8
    $region9: #{forward.1} parent=1 // pred_fallthru
      _
    // Predicated region
    $region10: #{forward.1} parent=1 // pred_check
      _
    $region11: #{forward.1} parent=1 // pred_check_branch
      %27 = sbr.rel (0) target = $region13
    $region12: #{forward.1} parent=1 // pred_region
      _
    $region13: #{forward.1} parent=1 // pred_fallthru
      _
    // Predicated region
    $region14: #{forward.1} parent=1 // pred_check
      _
    $region15: #{forward.1} parent=1 // pred_check_branch
      %29 = sbr.rel (0) target = $region17
    $region16: #{forward.1} parent=1 // pred_region
      %s31 = ssub.s32 2336, 2336
      %32 = vsyncadd [#allocation8], %s31
      %s34 = sshll.u32 [#allocation7], 4
      %s35 = int_to_ptr.vmem [resolvable:$true] %s34
      %37 = dma.hbm_to_vmem [thread:$0]  %s3, 2336, %s35, [#allocation8]
    $region17: #{forward.1} parent=1 // pred_fallthru
      _
    // Predicated region
    $region18: #{forward.1} parent=1 // pred_check
      _
    $region19: #{forward.1} parent=1 // pred_check_branch
      %39 = sbr.rel (0) target = $region21
    $region20: #{forward.1} parent=1 // pred_region
      %40 = dma.done [#allocation6], 512
    $region21: #{forward.1} parent=1 // pred_fallthru
      _
    // Predicated region
    $region22: #{forward.1} parent=1 // pred_check
      _
    $region23: #{forward.1} parent=1 // pred_check_branch
      %42 = sbr.rel (0) target = $region25
    $region24: #{forward.1} parent=1 // pred_region
      %43 = dma.done [#allocation8], 2336
    $region25: #{forward.1} parent=1 // pred_fallthru
      _
    %s46 = sshll.u32 1, 14
    %s47 = sxor.u32 4294967295, %s46
    %s49 = sld [smem:[#allocation0]]
    %s50 = sadd.s32 2, %s49
    %s52 = sshll.u32 7, 26
    %s53 = sxor.u32 4294967295, %s52
    %s54 = sand.u32 0, %s53
    %s55 = sshll.u32 %s50, 26
    %s56 = sor.u32 %s54, %s55
    %s57 = sshll.u32 [#allocation2], 4
    %s58 = int_to_ptr.vmem [resolvable:$true] %s57
    %61 = sst [smem:[#allocation10]] 9344
    %s62 = scalar_lea.smem [#allocation10], 1
    %63 = sst [smem:[%s62]] 9344
    %s64 = scalar_lea.smem [#allocation10], 2
    %65 = sst [smem:[%s64]] 73
    %s66 = scalar_lea.smem [#allocation10], 3
    %67 = sst [smem:[%s66]] 64
    %s68 = scalar_lea.smem [#allocation10], 4
    %69 = sst [smem:[%s68]] 128
    %s70 = scalar_lea.smem [#allocation10], 5
    %71 = sst [smem:[%s70]] 2
    %s72 = scalar_lea.smem [#allocation10], 6
    %73 = sst [smem:[%s72]] 4672
    %s74 = scalar_lea.smem [#allocation10], 7
    %75 = sst [smem:[%s74]] 64
    %s76 = scalar_lea.smem [#allocation10], 8
    %77 = sst [smem:[%s76]] 4
    %79 = dma.general %s4, 18688, %s58, [#allocation3], [#allocation9], [#allocation10], %s56, 0
    %s80 = scalar_lea.hbm %s4, 18688
    %s81 = scalar_lea.vmem [#allocation2], 1168
    %s82 = scalar_lea.sflag [#allocation3], 1
    %s84 = sshll.u32 1, 14
    %s85 = sxor.u32 4294967295, %s84
    %s87 = sadd.s32 2, %s49
    %s89 = sshll.u32 7, 26
    %s90 = sxor.u32 4294967295, %s89
    %s91 = sand.u32 0, %s90
    %s92 = sshll.u32 %s87, 26
    %s93 = sor.u32 %s91, %s92
    %s94 = sshll.u32 %s81, 4
    %s95 = int_to_ptr.vmem [resolvable:$true] %s94
    %98 = sst [smem:[#allocation12]] 9344
    %s99 = scalar_lea.smem [#allocation12], 1
    %100 = sst [smem:[%s99]] 9344
    %s101 = scalar_lea.smem [#allocation12], 2
    %102 = sst [smem:[%s101]] 73
    %s103 = scalar_lea.smem [#allocation12], 3
    %104 = sst [smem:[%s103]] 64
    %s105 = scalar_lea.smem [#allocation12], 4
    %106 = sst [smem:[%s105]] 128
    %s107 = scalar_lea.smem [#allocation12], 5
    %108 = sst [smem:[%s107]] 2
    %s109 = scalar_lea.smem [#allocation12], 6
    %110 = sst [smem:[%s109]] 4672
    %s111 = scalar_lea.smem [#allocation12], 7
    %112 = sst [smem:[%s111]] 64
    %s113 = scalar_lea.smem [#allocation12], 8
    %114 = sst [smem:[%s113]] 4
    %116 = dma.general %s80, 18688, %s95, %s82, [#allocation11], [#allocation12], %s93, 0
    %v117 = vld [vmem:[#allocation5] sm:$0xff]
    %v118 = vld [vmem:[#allocation5 + $0x8] sm:$0xff]
    %v119 = vld [vmem:[#allocation5 + $0x10] sm:$0xff]
    %v120 = vld [vmem:[#allocation5 + $0x18] sm:$0xff]
    %v121 = vld [vmem:[%s2] sm:$0xff]
    %v122 = vld [vmem:[%s2 + $0x8] sm:$0xff]
    %v123 = vld [vmem:[%s2 + $0x10] sm:$0xff]
    %v124 = vld [vmem:[%s2 + $0x18] sm:$0xff]
    %v125 = vld [vmem:[%s0] sm:$0xff]
    %v126 = vld [vmem:[%s0 + $0x8] sm:$0xff]
    %v127 = vld [vmem:[%s0 + $0x10] sm:$0xff]
    %v128 = vld [vmem:[%s0 + $0x18] sm:$0xff]
    %v129 = vld [vmem:[%s0 + $0x20] sm:$0xff]
    %v130 = vld [vmem:[%s0 + $0x28] sm:$0xff]
    %132 = vset.pattern.permute.xlu0 0
    %133 = vperm.xlu0 %132, %v121
    %v134 = vpop.permute.xlu0 %133
    %137 = vset.pattern.permute.xlu0 0
    %138 = vperm.xlu0 %137, %v122
    %v139 = vpop.permute.xlu0 %138
    %142 = vset.pattern.permute.xlu0 0
    %143 = vperm.xlu0 %142, %v123
    %v144 = vpop.permute.xlu0 %143
    %147 = vset.pattern.permute.xlu0 0
    %148 = vperm.xlu0 %147, %v124
    %v149 = vpop.permute.xlu0 %148
    %vm151 = vcmask 392192
    %v153 = vsel %vm151, %v117, 0
    %v156 = vsel %vm151, %v118, 0
    %v159 = vsel %vm151, %v119, 0
    %v162 = vsel %vm151, %v120, 0
    %164 = vmatprep.subr.mxu0 0.0
    %165 = vmatpush1.msra.mxu0 %v125
    %166 = vmatprep.subr.mxu0 0.0
    %167 = vmatpush1.msra.mxu0 %v126
    %168 = vmatprep.subr.mxu0 0.0
    %169 = vmatpush1.msra.mxu0 %v127
    %170 = vmatprep.subr.mxu0 0.0
    %171 = vmatpush1.msra.mxu0 %v128
    %172 = vmatprep.subr.mxu0 0.0
    %173 = vmatpush1.msra.mxu0 %v129
    %174 = vmatprep.subr.mxu0 0.0
    %175 = vmatpush1.msra.mxu0 %v130
    %176 = vmatprep.subr.mxu0 0.0
    %177 = vmatpush1.msra.mxu0 0.0
    %178 = vmatprep.subr.mxu0 0.0
    %179 = vmatpush1.msra.mxu0 0.0
    %180 = vmatprep.subr.mxu0 0.0
    %181 = vmatpush1.msra.mxu0 0.0
    %182 = vmatprep.subr.mxu0 0.0
    %183 = vmatpush1.msra.mxu0 0.0
    %184 = vmatprep.subr.mxu0 0.0
    %185 = vmatpush1.msra.mxu0 0.0
    %186 = vmatprep.subr.mxu0 0.0
    %187 = vmatpush1.msra.mxu0 0.0
    %188 = vmatprep.subr.mxu0 0.0
    %189 = vmatpush1.msra.mxu0 0.0
    %190 = vmatprep.subr.mxu0 0.0
    %191 = vmatpush1.msra.mxu0 0.0
    %192 = vmatprep.subr.mxu0 0.0
    %193 = vmatpush1.msra.mxu0 0.0
    %194 = vmatprep.subr.mxu0 0.0
    %195 = vmatpush1.msra.mxu0 0.0
    %196 = vmatprep.subr.mxu0 0.0
    %197 = vmatpush1.msra.mxu0 0.0
    %198 = vmatprep.subr.mxu0 0.0
    %199 = vmatpush1.msra.mxu0 0.0
    %200 = vmatprep.subr.mxu0 0.0
    %201 = vmatpush1.msra.mxu0 0.0
    %202 = vmatprep.subr.mxu0 0.0
    %203 = vmatpush1.msra.mxu0 0.0
    %204 = vmatprep.subr.mxu0 0.0
    %205 = vmatpush1.msra.mxu0 0.0
    %206 = vmatprep.subr.mxu0 0.0
    %207 = vmatpush1.msra.mxu0 0.0
    %208 = vmatprep.subr.mxu0 0.0
    %209 = vmatpush1.msra.mxu0 0.0
    %210 = vmatprep.subr.mxu0 0.0
    %211 = vmatpush1.msra.mxu0 0.0
    %212 = vmatprep.subr.mxu0 0.0
    %213 = vmatpush1.msra.mxu0 0.0
    %214 = vmatprep.subr.mxu0 0.0
    %215 = vmatpush1.msra.mxu0 0.0
    %216 = vmatprep.subr.mxu0 0.0
    %217 = vmatpush1.msra.mxu0 0.0
    %218 = vmatprep.subr.mxu0 0.0
    %219 = vmatpush1.msra.mxu0 0.0
    %220 = vmatprep.subr.mxu0 0.0
    %221 = vmatpush1.msra.mxu0 0.0
    %222 = vmatprep.subr.mxu0 0.0
    %223 = vmatpush1.msra.mxu0 0.0
    %224 = vmatprep.subr.mxu0 0.0
    %225 = vmatpush1.msra.mxu0 0.0
    %226 = vmatprep.subr.mxu0 0.0
    %227 = vmatpush1.msra.mxu0 0.0
    %228 = vmatprep.mubr.f32.mxu0 0.0
    %229 = vmatmul.mubr.f32.gmra.mrb[0].mxu0 %v153
    %v230 = vpop.f32.mrb[0].mxu0
    %v231 = vadd.f32 %v134, %v230
    %v232 = vpop.f32.mrb[0].mxu0
    %233 = vmatprep.mubr.f32.mxu0 0.0
    %234 = vmatmul.mubr.f32.gmra.mrb[0].mxu0 %v156
    %v235 = vpop.f32.mrb[0].mxu0
    %v236 = vadd.f32 %v139, %v235
    %v237 = vpop.f32.mrb[0].mxu0
    %238 = vmatprep.mubr.f32.mxu0 0.0
    %239 = vmatmul.mubr.f32.gmra.mrb[0].mxu0 %v159
    %v240 = vpop.f32.mrb[0].mxu0
    %v241 = vadd.f32 %v144, %v240
    %v242 = vpop.f32.mrb[0].mxu0
    %243 = vmatprep.mubr.f32.mxu0 0.0
    %244 = vmatmul.mubr.f32.gmra.mrb[0].mxu0 %v162
    %v245 = vpop.f32.mrb[0].mxu0
    %v246 = vadd.f32 %v149, %v245
    %v247 = vpop.f32.mrb[0].mxu0
    %248 = vdwg.mxu0
    %v249 = vmax.f32 %v231, 0.0
    %v250 = vmax.f32 %v236, 0.0
    %v251 = vmax.f32 %v241, 0.0
    %v252 = vmax.f32 %v246, 0.0
    %vm253 = vcmask 244736
    %v255 = vsel %vm253, %v249, 0
    %v258 = vsel %vm253, %v250, 0
    %v261 = vsel %vm253, %v251, 0
    %v264 = vsel %vm253, %v252, 0
    %266 = vmatprep.subr.mxu0 0.0
    %267 = vmatpush1.xpose.msra.mxu0 %v255
    %268 = vmatprep.subr.mxu0 0.0
    %269 = vmatpush1.xpose.msra.mxu0 %v258
    %270 = vmatprep.subr.mxu0 0.0
    %271 = vmatpush1.xpose.msra.mxu0 %v261
    %272 = vmatprep.subr.mxu0 0.0
    %273 = vmatpush1.xpose.msra.mxu0 %v264
    %274 = vmatprep.subr.mxu0 0.0
    %275 = vmatpush1.xpose.msra.mxu0 0.0
    %276 = vmatprep.subr.mxu0 0.0
    %277 = vmatpush1.xpose.msra.mxu0 0.0
    %278 = vmatprep.subr.mxu0 0.0
    %279 = vmatpush1.xpose.msra.mxu0 0.0
    %280 = vmatprep.subr.mxu0 0.0
    %281 = vmatpush1.xpose.msra.mxu0 0.0
    %282 = vmatprep.subr.mxu0 0.0
    %283 = vmatpush1.xpose.msra.mxu0 0.0
    %284 = vmatprep.subr.mxu0 0.0
    %285 = vmatpush1.xpose.msra.mxu0 0.0
    %286 = vmatprep.subr.mxu0 0.0
    %287 = vmatpush1.xpose.msra.mxu0 0.0
    %288 = vmatprep.subr.mxu0 0.0
    %289 = vmatpush1.xpose.msra.mxu0 0.0
    %290 = vmatprep.subr.mxu0 0.0
    %291 = vmatpush1.xpose.msra.mxu0 0.0
    %292 = vmatprep.subr.mxu0 0.0
    %293 = vmatpush1.xpose.msra.mxu0 0.0
    %294 = vmatprep.subr.mxu0 0.0
    %295 = vmatpush1.xpose.msra.mxu0 0.0
    %296 = vmatprep.subr.mxu0 0.0
    %297 = vmatpush1.xpose.msra.mxu0 0.0
    %298 = vmatprep.subr.mxu0 0.0
    %299 = vmatpush1.xpose.msra.mxu0 0.0
    %300 = vmatprep.subr.mxu0 0.0
    %301 = vmatpush1.xpose.msra.mxu0 0.0
    %302 = vmatprep.subr.mxu0 0.0
    %303 = vmatpush1.xpose.msra.mxu0 0.0
    %304 = vmatprep.subr.mxu0 0.0
    %305 = vmatpush1.xpose.msra.mxu0 0.0
    %306 = vmatprep.subr.mxu0 0.0
    %307 = vmatpush1.xpose.msra.mxu0 0.0
    %308 = vmatprep.subr.mxu0 0.0
    %309 = vmatpush1.xpose.msra.mxu0 0.0
    %310 = vmatprep.subr.mxu0 0.0
    %311 = vmatpush1.xpose.msra.mxu0 0.0
    %312 = vmatprep.subr.mxu0 0.0
    %313 = vmatpush1.xpose.msra.mxu0 0.0
    %314 = vmatprep.subr.mxu0 0.0
    %315 = vmatpush1.xpose.msra.mxu0 0.0
    %316 = vmatprep.subr.mxu0 0.0
    %317 = vmatpush1.xpose.msra.mxu0 0.0
    %318 = vmatprep.subr.mxu0 0.0
    %319 = vmatpush1.xpose.msra.mxu0 0.0
    %320 = vmatprep.subr.mxu0 0.0
    %321 = vmatpush1.xpose.msra.mxu0 0.0
    %322 = vmatprep.subr.mxu0 0.0
    %323 = vmatpush1.xpose.msra.mxu0 0.0
    %324 = vmatprep.subr.mxu0 0.0
    %325 = vmatpush1.xpose.msra.mxu0 0.0
    %326 = vmatprep.subr.mxu0 0.0
    %327 = vmatpush1.xpose.msra.mxu0 0.0
    %328 = vmatprep.subr.mxu0 0.0
    %329 = vmatpush1.xpose.msra.mxu0 0.0
    %330 = vmatprep.mubr.f32.mxu0 0.0
    %331 = vmatmul.mubr.f32.gmra.mrb[0].mxu0 %v255
    %v332 = vpop.f32.mrb[0].mxu0
    %v333 = vadd.f32 0.0, %v332
    %v334 = vpop.f32.mrb[0].mxu0
    %335 = vmatprep.mubr.f32.mxu0 0.0
    %336 = vmatmul.mubr.f32.gmra.mrb[0].mxu0 %v258
    %v337 = vpop.f32.mrb[0].mxu0
    %v338 = vadd.f32 0.0, %v337
    %v339 = vpop.f32.mrb[0].mxu0
    %340 = vmatprep.mubr.f32.mxu0 0.0
    %341 = vmatmul.mubr.f32.gmra.mrb[0].mxu0 %v261
    %v342 = vpop.f32.mrb[0].mxu0
    %v343 = vadd.f32 0.0, %v342
    %v344 = vpop.f32.mrb[0].mxu0
    %345 = vmatprep.mubr.f32.mxu0 0.0
    %346 = vmatmul.mubr.f32.gmra.mrb[0].mxu0 %v264
    %v347 = vpop.f32.mrb[0].mxu0
    %v348 = vadd.f32 0.0, %v347
    %v349 = vpop.f32.mrb[0].mxu0
    %350 = vdwg.mxu0
    %v351 = vmul.f32 %v333, 0.18257418
    %v352 = vmul.f32 %v338, 0.18257418
    %v353 = vmul.f32 %v343, 0.18257418
    %v354 = vmul.f32 %v348, 0.18257418
    %vm355 = vcmask 261120
    %v356 = vsel %vm355, %v351, -inf
    %357 = vmax.xlane.f32.xlu0 %v356
    %v358 = vpop.xlane.xlu0 %357
    %v359 = vsel %vm355, %v352, -inf
    %360 = vmax.xlane.f32.xlu0 %v359
    %v361 = vpop.xlane.xlu0 %360
    %v362 = vsel %vm355, %v353, -inf
    %363 = vmax.xlane.f32.xlu0 %v362
    %v364 = vpop.xlane.xlu0 %363
    %v365 = vsel %vm355, %v354, -inf
    %366 = vmax.xlane.f32.xlu0 %v365
    %v367 = vpop.xlane.xlu0 %366
    %v368 = vsub.f32 %v351, %v358
    %v369 = vsub.f32 %v352, %v361
    %v370 = vsub.f32 %v353, %v364
    %v371 = vsub.f32 %v354, %v367
    %v372 = vmul.f32 %v368, 1.442695
    %v373 = vpow.pop %v372
    %v374 = vmul.f32 %v369, 1.442695
    %v375 = vpow.pop %v374
    %v376 = vmul.f32 %v370, 1.442695
    %v377 = vpow.pop %v376
    %v378 = vmul.f32 %v371, 1.442695
    %v379 = vpow.pop %v378
    %v380 = vsel %vm355, %v373, 0.0
    %381 = vadd.xlane.f32.xlu0 %v380
    %v382 = vpop.xlane.xlu0 %381
    %v383 = vsel %vm355, %v375, 0.0
    %384 = vadd.xlane.f32.xlu0 %v383
    %v385 = vpop.xlane.xlu0 %384
    %v386 = vsel %vm355, %v377, 0.0
    %387 = vadd.xlane.f32.xlu0 %v386
    %v388 = vpop.xlane.xlu0 %387
    %v389 = vsel %vm355, %v379, 0.0
    %390 = vadd.xlane.f32.xlu0 %v389
    %v391 = vpop.xlane.xlu0 %390
    %v392 = vrcp.pop %v382
    %v393 = vrcp.pop %v385
    %v394 = vrcp.pop %v388
    %v395 = vrcp.pop %v391
    %v396 = vmul.f32 %v373, %v392
    %v397 = vmul.f32 %v375, %v393
    %v398 = vmul.f32 %v377, %v394
    %v399 = vmul.f32 %v379, %v395
    %v401 = vsel %vm355, %v396, 0
    %v404 = vsel %vm355, %v397, 0
    %v407 = vsel %vm355, %v398, 0
    %v410 = vsel %vm355, %v399, 0
    %412 = vmatprep.subr.mxu0 0.0
    %413 = vmatpush1.msra.mxu0 %v249
    %414 = vmatprep.subr.mxu0 0.0
    %415 = vmatpush1.msra.mxu0 %v250
    %416 = vmatprep.subr.mxu0 0.0
    %417 = vmatpush1.msra.mxu0 %v251
    %418 = vmatprep.subr.mxu0 0.0
    %419 = vmatpush1.msra.mxu0 %v252
    %420 = vmatprep.subr.mxu0 0.0
    %421 = vmatpush1.msra.mxu0 0.0
    %422 = vmatprep.subr.mxu0 0.0
    %423 = vmatpush1.msra.mxu0 0.0
    %424 = vmatprep.subr.mxu0 0.0
    %425 = vmatpush1.msra.mxu0 0.0
    %426 = vmatprep.subr.mxu0 0.0
    %427 = vmatpush1.msra.mxu0 0.0
    %428 = vmatprep.subr.mxu0 0.0
    %429 = vmatpush1.msra.mxu0 0.0
    %430 = vmatprep.subr.mxu0 0.0
    %431 = vmatpush1.msra.mxu0 0.0
    %432 = vmatprep.subr.mxu0 0.0
    %433 = vmatpush1.msra.mxu0 0.0
    %434 = vmatprep.subr.mxu0 0.0
    %435 = vmatpush1.msra.mxu0 0.0
    %436 = vmatprep.subr.mxu0 0.0
    %437 = vmatpush1.msra.mxu0 0.0
    %438 = vmatprep.subr.mxu0 0.0
    %439 = vmatpush1.msra.mxu0 0.0
    %440 = vmatprep.subr.mxu0 0.0
    %441 = vmatpush1.msra.mxu0 0.0
    %442 = vmatprep.subr.mxu0 0.0
    %443 = vmatpush1.msra.mxu0 0.0
    %444 = vmatprep.subr.mxu0 0.0
    %445 = vmatpush1.msra.mxu0 0.0
    %446 = vmatprep.subr.mxu0 0.0
    %447 = vmatpush1.msra.mxu0 0.0
    %448 = vmatprep.subr.mxu0 0.0
    %449 = vmatpush1.msra.mxu0 0.0
    %450 = vmatprep.subr.mxu0 0.0
    %451 = vmatpush1.msra.mxu0 0.0
    %452 = vmatprep.subr.mxu0 0.0
    %453 = vmatpush1.msra.mxu0 0.0
    %454 = vmatprep.subr.mxu0 0.0
    %455 = vmatpush1.msra.mxu0 0.0
    %456 = vmatprep.subr.mxu0 0.0
    %457 = vmatpush1.msra.mxu0 0.0
    %458 = vmatprep.subr.mxu0 0.0
    %459 = vmatpush1.msra.mxu0 0.0
    %460 = vmatprep.subr.mxu0 0.0
    %461 = vmatpush1.msra.mxu0 0.0
    %462 = vmatprep.subr.mxu0 0.0
    %463 = vmatpush1.msra.mxu0 0.0
    %464 = vmatprep.subr.mxu0 0.0
    %465 = vmatpush1.msra.mxu0 0.0
    %466 = vmatprep.subr.mxu0 0.0
    %467 = vmatpush1.msra.mxu0 0.0
    %468 = vmatprep.subr.mxu0 0.0
    %469 = vmatpush1.msra.mxu0 0.0
    %470 = vmatprep.subr.mxu0 0.0
    %471 = vmatpush1.msra.mxu0 0.0
    %472 = vmatprep.subr.mxu0 0.0
    %473 = vmatpush1.msra.mxu0 0.0
    %474 = vmatprep.subr.mxu0 0.0
    %475 = vmatpush1.msra.mxu0 0.0
    %476 = vmatprep.mubr.f32.mxu0 0.0
    %477 = vmatmul.mubr.f32.gmra.mrb[0].mxu0 %v401
    %v478 = vpop.f32.mrb[0].mxu0
    %v479 = vadd.f32 0.0, %v478
    %v480 = vpop.f32.mrb[0].mxu0
    %481 = vmatprep.mubr.f32.mxu0 0.0
    %482 = vmatmul.mubr.f32.gmra.mrb[0].mxu0 %v404
    %v483 = vpop.f32.mrb[0].mxu0
    %v484 = vadd.f32 0.0, %v483
    %v485 = vpop.f32.mrb[0].mxu0
    %486 = vmatprep.mubr.f32.mxu0 0.0
    %487 = vmatmul.mubr.f32.gmra.mrb[0].mxu0 %v407
    %v488 = vpop.f32.mrb[0].mxu0
    %v489 = vadd.f32 0.0, %v488
    %v490 = vpop.f32.mrb[0].mxu0
    %491 = vmatprep.mubr.f32.mxu0 0.0
    %492 = vmatmul.mubr.f32.gmra.mrb[0].mxu0 %v410
    %v493 = vpop.f32.mrb[0].mxu0
    %v494 = vadd.f32 0.0, %v493
    %v495 = vpop.f32.mrb[0].mxu0
    %496 = vdwg.mxu0
    %v497 = vsel %vm253, %v479, 0.0
    %498 = vadd.xlane.f32.xlu0 %v497
    %v499 = vpop.xlane.xlu0 %498
    %v500 = vsel %vm253, %v484, 0.0
    %501 = vadd.xlane.f32.xlu0 %v500
    %v502 = vpop.xlane.xlu0 %501
    %v503 = vsel %vm253, %v489, 0.0
    %504 = vadd.xlane.f32.xlu0 %v503
    %v505 = vpop.xlane.xlu0 %504
    %v506 = vsel %vm253, %v494, 0.0
    %507 = vadd.xlane.f32.xlu0 %v506
    %v508 = vpop.xlane.xlu0 %507
    %v509 = vrcp.pop 30.0
    %v510 = vmul.f32 %v499, %v509
    %v511 = vmul.f32 %v502, %v509
    %v512 = vmul.f32 %v505, %v509
    %v513 = vmul.f32 %v508, %v509
    %v518 = vlaneseq
    %v519 = vand.u32 %v518, 127
    %v520 = vlaneseq
    %v521 = vshrl.u32 %v520, 7
    %v522 = vsub.s32 %v519, %v521
    %v523 = vrot.slane %v510, %v522
    %v524 = vadd.s32 %v519, 4294967288
    %v525 = vlaneseq
    %v526 = vshrl.u32 %v525, 7
    %v527 = vsub.s32 %v524, %v526
    %v528 = vrot.slane %v511, %v527
    %vm529 = vcmask 130112
    %v530 = vsel %vm529, %v528, %v523
    %v531 = vadd.s32 %v519, 4294967280
    %v532 = vlaneseq
    %v533 = vshrl.u32 %v532, 7
    %v534 = vsub.s32 %v531, %v533
    %v535 = vrot.slane %v512, %v534
    %vm536 = vcmask 195712
    %v537 = vsel %vm536, %v535, %v530
    %v538 = vadd.s32 %v519, 4294967272
    %v539 = vlaneseq
    %v540 = vshrl.u32 %v539, 7
    %v541 = vsub.s32 %v538, %v540
    %v542 = vrot.slane %v513, %v541
    %vm543 = vcmask 261312
    %v544 = vsel %vm543, %v542, %v537
    %vm546 = vcmask 253952
    %547 = vst.msk [vmem:[#allocation4] sm:$0x1] %vm546, %v544
    %s548 = scalar_lea.vmem %s0, 48
    %v549 = vld [vmem:[%s548] sm:$0xff]
    %v550 = vld [vmem:[%s548 + $0x8] sm:$0xff]
    %v551 = vld [vmem:[%s548 + $0x10] sm:$0xff]
    %v552 = vld [vmem:[%s548 + $0x18] sm:$0xff]
    %v553 = vld [vmem:[%s548 + $0x20] sm:$0xff]
    %v554 = vld [vmem:[%s548 + $0x28] sm:$0xff]
    %555 = vmatprep.subr.mxu0 0.0
    %556 = vmatpush1.msra.mxu0 %v549
    %557 = vmatprep.subr.mxu0 0.0
    %558 = vmatpush1.msra.mxu0 %v550
    %559 = vmatprep.subr.mxu0 0.0
    %560 = vmatpush1.msra.mxu0 %v551
    %561 = vmatprep.subr.mxu0 0.0
    %562 = vmatpush1.msra.mxu0 %v552
    %563 = vmatprep.subr.mxu0 0.0
    %564 = vmatpush1.msra.mxu0 %v553
    %565 = vmatprep.subr.mxu0 0.0
    %566 = vmatpush1.msra.mxu0 %v554
    %567 = vmatprep.subr.mxu0 0.0
    %568 = vmatpush1.msra.mxu0 0.0
    %569 = vmatprep.subr.mxu0 0.0
    %570 = vmatpush1.msra.mxu0 0.0
    %571 = vmatprep.subr.mxu0 0.0
    %572 = vmatpush1.msra.mxu0 0.0
    %573 = vmatprep.subr.mxu0 0.0
    %574 = vmatpush1.msra.mxu0 0.0
    %575 = vmatprep.subr.mxu0 0.0
    %576 = vmatpush1.msra.mxu0 0.0
    %577 = vmatprep.subr.mxu0 0.0
    %578 = vmatpush1.msra.mxu0 0.0
    %579 = vmatprep.subr.mxu0 0.0
    %580 = vmatpush1.msra.mxu0 0.0
    %581 = vmatprep.subr.mxu0 0.0
    %582 = vmatpush1.msra.mxu0 0.0
    %583 = vmatprep.subr.mxu0 0.0
    %584 = vmatpush1.msra.mxu0 0.0
    %585 = vmatprep.subr.mxu0 0.0
    %586 = vmatpush1.msra.mxu0 0.0
    %587 = vmatprep.subr.mxu0 0.0
    %588 = vmatpush1.msra.mxu0 0.0
    %589 = vmatprep.subr.mxu0 0.0
    %590 = vmatpush1.msra.mxu0 0.0
    %591 = vmatprep.subr.mxu0 0.0
    %592 = vmatpush1.msra.mxu0 0.0
    %593 = vmatprep.subr.mxu0 0.0
    %594 = vmatpush1.msra.mxu0 0.0
    %595 = vmatprep.subr.mxu0 0.0
    %596 = vmatpush1.msra.mxu0 0.0
    %597 = vmatprep.subr.mxu0 0.0
    %598 = vmatpush1.msra.mxu0 0.0
    %599 = vmatprep.subr.mxu0 0.0
    %600 = vmatpush1.msra.mxu0 0.0
    %601 = vmatprep.subr.mxu0 0.0
    %602 = vmatpush1.msra.mxu0 0.0
    %603 = vmatprep.subr.mxu0 0.0
    %604 = vmatpush1.msra.mxu0 0.0
    %605 = vmatprep.subr.mxu0 0.0
    %606 = vmatpush1.msra.mxu0 0.0
    %607 = vmatprep.subr.mxu0 0.0
    %608 = vmatpush1.msra.mxu0 0.0
    %609 = vmatprep.subr.mxu0 0.0
    %610 = vmatpush1.msra.mxu0 0.0
    %611 = vmatprep.subr.mxu0 0.0
    %612 = vmatpush1.msra.mxu0 0.0
    %613 = vmatprep.subr.mxu0 0.0
    %614 = vmatpush1.msra.mxu0 0.0
    %615 = vmatprep.subr.mxu0 0.0
    %616 = vmatpush1.msra.mxu0 0.0
    %617 = vmatprep.subr.mxu0 0.0
    %618 = vmatpush1.msra.mxu0 0.0
    %619 = vmatprep.mubr.f32.mxu0 0.0
    %620 = vmatmul.mubr.f32.gmra.mrb[0].mxu0 %v153
    %v621 = vpop.f32.mrb[0].mxu0
    %v622 = vadd.f32 %v134, %v621
    %v623 = vpop.f32.mrb[0].mxu0
    %624 = vmatprep.mubr.f32.mxu0 0.0
    %625 = vmatmul.mubr.f32.gmra.mrb[0].mxu0 %v156
    %v626 = vpop.f32.mrb[0].mxu0
    %v627 = vadd.f32 %v139, %v626
    %v628 = vpop.f32.mrb[0].mxu0
    %629 = vmatprep.mubr.f32.mxu0 0.0
    %630 = vmatmul.mubr.f32.gmra.mrb[0].mxu0 %v159
    %v631 = vpop.f32.mrb[0].mxu0
    %v632 = vadd.f32 %v144, %v631
    %v633 = vpop.f32.mrb[0].mxu0
    %634 = vmatprep.mubr.f32.mxu0 0.0
    %635 = vmatmul.mubr.f32.gmra.mrb[0].mxu0 %v162
    %v636 = vpop.f32.mrb[0].mxu0
    %v637 = vadd.f32 %v149, %v636
    %v638 = vpop.f32.mrb[0].mxu0
    %639 = vdwg.mxu0
    %v640 = vmax.f32 %v622, 0.0
    %v641 = vmax.f32 %v627, 0.0
    %v642 = vmax.f32 %v632, 0.0
    %v643 = vmax.f32 %v637, 0.0
    %v645 = vsel %vm253, %v640, 0
    %v648 = vsel %vm253, %v641, 0
    %v651 = vsel %vm253, %v642, 0
    %v654 = vsel %vm253, %v643, 0
    %656 = vmatprep.subr.mxu0 0.0
    %657 = vmatpush1.xpose.msra.mxu0 %v645
    %658 = vmatprep.subr.mxu0 0.0
    %659 = vmatpush1.xpose.msra.mxu0 %v648
    %660 = vmatprep.subr.mxu0 0.0
    %661 = vmatpush1.xpose.msra.mxu0 %v651
    %662 = vmatprep.subr.mxu0 0.0
    %663 = vmatpush1.xpose.msra.mxu0 %v654
    %664 = vmatprep.subr.mxu0 0.0
    %665 = vmatpush1.xpose.msra.mxu0 0.0
    %666 = vmatprep.subr.mxu0 0.0
    %667 = vmatpush1.xpose.msra.mxu0 0.0
    %668 = vmatprep.subr.mxu0 0.0
    %669 = vmatpush1.xpose.msra.mxu0 0.0
    %670 = vmatprep.subr.mxu0 0.0
    %671 = vmatpush1.xpose.msra.mxu0 0.0
    %672 = vmatprep.subr.mxu0 0.0
    %673 = vmatpush1.xpose.msra.mxu0 0.0
    %674 = vmatprep.subr.mxu0 0.0
    %675 = vmatpush1.xpose.msra.mxu0 0.0
    %676 = vmatprep.subr.mxu0 0.0
    %677 = vmatpush1.xpose.msra.mxu0 0.0
    %678 = vmatprep.subr.mxu0 0.0
    %679 = vmatpush1.xpose.msra.mxu0 0.0
    %680 = vmatprep.subr.mxu0 0.0
    %681 = vmatpush1.xpose.msra.mxu0 0.0
    %682 = vmatprep.subr.mxu0 0.0
    %683 = vmatpush1.xpose.msra.mxu0 0.0
    %684 = vmatprep.subr.mxu0 0.0
    %685 = vmatpush1.xpose.msra.mxu0 0.0
    %686 = vmatprep.subr.mxu0 0.0
    %687 = vmatpush1.xpose.msra.mxu0 0.0
    %688 = vmatprep.subr.mxu0 0.0
    %689 = vmatpush1.xpose.msra.mxu0 0.0
    %690 = vmatprep.subr.mxu0 0.0
    %691 = vmatpush1.xpose.msra.mxu0 0.0
    %692 = vmatprep.subr.mxu0 0.0
    %693 = vmatpush1.xpose.msra.mxu0 0.0
    %694 = vmatprep.subr.mxu0 0.0
    %695 = vmatpush1.xpose.msra.mxu0 0.0
    %696 = vmatprep.subr.mxu0 0.0
    %697 = vmatpush1.xpose.msra.mxu0 0.0
    %698 = vmatprep.subr.mxu0 0.0
    %699 = vmatpush1.xpose.msra.mxu0 0.0
    %700 = vmatprep.subr.mxu0 0.0
    %701 = vmatpush1.xpose.msra.mxu0 0.0
    %702 = vmatprep.subr.mxu0 0.0
    %703 = vmatpush1.xpose.msra.mxu0 0.0
    %704 = vmatprep.subr.mxu0 0.0
    %705 = vmatpush1.xpose.msra.mxu0 0.0
    %706 = vmatprep.subr.mxu0 0.0
    %707 = vmatpush1.xpose.msra.mxu0 0.0
    %708 = vmatprep.subr.mxu0 0.0
    %709 = vmatpush1.xpose.msra.mxu0 0.0
    %710 = vmatprep.subr.mxu0 0.0
    %711 = vmatpush1.xpose.msra.mxu0 0.0
    %712 = vmatprep.subr.mxu0 0.0
    %713 = vmatpush1.xpose.msra.mxu0 0.0
    %714 = vmatprep.subr.mxu0 0.0
    %715 = vmatpush1.xpose.msra.mxu0 0.0
    %716 = vmatprep.subr.mxu0 0.0
    %717 = vmatpush1.xpose.msra.mxu0 0.0
    %718 = vmatprep.subr.mxu0 0.0
    %719 = vmatpush1.xpose.msra.mxu0 0.0
    %720 = vmatprep.mubr.f32.mxu0 0.0
    %721 = vmatmul.mubr.f32.gmra.mrb[0].mxu0 %v645
    %v722 = vpop.f32.mrb[0].mxu0
    %v723 = vadd.f32 0.0, %v722
    %v724 = vpop.f32.mrb[0].mxu0
    %725 = vmatprep.mubr.f32.mxu0 0.0
    %726 = vmatmul.mubr.f32.gmra.mrb[0].mxu0 %v648
    %v727 = vpop.f32.mrb[0].mxu0
    %v728 = vadd.f32 0.0, %v727
    %v729 = vpop.f32.mrb[0].mxu0
    %730 = vmatprep.mubr.f32.mxu0 0.0
    %731 = vmatmul.mubr.f32.gmra.mrb[0].mxu0 %v651
    %v732 = vpop.f32.mrb[0].mxu0
    %v733 = vadd.f32 0.0, %v732
    %v734 = vpop.f32.mrb[0].mxu0
    %735 = vmatprep.mubr.f32.mxu0 0.0
    %736 = vmatmul.mubr.f32.gmra.mrb[0].mxu0 %v654
    %v737 = vpop.f32.mrb[0].mxu0
    %v738 = vadd.f32 0.0, %v737
    %v739 = vpop.f32.mrb[0].mxu0
    %740 = vdwg.mxu0
    %v741 = vmul.f32 %v723, 0.18257418
    %v742 = vmul.f32 %v728, 0.18257418
    %v743 = vmul.f32 %v733, 0.18257418
    %v744 = vmul.f32 %v738, 0.18257418
    %v745 = vsel %vm355, %v741, -inf
    %746 = vmax.xlane.f32.xlu0 %v745
    %v747 = vpop.xlane.xlu0 %746
    %v748 = vsel %vm355, %v742, -inf
    %749 = vmax.xlane.f32.xlu0 %v748
    %v750 = vpop.xlane.xlu0 %749
    %v751 = vsel %vm355, %v743, -inf
    %752 = vmax.xlane.f32.xlu0 %v751
    %v753 = vpop.xlane.xlu0 %752
    %v754 = vsel %vm355, %v744, -inf
    %755 = vmax.xlane.f32.xlu0 %v754
    %v756 = vpop.xlane.xlu0 %755
    %v757 = vsub.f32 %v741, %v747
    %v758 = vsub.f32 %v742, %v750
    %v759 = vsub.f32 %v743, %v753
    %v760 = vsub.f32 %v744, %v756
    %v761 = vmul.f32 %v757, 1.442695
    %v762 = vpow.pop %v761
    %v763 = vmul.f32 %v758, 1.442695
    %v764 = vpow.pop %v763
    %v765 = vmul.f32 %v759, 1.442695
    %v766 = vpow.pop %v765
    %v767 = vmul.f32 %v760, 1.442695
    %v768 = vpow.pop %v767
    %v769 = vsel %vm355, %v762, 0.0
    %770 = vadd.xlane.f32.xlu0 %v769
    %v771 = vpop.xlane.xlu0 %770
    %v772 = vsel %vm355, %v764, 0.0
    %773 = vadd.xlane.f32.xlu0 %v772
    %v774 = vpop.xlane.xlu0 %773
    %v775 = vsel %vm355, %v766, 0.0
    %776 = vadd.xlane.f32.xlu0 %v775
    %v777 = vpop.xlane.xlu0 %776
    %v778 = vsel %vm355, %v768, 0.0
    %779 = vadd.xlane.f32.xlu0 %v778
    %v780 = vpop.xlane.xlu0 %779
    %v781 = vrcp.pop %v771
    %v782 = vrcp.pop %v774
    %v783 = vrcp.pop %v777
    %v784 = vrcp.pop %v780
    %v785 = vmul.f32 %v762, %v781
    %v786 = vmul.f32 %v764, %v782
    %v787 = vmul.f32 %v766, %v783
    %v788 = vmul.f32 %v768, %v784
    %v790 = vsel %vm355, %v785, 0
    %v793 = vsel %vm355, %v786, 0
    %v796 = vsel %vm355, %v787, 0
    %v799 = vsel %vm355, %v788, 0
    %801 = vmatprep.subr.mxu0 0.0
    %802 = vmatpush1.msra.mxu0 %v640
    %803 = vmatprep.subr.mxu0 0.0
    %804 = vmatpush1.msra.mxu0 %v641
    %805 = vmatprep.subr.mxu0 0.0
    %806 = vmatpush1.msra.mxu0 %v642
    %807 = vmatprep.subr.mxu0 0.0
    %808 = vmatpush1.msra.mxu0 %v643
    %809 = vmatprep.subr.mxu0 0.0
    %810 = vmatpush1.msra.mxu0 0.0
    %811 = vmatprep.subr.mxu0 0.0
    %812 = vmatpush1.msra.mxu0 0.0
    %813 = vmatprep.subr.mxu0 0.0
    %814 = vmatpush1.msra.mxu0 0.0
    %815 = vmatprep.subr.mxu0 0.0
    %816 = vmatpush1.msra.mxu0 0.0
    %817 = vmatprep.subr.mxu0 0.0
    %818 = vmatpush1.msra.mxu0 0.0
    %819 = vmatprep.subr.mxu0 0.0
    %820 = vmatpush1.msra.mxu0 0.0
    %821 = vmatprep.subr.mxu0 0.0
    %822 = vmatpush1.msra.mxu0 0.0
    %823 = vmatprep.subr.mxu0 0.0
    %824 = vmatpush1.msra.mxu0 0.0
    %825 = vmatprep.subr.mxu0 0.0
    %826 = vmatpush1.msra.mxu0 0.0
    %827 = vmatprep.subr.mxu0 0.0
    %828 = vmatpush1.msra.mxu0 0.0
    %829 = vmatprep.subr.mxu0 0.0
    %830 = vmatpush1.msra.mxu0 0.0
    %831 = vmatprep.subr.mxu0 0.0
    %832 = vmatpush1.msra.mxu0 0.0
    %833 = vmatprep.subr.mxu0 0.0
    %834 = vmatpush1.msra.mxu0 0.0
    %835 = vmatprep.subr.mxu0 0.0
    %836 = vmatpush1.msra.mxu0 0.0
    %837 = vmatprep.subr.mxu0 0.0
    %838 = vmatpush1.msra.mxu0 0.0
    %839 = vmatprep.subr.mxu0 0.0
    %840 = vmatpush1.msra.mxu0 0.0
    %841 = vmatprep.subr.mxu0 0.0
    %842 = vmatpush1.msra.mxu0 0.0
    %843 = vmatprep.subr.mxu0 0.0
    %844 = vmatpush1.msra.mxu0 0.0
    %845 = vmatprep.subr.mxu0 0.0
    %846 = vmatpush1.msra.mxu0 0.0
    %847 = vmatprep.subr.mxu0 0.0
    %848 = vmatpush1.msra.mxu0 0.0
    %849 = vmatprep.subr.mxu0 0.0
    %850 = vmatpush1.msra.mxu0 0.0
    %851 = vmatprep.subr.mxu0 0.0
    %852 = vmatpush1.msra.mxu0 0.0
    %853 = vmatprep.subr.mxu0 0.0
    %854 = vmatpush1.msra.mxu0 0.0
    %855 = vmatprep.subr.mxu0 0.0
    %856 = vmatpush1.msra.mxu0 0.0
    %857 = vmatprep.subr.mxu0 0.0
    %858 = vmatpush1.msra.mxu0 0.0
    %859 = vmatprep.subr.mxu0 0.0
    %860 = vmatpush1.msra.mxu0 0.0
    %861 = vmatprep.subr.mxu0 0.0
    %862 = vmatpush1.msra.mxu0 0.0
    %863 = vmatprep.subr.mxu0 0.0
    %864 = vmatpush1.msra.mxu0 0.0
    %865 = vmatprep.mubr.f32.mxu0 0.0
    %866 = vmatmul.mubr.f32.gmra.mrb[0].mxu0 %v790
    %v867 = vpop.f32.mrb[0].mxu0
    %v868 = vadd.f32 0.0, %v867
    %v869 = vpop.f32.mrb[0].mxu0
    %870 = vmatprep.mubr.f32.mxu0 0.0
    %871 = vmatmul.mubr.f32.gmra.mrb[0].mxu0 %v793
    %v872 = vpop.f32.mrb[0].mxu0
    %v873 = vadd.f32 0.0, %v872
    %v874 = vpop.f32.mrb[0].mxu0
    %875 = vmatprep.mubr.f32.mxu0 0.0
    %876 = vmatmul.mubr.f32.gmra.mrb[0].mxu0 %v796
    %v877 = vpop.f32.mrb[0].mxu0
    %v878 = vadd.f32 0.0, %v877
    %v879 = vpop.f32.mrb[0].mxu0
    %880 = vmatprep.mubr.f32.mxu0 0.0
    %881 = vmatmul.mubr.f32.gmra.mrb[0].mxu0 %v799
    %v882 = vpop.f32.mrb[0].mxu0
    %v883 = vadd.f32 0.0, %v882
    %v884 = vpop.f32.mrb[0].mxu0
    %885 = vdwg.mxu0
    %v886 = vsel %vm253, %v868, 0.0
    %887 = vadd.xlane.f32.xlu0 %v886
    %v888 = vpop.xlane.xlu0 %887
    %v889 = vsel %vm253, %v873, 0.0
    %890 = vadd.xlane.f32.xlu0 %v889
    %v891 = vpop.xlane.xlu0 %890
    %v892 = vsel %vm253, %v878, 0.0
    %893 = vadd.xlane.f32.xlu0 %v892
    %v894 = vpop.xlane.xlu0 %893
    %v895 = vsel %vm253, %v883, 0.0
    %896 = vadd.xlane.f32.xlu0 %v895
    %v897 = vpop.xlane.xlu0 %896
    %v898 = vmul.f32 %v888, %v509
    %v899 = vmul.f32 %v891, %v509
    %v900 = vmul.f32 %v894, %v509
    %v901 = vmul.f32 %v897, %v509
    %v906 = vlaneseq
    %v907 = vshrl.u32 %v906, 7
    %v908 = vsub.s32 %v519, %v907
    %v909 = vrot.slane %v898, %v908
    %v910 = vlaneseq
    %v911 = vshrl.u32 %v910, 7
    %v912 = vsub.s32 %v524, %v911
    %v913 = vrot.slane %v899, %v912
    %v914 = vsel %vm529, %v913, %v909
    %v915 = vlaneseq
    %v916 = vshrl.u32 %v915, 7
    %v917 = vsub.s32 %v531, %v916
    %v918 = vrot.slane %v900, %v917
    %v919 = vsel %vm536, %v918, %v914
    %v920 = vlaneseq
    %v921 = vshrl.u32 %v920, 7
    %v922 = vsub.s32 %v538, %v921
    %v923 = vrot.slane %v901, %v922
    %v924 = vsel %vm543, %v923, %v919
    %926 = vst.msk [vmem:[#allocation4 + $0x1] sm:$0x1] %vm546, %v924
    %v927 = vld [vmem:[#allocation4] sm:$0x3]
    %v928 = vpack.c.bf16 %v927, %v927
    %s929 = smul.u32 4, 4
    %s930 = smul.u32 %s929, 73
    %s931 = sshll.u32 %s930, 4
    %932 = dma.done [#allocation3], %s931
    %v933 = vld [vmem:[#allocation2] sm:$0xff]
    %v934 = vld [vmem:[#allocation2 + $0x8] sm:$0xff]
    %v935 = vld [vmem:[#allocation2 + $0x10] sm:$0xff]
    %v936 = vld [vmem:[#allocation2 + $0x18] sm:$0xff]
    %v937 = vld [vmem:[#allocation2 + $0x20] sm:$0xff]
    %v938 = vld [vmem:[#allocation2 + $0x28] sm:$0xff]
    %v939 = vld [vmem:[#allocation2 + $0x30] sm:$0xff]
    %v940 = vld [vmem:[#allocation2 + $0x38] sm:$0xff]
    %v941 = vld [vmem:[#allocation2 + $0x40] sm:$0xff]
    %v942 = vld [vmem:[#allocation2 + $0x48] sm:$0xff]
    %v943 = vld [vmem:[#allocation2 + $0x50] sm:$0xff]
    %v944 = vld [vmem:[#allocation2 + $0x58] sm:$0xff]
    %v945 = vld [vmem:[#allocation2 + $0x60] sm:$0xff]
    %v946 = vld [vmem:[#allocation2 + $0x68] sm:$0xff]
    %v947 = vld [vmem:[#allocation2 + $0x70] sm:$0xff]
    %v948 = vld [vmem:[#allocation2 + $0x78] sm:$0xff]
    %v949 = vld [vmem:[#allocation2 + $0x80] sm:$0xff]
    %v950 = vld [vmem:[#allocation2 + $0x88] sm:$0xff]
    %v951 = vld [vmem:[#allocation2 + $0x90] sm:$0xff]
    %v952 = vld [vmem:[#allocation2 + $0x98] sm:$0xff]
    %v953 = vld [vmem:[#allocation2 + $0xa0] sm:$0xff]
    %v954 = vld [vmem:[#allocation2 + $0xa8] sm:$0xff]
    %v955 = vld [vmem:[#allocation2 + $0xb0] sm:$0xff]
    %v956 = vld [vmem:[#allocation2 + $0xb8] sm:$0xff]
    %v957 = vld [vmem:[#allocation2 + $0xc0] sm:$0xff]
    %v958 = vld [vmem:[#allocation2 + $0xc8] sm:$0xff]
    %v959 = vld [vmem:[#allocation2 + $0xd0] sm:$0xff]
    %v960 = vld [vmem:[#allocation2 + $0xd8] sm:$0xff]
    %v961 = vld [vmem:[#allocation2 + $0xe0] sm:$0xff]
    %v962 = vld [vmem:[#allocation2 + $0xe8] sm:$0xff]
    %v963 = vld [vmem:[#allocation2 + $0xf0] sm:$0xff]
    %v964 = vld [vmem:[#allocation2 + $0xf8] sm:$0xff]
    %v965 = vld [vmem:[#allocation2 + $0x100] sm:$0xff]
    %v966 = vld [vmem:[#allocation2 + $0x108] sm:$0xff]
    %v967 = vld [vmem:[#allocation2 + $0x110] sm:$0xff]
    %v968 = vld [vmem:[#allocation2 + $0x118] sm:$0xff]
    %v969 = vld [vmem:[#allocation2 + $0x120] sm:$0xff]
    %v970 = vld [vmem:[#allocation2 + $0x128] sm:$0xff]
    %v971 = vld [vmem:[#allocation2 + $0x130] sm:$0xff]
    %v972 = vld [vmem:[#allocation2 + $0x138] sm:$0xff]
    %v973 = vld [vmem:[#allocation2 + $0x140] sm:$0xff]
    %v974 = vld [vmem:[#allocation2 + $0x148] sm:$0xff]
    %v975 = vld [vmem:[#allocation2 + $0x150] sm:$0xff]
    %v976 = vld [vmem:[#allocation2 + $0x158] sm:$0xff]
    %v977 = vld [vmem:[#allocation2 + $0x160] sm:$0xff]
    %v978 = vld [vmem:[#allocation2 + $0x168] sm:$0xff]
    %v979 = vld [vmem:[#allocation2 + $0x170] sm:$0xff]
    %v980 = vld [vmem:[#allocation2 + $0x178] sm:$0xff]
    %v981 = vld [vmem:[#allocation2 + $0x180] sm:$0xff]
    %v982 = vld [vmem:[#allocation2 + $0x188] sm:$0xff]
    %v983 = vld [vmem:[#allocation2 + $0x190] sm:$0xff]
    %v984 = vld [vmem:[#allocation2 + $0x198] sm:$0xff]
    %v985 = vld [vmem:[#allocation2 + $0x1a0] sm:$0xff]
    %v986 = vld [vmem:[#allocation2 + $0x1a8] sm:$0xff]
    %v987 = vld [vmem:[#allocation2 + $0x1b0] sm:$0xff]
    %v988 = vld [vmem:[#allocation2 + $0x1b8] sm:$0xff]
    %v989 = vld [vmem:[#allocation2 + $0x1c0] sm:$0xff]
    %v990 = vld [vmem:[#allocation2 + $0x1c8] sm:$0xff]
    %v991 = vld [vmem:[#allocation2 + $0x1d0] sm:$0xff]
    %v992 = vld [vmem:[#allocation2 + $0x1d8] sm:$0xff]
    %v993 = vld [vmem:[#allocation2 + $0x1e0] sm:$0xff]
    %v994 = vld [vmem:[#allocation2 + $0x1e8] sm:$0xff]
    %v995 = vld [vmem:[#allocation2 + $0x1f0] sm:$0xff]
    %v996 = vld [vmem:[#allocation2 + $0x1f8] sm:$0xff]
    %v997 = vld [vmem:[#allocation2 + $0x200] sm:$0xff]
    %v998 = vld [vmem:[#allocation2 + $0x208] sm:$0xff]
    %v999 = vld [vmem:[#allocation2 + $0x210] sm:$0xff]
    %v1000 = vld [vmem:[#allocation2 + $0x218] sm:$0xff]
    %v1001 = vld [vmem:[#allocation2 + $0x220] sm:$0xff]
    %v1002 = vld [vmem:[#allocation2 + $0x228] sm:$0xff]
    %v1003 = vld [vmem:[#allocation2 + $0x230] sm:$0xff]
    %v1004 = vld [vmem:[#allocation2 + $0x238] sm:$0xff]
    %v1005 = vld [vmem:[#allocation2 + $0x240] sm:$0xff]
    %v1006 = vld [vmem:[#allocation2 + $0x248] sm:$0xff]
    %v1007 = vld [vmem:[#allocation2 + $0x250] sm:$0xff]
    %v1008 = vld [vmem:[#allocation2 + $0x258] sm:$0xff]
    %v1009 = vld [vmem:[#allocation2 + $0x260] sm:$0xff]
    %v1010 = vld [vmem:[#allocation2 + $0x268] sm:$0xff]
    %v1011 = vld [vmem:[#allocation2 + $0x270] sm:$0xff]
    %v1012 = vld [vmem:[#allocation2 + $0x278] sm:$0xff]
    %v1013 = vld [vmem:[#allocation2 + $0x280] sm:$0xff]
    %v1014 = vld [vmem:[#allocation2 + $0x288] sm:$0xff]
    %v1015 = vld [vmem:[#allocation2 + $0x290] sm:$0xff]
    %v1016 = vld [vmem:[#allocation2 + $0x298] sm:$0xff]
    %v1017 = vld [vmem:[#allocation2 + $0x2a0] sm:$0xff]
    %v1018 = vld [vmem:[#allocation2 + $0x2a8] sm:$0xff]
    %v1019 = vld [vmem:[#allocation2 + $0x2b0] sm:$0xff]
    %v1020 = vld [vmem:[#allocation2 + $0x2b8] sm:$0xff]
    %v1021 = vld [vmem:[#allocation2 + $0x2c0] sm:$0xff]
    %v1022 = vld [vmem:[#allocation2 + $0x2c8] sm:$0xff]
    %v1023 = vld [vmem:[#allocation2 + $0x2d0] sm:$0xff]
    %v1024 = vld [vmem:[#allocation2 + $0x2d8] sm:$0xff]
    %v1025 = vld [vmem:[#allocation2 + $0x2e0] sm:$0xff]
    %v1026 = vld [vmem:[#allocation2 + $0x2e8] sm:$0xff]
    %v1027 = vld [vmem:[#allocation2 + $0x2f0] sm:$0xff]
    %v1028 = vld [vmem:[#allocation2 + $0x2f8] sm:$0xff]
    %v1029 = vld [vmem:[#allocation2 + $0x300] sm:$0xff]
    %v1030 = vld [vmem:[#allocation2 + $0x308] sm:$0xff]
    %v1031 = vld [vmem:[#allocation2 + $0x310] sm:$0xff]
    %v1032 = vld [vmem:[#allocation2 + $0x318] sm:$0xff]
    %v1033 = vld [vmem:[#allocation2 + $0x320] sm:$0xff]
    %v1034 = vld [vmem:[#allocation2 + $0x328] sm:$0xff]
    %v1035 = vld [vmem:[#allocation2 + $0x330] sm:$0xff]
    %v1036 = vld [vmem:[#allocation2 + $0x338] sm:$0xff]
    %v1037 = vld [vmem:[#allocation2 + $0x340] sm:$0xff]
    %v1038 = vld [vmem:[#allocation2 + $0x348] sm:$0xff]
    %v1039 = vld [vmem:[#allocation2 + $0x350] sm:$0xff]
    %v1040 = vld [vmem:[#allocation2 + $0x358] sm:$0xff]
    %v1041 = vld [vmem:[#allocation2 + $0x360] sm:$0xff]
    %v1042 = vld [vmem:[#allocation2 + $0x368] sm:$0xff]
    %v1043 = vld [vmem:[#allocation2 + $0x370] sm:$0xff]
    %v1044 = vld [vmem:[#allocation2 + $0x378] sm:$0xff]
    %v1045 = vld [vmem:[#allocation2 + $0x380] sm:$0xff]
    %v1046 = vld [vmem:[#allocation2 + $0x388] sm:$0xff]
    %v1047 = vld [vmem:[#allocation2 + $0x390] sm:$0xff]
    %v1048 = vld [vmem:[#allocation2 + $0x398] sm:$0xff]
    %v1049 = vld [vmem:[#allocation2 + $0x3a0] sm:$0xff]
    %v1050 = vld [vmem:[#allocation2 + $0x3a8] sm:$0xff]
    %v1051 = vld [vmem:[#allocation2 + $0x3b0] sm:$0xff]
    %v1052 = vld [vmem:[#allocation2 + $0x3b8] sm:$0xff]
    %v1053 = vld [vmem:[#allocation2 + $0x3c0] sm:$0xff]
    %v1054 = vld [vmem:[#allocation2 + $0x3c8] sm:$0xff]
    %v1055 = vld [vmem:[#allocation2 + $0x3d0] sm:$0xff]
    %v1056 = vld [vmem:[#allocation2 + $0x3d8] sm:$0xff]
    %v1057 = vld [vmem:[#allocation2 + $0x3e0] sm:$0xff]
    %v1058 = vld [vmem:[#allocation2 + $0x3e8] sm:$0xff]
    %v1059 = vld [vmem:[#allocation2 + $0x3f0] sm:$0xff]
    %v1060 = vld [vmem:[#allocation2 + $0x3f8] sm:$0xff]
    %v1061 = vld [vmem:[#allocation2 + $0x400] sm:$0xff]
    %v1062 = vld [vmem:[#allocation2 + $0x408] sm:$0xff]
    %v1063 = vld [vmem:[#allocation2 + $0x410] sm:$0xff]
    %v1064 = vld [vmem:[#allocation2 + $0x418] sm:$0xff]
    %v1065 = vld [vmem:[#allocation2 + $0x420] sm:$0xff]
    %v1066 = vld [vmem:[#allocation2 + $0x428] sm:$0xff]
    %v1067 = vld [vmem:[#allocation2 + $0x430] sm:$0xff]
    %v1068 = vld [vmem:[#allocation2 + $0x438] sm:$0xff]
    %v1069 = vld [vmem:[#allocation2 + $0x440] sm:$0xff]
    %v1070 = vld [vmem:[#allocation2 + $0x448] sm:$0xff]
    %v1071 = vld [vmem:[#allocation2 + $0x450] sm:$0xff]
    %v1072 = vld [vmem:[#allocation2 + $0x458] sm:$0xff]
    %v1073 = vld [vmem:[#allocation2 + $0x460] sm:$0xff]
    %v1074 = vld [vmem:[#allocation2 + $0x468] sm:$0xff]
    %v1075 = vld [vmem:[#allocation2 + $0x470] sm:$0xff]
    %v1076 = vld [vmem:[#allocation2 + $0x478] sm:$0xff]
    %v1077 = vld [vmem:[#allocation2 + $0x480] sm:$0xff]
    %v1078 = vld [vmem:[#allocation2 + $0x488] sm:$0xff]
    %v1079 = vld [vmem:[#allocation7] sm:$0xff]
    %v1080 = vld [vmem:[#allocation7 + $0x8] sm:$0xff]
    %v1081 = vld [vmem:[#allocation7 + $0x10] sm:$0xff]
    %v1082 = vld [vmem:[#allocation7 + $0x18] sm:$0xff]
    %v1083 = vld [vmem:[#allocation7 + $0x20] sm:$0xff]
    %v1084 = vld [vmem:[#allocation7 + $0x28] sm:$0xff]
    %v1085 = vld [vmem:[#allocation7 + $0x30] sm:$0xff]
    %v1086 = vld [vmem:[#allocation7 + $0x38] sm:$0xff]
    %v1087 = vld [vmem:[#allocation7 + $0x40] sm:$0xff]
    %v1088 = vld [vmem:[#allocation7 + $0x48] sm:$0x1]
    %v1099 = vlaneseq
    %v1100 = vshrl.u32 %v1099, 7
    %v1101 = vsub.s32 0, %v1100
    %v1102 = vrot.slane %v1079, %v1101
    %v1103 = vlaneseq
    %v1104 = vshrl.u32 %v1103, 7
    %v1105 = vsub.s32 1, %v1104
    %v1106 = vrot.slane %v1079, %v1105
    %v1107 = vlaneseq
    %v1108 = vshrl.u32 %v1107, 7
    %v1109 = vsub.s32 2, %v1108
    %v1110 = vrot.slane %v1079, %v1109
    %v1111 = vlaneseq
    %v1112 = vshrl.u32 %v1111, 7
    %v1113 = vsub.s32 3, %v1112
    %v1114 = vrot.slane %v1079, %v1113
    %v1115 = vlaneseq
    %v1116 = vshrl.u32 %v1115, 7
    %v1117 = vsub.s32 4, %v1116
    %v1118 = vrot.slane %v1079, %v1117
    %v1119 = vlaneseq
    %v1120 = vshrl.u32 %v1119, 7
    %v1121 = vsub.s32 5, %v1120
    %v1122 = vrot.slane %v1079, %v1121
    %v1123 = vlaneseq
    %v1124 = vshrl.u32 %v1123, 7
    %v1125 = vsub.s32 6, %v1124
    %v1126 = vrot.slane %v1079, %v1125
    %v1127 = vlaneseq
    %v1128 = vshrl.u32 %v1127, 7
    %v1129 = vsub.s32 7, %v1128
    %v1130 = vrot.slane %v1079, %v1129
    %v1131 = vlaneseq
    %v1132 = vshrl.u32 %v1131, 7
    %v1133 = vsub.s32 0, %v1132
    %v1134 = vrot.slane %v1080, %v1133
    %v1135 = vlaneseq
    %v1136 = vshrl.u32 %v1135, 7
    %v1137 = vsub.s32 1, %v1136
    %v1138 = vrot.slane %v1080, %v1137
    %v1139 = vlaneseq
    %v1140 = vshrl.u32 %v1139, 7
    %v1141 = vsub.s32 2, %v1140
    %v1142 = vrot.slane %v1080, %v1141
    %v1143 = vlaneseq
    %v1144 = vshrl.u32 %v1143, 7
    %v1145 = vsub.s32 3, %v1144
    %v1146 = vrot.slane %v1080, %v1145
    %v1147 = vlaneseq
    %v1148 = vshrl.u32 %v1147, 7
    %v1149 = vsub.s32 4, %v1148
    %v1150 = vrot.slane %v1080, %v1149
    %v1151 = vlaneseq
    %v1152 = vshrl.u32 %v1151, 7
    %v1153 = vsub.s32 5, %v1152
    %v1154 = vrot.slane %v1080, %v1153
    %v1155 = vlaneseq
    %v1156 = vshrl.u32 %v1155, 7
    %v1157 = vsub.s32 6, %v1156
    %v1158 = vrot.slane %v1080, %v1157
    %v1159 = vlaneseq
    %v1160 = vshrl.u32 %v1159, 7
    %v1161 = vsub.s32 7, %v1160
    %v1162 = vrot.slane %v1080, %v1161
    %v1163 = vlaneseq
    %v1164 = vshrl.u32 %v1163, 7
    %v1165 = vsub.s32 0, %v1164
    %v1166 = vrot.slane %v1081, %v1165
    %v1167 = vlaneseq
    %v1168 = vshrl.u32 %v1167, 7
    %v1169 = vsub.s32 1, %v1168
    %v1170 = vrot.slane %v1081, %v1169
    %v1171 = vlaneseq
    %v1172 = vshrl.u32 %v1171, 7
    %v1173 = vsub.s32 2, %v1172
    %v1174 = vrot.slane %v1081, %v1173
    %v1175 = vlaneseq
    %v1176 = vshrl.u32 %v1175, 7
    %v1177 = vsub.s32 3, %v1176
    %v1178 = vrot.slane %v1081, %v1177
    %v1179 = vlaneseq
    %v1180 = vshrl.u32 %v1179, 7
    %v1181 = vsub.s32 4, %v1180
    %v1182 = vrot.slane %v1081, %v1181
    %v1183 = vlaneseq
    %v1184 = vshrl.u32 %v1183, 7
    %v1185 = vsub.s32 5, %v1184
    %v1186 = vrot.slane %v1081, %v1185
    %v1187 = vlaneseq
    %v1188 = vshrl.u32 %v1187, 7
    %v1189 = vsub.s32 6, %v1188
    %v1190 = vrot.slane %v1081, %v1189
    %v1191 = vlaneseq
    %v1192 = vshrl.u32 %v1191, 7
    %v1193 = vsub.s32 7, %v1192
    %v1194 = vrot.slane %v1081, %v1193
    %v1195 = vlaneseq
    %v1196 = vshrl.u32 %v1195, 7
    %v1197 = vsub.s32 0, %v1196
    %v1198 = vrot.slane %v1082, %v1197
    %v1199 = vlaneseq
    %v1200 = vshrl.u32 %v1199, 7
    %v1201 = vsub.s32 1, %v1200
    %v1202 = vrot.slane %v1082, %v1201
    %v1203 = vlaneseq
    %v1204 = vshrl.u32 %v1203, 7
    %v1205 = vsub.s32 2, %v1204
    %v1206 = vrot.slane %v1082, %v1205
    %v1207 = vlaneseq
    %v1208 = vshrl.u32 %v1207, 7
    %v1209 = vsub.s32 3, %v1208
    %v1210 = vrot.slane %v1082, %v1209
    %v1211 = vlaneseq
    %v1212 = vshrl.u32 %v1211, 7
    %v1213 = vsub.s32 4, %v1212
    %v1214 = vrot.slane %v1082, %v1213
    %v1215 = vlaneseq
    %v1216 = vshrl.u32 %v1215, 7
    %v1217 = vsub.s32 5, %v1216
    %v1218 = vrot.slane %v1082, %v1217
    %v1219 = vlaneseq
    %v1220 = vshrl.u32 %v1219, 7
    %v1221 = vsub.s32 6, %v1220
    %v1222 = vrot.slane %v1082, %v1221
    %v1223 = vlaneseq
    %v1224 = vshrl.u32 %v1223, 7
    %v1225 = vsub.s32 7, %v1224
    %v1226 = vrot.slane %v1082, %v1225
    %v1227 = vlaneseq
    %v1228 = vshrl.u32 %v1227, 7
    %v1229 = vsub.s32 0, %v1228
    %v1230 = vrot.slane %v1083, %v1229
    %v1231 = vlaneseq
    %v1232 = vshrl.u32 %v1231, 7
    %v1233 = vsub.s32 1, %v1232
    %v1234 = vrot.slane %v1083, %v1233
    %v1235 = vlaneseq
    %v1236 = vshrl.u32 %v1235, 7
    %v1237 = vsub.s32 2, %v1236
    %v1238 = vrot.slane %v1083, %v1237
    %v1239 = vlaneseq
    %v1240 = vshrl.u32 %v1239, 7
    %v1241 = vsub.s32 3, %v1240
    %v1242 = vrot.slane %v1083, %v1241
    %v1243 = vlaneseq
    %v1244 = vshrl.u32 %v1243, 7
    %v1245 = vsub.s32 4, %v1244
    %v1246 = vrot.slane %v1083, %v1245
    %v1247 = vlaneseq
    %v1248 = vshrl.u32 %v1247, 7
    %v1249 = vsub.s32 5, %v1248
    %v1250 = vrot.slane %v1083, %v1249
    %v1251 = vlaneseq
    %v1252 = vshrl.u32 %v1251, 7
    %v1253 = vsub.s32 6, %v1252
    %v1254 = vrot.slane %v1083, %v1253
    %v1255 = vlaneseq
    %v1256 = vshrl.u32 %v1255, 7
    %v1257 = vsub.s32 7, %v1256
    %v1258 = vrot.slane %v1083, %v1257
    %v1259 = vlaneseq
    %v1260 = vshrl.u32 %v1259, 7
    %v1261 = vsub.s32 0, %v1260
    %v1262 = vrot.slane %v1084, %v1261
    %v1263 = vlaneseq
    %v1264 = vshrl.u32 %v1263, 7
    %v1265 = vsub.s32 1, %v1264
    %v1266 = vrot.slane %v1084, %v1265
    %v1267 = vlaneseq
    %v1268 = vshrl.u32 %v1267, 7
    %v1269 = vsub.s32 2, %v1268
    %v1270 = vrot.slane %v1084, %v1269
    %v1271 = vlaneseq
    %v1272 = vshrl.u32 %v1271, 7
    %v1273 = vsub.s32 3, %v1272
    %v1274 = vrot.slane %v1084, %v1273
    %v1275 = vlaneseq
    %v1276 = vshrl.u32 %v1275, 7
    %v1277 = vsub.s32 4, %v1276
    %v1278 = vrot.slane %v1084, %v1277
    %v1279 = vlaneseq
    %v1280 = vshrl.u32 %v1279, 7
    %v1281 = vsub.s32 5, %v1280
    %v1282 = vrot.slane %v1084, %v1281
    %v1283 = vlaneseq
    %v1284 = vshrl.u32 %v1283, 7
    %v1285 = vsub.s32 6, %v1284
    %v1286 = vrot.slane %v1084, %v1285
    %v1287 = vlaneseq
    %v1288 = vshrl.u32 %v1287, 7
    %v1289 = vsub.s32 7, %v1288
    %v1290 = vrot.slane %v1084, %v1289
    %v1291 = vlaneseq
    %v1292 = vshrl.u32 %v1291, 7
    %v1293 = vsub.s32 0, %v1292
    %v1294 = vrot.slane %v1085, %v1293
    %v1295 = vlaneseq
    %v1296 = vshrl.u32 %v1295, 7
    %v1297 = vsub.s32 1, %v1296
    %v1298 = vrot.slane %v1085, %v1297
    %v1299 = vlaneseq
    %v1300 = vshrl.u32 %v1299, 7
    %v1301 = vsub.s32 2, %v1300
    %v1302 = vrot.slane %v1085, %v1301
    %v1303 = vlaneseq
    %v1304 = vshrl.u32 %v1303, 7
    %v1305 = vsub.s32 3, %v1304
    %v1306 = vrot.slane %v1085, %v1305
    %v1307 = vlaneseq
    %v1308 = vshrl.u32 %v1307, 7
    %v1309 = vsub.s32 4, %v1308
    %v1310 = vrot.slane %v1085, %v1309
    %v1311 = vlaneseq
    %v1312 = vshrl.u32 %v1311, 7
    %v1313 = vsub.s32 5, %v1312
    %v1314 = vrot.slane %v1085, %v1313
    %v1315 = vlaneseq
    %v1316 = vshrl.u32 %v1315, 7
    %v1317 = vsub.s32 6, %v1316
    %v1318 = vrot.slane %v1085, %v1317
    %v1319 = vlaneseq
    %v1320 = vshrl.u32 %v1319, 7
    %v1321 = vsub.s32 7, %v1320
    %v1322 = vrot.slane %v1085, %v1321
    %v1323 = vlaneseq
    %v1324 = vshrl.u32 %v1323, 7
    %v1325 = vsub.s32 0, %v1324
    %v1326 = vrot.slane %v1086, %v1325
    %v1327 = vlaneseq
    %v1328 = vshrl.u32 %v1327, 7
    %v1329 = vsub.s32 1, %v1328
    %v1330 = vrot.slane %v1086, %v1329
    %v1331 = vlaneseq
    %v1332 = vshrl.u32 %v1331, 7
    %v1333 = vsub.s32 2, %v1332
    %v1334 = vrot.slane %v1086, %v1333
    %v1335 = vlaneseq
    %v1336 = vshrl.u32 %v1335, 7
    %v1337 = vsub.s32 3, %v1336
    %v1338 = vrot.slane %v1086, %v1337
    %v1339 = vlaneseq
    %v1340 = vshrl.u32 %v1339, 7
    %v1341 = vsub.s32 4, %v1340
    %v1342 = vrot.slane %v1086, %v1341
    %v1343 = vlaneseq
    %v1344 = vshrl.u32 %v1343, 7
    %v1345 = vsub.s32 5, %v1344
    %v1346 = vrot.slane %v1086, %v1345
    %v1347 = vlaneseq
    %v1348 = vshrl.u32 %v1347, 7
    %v1349 = vsub.s32 6, %v1348
    %v1350 = vrot.slane %v1086, %v1349
    %v1351 = vlaneseq
    %v1352 = vshrl.u32 %v1351, 7
    %v1353 = vsub.s32 7, %v1352
    %v1354 = vrot.slane %v1086, %v1353
    %v1355 = vlaneseq
    %v1356 = vshrl.u32 %v1355, 7
    %v1357 = vsub.s32 0, %v1356
    %v1358 = vrot.slane %v1087, %v1357
    %v1359 = vlaneseq
    %v1360 = vshrl.u32 %v1359, 7
    %v1361 = vsub.s32 1, %v1360
    %v1362 = vrot.slane %v1087, %v1361
    %v1363 = vlaneseq
    %v1364 = vshrl.u32 %v1363, 7
    %v1365 = vsub.s32 2, %v1364
    %v1366 = vrot.slane %v1087, %v1365
    %v1367 = vlaneseq
    %v1368 = vshrl.u32 %v1367, 7
    %v1369 = vsub.s32 3, %v1368
    %v1370 = vrot.slane %v1087, %v1369
    %v1371 = vlaneseq
    %v1372 = vshrl.u32 %v1371, 7
    %v1373 = vsub.s32 4, %v1372
    %v1374 = vrot.slane %v1087, %v1373
    %v1375 = vlaneseq
    %v1376 = vshrl.u32 %v1375, 7
    %v1377 = vsub.s32 5, %v1376
    %v1378 = vrot.slane %v1087, %v1377
    %v1379 = vlaneseq
    %v1380 = vshrl.u32 %v1379, 7
    %v1381 = vsub.s32 6, %v1380
    %v1382 = vrot.slane %v1087, %v1381
    %v1383 = vlaneseq
    %v1384 = vshrl.u32 %v1383, 7
    %v1385 = vsub.s32 7, %v1384
    %v1386 = vrot.slane %v1087, %v1385
    %v1387 = vlaneseq
    %v1388 = vshrl.u32 %v1387, 7
    %v1389 = vsub.s32 0, %v1388
    %v1390 = vrot.slane %v1088, %v1389
    %v1465 = vsel %vm355, %v928, 0
    %1467 = vmatprep.subr.bf16.mxu0 %v934
    %1468 = vmatpush1.bf16.msra.mxu0 %v933
    %1469 = vmatprep.subr.bf16.mxu0 %v1007
    %1470 = vmatpush1.bf16.msra.mxu0 %v1006
    %1471 = vmatprep.subr.bf16.mxu0 0
    %1472 = vmatpush1.bf16.msra.mxu0 0
    %1473 = vmatprep.subr.bf16.mxu0 0
    %1474 = vmatpush1.bf16.msra.mxu0 0
    %1475 = vmatprep.subr.bf16.mxu0 0
    %1476 = vmatpush1.bf16.msra.mxu0 0
    %1477 = vmatprep.subr.bf16.mxu0 0
    %1478 = vmatpush1.bf16.msra.mxu0 0
    %1479 = vmatprep.subr.bf16.mxu0 0
    %1480 = vmatpush1.bf16.msra.mxu0 0
    %1481 = vmatprep.subr.bf16.mxu0 0
    %1482 = vmatpush1.bf16.msra.mxu0 0
    %1483 = vmatprep.subr.bf16.mxu0 0
    %1484 = vmatpush1.bf16.msra.mxu0 0
    %1485 = vmatprep.subr.bf16.mxu0 0
    %1486 = vmatpush1.bf16.msra.mxu0 0
    %1487 = vmatprep.subr.bf16.mxu0 0
    %1488 = vmatpush1.bf16.msra.mxu0 0
    %1489 = vmatprep.subr.bf16.mxu0 0
    %1490 = vmatpush1.bf16.msra.mxu0 0
    %1491 = vmatprep.subr.bf16.mxu0 0
    %1492 = vmatpush1.bf16.msra.mxu0 0
    %1493 = vmatprep.subr.bf16.mxu0 0
    %1494 = vmatpush1.bf16.msra.mxu0 0
    %1495 = vmatprep.subr.bf16.mxu0 0
    %1496 = vmatpush1.bf16.msra.mxu0 0
    %1497 = vmatprep.subr.bf16.mxu0 0
    %1498 = vmatpush1.bf16.msra.mxu0 0
    %1499 = vmatprep.mubr.bf16.mxu0 0
    %1500 = vmatmul.mubr.bf16.gmra.mrb[0].mxu0 %v1465
    %v1501 = vpop.f32.mrb[0].mxu0
    %v1502 = vadd.f32 %v1102, %v1501
    %v1503 = vpop.f32.mrb[0].mxu0
    %v1504 = vadd.f32 %v1106, %v1503
    %v1505 = vpop.f32.mrb[0].mxu0
    %v1506 = vpop.f32.mrb[0].mxu0
    %1507 = vdwg.mxu0
    %1508 = vmatprep.subr.bf16.mxu0 %v936
    %1509 = vmatpush1.bf16.msra.mxu0 %v935
    %1510 = vmatprep.subr.bf16.mxu0 %v1009
    %1511 = vmatpush1.bf16.msra.mxu0 %v1008
    %1512 = vmatprep.subr.bf16.mxu0 0
    %1513 = vmatpush1.bf16.msra.mxu0 0
    %1514 = vmatprep.subr.bf16.mxu0 0
    %1515 = vmatpush1.bf16.msra.mxu0 0
    %1516 = vmatprep.subr.bf16.mxu0 0
    %1517 = vmatpush1.bf16.msra.mxu0 0
    %1518 = vmatprep.subr.bf16.mxu0 0
    %1519 = vmatpush1.bf16.msra.mxu0 0
    %1520 = vmatprep.subr.bf16.mxu0 0
    %1521 = vmatpush1.bf16.msra.mxu0 0
    %1522 = vmatprep.subr.bf16.mxu0 0
    %1523 = vmatpush1.bf16.msra.mxu0 0
    %1524 = vmatprep.subr.bf16.mxu0 0
    %1525 = vmatpush1.bf16.msra.mxu0 0
    %1526 = vmatprep.subr.bf16.mxu0 0
    %1527 = vmatpush1.bf16.msra.mxu0 0
    %1528 = vmatprep.subr.bf16.mxu0 0
    %1529 = vmatpush1.bf16.msra.mxu0 0
    %1530 = vmatprep.subr.bf16.mxu0 0
    %1531 = vmatpush1.bf16.msra.mxu0 0
    %1532 = vmatprep.subr.bf16.mxu0 0
    %1533 = vmatpush1.bf16.msra.mxu0 0
    %1534 = vmatprep.subr.bf16.mxu0 0
    %1535 = vmatpush1.bf16.msra.mxu0 0
    %1536 = vmatprep.subr.bf16.mxu0 0
    %1537 = vmatpush1.bf16.msra.mxu0 0
    %1538 = vmatprep.subr.bf16.mxu0 0
    %1539 = vmatpush1.bf16.msra.mxu0 0
    %1540 = vmatprep.mubr.bf16.mxu0 0
    %1541 = vmatmul.mubr.bf16.gmra.mrb[0].mxu0 %v1465
    %v1542 = vpop.f32.mrb[0].mxu0
    %v1543 = vadd.f32 %v1110, %v1542
    %v1544 = vpop.f32.mrb[0].mxu0
    %v1545 = vadd.f32 %v1114, %v1544
    %v1546 = vpop.f32.mrb[0].mxu0
    %v1547 = vpop.f32.mrb[0].mxu0
    %1548 = vdwg.mxu0
    %1549 = vmatprep.subr.bf16.mxu0 %v938
    %1550 = vmatpush1.bf16.msra.mxu0 %v937
    %1551 = vmatprep.subr.bf16.mxu0 %v1011
    %1552 = vmatpush1.bf16.msra.mxu0 %v1010
    %1553 = vmatprep.subr.bf16.mxu0 0
    %1554 = vmatpush1.bf16.msra.mxu0 0
    %1555 = vmatprep.subr.bf16.mxu0 0
    %1556 = vmatpush1.bf16.msra.mxu0 0
    %1557 = vmatprep.subr.bf16.mxu0 0
    %1558 = vmatpush1.bf16.msra.mxu0 0
    %1559 = vmatprep.subr.bf16.mxu0 0
    %1560 = vmatpush1.bf16.msra.mxu0 0
    %1561 = vmatprep.subr.bf16.mxu0 0
    %1562 = vmatpush1.bf16.msra.mxu0 0
    %1563 = vmatprep.subr.bf16.mxu0 0
    %1564 = vmatpush1.bf16.msra.mxu0 0
    %1565 = vmatprep.subr.bf16.mxu0 0
    %1566 = vmatpush1.bf16.msra.mxu0 0
    %1567 = vmatprep.subr.bf16.mxu0 0
    %1568 = vmatpush1.bf16.msra.mxu0 0
    %1569 = vmatprep.subr.bf16.mxu0 0
    %1570 = vmatpush1.bf16.msra.mxu0 0
    %1571 = vmatprep.subr.bf16.mxu0 0
    %1572 = vmatpush1.bf16.msra.mxu0 0
    %1573 = vmatprep.subr.bf16.mxu0 0
    %1574 = vmatpush1.bf16.msra.mxu0 0
    %1575 = vmatprep.subr.bf16.mxu0 0
    %1576 = vmatpush1.bf16.msra.mxu0 0
    %1577 = vmatprep.subr.bf16.mxu0 0
    %1578 = vmatpush1.bf16.msra.mxu0 0
    %1579 = vmatprep.subr.bf16.mxu0 0
    %1580 = vmatpush1.bf16.msra.mxu0 0
    %1581 = vmatprep.mubr.bf16.mxu0 0
    %1582 = vmatmul.mubr.bf16.gmra.mrb[0].mxu0 %v1465
    %v1583 = vpop.f32.mrb[0].mxu0
    %v1584 = vadd.f32 %v1118, %v1583
    %v1585 = vpop.f32.mrb[0].mxu0
    %v1586 = vadd.f32 %v1122, %v1585
    %v1587 = vpop.f32.mrb[0].mxu0
    %v1588 = vpop.f32.mrb[0].mxu0
    %1589 = vdwg.mxu0
    %1590 = vmatprep.subr.bf16.mxu0 %v940
    %1591 = vmatpush1.bf16.msra.mxu0 %v939
    %1592 = vmatprep.subr.bf16.mxu0 %v1013
    %1593 = vmatpush1.bf16.msra.mxu0 %v1012
    %1594 = vmatprep.subr.bf16.mxu0 0
    %1595 = vmatpush1.bf16.msra.mxu0 0
    %1596 = vmatprep.subr.bf16.mxu0 0
    %1597 = vmatpush1.bf16.msra.mxu0 0
    %1598 = vmatprep.subr.bf16.mxu0 0
    %1599 = vmatpush1.bf16.msra.mxu0 0
    %1600 = vmatprep.subr.bf16.mxu0 0
    %1601 = vmatpush1.bf16.msra.mxu0 0
    %1602 = vmatprep.subr.bf16.mxu0 0
    %1603 = vmatpush1.bf16.msra.mxu0 0
    %1604 = vmatprep.subr.bf16.mxu0 0
    %1605 = vmatpush1.bf16.msra.mxu0 0
    %1606 = vmatprep.subr.bf16.mxu0 0
    %1607 = vmatpush1.bf16.msra.mxu0 0
    %1608 = vmatprep.subr.bf16.mxu0 0
    %1609 = vmatpush1.bf16.msra.mxu0 0
    %1610 = vmatprep.subr.bf16.mxu0 0
    %1611 = vmatpush1.bf16.msra.mxu0 0
    %1612 = vmatprep.subr.bf16.mxu0 0
    %1613 = vmatpush1.bf16.msra.mxu0 0
    %1614 = vmatprep.subr.bf16.mxu0 0
    %1615 = vmatpush1.bf16.msra.mxu0 0
    %1616 = vmatprep.subr.bf16.mxu0 0
    %1617 = vmatpush1.bf16.msra.mxu0 0
    %1618 = vmatprep.subr.bf16.mxu0 0
    %1619 = vmatpush1.bf16.msra.mxu0 0
    %1620 = vmatprep.subr.bf16.mxu0 0
    %1621 = vmatpush1.bf16.msra.mxu0 0
    %1622 = vmatprep.mubr.bf16.mxu0 0
    %1623 = vmatmul.mubr.bf16.gmra.mrb[0].mxu0 %v1465
    %v1624 = vpop.f32.mrb[0].mxu0
    %v1625 = vadd.f32 %v1126, %v1624
    %v1626 = vpop.f32.mrb[0].mxu0
    %v1627 = vadd.f32 %v1130, %v1626
    %v1628 = vpop.f32.mrb[0].mxu0
    %v1629 = vpop.f32.mrb[0].mxu0
    %1630 = vdwg.mxu0
    %1631 = vmatprep.subr.bf16.mxu0 %v942
    %1632 = vmatpush1.bf16.msra.mxu0 %v941
    %1633 = vmatprep.subr.bf16.mxu0 %v1015
    %1634 = vmatpush1.bf16.msra.mxu0 %v1014
    %1635 = vmatprep.subr.bf16.mxu0 0
    %1636 = vmatpush1.bf16.msra.mxu0 0
    %1637 = vmatprep.subr.bf16.mxu0 0
    %1638 = vmatpush1.bf16.msra.mxu0 0
    %1639 = vmatprep.subr.bf16.mxu0 0
    %1640 = vmatpush1.bf16.msra.mxu0 0
    %1641 = vmatprep.subr.bf16.mxu0 0
    %1642 = vmatpush1.bf16.msra.mxu0 0
    %1643 = vmatprep.subr.bf16.mxu0 0
    %1644 = vmatpush1.bf16.msra.mxu0 0
    %1645 = vmatprep.subr.bf16.mxu0 0
    %1646 = vmatpush1.bf16.msra.mxu0 0
    %1647 = vmatprep.subr.bf16.mxu0 0
    %1648 = vmatpush1.bf16.msra.mxu0 0
    %1649 = vmatprep.subr.bf16.mxu0 0
    %1650 = vmatpush1.bf16.msra.mxu0 0
    %1651 = vmatprep.subr.bf16.mxu0 0
    %1652 = vmatpush1.bf16.msra.mxu0 0
    %1653 = vmatprep.subr.bf16.mxu0 0
    %1654 = vmatpush1.bf16.msra.mxu0 0
    %1655 = vmatprep.subr.bf16.mxu0 0
    %1656 = vmatpush1.bf16.msra.mxu0 0
    %1657 = vmatprep.subr.bf16.mxu0 0
    %1658 = vmatpush1.bf16.msra.mxu0 0
    %1659 = vmatprep.subr.bf16.mxu0 0
    %1660 = vmatpush1.bf16.msra.mxu0 0
    %1661 = vmatprep.subr.bf16.mxu0 0
    %1662 = vmatpush1.bf16.msra.mxu0 0
    %1663 = vmatprep.mubr.bf16.mxu0 0
    %1664 = vmatmul.mubr.bf16.gmra.mrb[0].mxu0 %v1465
    %v1665 = vpop.f32.mrb[0].mxu0
    %v1666 = vadd.f32 %v1134, %v1665
    %v1667 = vpop.f32.mrb[0].mxu0
    %v1668 = vadd.f32 %v1138, %v1667
    %v1669 = vpop.f32.mrb[0].mxu0
    %v1670 = vpop.f32.mrb[0].mxu0
    %1671 = vdwg.mxu0
    %1672 = vmatprep.subr.bf16.mxu0 %v944
    %1673 = vmatpush1.bf16.msra.mxu0 %v943
    %1674 = vmatprep.subr.bf16.mxu0 %v1017
    %1675 = vmatpush1.bf16.msra.mxu0 %v1016
    %1676 = vmatprep.subr.bf16.mxu0 0
    %1677 = vmatpush1.bf16.msra.mxu0 0
    %1678 = vmatprep.subr.bf16.mxu0 0
    %1679 = vmatpush1.bf16.msra.mxu0 0
    %1680 = vmatprep.subr.bf16.mxu0 0
    %1681 = vmatpush1.bf16.msra.mxu0 0
    %1682 = vmatprep.subr.bf16.mxu0 0
    %1683 = vmatpush1.bf16.msra.mxu0 0
    %1684 = vmatprep.subr.bf16.mxu0 0
    %1685 = vmatpush1.bf16.msra.mxu0 0
    %1686 = vmatprep.subr.bf16.mxu0 0
    %1687 = vmatpush1.bf16.msra.mxu0 0
    %1688 = vmatprep.subr.bf16.mxu0 0
    %1689 = vmatpush1.bf16.msra.mxu0 0
    %1690 = vmatprep.subr.bf16.mxu0 0
    %1691 = vmatpush1.bf16.msra.mxu0 0
    %1692 = vmatprep.subr.bf16.mxu0 0
    %1693 = vmatpush1.bf16.msra.mxu0 0
    %1694 = vmatprep.subr.bf16.mxu0 0
    %1695 = vmatpush1.bf16.msra.mxu0 0
    %1696 = vmatprep.subr.bf16.mxu0 0
    %1697 = vmatpush1.bf16.msra.mxu0 0
    %1698 = vmatprep.subr.bf16.mxu0 0
    %1699 = vmatpush1.bf16.msra.mxu0 0
    %1700 = vmatprep.subr.bf16.mxu0 0
    %1701 = vmatpush1.bf16.msra.mxu0 0
    %1702 = vmatprep.subr.bf16.mxu0 0
    %1703 = vmatpush1.bf16.msra.mxu0 0
    %1704 = vmatprep.mubr.bf16.mxu0 0
    %1705 = vmatmul.mubr.bf16.gmra.mrb[0].mxu0 %v1465
    %v1706 = vpop.f32.mrb[0].mxu0
    %v1707 = vadd.f32 %v1142, %v1706
    %v1708 = vpop.f32.mrb[0].mxu0
    %v1709 = vadd.f32 %v1146, %v1708
    %v1710 = vpop.f32.mrb[0].mxu0
    %v1711 = vpop.f32.mrb[0].mxu0
    %1712 = vdwg.mxu0
    %1713 = vmatprep.subr.bf16.mxu0 %v946
    %1714 = vmatpush1.bf16.msra.mxu0 %v945
    %1715 = vmatprep.subr.bf16.mxu0 %v1019
    %1716 = vmatpush1.bf16.msra.mxu0 %v1018
    %1717 = vmatprep.subr.bf16.mxu0 0
    %1718 = vmatpush1.bf16.msra.mxu0 0
    %1719 = vmatprep.subr.bf16.mxu0 0
    %1720 = vmatpush1.bf16.msra.mxu0 0
    %1721 = vmatprep.subr.bf16.mxu0 0
    %1722 = vmatpush1.bf16.msra.mxu0 0
    %1723 = vmatprep.subr.bf16.mxu0 0
    %1724 = vmatpush1.bf16.msra.mxu0 0
    %1725 = vmatprep.subr.bf16.mxu0 0
    %1726 = vmatpush1.bf16.msra.mxu0 0
    %1727 = vmatprep.subr.bf16.mxu0 0
    %1728 = vmatpush1.bf16.msra.mxu0 0
    %1729 = vmatprep.subr.bf16.mxu0 0
    %1730 = vmatpush1.bf16.msra.mxu0 0
    %1731 = vmatprep.subr.bf16.mxu0 0
    %1732 = vmatpush1.bf16.msra.mxu0 0
    %1733 = vmatprep.subr.bf16.mxu0 0
    %1734 = vmatpush1.bf16.msra.mxu0 0
    %1735 = vmatprep.subr.bf16.mxu0 0
    %1736 = vmatpush1.bf16.msra.mxu0 0
    %1737 = vmatprep.subr.bf16.mxu0 0
    %1738 = vmatpush1.bf16.msra.mxu0 0
    %1739 = vmatprep.subr.bf16.mxu0 0
    %1740 = vmatpush1.bf16.msra.mxu0 0
    %1741 = vmatprep.subr.bf16.mxu0 0
    %1742 = vmatpush1.bf16.msra.mxu0 0
    %1743 = vmatprep.subr.bf16.mxu0 0
    %1744 = vmatpush1.bf16.msra.mxu0 0
    %1745 = vmatprep.mubr.bf16.mxu0 0
    %1746 = vmatmul.mubr.bf16.gmra.mrb[0].mxu0 %v1465
    %v1747 = vpop.f32.mrb[0].mxu0
    %v1748 = vadd.f32 %v1150, %v1747
    %v1749 = vpop.f32.mrb[0].mxu0
    %v1750 = vadd.f32 %v1154, %v1749
    %v1751 = vpop.f32.mrb[0].mxu0
    %v1752 = vpop.f32.mrb[0].mxu0
    %1753 = vdwg.mxu0
    %1754 = vmatprep.subr.bf16.mxu0 %v948
    %1755 = vmatpush1.bf16.msra.mxu0 %v947
    %1756 = vmatprep.subr.bf16.mxu0 %v1021
    %1757 = vmatpush1.bf16.msra.mxu0 %v1020
    %1758 = vmatprep.subr.bf16.mxu0 0
    %1759 = vmatpush1.bf16.msra.mxu0 0
    %1760 = vmatprep.subr.bf16.mxu0 0
    %1761 = vmatpush1.bf16.msra.mxu0 0
    %1762 = vmatprep.subr.bf16.mxu0 0
    %1763 = vmatpush1.bf16.msra.mxu0 0
    %1764 = vmatprep.subr.bf16.mxu0 0
    %1765 = vmatpush1.bf16.msra.mxu0 0
    %1766 = vmatprep.subr.bf16.mxu0 0
    %1767 = vmatpush1.bf16.msra.mxu0 0
    %1768 = vmatprep.subr.bf16.mxu0 0
    %1769 = vmatpush1.bf16.msra.mxu0 0
    %1770 = vmatprep.subr.bf16.mxu0 0
    %1771 = vmatpush1.bf16.msra.mxu0 0
    %1772 = vmatprep.subr.bf16.mxu0 0
    %1773 = vmatpush1.bf16.msra.mxu0 0
    %1774 = vmatprep.subr.bf16.mxu0 0
    %1775 = vmatpush1.bf16.msra.mxu0 0
    %1776 = vmatprep.subr.bf16.mxu0 0
    %1777 = vmatpush1.bf16.msra.mxu0 0
    %1778 = vmatprep.subr.bf16.mxu0 0
    %1779 = vmatpush1.bf16.msra.mxu0 0
    %1780 = vmatprep.subr.bf16.mxu0 0
    %1781 = vmatpush1.bf16.msra.mxu0 0
    %1782 = vmatprep.subr.bf16.mxu0 0
    %1783 = vmatpush1.bf16.msra.mxu0 0
    %1784 = vmatprep.subr.bf16.mxu0 0
    %1785 = vmatpush1.bf16.msra.mxu0 0
    %1786 = vmatprep.mubr.bf16.mxu0 0
    %1787 = vmatmul.mubr.bf16.gmra.mrb[0].mxu0 %v1465
    %v1788 = vpop.f32.mrb[0].mxu0
    %v1789 = vadd.f32 %v1158, %v1788
    %v1790 = vpop.f32.mrb[0].mxu0
    %v1791 = vadd.f32 %v1162, %v1790
    %v1792 = vpop.f32.mrb[0].mxu0
    %v1793 = vpop.f32.mrb[0].mxu0
    %1794 = vdwg.mxu0
    %1795 = vmatprep.subr.bf16.mxu0 %v950
    %1796 = vmatpush1.bf16.msra.mxu0 %v949
    %1797 = vmatprep.subr.bf16.mxu0 %v1023
    %1798 = vmatpush1.bf16.msra.mxu0 %v1022
    %1799 = vmatprep.subr.bf16.mxu0 0
    %1800 = vmatpush1.bf16.msra.mxu0 0
    %1801 = vmatprep.subr.bf16.mxu0 0
    %1802 = vmatpush1.bf16.msra.mxu0 0
    %1803 = vmatprep.subr.bf16.mxu0 0
    %1804 = vmatpush1.bf16.msra.mxu0 0
    %1805 = vmatprep.subr.bf16.mxu0 0
    %1806 = vmatpush1.bf16.msra.mxu0 0
    %1807 = vmatprep.subr.bf16.mxu0 0
    %1808 = vmatpush1.bf16.msra.mxu0 0
    %1809 = vmatprep.subr.bf16.mxu0 0
    %1810 = vmatpush1.bf16.msra.mxu0 0
    %1811 = vmatprep.subr.bf16.mxu0 0
    %1812 = vmatpush1.bf16.msra.mxu0 0
    %1813 = vmatprep.subr.bf16.mxu0 0
    %1814 = vmatpush1.bf16.msra.mxu0 0
    %1815 = vmatprep.subr.bf16.mxu0 0
    %1816 = vmatpush1.bf16.msra.mxu0 0
    %1817 = vmatprep.subr.bf16.mxu0 0
    %1818 = vmatpush1.bf16.msra.mxu0 0
    %1819 = vmatprep.subr.bf16.mxu0 0
    %1820 = vmatpush1.bf16.msra.mxu0 0
    %1821 = vmatprep.subr.bf16.mxu0 0
    %1822 = vmatpush1.bf16.msra.mxu0 0
    %1823 = vmatprep.subr.bf16.mxu0 0
    %1824 = vmatpush1.bf16.msra.mxu0 0
    %1825 = vmatprep.subr.bf16.mxu0 0
    %1826 = vmatpush1.bf16.msra.mxu0 0
    %1827 = vmatprep.mubr.bf16.mxu0 0
    %1828 = vmatmul.mubr.bf16.gmra.mrb[0].mxu0 %v1465
    %v1829 = vpop.f32.mrb[0].mxu0
    %v1830 = vadd.f32 %v1166, %v1829
    %v1831 = vpop.f32.mrb[0].mxu0
    %v1832 = vadd.f32 %v1170, %v1831
    %v1833 = vpop.f32.mrb[0].mxu0
    %v1834 = vpop.f32.mrb[0].mxu0
    %1835 = vdwg.mxu0
    %1836 = vmatprep.subr.bf16.mxu0 %v952
    %1837 = vmatpush1.bf16.msra.mxu0 %v951
    %1838 = vmatprep.subr.bf16.mxu0 %v1025
    %1839 = vmatpush1.bf16.msra.mxu0 %v1024
    %1840 = vmatprep.subr.bf16.mxu0 0
    %1841 = vmatpush1.bf16.msra.mxu0 0
    %1842 = vmatprep.subr.bf16.mxu0 0
    %1843 = vmatpush1.bf16.msra.mxu0 0
    %1844 = vmatprep.subr.bf16.mxu0 0
    %1845 = vmatpush1.bf16.msra.mxu0 0
    %1846 = vmatprep.subr.bf16.mxu0 0
    %1847 = vmatpush1.bf16.msra.mxu0 0
    %1848 = vmatprep.subr.bf16.mxu0 0
    %1849 = vmatpush1.bf16.msra.mxu0 0
    %1850 = vmatprep.subr.bf16.mxu0 0
    %1851 = vmatpush1.bf16.msra.mxu0 0
    %1852 = vmatprep.subr.bf16.mxu0 0
    %1853 = vmatpush1.bf16.msra.mxu0 0
    %1854 = vmatprep.subr.bf16.mxu0 0
    %1855 = vmatpush1.bf16.msra.mxu0 0
    %1856 = vmatprep.subr.bf16.mxu0 0
    %1857 = vmatpush1.bf16.msra.mxu0 0
    %1858 = vmatprep.subr.bf16.mxu0 0
    %1859 = vmatpush1.bf16.msra.mxu0 0
    %1860 = vmatprep.subr.bf16.mxu0 0
    %1861 = vmatpush1.bf16.msra.mxu0 0
    %1862 = vmatprep.subr.bf16.mxu0 0
    %1863 = vmatpush1.bf16.msra.mxu0 0
    %1864 = vmatprep.subr.bf16.mxu0 0
    %1865 = vmatpush1.bf16.msra.mxu0 0
    %1866 = vmatprep.subr.bf16.mxu0 0
    %1867 = vmatpush1.bf16.msra.mxu0 0
    %1868 = vmatprep.mubr.bf16.mxu0 0
    %1869 = vmatmul.mubr.bf16.gmra.mrb[0].mxu0 %v1465
    %v1870 = vpop.f32.mrb[0].mxu0
    %v1871 = vadd.f32 %v1174, %v1870
    %v1872 = vpop.f32.mrb[0].mxu0
    %v1873 = vadd.f32 %v1178, %v1872
    %v1874 = vpop.f32.mrb[0].mxu0
    %v1875 = vpop.f32.mrb[0].mxu0
    %1876 = vdwg.mxu0
    %1877 = vmatprep.subr.bf16.mxu0 %v954
    %1878 = vmatpush1.bf16.msra.mxu0 %v953
    %1879 = vmatprep.subr.bf16.mxu0 %v1027
    %1880 = vmatpush1.bf16.msra.mxu0 %v1026
    %1881 = vmatprep.subr.bf16.mxu0 0
    %1882 = vmatpush1.bf16.msra.mxu0 0
    %1883 = vmatprep.subr.bf16.mxu0 0
    %1884 = vmatpush1.bf16.msra.mxu0 0
    %1885 = vmatprep.subr.bf16.mxu0 0
    %1886 = vmatpush1.bf16.msra.mxu0 0
    %1887 = vmatprep.subr.bf16.mxu0 0
    %1888 = vmatpush1.bf16.msra.mxu0 0
    %1889 = vmatprep.subr.bf16.mxu0 0
    %1890 = vmatpush1.bf16.msra.mxu0 0
    %1891 = vmatprep.subr.bf16.mxu0 0
    %1892 = vmatpush1.bf16.msra.mxu0 0
    %1893 = vmatprep.subr.bf16.mxu0 0
    %1894 = vmatpush1.bf16.msra.mxu0 0
    %1895 = vmatprep.subr.bf16.mxu0 0
    %1896 = vmatpush1.bf16.msra.mxu0 0
    %1897 = vmatprep.subr.bf16.mxu0 0
    %1898 = vmatpush1.bf16.msra.mxu0 0
    %1899 = vmatprep.subr.bf16.mxu0 0
    %1900 = vmatpush1.bf16.msra.mxu0 0
    %1901 = vmatprep.subr.bf16.mxu0 0
    %1902 = vmatpush1.bf16.msra.mxu0 0
    %1903 = vmatprep.subr.bf16.mxu0 0
    %1904 = vmatpush1.bf16.msra.mxu0 0
    %1905 = vmatprep.subr.bf16.mxu0 0
    %1906 = vmatpush1.bf16.msra.mxu0 0
    %1907 = vmatprep.subr.bf16.mxu0 0
    %1908 = vmatpush1.bf16.msra.mxu0 0
    %1909 = vmatprep.mubr.bf16.mxu0 0
    %1910 = vmatmul.mubr.bf16.gmra.mrb[0].mxu0 %v1465
    %v1911 = vpop.f32.mrb[0].mxu0
    %v1912 = vadd.f32 %v1182, %v1911
    %v1913 = vpop.f32.mrb[0].mxu0
    %v1914 = vadd.f32 %v1186, %v1913
    %v1915 = vpop.f32.mrb[0].mxu0
    %v1916 = vpop.f32.mrb[0].mxu0
    %1917 = vdwg.mxu0
    %1918 = vmatprep.subr.bf16.mxu0 %v956
    %1919 = vmatpush1.bf16.msra.mxu0 %v955
    %1920 = vmatprep.subr.bf16.mxu0 %v1029
    %1921 = vmatpush1.bf16.msra.mxu0 %v1028
    %1922 = vmatprep.subr.bf16.mxu0 0
    %1923 = vmatpush1.bf16.msra.mxu0 0
    %1924 = vmatprep.subr.bf16.mxu0 0
    %1925 = vmatpush1.bf16.msra.mxu0 0
    %1926 = vmatprep.subr.bf16.mxu0 0
    %1927 = vmatpush1.bf16.msra.mxu0 0
    %1928 = vmatprep.subr.bf16.mxu0 0
    %1929 = vmatpush1.bf16.msra.mxu0 0
    %1930 = vmatprep.subr.bf16.mxu0 0
    %1931 = vmatpush1.bf16.msra.mxu0 0
    %1932 = vmatprep.subr.bf16.mxu0 0
    %1933 = vmatpush1.bf16.msra.mxu0 0
    %1934 = vmatprep.subr.bf16.mxu0 0
    %1935 = vmatpush1.bf16.msra.mxu0 0
    %1936 = vmatprep.subr.bf16.mxu0 0
    %1937 = vmatpush1.bf16.msra.mxu0 0
    %1938 = vmatprep.subr.bf16.mxu0 0
    %1939 = vmatpush1.bf16.msra.mxu0 0
    %1940 = vmatprep.subr.bf16.mxu0 0
    %1941 = vmatpush1.bf16.msra.mxu0 0
    %1942 = vmatprep.subr.bf16.mxu0 0
    %1943 = vmatpush1.bf16.msra.mxu0 0
    %1944 = vmatprep.subr.bf16.mxu0 0
    %1945 = vmatpush1.bf16.msra.mxu0 0
    %1946 = vmatprep.subr.bf16.mxu0 0
    %1947 = vmatpush1.bf16.msra.mxu0 0
    %1948 = vmatprep.subr.bf16.mxu0 0
    %1949 = vmatpush1.bf16.msra.mxu0 0
    %1950 = vmatprep.mubr.bf16.mxu0 0
    %1951 = vmatmul.mubr.bf16.gmra.mrb[0].mxu0 %v1465
    %v1952 = vpop.f32.mrb[0].mxu0
    %v1953 = vadd.f32 %v1190, %v1952
    %v1954 = vpop.f32.mrb[0].mxu0
    %v1955 = vadd.f32 %v1194, %v1954
    %v1956 = vpop.f32.mrb[0].mxu0
    %v1957 = vpop.f32.mrb[0].mxu0
    %1958 = vdwg.mxu0
    %1959 = vmatprep.subr.bf16.mxu0 %v958
    %1960 = vmatpush1.bf16.msra.mxu0 %v957
    %1961 = vmatprep.subr.bf16.mxu0 %v1031
    %1962 = vmatpush1.bf16.msra.mxu0 %v1030
    %1963 = vmatprep.subr.bf16.mxu0 0
    %1964 = vmatpush1.bf16.msra.mxu0 0
    %1965 = vmatprep.subr.bf16.mxu0 0
    %1966 = vmatpush1.bf16.msra.mxu0 0
    %1967 = vmatprep.subr.bf16.mxu0 0
    %1968 = vmatpush1.bf16.msra.mxu0 0
    %1969 = vmatprep.subr.bf16.mxu0 0
    %1970 = vmatpush1.bf16.msra.mxu0 0
    %1971 = vmatprep.subr.bf16.mxu0 0
    %1972 = vmatpush1.bf16.msra.mxu0 0
    %1973 = vmatprep.subr.bf16.mxu0 0
    %1974 = vmatpush1.bf16.msra.mxu0 0
    %1975 = vmatprep.subr.bf16.mxu0 0
    %1976 = vmatpush1.bf16.msra.mxu0 0
    %1977 = vmatprep.subr.bf16.mxu0 0
    %1978 = vmatpush1.bf16.msra.mxu0 0
    %1979 = vmatprep.subr.bf16.mxu0 0
    %1980 = vmatpush1.bf16.msra.mxu0 0
    %1981 = vmatprep.subr.bf16.mxu0 0
    %1982 = vmatpush1.bf16.msra.mxu0 0
    %1983 = vmatprep.subr.bf16.mxu0 0
    %1984 = vmatpush1.bf16.msra.mxu0 0
    %1985 = vmatprep.subr.bf16.mxu0 0
    %1986 = vmatpush1.bf16.msra.mxu0 0
    %1987 = vmatprep.subr.bf16.mxu0 0
    %1988 = vmatpush1.bf16.msra.mxu0 0
    %1989 = vmatprep.subr.bf16.mxu0 0
    %1990 = vmatpush1.bf16.msra.mxu0 0
    %1991 = vmatprep.mubr.bf16.mxu0 0
    %1992 = vmatmul.mubr.bf16.gmra.mrb[0].mxu0 %v1465
    %v1993 = vpop.f32.mrb[0].mxu0
    %v1994 = vadd.f32 %v1198, %v1993
    %v1995 = vpop.f32.mrb[0].mxu0
    %v1996 = vadd.f32 %v1202, %v1995
    %v1997 = vpop.f32.mrb[0].mxu0
    %v1998 = vpop.f32.mrb[0].mxu0
    %1999 = vdwg.mxu0
    %2000 = vmatprep.subr.bf16.mxu0 %v960
    %2001 = vmatpush1.bf16.msra.mxu0 %v959
    %2002 = vmatprep.subr.bf16.mxu0 %v1033
    %2003 = vmatpush1.bf16.msra.mxu0 %v1032
    %2004 = vmatprep.subr.bf16.mxu0 0
    %2005 = vmatpush1.bf16.msra.mxu0 0
    %2006 = vmatprep.subr.bf16.mxu0 0
    %2007 = vmatpush1.bf16.msra.mxu0 0
    %2008 = vmatprep.subr.bf16.mxu0 0
    %2009 = vmatpush1.bf16.msra.mxu0 0
    %2010 = vmatprep.subr.bf16.mxu0 0
    %2011 = vmatpush1.bf16.msra.mxu0 0
    %2012 = vmatprep.subr.bf16.mxu0 0
    %2013 = vmatpush1.bf16.msra.mxu0 0
    %2014 = vmatprep.subr.bf16.mxu0 0
    %2015 = vmatpush1.bf16.msra.mxu0 0
    %2016 = vmatprep.subr.bf16.mxu0 0
    %2017 = vmatpush1.bf16.msra.mxu0 0
    %2018 = vmatprep.subr.bf16.mxu0 0
    %2019 = vmatpush1.bf16.msra.mxu0 0
    %2020 = vmatprep.subr.bf16.mxu0 0
    %2021 = vmatpush1.bf16.msra.mxu0 0
    %2022 = vmatprep.subr.bf16.mxu0 0
    %2023 = vmatpush1.bf16.msra.mxu0 0
    %2024 = vmatprep.subr.bf16.mxu0 0
    %2025 = vmatpush1.bf16.msra.mxu0 0
    %2026 = vmatprep.subr.bf16.mxu0 0
    %2027 = vmatpush1.bf16.msra.mxu0 0
    %2028 = vmatprep.subr.bf16.mxu0 0
    %2029 = vmatpush1.bf16.msra.mxu0 0
    %2030 = vmatprep.subr.bf16.mxu0 0
    %2031 = vmatpush1.bf16.msra.mxu0 0
    %2032 = vmatprep.mubr.bf16.mxu0 0
    %2033 = vmatmul.mubr.bf16.gmra.mrb[0].mxu0 %v1465
    %v2034 = vpop.f32.mrb[0].mxu0
    %v2035 = vadd.f32 %v1206, %v2034
    %v2036 = vpop.f32.mrb[0].mxu0
    %v2037 = vadd.f32 %v1210, %v2036
    %v2038 = vpop.f32.mrb[0].mxu0
    %v2039 = vpop.f32.mrb[0].mxu0
    %2040 = vdwg.mxu0
    %2041 = vmatprep.subr.bf16.mxu0 %v962
    %2042 = vmatpush1.bf16.msra.mxu0 %v961
    %2043 = vmatprep.subr.bf16.mxu0 %v1035
    %2044 = vmatpush1.bf16.msra.mxu0 %v1034
    %2045 = vmatprep.subr.bf16.mxu0 0
    %2046 = vmatpush1.bf16.msra.mxu0 0
    %2047 = vmatprep.subr.bf16.mxu0 0
    %2048 = vmatpush1.bf16.msra.mxu0 0
    %2049 = vmatprep.subr.bf16.mxu0 0
    %2050 = vmatpush1.bf16.msra.mxu0 0
    %2051 = vmatprep.subr.bf16.mxu0 0
    %2052 = vmatpush1.bf16.msra.mxu0 0
    %2053 = vmatprep.subr.bf16.mxu0 0
    %2054 = vmatpush1.bf16.msra.mxu0 0
    %2055 = vmatprep.subr.bf16.mxu0 0
    %2056 = vmatpush1.bf16.msra.mxu0 0
    %2057 = vmatprep.subr.bf16.mxu0 0
    %2058 = vmatpush1.bf16.msra.mxu0 0
    %2059 = vmatprep.subr.bf16.mxu0 0
    %2060 = vmatpush1.bf16.msra.mxu0 0
    %2061 = vmatprep.subr.bf16.mxu0 0
    %2062 = vmatpush1.bf16.msra.mxu0 0
    %2063 = vmatprep.subr.bf16.mxu0 0
    %2064 = vmatpush1.bf16.msra.mxu0 0
    %2065 = vmatprep.subr.bf16.mxu0 0
    %2066 = vmatpush1.bf16.msra.mxu0 0
    %2067 = vmatprep.subr.bf16.mxu0 0
    %2068 = vmatpush1.bf16.msra.mxu0 0
    %2069 = vmatprep.subr.bf16.mxu0 0
    %2070 = vmatpush1.bf16.msra.mxu0 0
    %2071 = vmatprep.subr.bf16.mxu0 0
    %2072 = vmatpush1.bf16.msra.mxu0 0
    %2073 = vmatprep.mubr.bf16.mxu0 0
    %2074 = vmatmul.mubr.bf16.gmra.mrb[0].mxu0 %v1465
    %v2075 = vpop.f32.mrb[0].mxu0
    %v2076 = vadd.f32 %v1214, %v2075
    %v2077 = vpop.f32.mrb[0].mxu0
    %v2078 = vadd.f32 %v1218, %v2077
    %v2079 = vpop.f32.mrb[0].mxu0
    %v2080 = vpop.f32.mrb[0].mxu0
    %2081 = vdwg.mxu0
    %2082 = vmatprep.subr.bf16.mxu0 %v964
    %2083 = vmatpush1.bf16.msra.mxu0 %v963
    %2084 = vmatprep.subr.bf16.mxu0 %v1037
    %2085 = vmatpush1.bf16.msra.mxu0 %v1036
    %2086 = vmatprep.subr.bf16.mxu0 0
    %2087 = vmatpush1.bf16.msra.mxu0 0
    %2088 = vmatprep.subr.bf16.mxu0 0
    %2089 = vmatpush1.bf16.msra.mxu0 0
    %2090 = vmatprep.subr.bf16.mxu0 0
    %2091 = vmatpush1.bf16.msra.mxu0 0
    %2092 = vmatprep.subr.bf16.mxu0 0
    %2093 = vmatpush1.bf16.msra.mxu0 0
    %2094 = vmatprep.subr.bf16.mxu0 0
    %2095 = vmatpush1.bf16.msra.mxu0 0
    %2096 = vmatprep.subr.bf16.mxu0 0
    %2097 = vmatpush1.bf16.msra.mxu0 0
    %2098 = vmatprep.subr.bf16.mxu0 0
    %2099 = vmatpush1.bf16.msra.mxu0 0
    %2100 = vmatprep.subr.bf16.mxu0 0
    %2101 = vmatpush1.bf16.msra.mxu0 0
    %2102 = vmatprep.subr.bf16.mxu0 0
    %2103 = vmatpush1.bf16.msra.mxu0 0
    %2104 = vmatprep.subr.bf16.mxu0 0
    %2105 = vmatpush1.bf16.msra.mxu0 0
    %2106 = vmatprep.subr.bf16.mxu0 0
    %2107 = vmatpush1.bf16.msra.mxu0 0
    %2108 = vmatprep.subr.bf16.mxu0 0
    %2109 = vmatpush1.bf16.msra.mxu0 0
    %2110 = vmatprep.subr.bf16.mxu0 0
    %2111 = vmatpush1.bf16.msra.mxu0 0
    %2112 = vmatprep.subr.bf16.mxu0 0
    %2113 = vmatpush1.bf16.msra.mxu0 0
    %2114 = vmatprep.mubr.bf16.mxu0 0
    %2115 = vmatmul.mubr.bf16.gmra.mrb[0].mxu0 %v1465
    %v2116 = vpop.f32.mrb[0].mxu0
    %v2117 = vadd.f32 %v1222, %v2116
    %v2118 = vpop.f32.mrb[0].mxu0
    %v2119 = vadd.f32 %v1226, %v2118
    %v2120 = vpop.f32.mrb[0].mxu0
    %v2121 = vpop.f32.mrb[0].mxu0
    %2122 = vdwg.mxu0
    %2123 = vmatprep.subr.bf16.mxu0 %v966
    %2124 = vmatpush1.bf16.msra.mxu0 %v965
    %2125 = vmatprep.subr.bf16.mxu0 %v1039
    %2126 = vmatpush1.bf16.msra.mxu0 %v1038
    %2127 = vmatprep.subr.bf16.mxu0 0
    %2128 = vmatpush1.bf16.msra.mxu0 0
    %2129 = vmatprep.subr.bf16.mxu0 0
    %2130 = vmatpush1.bf16.msra.mxu0 0
    %2131 = vmatprep.subr.bf16.mxu0 0
    %2132 = vmatpush1.bf16.msra.mxu0 0
    %2133 = vmatprep.subr.bf16.mxu0 0
    %2134 = vmatpush1.bf16.msra.mxu0 0
    %2135 = vmatprep.subr.bf16.mxu0 0
    %2136 = vmatpush1.bf16.msra.mxu0 0
    %2137 = vmatprep.subr.bf16.mxu0 0
    %2138 = vmatpush1.bf16.msra.mxu0 0
    %2139 = vmatprep.subr.bf16.mxu0 0
    %2140 = vmatpush1.bf16.msra.mxu0 0
    %2141 = vmatprep.subr.bf16.mxu0 0
    %2142 = vmatpush1.bf16.msra.mxu0 0
    %2143 = vmatprep.subr.bf16.mxu0 0
    %2144 = vmatpush1.bf16.msra.mxu0 0
    %2145 = vmatprep.subr.bf16.mxu0 0
    %2146 = vmatpush1.bf16.msra.mxu0 0
    %2147 = vmatprep.subr.bf16.mxu0 0
    %2148 = vmatpush1.bf16.msra.mxu0 0
    %2149 = vmatprep.subr.bf16.mxu0 0
    %2150 = vmatpush1.bf16.msra.mxu0 0
    %2151 = vmatprep.subr.bf16.mxu0 0
    %2152 = vmatpush1.bf16.msra.mxu0 0
    %2153 = vmatprep.subr.bf16.mxu0 0
    %2154 = vmatpush1.bf16.msra.mxu0 0
    %2155 = vmatprep.mubr.bf16.mxu0 0
    %2156 = vmatmul.mubr.bf16.gmra.mrb[0].mxu0 %v1465
    %v2157 = vpop.f32.mrb[0].mxu0
    %v2158 = vadd.f32 %v1230, %v2157
    %v2159 = vpop.f32.mrb[0].mxu0
    %v2160 = vadd.f32 %v1234, %v2159
    %v2161 = vpop.f32.mrb[0].mxu0
    %v2162 = vpop.f32.mrb[0].mxu0
    %2163 = vdwg.mxu0
    %2164 = vmatprep.subr.bf16.mxu0 %v968
    %2165 = vmatpush1.bf16.msra.mxu0 %v967
    %2166 = vmatprep.subr.bf16.mxu0 %v1041
    %2167 = vmatpush1.bf16.msra.mxu0 %v1040
    %2168 = vmatprep.subr.bf16.mxu0 0
    %2169 = vmatpush1.bf16.msra.mxu0 0
    %2170 = vmatprep.subr.bf16.mxu0 0
    %2171 = vmatpush1.bf16.msra.mxu0 0
    %2172 = vmatprep.subr.bf16.mxu0 0
    %2173 = vmatpush1.bf16.msra.mxu0 0
    %2174 = vmatprep.subr.bf16.mxu0 0
    %2175 = vmatpush1.bf16.msra.mxu0 0
    %2176 = vmatprep.subr.bf16.mxu0 0
    %2177 = vmatpush1.bf16.msra.mxu0 0
    %2178 = vmatprep.subr.bf16.mxu0 0
    %2179 = vmatpush1.bf16.msra.mxu0 0
    %2180 = vmatprep.subr.bf16.mxu0 0
    %2181 = vmatpush1.bf16.msra.mxu0 0
    %2182 = vmatprep.subr.bf16.mxu0 0
    %2183 = vmatpush1.bf16.msra.mxu0 0
    %2184 = vmatprep.subr.bf16.mxu0 0
    %2185 = vmatpush1.bf16.msra.mxu0 0
    %2186 = vmatprep.subr.bf16.mxu0 0
    %2187 = vmatpush1.bf16.msra.mxu0 0
    %2188 = vmatprep.subr.bf16.mxu0 0
    %2189 = vmatpush1.bf16.msra.mxu0 0
    %2190 = vmatprep.subr.bf16.mxu0 0
    %2191 = vmatpush1.bf16.msra.mxu0 0
    %2192 = vmatprep.subr.bf16.mxu0 0
    %2193 = vmatpush1.bf16.msra.mxu0 0
    %2194 = vmatprep.subr.bf16.mxu0 0
    %2195 = vmatpush1.bf16.msra.mxu0 0
    %2196 = vmatprep.mubr.bf16.mxu0 0
    %2197 = vmatmul.mubr.bf16.gmra.mrb[0].mxu0 %v1465
    %v2198 = vpop.f32.mrb[0].mxu0
    %v2199 = vadd.f32 %v1238, %v2198
    %v2200 = vpop.f32.mrb[0].mxu0
    %v2201 = vadd.f32 %v1242, %v2200
    %v2202 = vpop.f32.mrb[0].mxu0
    %v2203 = vpop.f32.mrb[0].mxu0
    %2204 = vdwg.mxu0
    %2205 = vmatprep.subr.bf16.mxu0 %v970
    %2206 = vmatpush1.bf16.msra.mxu0 %v969
    %2207 = vmatprep.subr.bf16.mxu0 %v1043
    %2208 = vmatpush1.bf16.msra.mxu0 %v1042
    %2209 = vmatprep.subr.bf16.mxu0 0
    %2210 = vmatpush1.bf16.msra.mxu0 0
    %2211 = vmatprep.subr.bf16.mxu0 0
    %2212 = vmatpush1.bf16.msra.mxu0 0
    %2213 = vmatprep.subr.bf16.mxu0 0
    %2214 = vmatpush1.bf16.msra.mxu0 0
    %2215 = vmatprep.subr.bf16.mxu0 0
    %2216 = vmatpush1.bf16.msra.mxu0 0
    %2217 = vmatprep.subr.bf16.mxu0 0
    %2218 = vmatpush1.bf16.msra.mxu0 0
    %2219 = vmatprep.subr.bf16.mxu0 0
    %2220 = vmatpush1.bf16.msra.mxu0 0
    %2221 = vmatprep.subr.bf16.mxu0 0
    %2222 = vmatpush1.bf16.msra.mxu0 0
    %2223 = vmatprep.subr.bf16.mxu0 0
    %2224 = vmatpush1.bf16.msra.mxu0 0
    %2225 = vmatprep.subr.bf16.mxu0 0
    %2226 = vmatpush1.bf16.msra.mxu0 0
    %2227 = vmatprep.subr.bf16.mxu0 0
    %2228 = vmatpush1.bf16.msra.mxu0 0
    %2229 = vmatprep.subr.bf16.mxu0 0
    %2230 = vmatpush1.bf16.msra.mxu0 0
    %2231 = vmatprep.subr.bf16.mxu0 0
    %2232 = vmatpush1.bf16.msra.mxu0 0
    %2233 = vmatprep.subr.bf16.mxu0 0
    %2234 = vmatpush1.bf16.msra.mxu0 0
    %2235 = vmatprep.subr.bf16.mxu0 0
    %2236 = vmatpush1.bf16.msra.mxu0 0
    %2237 = vmatprep.mubr.bf16.mxu0 0
    %2238 = vmatmul.mubr.bf16.gmra.mrb[0].mxu0 %v1465
    %v2239 = vpop.f32.mrb[0].mxu0
    %v2240 = vadd.f32 %v1246, %v2239
    %v2241 = vpop.f32.mrb[0].mxu0
    %v2242 = vadd.f32 %v1250, %v2241
    %v2243 = vpop.f32.mrb[0].mxu0
    %v2244 = vpop.f32.mrb[0].mxu0
    %2245 = vdwg.mxu0
    %2246 = vmatprep.subr.bf16.mxu0 %v972
    %2247 = vmatpush1.bf16.msra.mxu0 %v971
    %2248 = vmatprep.subr.bf16.mxu0 %v1045
    %2249 = vmatpush1.bf16.msra.mxu0 %v1044
    %2250 = vmatprep.subr.bf16.mxu0 0
    %2251 = vmatpush1.bf16.msra.mxu0 0
    %2252 = vmatprep.subr.bf16.mxu0 0
    %2253 = vmatpush1.bf16.msra.mxu0 0
    %2254 = vmatprep.subr.bf16.mxu0 0
    %2255 = vmatpush1.bf16.msra.mxu0 0
    %2256 = vmatprep.subr.bf16.mxu0 0
    %2257 = vmatpush1.bf16.msra.mxu0 0
    %2258 = vmatprep.subr.bf16.mxu0 0
    %2259 = vmatpush1.bf16.msra.mxu0 0
    %2260 = vmatprep.subr.bf16.mxu0 0
    %2261 = vmatpush1.bf16.msra.mxu0 0
    %2262 = vmatprep.subr.bf16.mxu0 0
    %2263 = vmatpush1.bf16.msra.mxu0 0
    %2264 = vmatprep.subr.bf16.mxu0 0
    %2265 = vmatpush1.bf16.msra.mxu0 0
    %2266 = vmatprep.subr.bf16.mxu0 0
    %2267 = vmatpush1.bf16.msra.mxu0 0
    %2268 = vmatprep.subr.bf16.mxu0 0
    %2269 = vmatpush1.bf16.msra.mxu0 0
    %2270 = vmatprep.subr.bf16.mxu0 0
    %2271 = vmatpush1.bf16.msra.mxu0 0
    %2272 = vmatprep.subr.bf16.mxu0 0
    %2273 = vmatpush1.bf16.msra.mxu0 0
    %2274 = vmatprep.subr.bf16.mxu0 0
    %2275 = vmatpush1.bf16.msra.mxu0 0
    %2276 = vmatprep.subr.bf16.mxu0 0
    %2277 = vmatpush1.bf16.msra.mxu0 0
    %2278 = vmatprep.mubr.bf16.mxu0 0
    %2279 = vmatmul.mubr.bf16.gmra.mrb[0].mxu0 %v1465
    %v2280 = vpop.f32.mrb[0].mxu0
    %v2281 = vadd.f32 %v1254, %v2280
    %v2282 = vpop.f32.mrb[0].mxu0
    %v2283 = vadd.f32 %v1258, %v2282
    %v2284 = vpop.f32.mrb[0].mxu0
    %v2285 = vpop.f32.mrb[0].mxu0
    %2286 = vdwg.mxu0
    %2287 = vmatprep.subr.bf16.mxu0 %v974
    %2288 = vmatpush1.bf16.msra.mxu0 %v973
    %2289 = vmatprep.subr.bf16.mxu0 %v1047
    %2290 = vmatpush1.bf16.msra.mxu0 %v1046
    %2291 = vmatprep.subr.bf16.mxu0 0
    %2292 = vmatpush1.bf16.msra.mxu0 0
    %2293 = vmatprep.subr.bf16.mxu0 0
    %2294 = vmatpush1.bf16.msra.mxu0 0
    %2295 = vmatprep.subr.bf16.mxu0 0
    %2296 = vmatpush1.bf16.msra.mxu0 0
    %2297 = vmatprep.subr.bf16.mxu0 0
    %2298 = vmatpush1.bf16.msra.mxu0 0
    %2299 = vmatprep.subr.bf16.mxu0 0
    %2300 = vmatpush1.bf16.msra.mxu0 0
    %2301 = vmatprep.subr.bf16.mxu0 0
    %2302 = vmatpush1.bf16.msra.mxu0 0
    %2303 = vmatprep.subr.bf16.mxu0 0
    %2304 = vmatpush1.bf16.msra.mxu0 0
    %2305 = vmatprep.subr.bf16.mxu0 0
    %2306 = vmatpush1.bf16.msra.mxu0 0
    %2307 = vmatprep.subr.bf16.mxu0 0
    %2308 = vmatpush1.bf16.msra.mxu0 0
    %2309 = vmatprep.subr.bf16.mxu0 0
    %2310 = vmatpush1.bf16.msra.mxu0 0
    %2311 = vmatprep.subr.bf16.mxu0 0
    %2312 = vmatpush1.bf16.msra.mxu0 0
    %2313 = vmatprep.subr.bf16.mxu0 0
    %2314 = vmatpush1.bf16.msra.mxu0 0
    %2315 = vmatprep.subr.bf16.mxu0 0
    %2316 = vmatpush1.bf16.msra.mxu0 0
    %2317 = vmatprep.subr.bf16.mxu0 0
    %2318 = vmatpush1.bf16.msra.mxu0 0
    %2319 = vmatprep.mubr.bf16.mxu0 0
    %2320 = vmatmul.mubr.bf16.gmra.mrb[0].mxu0 %v1465
    %v2321 = vpop.f32.mrb[0].mxu0
    %v2322 = vadd.f32 %v1262, %v2321
    %v2323 = vpop.f32.mrb[0].mxu0
    %v2324 = vadd.f32 %v1266, %v2323
    %v2325 = vpop.f32.mrb[0].mxu0
    %v2326 = vpop.f32.mrb[0].mxu0
    %2327 = vdwg.mxu0
    %2328 = vmatprep.subr.bf16.mxu0 %v976
    %2329 = vmatpush1.bf16.msra.mxu0 %v975
    %2330 = vmatprep.subr.bf16.mxu0 %v1049
    %2331 = vmatpush1.bf16.msra.mxu0 %v1048
    %2332 = vmatprep.subr.bf16.mxu0 0
    %2333 = vmatpush1.bf16.msra.mxu0 0
    %2334 = vmatprep.subr.bf16.mxu0 0
    %2335 = vmatpush1.bf16.msra.mxu0 0
    %2336 = vmatprep.subr.bf16.mxu0 0
    %2337 = vmatpush1.bf16.msra.mxu0 0
    %2338 = vmatprep.subr.bf16.mxu0 0
    %2339 = vmatpush1.bf16.msra.mxu0 0
    %2340 = vmatprep.subr.bf16.mxu0 0
    %2341 = vmatpush1.bf16.msra.mxu0 0
    %2342 = vmatprep.subr.bf16.mxu0 0
    %2343 = vmatpush1.bf16.msra.mxu0 0
    %2344 = vmatprep.subr.bf16.mxu0 0
    %2345 = vmatpush1.bf16.msra.mxu0 0
    %2346 = vmatprep.subr.bf16.mxu0 0
    %2347 = vmatpush1.bf16.msra.mxu0 0
    %2348 = vmatprep.subr.bf16.mxu0 0
    %2349 = vmatpush1.bf16.msra.mxu0 0
    %2350 = vmatprep.subr.bf16.mxu0 0
    %2351 = vmatpush1.bf16.msra.mxu0 0
    %2352 = vmatprep.subr.bf16.mxu0 0
    %2353 = vmatpush1.bf16.msra.mxu0 0
    %2354 = vmatprep.subr.bf16.mxu0 0
    %2355 = vmatpush1.bf16.msra.mxu0 0
    %2356 = vmatprep.subr.bf16.mxu0 0
    %2357 = vmatpush1.bf16.msra.mxu0 0
    %2358 = vmatprep.subr.bf16.mxu0 0
    %2359 = vmatpush1.bf16.msra.mxu0 0
    %2360 = vmatprep.mubr.bf16.mxu0 0
    %2361 = vmatmul.mubr.bf16.gmra.mrb[0].mxu0 %v1465
    %v2362 = vpop.f32.mrb[0].mxu0
    %v2363 = vadd.f32 %v1270, %v2362
    %v2364 = vpop.f32.mrb[0].mxu0
    %v2365 = vadd.f32 %v1274, %v2364
    %v2366 = vpop.f32.mrb[0].mxu0
    %v2367 = vpop.f32.mrb[0].mxu0
    %2368 = vdwg.mxu0
    %2369 = vmatprep.subr.bf16.mxu0 %v978
    %2370 = vmatpush1.bf16.msra.mxu0 %v977
    %2371 = vmatprep.subr.bf16.mxu0 %v1051
    %2372 = vmatpush1.bf16.msra.mxu0 %v1050
    %2373 = vmatprep.subr.bf16.mxu0 0
    %2374 = vmatpush1.bf16.msra.mxu0 0
    %2375 = vmatprep.subr.bf16.mxu0 0
    %2376 = vmatpush1.bf16.msra.mxu0 0
    %2377 = vmatprep.subr.bf16.mxu0 0
    %2378 = vmatpush1.bf16.msra.mxu0 0
    %2379 = vmatprep.subr.bf16.mxu0 0
    %2380 = vmatpush1.bf16.msra.mxu0 0
    %2381 = vmatprep.subr.bf16.mxu0 0
    %2382 = vmatpush1.bf16.msra.mxu0 0
    %2383 = vmatprep.subr.bf16.mxu0 0
    %2384 = vmatpush1.bf16.msra.mxu0 0
    %2385 = vmatprep.subr.bf16.mxu0 0
    %2386 = vmatpush1.bf16.msra.mxu0 0
    %2387 = vmatprep.subr.bf16.mxu0 0
    %2388 = vmatpush1.bf16.msra.mxu0 0
    %2389 = vmatprep.subr.bf16.mxu0 0
    %2390 = vmatpush1.bf16.msra.mxu0 0
    %2391 = vmatprep.subr.bf16.mxu0 0
    %2392 = vmatpush1.bf16.msra.mxu0 0
    %2393 = vmatprep.subr.bf16.mxu0 0
    %2394 = vmatpush1.bf16.msra.mxu0 0
    %2395 = vmatprep.subr.bf16.mxu0 0
    %2396 = vmatpush1.bf16.msra.mxu0 0
    %2397 = vmatprep.subr.bf16.mxu0 0
    %2398 = vmatpush1.bf16.msra.mxu0 0
    %2399 = vmatprep.subr.bf16.mxu0 0
    %2400 = vmatpush1.bf16.msra.mxu0 0
    %2401 = vmatprep.mubr.bf16.mxu0 0
    %2402 = vmatmul.mubr.bf16.gmra.mrb[0].mxu0 %v1465
    %v2403 = vpop.f32.mrb[0].mxu0
    %v2404 = vadd.f32 %v1278, %v2403
    %v2405 = vpop.f32.mrb[0].mxu0
    %v2406 = vadd.f32 %v1282, %v2405
    %v2407 = vpop.f32.mrb[0].mxu0
    %v2408 = vpop.f32.mrb[0].mxu0
    %2409 = vdwg.mxu0
    %2410 = vmatprep.subr.bf16.mxu0 %v980
    %2411 = vmatpush1.bf16.msra.mxu0 %v979
    %2412 = vmatprep.subr.bf16.mxu0 %v1053
    %2413 = vmatpush1.bf16.msra.mxu0 %v1052
    %2414 = vmatprep.subr.bf16.mxu0 0
    %2415 = vmatpush1.bf16.msra.mxu0 0
    %2416 = vmatprep.subr.bf16.mxu0 0
    %2417 = vmatpush1.bf16.msra.mxu0 0
    %2418 = vmatprep.subr.bf16.mxu0 0
    %2419 = vmatpush1.bf16.msra.mxu0 0
    %2420 = vmatprep.subr.bf16.mxu0 0
    %2421 = vmatpush1.bf16.msra.mxu0 0
    %2422 = vmatprep.subr.bf16.mxu0 0
    %2423 = vmatpush1.bf16.msra.mxu0 0
    %2424 = vmatprep.subr.bf16.mxu0 0
    %2425 = vmatpush1.bf16.msra.mxu0 0
    %2426 = vmatprep.subr.bf16.mxu0 0
    %2427 = vmatpush1.bf16.msra.mxu0 0
    %2428 = vmatprep.subr.bf16.mxu0 0
    %2429 = vmatpush1.bf16.msra.mxu0 0
    %2430 = vmatprep.subr.bf16.mxu0 0
    %2431 = vmatpush1.bf16.msra.mxu0 0
    %2432 = vmatprep.subr.bf16.mxu0 0
    %2433 = vmatpush1.bf16.msra.mxu0 0
    %2434 = vmatprep.subr.bf16.mxu0 0
    %2435 = vmatpush1.bf16.msra.mxu0 0
    %2436 = vmatprep.subr.bf16.mxu0 0
    %2437 = vmatpush1.bf16.msra.mxu0 0
    %2438 = vmatprep.subr.bf16.mxu0 0
    %2439 = vmatpush1.bf16.msra.mxu0 0
    %2440 = vmatprep.subr.bf16.mxu0 0
    %2441 = vmatpush1.bf16.msra.mxu0 0
    %2442 = vmatprep.mubr.bf16.mxu0 0
    %2443 = vmatmul.mubr.bf16.gmra.mrb[0].mxu0 %v1465
    %v2444 = vpop.f32.mrb[0].mxu0
    %v2445 = vadd.f32 %v1286, %v2444
    %v2446 = vpop.f32.mrb[0].mxu0
    %v2447 = vadd.f32 %v1290, %v2446
    %v2448 = vpop.f32.mrb[0].mxu0
    %v2449 = vpop.f32.mrb[0].mxu0
    %2450 = vdwg.mxu0
    %2451 = vmatprep.subr.bf16.mxu0 %v982
    %2452 = vmatpush1.bf16.msra.mxu0 %v981
    %2453 = vmatprep.subr.bf16.mxu0 %v1055
    %2454 = vmatpush1.bf16.msra.mxu0 %v1054
    %2455 = vmatprep.subr.bf16.mxu0 0
    %2456 = vmatpush1.bf16.msra.mxu0 0
    %2457 = vmatprep.subr.bf16.mxu0 0
    %2458 = vmatpush1.bf16.msra.mxu0 0
    %2459 = vmatprep.subr.bf16.mxu0 0
    %2460 = vmatpush1.bf16.msra.mxu0 0
    %2461 = vmatprep.subr.bf16.mxu0 0
    %2462 = vmatpush1.bf16.msra.mxu0 0
    %2463 = vmatprep.subr.bf16.mxu0 0
    %2464 = vmatpush1.bf16.msra.mxu0 0
    %2465 = vmatprep.subr.bf16.mxu0 0
    %2466 = vmatpush1.bf16.msra.mxu0 0
    %2467 = vmatprep.subr.bf16.mxu0 0
    %2468 = vmatpush1.bf16.msra.mxu0 0
    %2469 = vmatprep.subr.bf16.mxu0 0
    %2470 = vmatpush1.bf16.msra.mxu0 0
    %2471 = vmatprep.subr.bf16.mxu0 0
    %2472 = vmatpush1.bf16.msra.mxu0 0
    %2473 = vmatprep.subr.bf16.mxu0 0
    %2474 = vmatpush1.bf16.msra.mxu0 0
    %2475 = vmatprep.subr.bf16.mxu0 0
    %2476 = vmatpush1.bf16.msra.mxu0 0
    %2477 = vmatprep.subr.bf16.mxu0 0
    %2478 = vmatpush1.bf16.msra.mxu0 0
    %2479 = vmatprep.subr.bf16.mxu0 0
    %2480 = vmatpush1.bf16.msra.mxu0 0
    %2481 = vmatprep.subr.bf16.mxu0 0
    %2482 = vmatpush1.bf16.msra.mxu0 0
    %2483 = vmatprep.mubr.bf16.mxu0 0
    %2484 = vmatmul.mubr.bf16.gmra.mrb[0].mxu0 %v1465
    %v2485 = vpop.f32.mrb[0].mxu0
    %v2486 = vadd.f32 %v1294, %v2485
    %v2487 = vpop.f32.mrb[0].mxu0
    %v2488 = vadd.f32 %v1298, %v2487
    %v2489 = vpop.f32.mrb[0].mxu0
    %v2490 = vpop.f32.mrb[0].mxu0
    %2491 = vdwg.mxu0
    %2492 = vmatprep.subr.bf16.mxu0 %v984
    %2493 = vmatpush1.bf16.msra.mxu0 %v983
    %2494 = vmatprep.subr.bf16.mxu0 %v1057
    %2495 = vmatpush1.bf16.msra.mxu0 %v1056
    %2496 = vmatprep.subr.bf16.mxu0 0
    %2497 = vmatpush1.bf16.msra.mxu0 0
    %2498 = vmatprep.subr.bf16.mxu0 0
    %2499 = vmatpush1.bf16.msra.mxu0 0
    %2500 = vmatprep.subr.bf16.mxu0 0
    %2501 = vmatpush1.bf16.msra.mxu0 0
    %2502 = vmatprep.subr.bf16.mxu0 0
    %2503 = vmatpush1.bf16.msra.mxu0 0
    %2504 = vmatprep.subr.bf16.mxu0 0
    %2505 = vmatpush1.bf16.msra.mxu0 0
    %2506 = vmatprep.subr.bf16.mxu0 0
    %2507 = vmatpush1.bf16.msra.mxu0 0
    %2508 = vmatprep.subr.bf16.mxu0 0
    %2509 = vmatpush1.bf16.msra.mxu0 0
    %2510 = vmatprep.subr.bf16.mxu0 0
    %2511 = vmatpush1.bf16.msra.mxu0 0
    %2512 = vmatprep.subr.bf16.mxu0 0
    %2513 = vmatpush1.bf16.msra.mxu0 0
    %2514 = vmatprep.subr.bf16.mxu0 0
    %2515 = vmatpush1.bf16.msra.mxu0 0
    %2516 = vmatprep.subr.bf16.mxu0 0
    %2517 = vmatpush1.bf16.msra.mxu0 0
    %2518 = vmatprep.subr.bf16.mxu0 0
    %2519 = vmatpush1.bf16.msra.mxu0 0
    %2520 = vmatprep.subr.bf16.mxu0 0
    %2521 = vmatpush1.bf16.msra.mxu0 0
    %2522 = vmatprep.subr.bf16.mxu0 0
    %2523 = vmatpush1.bf16.msra.mxu0 0
    %2524 = vmatprep.mubr.bf16.mxu0 0
    %2525 = vmatmul.mubr.bf16.gmra.mrb[0].mxu0 %v1465
    %v2526 = vpop.f32.mrb[0].mxu0
    %v2527 = vadd.f32 %v1302, %v2526
    %v2528 = vpop.f32.mrb[0].mxu0
    %v2529 = vadd.f32 %v1306, %v2528
    %v2530 = vpop.f32.mrb[0].mxu0
    %v2531 = vpop.f32.mrb[0].mxu0
    %2532 = vdwg.mxu0
    %2533 = vmatprep.subr.bf16.mxu0 %v986
    %2534 = vmatpush1.bf16.msra.mxu0 %v985
    %2535 = vmatprep.subr.bf16.mxu0 %v1059
    %2536 = vmatpush1.bf16.msra.mxu0 %v1058
    %2537 = vmatprep.subr.bf16.mxu0 0
    %2538 = vmatpush1.bf16.msra.mxu0 0
    %2539 = vmatprep.subr.bf16.mxu0 0
    %2540 = vmatpush1.bf16.msra.mxu0 0
    %2541 = vmatprep.subr.bf16.mxu0 0
    %2542 = vmatpush1.bf16.msra.mxu0 0
    %2543 = vmatprep.subr.bf16.mxu0 0
    %2544 = vmatpush1.bf16.msra.mxu0 0
    %2545 = vmatprep.subr.bf16.mxu0 0
    %2546 = vmatpush1.bf16.msra.mxu0 0
    %2547 = vmatprep.subr.bf16.mxu0 0
    %2548 = vmatpush1.bf16.msra.mxu0 0
    %2549 = vmatprep.subr.bf16.mxu0 0
    %2550 = vmatpush1.bf16.msra.mxu0 0
    %2551 = vmatprep.subr.bf16.mxu0 0
    %2552 = vmatpush1.bf16.msra.mxu0 0
    %2553 = vmatprep.subr.bf16.mxu0 0
    %2554 = vmatpush1.bf16.msra.mxu0 0
    %2555 = vmatprep.subr.bf16.mxu0 0
    %2556 = vmatpush1.bf16.msra.mxu0 0
    %2557 = vmatprep.subr.bf16.mxu0 0
    %2558 = vmatpush1.bf16.msra.mxu0 0
    %2559 = vmatprep.subr.bf16.mxu0 0
    %2560 = vmatpush1.bf16.msra.mxu0 0
    %2561 = vmatprep.subr.bf16.mxu0 0
    %2562 = vmatpush1.bf16.msra.mxu0 0
    %2563 = vmatprep.subr.bf16.mxu0 0
    %2564 = vmatpush1.bf16.msra.mxu0 0
    %2565 = vmatprep.mubr.bf16.mxu0 0
    %2566 = vmatmul.mubr.bf16.gmra.mrb[0].mxu0 %v1465
    %v2567 = vpop.f32.mrb[0].mxu0
    %v2568 = vadd.f32 %v1310, %v2567
    %v2569 = vpop.f32.mrb[0].mxu0
    %v2570 = vadd.f32 %v1314, %v2569
    %v2571 = vpop.f32.mrb[0].mxu0
    %v2572 = vpop.f32.mrb[0].mxu0
    %2573 = vdwg.mxu0
    %2574 = vmatprep.subr.bf16.mxu0 %v988
    %2575 = vmatpush1.bf16.msra.mxu0 %v987
    %2576 = vmatprep.subr.bf16.mxu0 %v1061
    %2577 = vmatpush1.bf16.msra.mxu0 %v1060
    %2578 = vmatprep.subr.bf16.mxu0 0
    %2579 = vmatpush1.bf16.msra.mxu0 0
    %2580 = vmatprep.subr.bf16.mxu0 0
    %2581 = vmatpush1.bf16.msra.mxu0 0
    %2582 = vmatprep.subr.bf16.mxu0 0
    %2583 = vmatpush1.bf16.msra.mxu0 0
    %2584 = vmatprep.subr.bf16.mxu0 0
    %2585 = vmatpush1.bf16.msra.mxu0 0
    %2586 = vmatprep.subr.bf16.mxu0 0
    %2587 = vmatpush1.bf16.msra.mxu0 0
    %2588 = vmatprep.subr.bf16.mxu0 0
    %2589 = vmatpush1.bf16.msra.mxu0 0
    %2590 = vmatprep.subr.bf16.mxu0 0
    %2591 = vmatpush1.bf16.msra.mxu0 0
    %2592 = vmatprep.subr.bf16.mxu0 0
    %2593 = vmatpush1.bf16.msra.mxu0 0
    %2594 = vmatprep.subr.bf16.mxu0 0
    %2595 = vmatpush1.bf16.msra.mxu0 0
    %2596 = vmatprep.subr.bf16.mxu0 0
    %2597 = vmatpush1.bf16.msra.mxu0 0
    %2598 = vmatprep.subr.bf16.mxu0 0
    %2599 = vmatpush1.bf16.msra.mxu0 0
    %2600 = vmatprep.subr.bf16.mxu0 0
    %2601 = vmatpush1.bf16.msra.mxu0 0
    %2602 = vmatprep.subr.bf16.mxu0 0
    %2603 = vmatpush1.bf16.msra.mxu0 0
    %2604 = vmatprep.subr.bf16.mxu0 0
    %2605 = vmatpush1.bf16.msra.mxu0 0
    %2606 = vmatprep.mubr.bf16.mxu0 0
    %2607 = vmatmul.mubr.bf16.gmra.mrb[0].mxu0 %v1465
    %v2608 = vpop.f32.mrb[0].mxu0
    %v2609 = vadd.f32 %v1318, %v2608
    %v2610 = vpop.f32.mrb[0].mxu0
    %v2611 = vadd.f32 %v1322, %v2610
    %v2612 = vpop.f32.mrb[0].mxu0
    %v2613 = vpop.f32.mrb[0].mxu0
    %2614 = vdwg.mxu0
    %2615 = vmatprep.subr.bf16.mxu0 %v990
    %2616 = vmatpush1.bf16.msra.mxu0 %v989
    %2617 = vmatprep.subr.bf16.mxu0 %v1063
    %2618 = vmatpush1.bf16.msra.mxu0 %v1062
    %2619 = vmatprep.subr.bf16.mxu0 0
    %2620 = vmatpush1.bf16.msra.mxu0 0
    %2621 = vmatprep.subr.bf16.mxu0 0
    %2622 = vmatpush1.bf16.msra.mxu0 0
    %2623 = vmatprep.subr.bf16.mxu0 0
    %2624 = vmatpush1.bf16.msra.mxu0 0
    %2625 = vmatprep.subr.bf16.mxu0 0
    %2626 = vmatpush1.bf16.msra.mxu0 0
    %2627 = vmatprep.subr.bf16.mxu0 0
    %2628 = vmatpush1.bf16.msra.mxu0 0
    %2629 = vmatprep.subr.bf16.mxu0 0
    %2630 = vmatpush1.bf16.msra.mxu0 0
    %2631 = vmatprep.subr.bf16.mxu0 0
    %2632 = vmatpush1.bf16.msra.mxu0 0
    %2633 = vmatprep.subr.bf16.mxu0 0
    %2634 = vmatpush1.bf16.msra.mxu0 0
    %2635 = vmatprep.subr.bf16.mxu0 0
    %2636 = vmatpush1.bf16.msra.mxu0 0
    %2637 = vmatprep.subr.bf16.mxu0 0
    %2638 = vmatpush1.bf16.msra.mxu0 0
    %2639 = vmatprep.subr.bf16.mxu0 0
    %2640 = vmatpush1.bf16.msra.mxu0 0
    %2641 = vmatprep.subr.bf16.mxu0 0
    %2642 = vmatpush1.bf16.msra.mxu0 0
    %2643 = vmatprep.subr.bf16.mxu0 0
    %2644 = vmatpush1.bf16.msra.mxu0 0
    %2645 = vmatprep.subr.bf16.mxu0 0
    %2646 = vmatpush1.bf16.msra.mxu0 0
    %2647 = vmatprep.mubr.bf16.mxu0 0
    %2648 = vmatmul.mubr.bf16.gmra.mrb[0].mxu0 %v1465
    %v2649 = vpop.f32.mrb[0].mxu0
    %v2650 = vadd.f32 %v1326, %v2649
    %v2651 = vpop.f32.mrb[0].mxu0
    %v2652 = vadd.f32 %v1330, %v2651
    %v2653 = vpop.f32.mrb[0].mxu0
    %v2654 = vpop.f32.mrb[0].mxu0
    %2655 = vdwg.mxu0
    %2656 = vmatprep.subr.bf16.mxu0 %v992
    %2657 = vmatpush1.bf16.msra.mxu0 %v991
    %2658 = vmatprep.subr.bf16.mxu0 %v1065
    %2659 = vmatpush1.bf16.msra.mxu0 %v1064
    %2660 = vmatprep.subr.bf16.mxu0 0
    %2661 = vmatpush1.bf16.msra.mxu0 0
    %2662 = vmatprep.subr.bf16.mxu0 0
    %2663 = vmatpush1.bf16.msra.mxu0 0
    %2664 = vmatprep.subr.bf16.mxu0 0
    %2665 = vmatpush1.bf16.msra.mxu0 0
    %2666 = vmatprep.subr.bf16.mxu0 0
    %2667 = vmatpush1.bf16.msra.mxu0 0
    %2668 = vmatprep.subr.bf16.mxu0 0
    %2669 = vmatpush1.bf16.msra.mxu0 0
    %2670 = vmatprep.subr.bf16.mxu0 0
    %2671 = vmatpush1.bf16.msra.mxu0 0
    %2672 = vmatprep.subr.bf16.mxu0 0
    %2673 = vmatpush1.bf16.msra.mxu0 0
    %2674 = vmatprep.subr.bf16.mxu0 0
    %2675 = vmatpush1.bf16.msra.mxu0 0
    %2676 = vmatprep.subr.bf16.mxu0 0
    %2677 = vmatpush1.bf16.msra.mxu0 0
    %2678 = vmatprep.subr.bf16.mxu0 0
    %2679 = vmatpush1.bf16.msra.mxu0 0
    %2680 = vmatprep.subr.bf16.mxu0 0
    %2681 = vmatpush1.bf16.msra.mxu0 0
    %2682 = vmatprep.subr.bf16.mxu0 0
    %2683 = vmatpush1.bf16.msra.mxu0 0
    %2684 = vmatprep.subr.bf16.mxu0 0
    %2685 = vmatpush1.bf16.msra.mxu0 0
    %2686 = vmatprep.subr.bf16.mxu0 0
    %2687 = vmatpush1.bf16.msra.mxu0 0
    %2688 = vmatprep.mubr.bf16.mxu0 0
    %2689 = vmatmul.mubr.bf16.gmra.mrb[0].mxu0 %v1465
    %v2690 = vpop.f32.mrb[0].mxu0
    %v2691 = vadd.f32 %v1334, %v2690
    %v2692 = vpop.f32.mrb[0].mxu0
    %v2693 = vadd.f32 %v1338, %v2692
    %v2694 = vpop.f32.mrb[0].mxu0
    %v2695 = vpop.f32.mrb[0].mxu0
    %2696 = vdwg.mxu0
    %2697 = vmatprep.subr.bf16.mxu0 %v994
    %2698 = vmatpush1.bf16.msra.mxu0 %v993
    %2699 = vmatprep.subr.bf16.mxu0 %v1067
    %2700 = vmatpush1.bf16.msra.mxu0 %v1066
    %2701 = vmatprep.subr.bf16.mxu0 0
    %2702 = vmatpush1.bf16.msra.mxu0 0
    %2703 = vmatprep.subr.bf16.mxu0 0
    %2704 = vmatpush1.bf16.msra.mxu0 0
    %2705 = vmatprep.subr.bf16.mxu0 0
    %2706 = vmatpush1.bf16.msra.mxu0 0
    %2707 = vmatprep.subr.bf16.mxu0 0
    %2708 = vmatpush1.bf16.msra.mxu0 0
    %2709 = vmatprep.subr.bf16.mxu0 0
    %2710 = vmatpush1.bf16.msra.mxu0 0
    %2711 = vmatprep.subr.bf16.mxu0 0
    %2712 = vmatpush1.bf16.msra.mxu0 0
    %2713 = vmatprep.subr.bf16.mxu0 0
    %2714 = vmatpush1.bf16.msra.mxu0 0
    %2715 = vmatprep.subr.bf16.mxu0 0
    %2716 = vmatpush1.bf16.msra.mxu0 0
    %2717 = vmatprep.subr.bf16.mxu0 0
    %2718 = vmatpush1.bf16.msra.mxu0 0
    %2719 = vmatprep.subr.bf16.mxu0 0
    %2720 = vmatpush1.bf16.msra.mxu0 0
    %2721 = vmatprep.subr.bf16.mxu0 0
    %2722 = vmatpush1.bf16.msra.mxu0 0
    %2723 = vmatprep.subr.bf16.mxu0 0
    %2724 = vmatpush1.bf16.msra.mxu0 0
    %2725 = vmatprep.subr.bf16.mxu0 0
    %2726 = vmatpush1.bf16.msra.mxu0 0
    %2727 = vmatprep.subr.bf16.mxu0 0
    %2728 = vmatpush1.bf16.msra.mxu0 0
    %2729 = vmatprep.mubr.bf16.mxu0 0
    %2730 = vmatmul.mubr.bf16.gmra.mrb[0].mxu0 %v1465
    %v2731 = vpop.f32.mrb[0].mxu0
    %v2732 = vadd.f32 %v1342, %v2731
    %v2733 = vpop.f32.mrb[0].mxu0
    %v2734 = vadd.f32 %v1346, %v2733
    %v2735 = vpop.f32.mrb[0].mxu0
    %v2736 = vpop.f32.mrb[0].mxu0
    %2737 = vdwg.mxu0
    %2738 = vmatprep.subr.bf16.mxu0 %v996
    %2739 = vmatpush1.bf16.msra.mxu0 %v995
    %2740 = vmatprep.subr.bf16.mxu0 %v1069
    %2741 = vmatpush1.bf16.msra.mxu0 %v1068
    %2742 = vmatprep.subr.bf16.mxu0 0
    %2743 = vmatpush1.bf16.msra.mxu0 0
    %2744 = vmatprep.subr.bf16.mxu0 0
    %2745 = vmatpush1.bf16.msra.mxu0 0
    %2746 = vmatprep.subr.bf16.mxu0 0
    %2747 = vmatpush1.bf16.msra.mxu0 0
    %2748 = vmatprep.subr.bf16.mxu0 0
    %2749 = vmatpush1.bf16.msra.mxu0 0
    %2750 = vmatprep.subr.bf16.mxu0 0
    %2751 = vmatpush1.bf16.msra.mxu0 0
    %2752 = vmatprep.subr.bf16.mxu0 0
    %2753 = vmatpush1.bf16.msra.mxu0 0
    %2754 = vmatprep.subr.bf16.mxu0 0
    %2755 = vmatpush1.bf16.msra.mxu0 0
    %2756 = vmatprep.subr.bf16.mxu0 0
    %2757 = vmatpush1.bf16.msra.mxu0 0
    %2758 = vmatprep.subr.bf16.mxu0 0
    %2759 = vmatpush1.bf16.msra.mxu0 0
    %2760 = vmatprep.subr.bf16.mxu0 0
    %2761 = vmatpush1.bf16.msra.mxu0 0
    %2762 = vmatprep.subr.bf16.mxu0 0
    %2763 = vmatpush1.bf16.msra.mxu0 0
    %2764 = vmatprep.subr.bf16.mxu0 0
    %2765 = vmatpush1.bf16.msra.mxu0 0
    %2766 = vmatprep.subr.bf16.mxu0 0
    %2767 = vmatpush1.bf16.msra.mxu0 0
    %2768 = vmatprep.subr.bf16.mxu0 0
    %2769 = vmatpush1.bf16.msra.mxu0 0
    %2770 = vmatprep.mubr.bf16.mxu0 0
    %2771 = vmatmul.mubr.bf16.gmra.mrb[0].mxu0 %v1465
    %v2772 = vpop.f32.mrb[0].mxu0
    %v2773 = vadd.f32 %v1350, %v2772
    %v2774 = vpop.f32.mrb[0].mxu0
    %v2775 = vadd.f32 %v1354, %v2774
    %v2776 = vpop.f32.mrb[0].mxu0
    %v2777 = vpop.f32.mrb[0].mxu0
    %2778 = vdwg.mxu0
    %2779 = vmatprep.subr.bf16.mxu0 %v998
    %2780 = vmatpush1.bf16.msra.mxu0 %v997
    %2781 = vmatprep.subr.bf16.mxu0 %v1071
    %2782 = vmatpush1.bf16.msra.mxu0 %v1070
    %2783 = vmatprep.subr.bf16.mxu0 0
    %2784 = vmatpush1.bf16.msra.mxu0 0
    %2785 = vmatprep.subr.bf16.mxu0 0
    %2786 = vmatpush1.bf16.msra.mxu0 0
    %2787 = vmatprep.subr.bf16.mxu0 0
    %2788 = vmatpush1.bf16.msra.mxu0 0
    %2789 = vmatprep.subr.bf16.mxu0 0
    %2790 = vmatpush1.bf16.msra.mxu0 0
    %2791 = vmatprep.subr.bf16.mxu0 0
    %2792 = vmatpush1.bf16.msra.mxu0 0
    %2793 = vmatprep.subr.bf16.mxu0 0
    %2794 = vmatpush1.bf16.msra.mxu0 0
    %2795 = vmatprep.subr.bf16.mxu0 0
    %2796 = vmatpush1.bf16.msra.mxu0 0
    %2797 = vmatprep.subr.bf16.mxu0 0
    %2798 = vmatpush1.bf16.msra.mxu0 0
    %2799 = vmatprep.subr.bf16.mxu0 0
    %2800 = vmatpush1.bf16.msra.mxu0 0
    %2801 = vmatprep.subr.bf16.mxu0 0
    %2802 = vmatpush1.bf16.msra.mxu0 0
    %2803 = vmatprep.subr.bf16.mxu0 0
    %2804 = vmatpush1.bf16.msra.mxu0 0
    %2805 = vmatprep.subr.bf16.mxu0 0
    %2806 = vmatpush1.bf16.msra.mxu0 0
    %2807 = vmatprep.subr.bf16.mxu0 0
    %2808 = vmatpush1.bf16.msra.mxu0 0
    %2809 = vmatprep.subr.bf16.mxu0 0
    %2810 = vmatpush1.bf16.msra.mxu0 0
    %2811 = vmatprep.mubr.bf16.mxu0 0
    %2812 = vmatmul.mubr.bf16.gmra.mrb[0].mxu0 %v1465
    %v2813 = vpop.f32.mrb[0].mxu0
    %v2814 = vadd.f32 %v1358, %v2813
    %v2815 = vpop.f32.mrb[0].mxu0
    %v2816 = vadd.f32 %v1362, %v2815
    %v2817 = vpop.f32.mrb[0].mxu0
    %v2818 = vpop.f32.mrb[0].mxu0
    %2819 = vdwg.mxu0
    %2820 = vmatprep.subr.bf16.mxu0 %v1000
    %2821 = vmatpush1.bf16.msra.mxu0 %v999
    %2822 = vmatprep.subr.bf16.mxu0 %v1073
    %2823 = vmatpush1.bf16.msra.mxu0 %v1072
    %2824 = vmatprep.subr.bf16.mxu0 0
    %2825 = vmatpush1.bf16.msra.mxu0 0
    %2826 = vmatprep.subr.bf16.mxu0 0
    %2827 = vmatpush1.bf16.msra.mxu0 0
    %2828 = vmatprep.subr.bf16.mxu0 0
    %2829 = vmatpush1.bf16.msra.mxu0 0
    %2830 = vmatprep.subr.bf16.mxu0 0
    %2831 = vmatpush1.bf16.msra.mxu0 0
    %2832 = vmatprep.subr.bf16.mxu0 0
    %2833 = vmatpush1.bf16.msra.mxu0 0
    %2834 = vmatprep.subr.bf16.mxu0 0
    %2835 = vmatpush1.bf16.msra.mxu0 0
    %2836 = vmatprep.subr.bf16.mxu0 0
    %2837 = vmatpush1.bf16.msra.mxu0 0
    %2838 = vmatprep.subr.bf16.mxu0 0
    %2839 = vmatpush1.bf16.msra.mxu0 0
    %2840 = vmatprep.subr.bf16.mxu0 0
    %2841 = vmatpush1.bf16.msra.mxu0 0
    %2842 = vmatprep.subr.bf16.mxu0 0
    %2843 = vmatpush1.bf16.msra.mxu0 0
    %2844 = vmatprep.subr.bf16.mxu0 0
    %2845 = vmatpush1.bf16.msra.mxu0 0
    %2846 = vmatprep.subr.bf16.mxu0 0
    %2847 = vmatpush1.bf16.msra.mxu0 0
    %2848 = vmatprep.subr.bf16.mxu0 0
    %2849 = vmatpush1.bf16.msra.mxu0 0
    %2850 = vmatprep.subr.bf16.mxu0 0
    %2851 = vmatpush1.bf16.msra.mxu0 0
    %2852 = vmatprep.mubr.bf16.mxu0 0
    %2853 = vmatmul.mubr.bf16.gmra.mrb[0].mxu0 %v1465
    %v2854 = vpop.f32.mrb[0].mxu0
    %v2855 = vadd.f32 %v1366, %v2854
    %v2856 = vpop.f32.mrb[0].mxu0
    %v2857 = vadd.f32 %v1370, %v2856
    %v2858 = vpop.f32.mrb[0].mxu0
    %v2859 = vpop.f32.mrb[0].mxu0
    %2860 = vdwg.mxu0
    %2861 = vmatprep.subr.bf16.mxu0 %v1002
    %2862 = vmatpush1.bf16.msra.mxu0 %v1001
    %2863 = vmatprep.subr.bf16.mxu0 %v1075
    %2864 = vmatpush1.bf16.msra.mxu0 %v1074
    %2865 = vmatprep.subr.bf16.mxu0 0
    %2866 = vmatpush1.bf16.msra.mxu0 0
    %2867 = vmatprep.subr.bf16.mxu0 0
    %2868 = vmatpush1.bf16.msra.mxu0 0
    %2869 = vmatprep.subr.bf16.mxu0 0
    %2870 = vmatpush1.bf16.msra.mxu0 0
    %2871 = vmatprep.subr.bf16.mxu0 0
    %2872 = vmatpush1.bf16.msra.mxu0 0
    %2873 = vmatprep.subr.bf16.mxu0 0
    %2874 = vmatpush1.bf16.msra.mxu0 0
    %2875 = vmatprep.subr.bf16.mxu0 0
    %2876 = vmatpush1.bf16.msra.mxu0 0
    %2877 = vmatprep.subr.bf16.mxu0 0
    %2878 = vmatpush1.bf16.msra.mxu0 0
    %2879 = vmatprep.subr.bf16.mxu0 0
    %2880 = vmatpush1.bf16.msra.mxu0 0
    %2881 = vmatprep.subr.bf16.mxu0 0
    %2882 = vmatpush1.bf16.msra.mxu0 0
    %2883 = vmatprep.subr.bf16.mxu0 0
    %2884 = vmatpush1.bf16.msra.mxu0 0
    %2885 = vmatprep.subr.bf16.mxu0 0
    %2886 = vmatpush1.bf16.msra.mxu0 0
    %2887 = vmatprep.subr.bf16.mxu0 0
    %2888 = vmatpush1.bf16.msra.mxu0 0
    %2889 = vmatprep.subr.bf16.mxu0 0
    %2890 = vmatpush1.bf16.msra.mxu0 0
    %2891 = vmatprep.subr.bf16.mxu0 0
    %2892 = vmatpush1.bf16.msra.mxu0 0
    %2893 = vmatprep.mubr.bf16.mxu0 0
    %2894 = vmatmul.mubr.bf16.gmra.mrb[0].mxu0 %v1465
    %v2895 = vpop.f32.mrb[0].mxu0
    %v2896 = vadd.f32 %v1374, %v2895
    %v2897 = vpop.f32.mrb[0].mxu0
    %v2898 = vadd.f32 %v1378, %v2897
    %v2899 = vpop.f32.mrb[0].mxu0
    %v2900 = vpop.f32.mrb[0].mxu0
    %2901 = vdwg.mxu0
    %2902 = vmatprep.subr.bf16.mxu0 %v1004
    %2903 = vmatpush1.bf16.msra.mxu0 %v1003
    %2904 = vmatprep.subr.bf16.mxu0 %v1077
    %2905 = vmatpush1.bf16.msra.mxu0 %v1076
    %2906 = vmatprep.subr.bf16.mxu0 0
    %2907 = vmatpush1.bf16.msra.mxu0 0
    %2908 = vmatprep.subr.bf16.mxu0 0
    %2909 = vmatpush1.bf16.msra.mxu0 0
    %2910 = vmatprep.subr.bf16.mxu0 0
    %2911 = vmatpush1.bf16.msra.mxu0 0
    %2912 = vmatprep.subr.bf16.mxu0 0
    %2913 = vmatpush1.bf16.msra.mxu0 0
    %2914 = vmatprep.subr.bf16.mxu0 0
    %2915 = vmatpush1.bf16.msra.mxu0 0
    %2916 = vmatprep.subr.bf16.mxu0 0
    %2917 = vmatpush1.bf16.msra.mxu0 0
    %2918 = vmatprep.subr.bf16.mxu0 0
    %2919 = vmatpush1.bf16.msra.mxu0 0
    %2920 = vmatprep.subr.bf16.mxu0 0
    %2921 = vmatpush1.bf16.msra.mxu0 0
    %2922 = vmatprep.subr.bf16.mxu0 0
    %2923 = vmatpush1.bf16.msra.mxu0 0
    %2924 = vmatprep.subr.bf16.mxu0 0
    %2925 = vmatpush1.bf16.msra.mxu0 0
    %2926 = vmatprep.subr.bf16.mxu0 0
    %2927 = vmatpush1.bf16.msra.mxu0 0
    %2928 = vmatprep.subr.bf16.mxu0 0
    %2929 = vmatpush1.bf16.msra.mxu0 0
    %2930 = vmatprep.subr.bf16.mxu0 0
    %2931 = vmatpush1.bf16.msra.mxu0 0
    %2932 = vmatprep.subr.bf16.mxu0 0
    %2933 = vmatpush1.bf16.msra.mxu0 0
    %2934 = vmatprep.mubr.bf16.mxu0 0
    %2935 = vmatmul.mubr.bf16.gmra.mrb[0].mxu0 %v1465
    %v2936 = vpop.f32.mrb[0].mxu0
    %v2937 = vadd.f32 %v1382, %v2936
    %v2938 = vpop.f32.mrb[0].mxu0
    %v2939 = vadd.f32 %v1386, %v2938
    %v2940 = vpop.f32.mrb[0].mxu0
    %v2941 = vpop.f32.mrb[0].mxu0
    %2942 = vdwg.mxu0
    %2943 = vmatprep.subr.bf16.mxu0 0
    %2944 = vmatpush1.bf16.msra.mxu0 %v1005
    %2945 = vmatprep.subr.bf16.mxu0 0
    %2946 = vmatpush1.bf16.msra.mxu0 %v1078
    %2947 = vmatprep.subr.bf16.mxu0 0
    %2948 = vmatpush1.bf16.msra.mxu0 0
    %2949 = vmatprep.subr.bf16.mxu0 0
    %2950 = vmatpush1.bf16.msra.mxu0 0
    %2951 = vmatprep.subr.bf16.mxu0 0
    %2952 = vmatpush1.bf16.msra.mxu0 0
    %2953 = vmatprep.subr.bf16.mxu0 0
    %2954 = vmatpush1.bf16.msra.mxu0 0
    %2955 = vmatprep.subr.bf16.mxu0 0
    %2956 = vmatpush1.bf16.msra.mxu0 0
    %2957 = vmatprep.subr.bf16.mxu0 0
    %2958 = vmatpush1.bf16.msra.mxu0 0
    %2959 = vmatprep.subr.bf16.mxu0 0
    %2960 = vmatpush1.bf16.msra.mxu0 0
    %2961 = vmatprep.subr.bf16.mxu0 0
    %2962 = vmatpush1.bf16.msra.mxu0 0
    %2963 = vmatprep.subr.bf16.mxu0 0
    %2964 = vmatpush1.bf16.msra.mxu0 0
    %2965 = vmatprep.subr.bf16.mxu0 0
    %2966 = vmatpush1.bf16.msra.mxu0 0
    %2967 = vmatprep.subr.bf16.mxu0 0
    %2968 = vmatpush1.bf16.msra.mxu0 0
    %2969 = vmatprep.subr.bf16.mxu0 0
    %2970 = vmatpush1.bf16.msra.mxu0 0
    %2971 = vmatprep.subr.bf16.mxu0 0
    %2972 = vmatpush1.bf16.msra.mxu0 0
    %2973 = vmatprep.subr.bf16.mxu0 0
    %2974 = vmatpush1.bf16.msra.mxu0 0
    %2975 = vmatprep.mubr.bf16.mxu0 0
    %2976 = vmatmul.mubr.bf16.gmra.mrb[0].mxu0 %v1465
    %v2977 = vpop.f32.mrb[0].mxu0
    %v2978 = vadd.f32 %v1390, %v2977
    %v2979 = vpop.f32.mrb[0].mxu0
    %v2980 = vpop.f32.mrb[0].mxu0
    %v2981 = vpop.f32.mrb[0].mxu0
    %2982 = vdwg.mxu0
    %v2983 = vxor.u32 %v1502, 2147483648
    %v2984 = vxor.u32 %v1504, 2147483648
    %v2985 = vxor.u32 %v1543, 2147483648
    %v2986 = vxor.u32 %v1545, 2147483648
    %v2987 = vxor.u32 %v1584, 2147483648
    %v2988 = vxor.u32 %v1586, 2147483648
    %v2989 = vxor.u32 %v1625, 2147483648
    %v2990 = vxor.u32 %v1627, 2147483648
    %v2991 = vxor.u32 %v1666, 2147483648
    %v2992 = vxor.u32 %v1668, 2147483648
    %v2993 = vxor.u32 %v1707, 2147483648
    %v2994 = vxor.u32 %v1709, 2147483648
    %v2995 = vxor.u32 %v1748, 2147483648
    %v2996 = vxor.u32 %v1750, 2147483648
    %v2997 = vxor.u32 %v1789, 2147483648
    %v2998 = vxor.u32 %v1791, 2147483648
    %v2999 = vxor.u32 %v1830, 2147483648
    %v3000 = vxor.u32 %v1832, 2147483648
    %v3001 = vxor.u32 %v1871, 2147483648
    %v3002 = vxor.u32 %v1873, 2147483648
    %v3003 = vxor.u32 %v1912, 2147483648
    %v3004 = vxor.u32 %v1914, 2147483648
    %v3005 = vxor.u32 %v1953, 2147483648
    %v3006 = vxor.u32 %v1955, 2147483648
    %v3007 = vxor.u32 %v1994, 2147483648
    %v3008 = vxor.u32 %v1996, 2147483648
    %v3009 = vxor.u32 %v2035, 2147483648
    %v3010 = vxor.u32 %v2037, 2147483648
    %v3011 = vxor.u32 %v2076, 2147483648
    %v3012 = vxor.u32 %v2078, 2147483648
    %v3013 = vxor.u32 %v2117, 2147483648
    %v3014 = vxor.u32 %v2119, 2147483648
    %v3015 = vxor.u32 %v2158, 2147483648
    %v3016 = vxor.u32 %v2160, 2147483648
    %v3017 = vxor.u32 %v2199, 2147483648
    %v3018 = vxor.u32 %v2201, 2147483648
    %v3019 = vxor.u32 %v2240, 2147483648
    %v3020 = vxor.u32 %v2242, 2147483648
    %v3021 = vxor.u32 %v2281, 2147483648
    %v3022 = vxor.u32 %v2283, 2147483648
    %v3023 = vxor.u32 %v2322, 2147483648
    %v3024 = vxor.u32 %v2324, 2147483648
    %v3025 = vxor.u32 %v2363, 2147483648
    %v3026 = vxor.u32 %v2365, 2147483648
    %v3027 = vxor.u32 %v2404, 2147483648
    %v3028 = vxor.u32 %v2406, 2147483648
    %v3029 = vxor.u32 %v2445, 2147483648
    %v3030 = vxor.u32 %v2447, 2147483648
    %v3031 = vxor.u32 %v2486, 2147483648
    %v3032 = vxor.u32 %v2488, 2147483648
    %v3033 = vxor.u32 %v2527, 2147483648
    %v3034 = vxor.u32 %v2529, 2147483648
    %v3035 = vxor.u32 %v2568, 2147483648
    %v3036 = vxor.u32 %v2570, 2147483648
    %v3037 = vxor.u32 %v2609, 2147483648
    %v3038 = vxor.u32 %v2611, 2147483648
    %v3039 = vxor.u32 %v2650, 2147483648
    %v3040 = vxor.u32 %v2652, 2147483648
    %v3041 = vxor.u32 %v2691, 2147483648
    %v3042 = vxor.u32 %v2693, 2147483648
    %v3043 = vxor.u32 %v2732, 2147483648
    %v3044 = vxor.u32 %v2734, 2147483648
    %v3045 = vxor.u32 %v2773, 2147483648
    %v3046 = vxor.u32 %v2775, 2147483648
    %v3047 = vxor.u32 %v2814, 2147483648
    %v3048 = vxor.u32 %v2816, 2147483648
    %v3049 = vxor.u32 %v2855, 2147483648
    %v3050 = vxor.u32 %v2857, 2147483648
    %v3051 = vxor.u32 %v2896, 2147483648
    %v3052 = vxor.u32 %v2898, 2147483648
    %v3053 = vxor.u32 %v2937, 2147483648
    %v3054 = vxor.u32 %v2939, 2147483648
    %v3055 = vxor.u32 %v2978, 2147483648
    %v3056 = vmul.f32 %v2983, 1.442695
    %v3057 = vpow.pop %v3056
    %v3058 = vmul.f32 %v2984, 1.442695
    %v3059 = vpow.pop %v3058
    %v3060 = vmul.f32 %v2985, 1.442695
    %v3061 = vpow.pop %v3060
    %v3062 = vmul.f32 %v2986, 1.442695
    %v3063 = vpow.pop %v3062
    %v3064 = vmul.f32 %v2987, 1.442695
    %v3065 = vpow.pop %v3064
    %v3066 = vmul.f32 %v2988, 1.442695
    %v3067 = vpow.pop %v3066
    %v3068 = vmul.f32 %v2989, 1.442695
    %v3069 = vpow.pop %v3068
    %v3070 = vmul.f32 %v2990, 1.442695
    %v3071 = vpow.pop %v3070
    %v3072 = vmul.f32 %v2991, 1.442695
    %v3073 = vpow.pop %v3072
    %v3074 = vmul.f32 %v2992, 1.442695
    %v3075 = vpow.pop %v3074
    %v3076 = vmul.f32 %v2993, 1.442695
    %v3077 = vpow.pop %v3076
    %v3078 = vmul.f32 %v2994, 1.442695
    %v3079 = vpow.pop %v3078
    %v3080 = vmul.f32 %v2995, 1.442695
    %v3081 = vpow.pop %v3080
    %v3082 = vmul.f32 %v2996, 1.442695
    %v3083 = vpow.pop %v3082
    %v3084 = vmul.f32 %v2997, 1.442695
    %v3085 = vpow.pop %v3084
    %v3086 = vmul.f32 %v2998, 1.442695
    %v3087 = vpow.pop %v3086
    %v3088 = vmul.f32 %v2999, 1.442695
    %v3089 = vpow.pop %v3088
    %v3090 = vmul.f32 %v3000, 1.442695
    %v3091 = vpow.pop %v3090
    %v3092 = vmul.f32 %v3001, 1.442695
    %v3093 = vpow.pop %v3092
    %v3094 = vmul.f32 %v3002, 1.442695
    %v3095 = vpow.pop %v3094
    %v3096 = vmul.f32 %v3003, 1.442695
    %v3097 = vpow.pop %v3096
    %v3098 = vmul.f32 %v3004, 1.442695
    %v3099 = vpow.pop %v3098
    %v3100 = vmul.f32 %v3005, 1.442695
    %v3101 = vpow.pop %v3100
    %v3102 = vmul.f32 %v3006, 1.442695
    %v3103 = vpow.pop %v3102
    %v3104 = vmul.f32 %v3007, 1.442695
    %v3105 = vpow.pop %v3104
    %v3106 = vmul.f32 %v3008, 1.442695
    %v3107 = vpow.pop %v3106
    %v3108 = vmul.f32 %v3009, 1.442695
    %v3109 = vpow.pop %v3108
    %v3110 = vmul.f32 %v3010, 1.442695
    %v3111 = vpow.pop %v3110
    %v3112 = vmul.f32 %v3011, 1.442695
    %v3113 = vpow.pop %v3112
    %v3114 = vmul.f32 %v3012, 1.442695
    %v3115 = vpow.pop %v3114
    %v3116 = vmul.f32 %v3013, 1.442695
    %v3117 = vpow.pop %v3116
    %v3118 = vmul.f32 %v3014, 1.442695
    %v3119 = vpow.pop %v3118
    %v3120 = vmul.f32 %v3015, 1.442695
    %v3121 = vpow.pop %v3120
    %v3122 = vmul.f32 %v3016, 1.442695
    %v3123 = vpow.pop %v3122
    %v3124 = vmul.f32 %v3017, 1.442695
    %v3125 = vpow.pop %v3124
    %v3126 = vmul.f32 %v3018, 1.442695
    %v3127 = vpow.pop %v3126
    %v3128 = vmul.f32 %v3019, 1.442695
    %v3129 = vpow.pop %v3128
    %v3130 = vmul.f32 %v3020, 1.442695
    %v3131 = vpow.pop %v3130
    %v3132 = vmul.f32 %v3021, 1.442695
    %v3133 = vpow.pop %v3132
    %v3134 = vmul.f32 %v3022, 1.442695
    %v3135 = vpow.pop %v3134
    %v3136 = vmul.f32 %v3023, 1.442695
    %v3137 = vpow.pop %v3136
    %v3138 = vmul.f32 %v3024, 1.442695
    %v3139 = vpow.pop %v3138
    %v3140 = vmul.f32 %v3025, 1.442695
    %v3141 = vpow.pop %v3140
    %v3142 = vmul.f32 %v3026, 1.442695
    %v3143 = vpow.pop %v3142
    %v3144 = vmul.f32 %v3027, 1.442695
    %v3145 = vpow.pop %v3144
    %v3146 = vmul.f32 %v3028, 1.442695
    %v3147 = vpow.pop %v3146
    %v3148 = vmul.f32 %v3029, 1.442695
    %v3149 = vpow.pop %v3148
    %v3150 = vmul.f32 %v3030, 1.442695
    %v3151 = vpow.pop %v3150
    %v3152 = vmul.f32 %v3031, 1.442695
    %v3153 = vpow.pop %v3152
    %v3154 = vmul.f32 %v3032, 1.442695
    %v3155 = vpow.pop %v3154
    %v3156 = vmul.f32 %v3033, 1.442695
    %v3157 = vpow.pop %v3156
    %v3158 = vmul.f32 %v3034, 1.442695
    %v3159 = vpow.pop %v3158
    %v3160 = vmul.f32 %v3035, 1.442695
    %v3161 = vpow.pop %v3160
    %v3162 = vmul.f32 %v3036, 1.442695
    %v3163 = vpow.pop %v3162
    %v3164 = vmul.f32 %v3037, 1.442695
    %v3165 = vpow.pop %v3164
    %v3166 = vmul.f32 %v3038, 1.442695
    %v3167 = vpow.pop %v3166
    %v3168 = vmul.f32 %v3039, 1.442695
    %v3169 = vpow.pop %v3168
    %v3170 = vmul.f32 %v3040, 1.442695
    %v3171 = vpow.pop %v3170
    %v3172 = vmul.f32 %v3041, 1.442695
    %v3173 = vpow.pop %v3172
    %v3174 = vmul.f32 %v3042, 1.442695
    %v3175 = vpow.pop %v3174
    %v3176 = vmul.f32 %v3043, 1.442695
    %v3177 = vpow.pop %v3176
    %v3178 = vmul.f32 %v3044, 1.442695
    %v3179 = vpow.pop %v3178
    %v3180 = vmul.f32 %v3045, 1.442695
    %v3181 = vpow.pop %v3180
    %v3182 = vmul.f32 %v3046, 1.442695
    %v3183 = vpow.pop %v3182
    %v3184 = vmul.f32 %v3047, 1.442695
    %v3185 = vpow.pop %v3184
    %v3186 = vmul.f32 %v3048, 1.442695
    %v3187 = vpow.pop %v3186
    %v3188 = vmul.f32 %v3049, 1.442695
    %v3189 = vpow.pop %v3188
    %v3190 = vmul.f32 %v3050, 1.442695
    %v3191 = vpow.pop %v3190
    %v3192 = vmul.f32 %v3051, 1.442695
    %v3193 = vpow.pop %v3192
    %v3194 = vmul.f32 %v3052, 1.442695
    %v3195 = vpow.pop %v3194
    %v3196 = vmul.f32 %v3053, 1.442695
    %v3197 = vpow.pop %v3196
    %v3198 = vmul.f32 %v3054, 1.442695
    %v3199 = vpow.pop %v3198
    %v3200 = vmul.f32 %v3055, 1.442695
    %v3201 = vpow.pop %v3200
    %v3202 = vadd.f32 %v3057, 1.0
    %v3203 = vadd.f32 %v3059, 1.0
    %v3204 = vadd.f32 %v3061, 1.0
    %v3205 = vadd.f32 %v3063, 1.0
    %v3206 = vadd.f32 %v3065, 1.0
    %v3207 = vadd.f32 %v3067, 1.0
    %v3208 = vadd.f32 %v3069, 1.0
    %v3209 = vadd.f32 %v3071, 1.0
    %v3210 = vadd.f32 %v3073, 1.0
    %v3211 = vadd.f32 %v3075, 1.0
    %v3212 = vadd.f32 %v3077, 1.0
    %v3213 = vadd.f32 %v3079, 1.0
    %v3214 = vadd.f32 %v3081, 1.0
    %v3215 = vadd.f32 %v3083, 1.0
    %v3216 = vadd.f32 %v3085, 1.0
    %v3217 = vadd.f32 %v3087, 1.0
    %v3218 = vadd.f32 %v3089, 1.0
    %v3219 = vadd.f32 %v3091, 1.0
    %v3220 = vadd.f32 %v3093, 1.0
    %v3221 = vadd.f32 %v3095, 1.0
    %v3222 = vadd.f32 %v3097, 1.0
    %v3223 = vadd.f32 %v3099, 1.0
    %v3224 = vadd.f32 %v3101, 1.0
    %v3225 = vadd.f32 %v3103, 1.0
    %v3226 = vadd.f32 %v3105, 1.0
    %v3227 = vadd.f32 %v3107, 1.0
    %v3228 = vadd.f32 %v3109, 1.0
    %v3229 = vadd.f32 %v3111, 1.0
    %v3230 = vadd.f32 %v3113, 1.0
    %v3231 = vadd.f32 %v3115, 1.0
    %v3232 = vadd.f32 %v3117, 1.0
    %v3233 = vadd.f32 %v3119, 1.0
    %v3234 = vadd.f32 %v3121, 1.0
    %v3235 = vadd.f32 %v3123, 1.0
    %v3236 = vadd.f32 %v3125, 1.0
    %v3237 = vadd.f32 %v3127, 1.0
    %v3238 = vadd.f32 %v3129, 1.0
    %v3239 = vadd.f32 %v3131, 1.0
    %v3240 = vadd.f32 %v3133, 1.0
    %v3241 = vadd.f32 %v3135, 1.0
    %v3242 = vadd.f32 %v3137, 1.0
    %v3243 = vadd.f32 %v3139, 1.0
    %v3244 = vadd.f32 %v3141, 1.0
    %v3245 = vadd.f32 %v3143, 1.0
    %v3246 = vadd.f32 %v3145, 1.0
    %v3247 = vadd.f32 %v3147, 1.0
    %v3248 = vadd.f32 %v3149, 1.0
    %v3249 = vadd.f32 %v3151, 1.0
    %v3250 = vadd.f32 %v3153, 1.0
    %v3251 = vadd.f32 %v3155, 1.0
    %v3252 = vadd.f32 %v3157, 1.0
    %v3253 = vadd.f32 %v3159, 1.0
    %v3254 = vadd.f32 %v3161, 1.0
    %v3255 = vadd.f32 %v3163, 1.0
    %v3256 = vadd.f32 %v3165, 1.0
    %v3257 = vadd.f32 %v3167, 1.0
    %v3258 = vadd.f32 %v3169, 1.0
    %v3259 = vadd.f32 %v3171, 1.0
    %v3260 = vadd.f32 %v3173, 1.0
    %v3261 = vadd.f32 %v3175, 1.0
    %v3262 = vadd.f32 %v3177, 1.0
    %v3263 = vadd.f32 %v3179, 1.0
    %v3264 = vadd.f32 %v3181, 1.0
    %v3265 = vadd.f32 %v3183, 1.0
    %v3266 = vadd.f32 %v3185, 1.0
    %v3267 = vadd.f32 %v3187, 1.0
    %v3268 = vadd.f32 %v3189, 1.0
    %v3269 = vadd.f32 %v3191, 1.0
    %v3270 = vadd.f32 %v3193, 1.0
    %v3271 = vadd.f32 %v3195, 1.0
    %v3272 = vadd.f32 %v3197, 1.0
    %v3273 = vadd.f32 %v3199, 1.0
    %v3274 = vadd.f32 %v3201, 1.0
    %v3275 = vrcp.pop %v3202
    %v3276 = vmul.f32 1.0, %v3275
    %v3277 = vrcp.pop %v3203
    %v3278 = vmul.f32 1.0, %v3277
    %v3279 = vrcp.pop %v3204
    %v3280 = vmul.f32 1.0, %v3279
    %v3281 = vrcp.pop %v3205
    %v3282 = vmul.f32 1.0, %v3281
    %v3283 = vrcp.pop %v3206
    %v3284 = vmul.f32 1.0, %v3283
    %v3285 = vrcp.pop %v3207
    %v3286 = vmul.f32 1.0, %v3285
    %v3287 = vrcp.pop %v3208
    %v3288 = vmul.f32 1.0, %v3287
    %v3289 = vrcp.pop %v3209
    %v3290 = vmul.f32 1.0, %v3289
    %v3291 = vrcp.pop %v3210
    %v3292 = vmul.f32 1.0, %v3291
    %v3293 = vrcp.pop %v3211
    %v3294 = vmul.f32 1.0, %v3293
    %v3295 = vrcp.pop %v3212
    %v3296 = vmul.f32 1.0, %v3295
    %v3297 = vrcp.pop %v3213
    %v3298 = vmul.f32 1.0, %v3297
    %v3299 = vrcp.pop %v3214
    %v3300 = vmul.f32 1.0, %v3299
    %v3301 = vrcp.pop %v3215
    %v3302 = vmul.f32 1.0, %v3301
    %v3303 = vrcp.pop %v3216
    %v3304 = vmul.f32 1.0, %v3303
    %v3305 = vrcp.pop %v3217
    %v3306 = vmul.f32 1.0, %v3305
    %v3307 = vrcp.pop %v3218
    %v3308 = vmul.f32 1.0, %v3307
    %v3309 = vrcp.pop %v3219
    %v3310 = vmul.f32 1.0, %v3309
    %v3311 = vrcp.pop %v3220
    %v3312 = vmul.f32 1.0, %v3311
    %v3313 = vrcp.pop %v3221
    %v3314 = vmul.f32 1.0, %v3313
    %v3315 = vrcp.pop %v3222
    %v3316 = vmul.f32 1.0, %v3315
    %v3317 = vrcp.pop %v3223
    %v3318 = vmul.f32 1.0, %v3317
    %v3319 = vrcp.pop %v3224
    %v3320 = vmul.f32 1.0, %v3319
    %v3321 = vrcp.pop %v3225
    %v3322 = vmul.f32 1.0, %v3321
    %v3323 = vrcp.pop %v3226
    %v3324 = vmul.f32 1.0, %v3323
    %v3325 = vrcp.pop %v3227
    %v3326 = vmul.f32 1.0, %v3325
    %v3327 = vrcp.pop %v3228
    %v3328 = vmul.f32 1.0, %v3327
    %v3329 = vrcp.pop %v3229
    %v3330 = vmul.f32 1.0, %v3329
    %v3331 = vrcp.pop %v3230
    %v3332 = vmul.f32 1.0, %v3331
    %v3333 = vrcp.pop %v3231
    %v3334 = vmul.f32 1.0, %v3333
    %v3335 = vrcp.pop %v3232
    %v3336 = vmul.f32 1.0, %v3335
    %v3337 = vrcp.pop %v3233
    %v3338 = vmul.f32 1.0, %v3337
    %v3339 = vrcp.pop %v3234
    %v3340 = vmul.f32 1.0, %v3339
    %v3341 = vrcp.pop %v3235
    %v3342 = vmul.f32 1.0, %v3341
    %v3343 = vrcp.pop %v3236
    %v3344 = vmul.f32 1.0, %v3343
    %v3345 = vrcp.pop %v3237
    %v3346 = vmul.f32 1.0, %v3345
    %v3347 = vrcp.pop %v3238
    %v3348 = vmul.f32 1.0, %v3347
    %v3349 = vrcp.pop %v3239
    %v3350 = vmul.f32 1.0, %v3349
    %v3351 = vrcp.pop %v3240
    %v3352 = vmul.f32 1.0, %v3351
    %v3353 = vrcp.pop %v3241
    %v3354 = vmul.f32 1.0, %v3353
    %v3355 = vrcp.pop %v3242
    %v3356 = vmul.f32 1.0, %v3355
    %v3357 = vrcp.pop %v3243
    %v3358 = vmul.f32 1.0, %v3357
    %v3359 = vrcp.pop %v3244
    %v3360 = vmul.f32 1.0, %v3359
    %v3361 = vrcp.pop %v3245
    %v3362 = vmul.f32 1.0, %v3361
    %v3363 = vrcp.pop %v3246
    %v3364 = vmul.f32 1.0, %v3363
    %v3365 = vrcp.pop %v3247
    %v3366 = vmul.f32 1.0, %v3365
    %v3367 = vrcp.pop %v3248
    %v3368 = vmul.f32 1.0, %v3367
    %v3369 = vrcp.pop %v3249
    %v3370 = vmul.f32 1.0, %v3369
    %v3371 = vrcp.pop %v3250
    %v3372 = vmul.f32 1.0, %v3371
    %v3373 = vrcp.pop %v3251
    %v3374 = vmul.f32 1.0, %v3373
    %v3375 = vrcp.pop %v3252
    %v3376 = vmul.f32 1.0, %v3375
    %v3377 = vrcp.pop %v3253
    %v3378 = vmul.f32 1.0, %v3377
    %v3379 = vrcp.pop %v3254
    %v3380 = vmul.f32 1.0, %v3379
    %v3381 = vrcp.pop %v3255
    %v3382 = vmul.f32 1.0, %v3381
    %v3383 = vrcp.pop %v3256
    %v3384 = vmul.f32 1.0, %v3383
    %v3385 = vrcp.pop %v3257
    %v3386 = vmul.f32 1.0, %v3385
    %v3387 = vrcp.pop %v3258
    %v3388 = vmul.f32 1.0, %v3387
    %v3389 = vrcp.pop %v3259
    %v3390 = vmul.f32 1.0, %v3389
    %v3391 = vrcp.pop %v3260
    %v3392 = vmul.f32 1.0, %v3391
    %v3393 = vrcp.pop %v3261
    %v3394 = vmul.f32 1.0, %v3393
    %v3395 = vrcp.pop %v3262
    %v3396 = vmul.f32 1.0, %v3395
    %v3397 = vrcp.pop %v3263
    %v3398 = vmul.f32 1.0, %v3397
    %v3399 = vrcp.pop %v3264
    %v3400 = vmul.f32 1.0, %v3399
    %v3401 = vrcp.pop %v3265
    %v3402 = vmul.f32 1.0, %v3401
    %v3403 = vrcp.pop %v3266
    %v3404 = vmul.f32 1.0, %v3403
    %v3405 = vrcp.pop %v3267
    %v3406 = vmul.f32 1.0, %v3405
    %v3407 = vrcp.pop %v3268
    %v3408 = vmul.f32 1.0, %v3407
    %v3409 = vrcp.pop %v3269
    %v3410 = vmul.f32 1.0, %v3409
    %v3411 = vrcp.pop %v3270
    %v3412 = vmul.f32 1.0, %v3411
    %v3413 = vrcp.pop %v3271
    %v3414 = vmul.f32 1.0, %v3413
    %v3415 = vrcp.pop %v3272
    %v3416 = vmul.f32 1.0, %v3415
    %v3417 = vrcp.pop %v3273
    %v3418 = vmul.f32 1.0, %v3417
    %v3419 = vrcp.pop %v3274
    %v3420 = vmul.f32 1.0, %v3419
    %v3494 = vcombine.low %v3276, %v3278
    %v3495 = vcombine.low %v3280, %v3282
    %v3497 = vunpack.c.l.s4 1983009808
    %v3498 = vunpack.c.0.s8 %v3497
    %v3499 = vlaneseq
    %v3500 = vshrl.u32 %v3499, 7
    %v3501 = vsub.s32 %v3498, %v3500
    %v3502 = vrot.slane %v3494, %v3501
    %v3504 = vunpack.c.l.s4 1983009808
    %v3505 = vunpack.c.0.s8 %v3504
    %v3506 = vlaneseq
    %v3507 = vshrl.u32 %v3506, 7
    %v3508 = vsub.s32 %v3505, %v3507
    %v3509 = vrot.slane %v3495, %v3508
    %v3510 = vcombine.low %v3502, %v3509
    %v3511 = vcombine.low %v3284, %v3286
    %v3512 = vcombine.low %v3288, %v3290
    %v3514 = vunpack.c.l.s4 1983009808
    %v3515 = vunpack.c.0.s8 %v3514
    %v3516 = vlaneseq
    %v3517 = vshrl.u32 %v3516, 7
    %v3518 = vsub.s32 %v3515, %v3517
    %v3519 = vrot.slane %v3511, %v3518
    %v3521 = vunpack.c.l.s4 1983009808
    %v3522 = vunpack.c.0.s8 %v3521
    %v3523 = vlaneseq
    %v3524 = vshrl.u32 %v3523, 7
    %v3525 = vsub.s32 %v3522, %v3524
    %v3526 = vrot.slane %v3512, %v3525
    %v3527 = vcombine.low %v3519, %v3526
    %v3528 = vcombine.low %v3292, %v3294
    %v3529 = vcombine.low %v3296, %v3298
    %v3531 = vunpack.c.l.s4 1983009808
    %v3532 = vunpack.c.0.s8 %v3531
    %v3533 = vlaneseq
    %v3534 = vshrl.u32 %v3533, 7
    %v3535 = vsub.s32 %v3532, %v3534
    %v3536 = vrot.slane %v3528, %v3535
    %v3538 = vunpack.c.l.s4 1983009808
    %v3539 = vunpack.c.0.s8 %v3538
    %v3540 = vlaneseq
    %v3541 = vshrl.u32 %v3540, 7
    %v3542 = vsub.s32 %v3539, %v3541
    %v3543 = vrot.slane %v3529, %v3542
    %v3544 = vcombine.low %v3536, %v3543
    %v3545 = vcombine.low %v3300, %v3302
    %v3546 = vcombine.low %v3304, %v3306
    %v3548 = vunpack.c.l.s4 1983009808
    %v3549 = vunpack.c.0.s8 %v3548
    %v3550 = vlaneseq
    %v3551 = vshrl.u32 %v3550, 7
    %v3552 = vsub.s32 %v3549, %v3551
    %v3553 = vrot.slane %v3545, %v3552
    %v3555 = vunpack.c.l.s4 1983009808
    %v3556 = vunpack.c.0.s8 %v3555
    %v3557 = vlaneseq
    %v3558 = vshrl.u32 %v3557, 7
    %v3559 = vsub.s32 %v3556, %v3558
    %v3560 = vrot.slane %v3546, %v3559
    %v3561 = vcombine.low %v3553, %v3560
    %v3562 = vcombine.low %v3308, %v3310
    %v3563 = vcombine.low %v3312, %v3314
    %v3565 = vunpack.c.l.s4 1983009808
    %v3566 = vunpack.c.0.s8 %v3565
    %v3567 = vlaneseq
    %v3568 = vshrl.u32 %v3567, 7
    %v3569 = vsub.s32 %v3566, %v3568
    %v3570 = vrot.slane %v3562, %v3569
    %v3572 = vunpack.c.l.s4 1983009808
    %v3573 = vunpack.c.0.s8 %v3572
    %v3574 = vlaneseq
    %v3575 = vshrl.u32 %v3574, 7
    %v3576 = vsub.s32 %v3573, %v3575
    %v3577 = vrot.slane %v3563, %v3576
    %v3578 = vcombine.low %v3570, %v3577
    %v3579 = vcombine.low %v3316, %v3318
    %v3580 = vcombine.low %v3320, %v3322
    %v3582 = vunpack.c.l.s4 1983009808
    %v3583 = vunpack.c.0.s8 %v3582
    %v3584 = vlaneseq
    %v3585 = vshrl.u32 %v3584, 7
    %v3586 = vsub.s32 %v3583, %v3585
    %v3587 = vrot.slane %v3579, %v3586
    %v3589 = vunpack.c.l.s4 1983009808
    %v3590 = vunpack.c.0.s8 %v3589
    %v3591 = vlaneseq
    %v3592 = vshrl.u32 %v3591, 7
    %v3593 = vsub.s32 %v3590, %v3592
    %v3594 = vrot.slane %v3580, %v3593
    %v3595 = vcombine.low %v3587, %v3594
    %v3596 = vcombine.low %v3324, %v3326
    %v3597 = vcombine.low %v3328, %v3330
    %v3599 = vunpack.c.l.s4 1983009808
    %v3600 = vunpack.c.0.s8 %v3599
    %v3601 = vlaneseq
    %v3602 = vshrl.u32 %v3601, 7
    %v3603 = vsub.s32 %v3600, %v3602
    %v3604 = vrot.slane %v3596, %v3603
    %v3606 = vunpack.c.l.s4 1983009808
    %v3607 = vunpack.c.0.s8 %v3606
    %v3608 = vlaneseq
    %v3609 = vshrl.u32 %v3608, 7
    %v3610 = vsub.s32 %v3607, %v3609
    %v3611 = vrot.slane %v3597, %v3610
    %v3612 = vcombine.low %v3604, %v3611
    %v3613 = vcombine.low %v3332, %v3334
    %v3614 = vcombine.low %v3336, %v3338
    %v3616 = vunpack.c.l.s4 1983009808
    %v3617 = vunpack.c.0.s8 %v3616
    %v3618 = vlaneseq
    %v3619 = vshrl.u32 %v3618, 7
    %v3620 = vsub.s32 %v3617, %v3619
    %v3621 = vrot.slane %v3613, %v3620
    %v3623 = vunpack.c.l.s4 1983009808
    %v3624 = vunpack.c.0.s8 %v3623
    %v3625 = vlaneseq
    %v3626 = vshrl.u32 %v3625, 7
    %v3627 = vsub.s32 %v3624, %v3626
    %v3628 = vrot.slane %v3614, %v3627
    %v3629 = vcombine.low %v3621, %v3628
    %v3630 = vcombine.low %v3340, %v3342
    %v3631 = vcombine.low %v3344, %v3346
    %v3633 = vunpack.c.l.s4 1983009808
    %v3634 = vunpack.c.0.s8 %v3633
    %v3635 = vlaneseq
    %v3636 = vshrl.u32 %v3635, 7
    %v3637 = vsub.s32 %v3634, %v3636
    %v3638 = vrot.slane %v3630, %v3637
    %v3640 = vunpack.c.l.s4 1983009808
    %v3641 = vunpack.c.0.s8 %v3640
    %v3642 = vlaneseq
    %v3643 = vshrl.u32 %v3642, 7
    %v3644 = vsub.s32 %v3641, %v3643
    %v3645 = vrot.slane %v3631, %v3644
    %v3646 = vcombine.low %v3638, %v3645
    %v3647 = vcombine.low %v3348, %v3350
    %v3648 = vcombine.low %v3352, %v3354
    %v3650 = vunpack.c.l.s4 1983009808
    %v3651 = vunpack.c.0.s8 %v3650
    %v3652 = vlaneseq
    %v3653 = vshrl.u32 %v3652, 7
    %v3654 = vsub.s32 %v3651, %v3653
    %v3655 = vrot.slane %v3647, %v3654
    %v3657 = vunpack.c.l.s4 1983009808
    %v3658 = vunpack.c.0.s8 %v3657
    %v3659 = vlaneseq
    %v3660 = vshrl.u32 %v3659, 7
    %v3661 = vsub.s32 %v3658, %v3660
    %v3662 = vrot.slane %v3648, %v3661
    %v3663 = vcombine.low %v3655, %v3662
    %v3664 = vcombine.low %v3356, %v3358
    %v3665 = vcombine.low %v3360, %v3362
    %v3667 = vunpack.c.l.s4 1983009808
    %v3668 = vunpack.c.0.s8 %v3667
    %v3669 = vlaneseq
    %v3670 = vshrl.u32 %v3669, 7
    %v3671 = vsub.s32 %v3668, %v3670
    %v3672 = vrot.slane %v3664, %v3671
    %v3674 = vunpack.c.l.s4 1983009808
    %v3675 = vunpack.c.0.s8 %v3674
    %v3676 = vlaneseq
    %v3677 = vshrl.u32 %v3676, 7
    %v3678 = vsub.s32 %v3675, %v3677
    %v3679 = vrot.slane %v3665, %v3678
    %v3680 = vcombine.low %v3672, %v3679
    %v3681 = vcombine.low %v3364, %v3366
    %v3682 = vcombine.low %v3368, %v3370
    %v3684 = vunpack.c.l.s4 1983009808
    %v3685 = vunpack.c.0.s8 %v3684
    %v3686 = vlaneseq
    %v3687 = vshrl.u32 %v3686, 7
    %v3688 = vsub.s32 %v3685, %v3687
    %v3689 = vrot.slane %v3681, %v3688
    %v3691 = vunpack.c.l.s4 1983009808
    %v3692 = vunpack.c.0.s8 %v3691
    %v3693 = vlaneseq
    %v3694 = vshrl.u32 %v3693, 7
    %v3695 = vsub.s32 %v3692, %v3694
    %v3696 = vrot.slane %v3682, %v3695
    %v3697 = vcombine.low %v3689, %v3696
    %v3698 = vcombine.low %v3372, %v3374
    %v3699 = vcombine.low %v3376, %v3378
    %v3701 = vunpack.c.l.s4 1983009808
    %v3702 = vunpack.c.0.s8 %v3701
    %v3703 = vlaneseq
    %v3704 = vshrl.u32 %v3703, 7
    %v3705 = vsub.s32 %v3702, %v3704
    %v3706 = vrot.slane %v3698, %v3705
    %v3708 = vunpack.c.l.s4 1983009808
    %v3709 = vunpack.c.0.s8 %v3708
    %v3710 = vlaneseq
    %v3711 = vshrl.u32 %v3710, 7
    %v3712 = vsub.s32 %v3709, %v3711
    %v3713 = vrot.slane %v3699, %v3712
    %v3714 = vcombine.low %v3706, %v3713
    %v3715 = vcombine.low %v3380, %v3382
    %v3716 = vcombine.low %v3384, %v3386
    %v3718 = vunpack.c.l.s4 1983009808
    %v3719 = vunpack.c.0.s8 %v3718
    %v3720 = vlaneseq
    %v3721 = vshrl.u32 %v3720, 7
    %v3722 = vsub.s32 %v3719, %v3721
    %v3723 = vrot.slane %v3715, %v3722
    %v3725 = vunpack.c.l.s4 1983009808
    %v3726 = vunpack.c.0.s8 %v3725
    %v3727 = vlaneseq
    %v3728 = vshrl.u32 %v3727, 7
    %v3729 = vsub.s32 %v3726, %v3728
    %v3730 = vrot.slane %v3716, %v3729
    %v3731 = vcombine.low %v3723, %v3730
    %v3732 = vcombine.low %v3388, %v3390
    %v3733 = vcombine.low %v3392, %v3394
    %v3735 = vunpack.c.l.s4 1983009808
    %v3736 = vunpack.c.0.s8 %v3735
    %v3737 = vlaneseq
    %v3738 = vshrl.u32 %v3737, 7
    %v3739 = vsub.s32 %v3736, %v3738
    %v3740 = vrot.slane %v3732, %v3739
    %v3742 = vunpack.c.l.s4 1983009808
    %v3743 = vunpack.c.0.s8 %v3742
    %v3744 = vlaneseq
    %v3745 = vshrl.u32 %v3744, 7
    %v3746 = vsub.s32 %v3743, %v3745
    %v3747 = vrot.slane %v3733, %v3746
    %v3748 = vcombine.low %v3740, %v3747
    %v3749 = vcombine.low %v3396, %v3398
    %v3750 = vcombine.low %v3400, %v3402
    %v3752 = vunpack.c.l.s4 1983009808
    %v3753 = vunpack.c.0.s8 %v3752
    %v3754 = vlaneseq
    %v3755 = vshrl.u32 %v3754, 7
    %v3756 = vsub.s32 %v3753, %v3755
    %v3757 = vrot.slane %v3749, %v3756
    %v3759 = vunpack.c.l.s4 1983009808
    %v3760 = vunpack.c.0.s8 %v3759
    %v3761 = vlaneseq
    %v3762 = vshrl.u32 %v3761, 7
    %v3763 = vsub.s32 %v3760, %v3762
    %v3764 = vrot.slane %v3750, %v3763
    %v3765 = vcombine.low %v3757, %v3764
    %v3766 = vcombine.low %v3404, %v3406
    %v3767 = vcombine.low %v3408, %v3410
    %v3769 = vunpack.c.l.s4 1983009808
    %v3770 = vunpack.c.0.s8 %v3769
    %v3771 = vlaneseq
    %v3772 = vshrl.u32 %v3771, 7
    %v3773 = vsub.s32 %v3770, %v3772
    %v3774 = vrot.slane %v3766, %v3773
    %v3776 = vunpack.c.l.s4 1983009808
    %v3777 = vunpack.c.0.s8 %v3776
    %v3778 = vlaneseq
    %v3779 = vshrl.u32 %v3778, 7
    %v3780 = vsub.s32 %v3777, %v3779
    %v3781 = vrot.slane %v3767, %v3780
    %v3782 = vcombine.low %v3774, %v3781
    %v3783 = vcombine.low %v3412, %v3414
    %v3784 = vcombine.low %v3416, %v3418
    %v3786 = vunpack.c.l.s4 1983009808
    %v3787 = vunpack.c.0.s8 %v3786
    %v3788 = vlaneseq
    %v3789 = vshrl.u32 %v3788, 7
    %v3790 = vsub.s32 %v3787, %v3789
    %v3791 = vrot.slane %v3783, %v3790
    %v3793 = vunpack.c.l.s4 1983009808
    %v3794 = vunpack.c.0.s8 %v3793
    %v3795 = vlaneseq
    %v3796 = vshrl.u32 %v3795, 7
    %v3797 = vsub.s32 %v3794, %v3796
    %v3798 = vrot.slane %v3784, %v3797
    %v3799 = vcombine.low %v3791, %v3798
    %v3801 = vunpack.c.l.s4 1983009808
    %v3802 = vunpack.c.0.s8 %v3801
    %v3803 = vlaneseq
    %v3804 = vshrl.u32 %v3803, 7
    %v3805 = vsub.s32 %v3802, %v3804
    %v3806 = vrot.slane %v3420, %v3805
    %3826 = vst [vmem:[%s5] sm:$0xff] %v3510
    %3827 = vst [vmem:[%s5 + $0x8] sm:$0xff] %v3527
    %3828 = vst [vmem:[%s5 + $0x10] sm:$0xff] %v3544
    %3829 = vst [vmem:[%s5 + $0x18] sm:$0xff] %v3561
    %3830 = vst [vmem:[%s5 + $0x20] sm:$0xff] %v3578
    %3831 = vst [vmem:[%s5 + $0x28] sm:$0xff] %v3595
    %3832 = vst [vmem:[%s5 + $0x30] sm:$0xff] %v3612
    %3833 = vst [vmem:[%s5 + $0x38] sm:$0xff] %v3629
    %3834 = vst [vmem:[%s5 + $0x40] sm:$0xff] %v3646
    %3835 = vst [vmem:[%s5 + $0x48] sm:$0xff] %v3663
    %3836 = vst [vmem:[%s5 + $0x50] sm:$0xff] %v3680
    %3837 = vst [vmem:[%s5 + $0x58] sm:$0xff] %v3697
    %3838 = vst [vmem:[%s5 + $0x60] sm:$0xff] %v3714
    %3839 = vst [vmem:[%s5 + $0x68] sm:$0xff] %v3731
    %3840 = vst [vmem:[%s5 + $0x70] sm:$0xff] %v3748
    %3841 = vst [vmem:[%s5 + $0x78] sm:$0xff] %v3765
    %3842 = vst [vmem:[%s5 + $0x80] sm:$0xff] %v3782
    %3843 = vst [vmem:[%s5 + $0x88] sm:$0xff] %v3799
    %3844 = vst [vmem:[%s5 + $0x90] sm:$0x3] %v3806
    %s3845 = sshll.u32 %s930, 4
    %3846 = dma.done %s82, %s3845
    %v3847 = vld [vmem:[%s81] sm:$0xff]
    %v3848 = vld [vmem:[%s81 + $0x8] sm:$0xff]
    %v3849 = vld [vmem:[%s81 + $0x10] sm:$0xff]
    %v3850 = vld [vmem:[%s81 + $0x18] sm:$0xff]
    %v3851 = vld [vmem:[%s81 + $0x20] sm:$0xff]
    %v3852 = vld [vmem:[%s81 + $0x28] sm:$0xff]
    %v3853 = vld [vmem:[%s81 + $0x30] sm:$0xff]
    %v3854 = vld [vmem:[%s81 + $0x38] sm:$0xff]
    %v3855 = vld [vmem:[%s81 + $0x40] sm:$0xff]
    %v3856 = vld [vmem:[%s81 + $0x48] sm:$0xff]
    %v3857 = vld [vmem:[%s81 + $0x50] sm:$0xff]
    %v3858 = vld [vmem:[%s81 + $0x58] sm:$0xff]
    %v3859 = vld [vmem:[%s81 + $0x60] sm:$0xff]
    %v3860 = vld [vmem:[%s81 + $0x68] sm:$0xff]
    %v3861 = vld [vmem:[%s81 + $0x70] sm:$0xff]
    %v3862 = vld [vmem:[%s81 + $0x78] sm:$0xff]
    %v3863 = vld [vmem:[%s81 + $0x80] sm:$0xff]
    %v3864 = vld [vmem:[%s81 + $0x88] sm:$0xff]
    %v3865 = vld [vmem:[%s81 + $0x90] sm:$0xff]
    %v3866 = vld [vmem:[%s81 + $0x98] sm:$0xff]
    %v3867 = vld [vmem:[%s81 + $0xa0] sm:$0xff]
    %v3868 = vld [vmem:[%s81 + $0xa8] sm:$0xff]
    %v3869 = vld [vmem:[%s81 + $0xb0] sm:$0xff]
    %v3870 = vld [vmem:[%s81 + $0xb8] sm:$0xff]
    %v3871 = vld [vmem:[%s81 + $0xc0] sm:$0xff]
    %v3872 = vld [vmem:[%s81 + $0xc8] sm:$0xff]
    %v3873 = vld [vmem:[%s81 + $0xd0] sm:$0xff]
    %v3874 = vld [vmem:[%s81 + $0xd8] sm:$0xff]
    %v3875 = vld [vmem:[%s81 + $0xe0] sm:$0xff]
    %v3876 = vld [vmem:[%s81 + $0xe8] sm:$0xff]
    %v3877 = vld [vmem:[%s81 + $0xf0] sm:$0xff]
    %v3878 = vld [vmem:[%s81 + $0xf8] sm:$0xff]
    %v3879 = vld [vmem:[%s81 + $0x100] sm:$0xff]
    %v3880 = vld [vmem:[%s81 + $0x108] sm:$0xff]
    %v3881 = vld [vmem:[%s81 + $0x110] sm:$0xff]
    %v3882 = vld [vmem:[%s81 + $0x118] sm:$0xff]
    %v3883 = vld [vmem:[%s81 + $0x120] sm:$0xff]
    %v3884 = vld [vmem:[%s81 + $0x128] sm:$0xff]
    %v3885 = vld [vmem:[%s81 + $0x130] sm:$0xff]
    %v3886 = vld [vmem:[%s81 + $0x138] sm:$0xff]
    %v3887 = vld [vmem:[%s81 + $0x140] sm:$0xff]
    %v3888 = vld [vmem:[%s81 + $0x148] sm:$0xff]
    %v3889 = vld [vmem:[%s81 + $0x150] sm:$0xff]
    %v3890 = vld [vmem:[%s81 + $0x158] sm:$0xff]
    %v3891 = vld [vmem:[%s81 + $0x160] sm:$0xff]
    %v3892 = vld [vmem:[%s81 + $0x168] sm:$0xff]
    %v3893 = vld [vmem:[%s81 + $0x170] sm:$0xff]
    %v3894 = vld [vmem:[%s81 + $0x178] sm:$0xff]
    %v3895 = vld [vmem:[%s81 + $0x180] sm:$0xff]
    %v3896 = vld [vmem:[%s81 + $0x188] sm:$0xff]
    %v3897 = vld [vmem:[%s81 + $0x190] sm:$0xff]
    %v3898 = vld [vmem:[%s81 + $0x198] sm:$0xff]
    %v3899 = vld [vmem:[%s81 + $0x1a0] sm:$0xff]
    %v3900 = vld [vmem:[%s81 + $0x1a8] sm:$0xff]
    %v3901 = vld [vmem:[%s81 + $0x1b0] sm:$0xff]
    %v3902 = vld [vmem:[%s81 + $0x1b8] sm:$0xff]
    %v3903 = vld [vmem:[%s81 + $0x1c0] sm:$0xff]
    %v3904 = vld [vmem:[%s81 + $0x1c8] sm:$0xff]
    %v3905 = vld [vmem:[%s81 + $0x1d0] sm:$0xff]
    %v3906 = vld [vmem:[%s81 + $0x1d8] sm:$0xff]
    %v3907 = vld [vmem:[%s81 + $0x1e0] sm:$0xff]
    %v3908 = vld [vmem:[%s81 + $0x1e8] sm:$0xff]
    %v3909 = vld [vmem:[%s81 + $0x1f0] sm:$0xff]
    %v3910 = vld [vmem:[%s81 + $0x1f8] sm:$0xff]
    %v3911 = vld [vmem:[%s81 + $0x200] sm:$0xff]
    %v3912 = vld [vmem:[%s81 + $0x208] sm:$0xff]
    %v3913 = vld [vmem:[%s81 + $0x210] sm:$0xff]
    %v3914 = vld [vmem:[%s81 + $0x218] sm:$0xff]
    %v3915 = vld [vmem:[%s81 + $0x220] sm:$0xff]
    %v3916 = vld [vmem:[%s81 + $0x228] sm:$0xff]
    %v3917 = vld [vmem:[%s81 + $0x230] sm:$0xff]
    %v3918 = vld [vmem:[%s81 + $0x238] sm:$0xff]
    %v3919 = vld [vmem:[%s81 + $0x240] sm:$0xff]
    %v3920 = vld [vmem:[%s81 + $0x248] sm:$0xff]
    %v3921 = vld [vmem:[%s81 + $0x250] sm:$0xff]
    %v3922 = vld [vmem:[%s81 + $0x258] sm:$0xff]
    %v3923 = vld [vmem:[%s81 + $0x260] sm:$0xff]
    %v3924 = vld [vmem:[%s81 + $0x268] sm:$0xff]
    %v3925 = vld [vmem:[%s81 + $0x270] sm:$0xff]
    %v3926 = vld [vmem:[%s81 + $0x278] sm:$0xff]
    %v3927 = vld [vmem:[%s81 + $0x280] sm:$0xff]
    %v3928 = vld [vmem:[%s81 + $0x288] sm:$0xff]
    %v3929 = vld [vmem:[%s81 + $0x290] sm:$0xff]
    %v3930 = vld [vmem:[%s81 + $0x298] sm:$0xff]
    %v3931 = vld [vmem:[%s81 + $0x2a0] sm:$0xff]
    %v3932 = vld [vmem:[%s81 + $0x2a8] sm:$0xff]
    %v3933 = vld [vmem:[%s81 + $0x2b0] sm:$0xff]
    %v3934 = vld [vmem:[%s81 + $0x2b8] sm:$0xff]
    %v3935 = vld [vmem:[%s81 + $0x2c0] sm:$0xff]
    %v3936 = vld [vmem:[%s81 + $0x2c8] sm:$0xff]
    %v3937 = vld [vmem:[%s81 + $0x2d0] sm:$0xff]
    %v3938 = vld [vmem:[%s81 + $0x2d8] sm:$0xff]
    %v3939 = vld [vmem:[%s81 + $0x2e0] sm:$0xff]
    %v3940 = vld [vmem:[%s81 + $0x2e8] sm:$0xff]
    %v3941 = vld [vmem:[%s81 + $0x2f0] sm:$0xff]
    %v3942 = vld [vmem:[%s81 + $0x2f8] sm:$0xff]
    %v3943 = vld [vmem:[%s81 + $0x300] sm:$0xff]
    %v3944 = vld [vmem:[%s81 + $0x308] sm:$0xff]
    %v3945 = vld [vmem:[%s81 + $0x310] sm:$0xff]
    %v3946 = vld [vmem:[%s81 + $0x318] sm:$0xff]
    %v3947 = vld [vmem:[%s81 + $0x320] sm:$0xff]
    %v3948 = vld [vmem:[%s81 + $0x328] sm:$0xff]
    %v3949 = vld [vmem:[%s81 + $0x330] sm:$0xff]
    %v3950 = vld [vmem:[%s81 + $0x338] sm:$0xff]
    %v3951 = vld [vmem:[%s81 + $0x340] sm:$0xff]
    %v3952 = vld [vmem:[%s81 + $0x348] sm:$0xff]
    %v3953 = vld [vmem:[%s81 + $0x350] sm:$0xff]
    %v3954 = vld [vmem:[%s81 + $0x358] sm:$0xff]
    %v3955 = vld [vmem:[%s81 + $0x360] sm:$0xff]
    %v3956 = vld [vmem:[%s81 + $0x368] sm:$0xff]
    %v3957 = vld [vmem:[%s81 + $0x370] sm:$0xff]
    %v3958 = vld [vmem:[%s81 + $0x378] sm:$0xff]
    %v3959 = vld [vmem:[%s81 + $0x380] sm:$0xff]
    %v3960 = vld [vmem:[%s81 + $0x388] sm:$0xff]
    %v3961 = vld [vmem:[%s81 + $0x390] sm:$0xff]
    %v3962 = vld [vmem:[%s81 + $0x398] sm:$0xff]
    %v3963 = vld [vmem:[%s81 + $0x3a0] sm:$0xff]
    %v3964 = vld [vmem:[%s81 + $0x3a8] sm:$0xff]
    %v3965 = vld [vmem:[%s81 + $0x3b0] sm:$0xff]
    %v3966 = vld [vmem:[%s81 + $0x3b8] sm:$0xff]
    %v3967 = vld [vmem:[%s81 + $0x3c0] sm:$0xff]
    %v3968 = vld [vmem:[%s81 + $0x3c8] sm:$0xff]
    %v3969 = vld [vmem:[%s81 + $0x3d0] sm:$0xff]
    %v3970 = vld [vmem:[%s81 + $0x3d8] sm:$0xff]
    %v3971 = vld [vmem:[%s81 + $0x3e0] sm:$0xff]
    %v3972 = vld [vmem:[%s81 + $0x3e8] sm:$0xff]
    %v3973 = vld [vmem:[%s81 + $0x3f0] sm:$0xff]
    %v3974 = vld [vmem:[%s81 + $0x3f8] sm:$0xff]
    %v3975 = vld [vmem:[%s81 + $0x400] sm:$0xff]
    %v3976 = vld [vmem:[%s81 + $0x408] sm:$0xff]
    %v3977 = vld [vmem:[%s81 + $0x410] sm:$0xff]
    %v3978 = vld [vmem:[%s81 + $0x418] sm:$0xff]
    %v3979 = vld [vmem:[%s81 + $0x420] sm:$0xff]
    %v3980 = vld [vmem:[%s81 + $0x428] sm:$0xff]
    %v3981 = vld [vmem:[%s81 + $0x430] sm:$0xff]
    %v3982 = vld [vmem:[%s81 + $0x438] sm:$0xff]
    %v3983 = vld [vmem:[%s81 + $0x440] sm:$0xff]
    %v3984 = vld [vmem:[%s81 + $0x448] sm:$0xff]
    %v3985 = vld [vmem:[%s81 + $0x450] sm:$0xff]
    %v3986 = vld [vmem:[%s81 + $0x458] sm:$0xff]
    %v3987 = vld [vmem:[%s81 + $0x460] sm:$0xff]
    %v3988 = vld [vmem:[%s81 + $0x468] sm:$0xff]
    %v3989 = vld [vmem:[%s81 + $0x470] sm:$0xff]
    %v3990 = vld [vmem:[%s81 + $0x478] sm:$0xff]
    %v3991 = vld [vmem:[%s81 + $0x480] sm:$0xff]
    %v3992 = vld [vmem:[%s81 + $0x488] sm:$0xff]
    %v3993 = vld [vmem:[#allocation7 + $0x49] sm:$0xff]
    %v3994 = vld [vmem:[#allocation7 + $0x51] sm:$0xff]
    %v3995 = vld [vmem:[#allocation7 + $0x59] sm:$0xff]
    %v3996 = vld [vmem:[#allocation7 + $0x61] sm:$0xff]
    %v3997 = vld [vmem:[#allocation7 + $0x69] sm:$0xff]
    %v3998 = vld [vmem:[#allocation7 + $0x71] sm:$0xff]
    %v3999 = vld [vmem:[#allocation7 + $0x79] sm:$0xff]
    %v4000 = vld [vmem:[#allocation7 + $0x81] sm:$0xff]
    %v4001 = vld [vmem:[#allocation7 + $0x89] sm:$0xff]
    %v4002 = vld [vmem:[#allocation7 + $0x91] sm:$0x1]
    %v4013 = vlaneseq
    %v4014 = vshrl.u32 %v4013, 7
    %v4015 = vsub.s32 0, %v4014
    %v4016 = vrot.slane %v3993, %v4015
    %v4017 = vlaneseq
    %v4018 = vshrl.u32 %v4017, 7
    %v4019 = vsub.s32 1, %v4018
    %v4020 = vrot.slane %v3993, %v4019
    %v4021 = vlaneseq
    %v4022 = vshrl.u32 %v4021, 7
    %v4023 = vsub.s32 2, %v4022
    %v4024 = vrot.slane %v3993, %v4023
    %v4025 = vlaneseq
    %v4026 = vshrl.u32 %v4025, 7
    %v4027 = vsub.s32 3, %v4026
    %v4028 = vrot.slane %v3993, %v4027
    %v4029 = vlaneseq
    %v4030 = vshrl.u32 %v4029, 7
    %v4031 = vsub.s32 4, %v4030
    %v4032 = vrot.slane %v3993, %v4031
    %v4033 = vlaneseq
    %v4034 = vshrl.u32 %v4033, 7
    %v4035 = vsub.s32 5, %v4034
    %v4036 = vrot.slane %v3993, %v4035
    %v4037 = vlaneseq
    %v4038 = vshrl.u32 %v4037, 7
    %v4039 = vsub.s32 6, %v4038
    %v4040 = vrot.slane %v3993, %v4039
    %v4041 = vlaneseq
    %v4042 = vshrl.u32 %v4041, 7
    %v4043 = vsub.s32 7, %v4042
    %v4044 = vrot.slane %v3993, %v4043
    %v4045 = vlaneseq
    %v4046 = vshrl.u32 %v4045, 7
    %v4047 = vsub.s32 0, %v4046
    %v4048 = vrot.slane %v3994, %v4047
    %v4049 = vlaneseq
    %v4050 = vshrl.u32 %v4049, 7
    %v4051 = vsub.s32 1, %v4050
    %v4052 = vrot.slane %v3994, %v4051
    %v4053 = vlaneseq
    %v4054 = vshrl.u32 %v4053, 7
    %v4055 = vsub.s32 2, %v4054
    %v4056 = vrot.slane %v3994, %v4055
    %v4057 = vlaneseq
    %v4058 = vshrl.u32 %v4057, 7
    %v4059 = vsub.s32 3, %v4058
    %v4060 = vrot.slane %v3994, %v4059
    %v4061 = vlaneseq
    %v4062 = vshrl.u32 %v4061, 7
    %v4063 = vsub.s32 4, %v4062
    %v4064 = vrot.slane %v3994, %v4063
    %v4065 = vlaneseq
    %v4066 = vshrl.u32 %v4065, 7
    %v4067 = vsub.s32 5, %v4066
    %v4068 = vrot.slane %v3994, %v4067
    %v4069 = vlaneseq
    %v4070 = vshrl.u32 %v4069, 7
    %v4071 = vsub.s32 6, %v4070
    %v4072 = vrot.slane %v3994, %v4071
    %v4073 = vlaneseq
    %v4074 = vshrl.u32 %v4073, 7
    %v4075 = vsub.s32 7, %v4074
    %v4076 = vrot.slane %v3994, %v4075
    %v4077 = vlaneseq
    %v4078 = vshrl.u32 %v4077, 7
    %v4079 = vsub.s32 0, %v4078
    %v4080 = vrot.slane %v3995, %v4079
    %v4081 = vlaneseq
    %v4082 = vshrl.u32 %v4081, 7
    %v4083 = vsub.s32 1, %v4082
    %v4084 = vrot.slane %v3995, %v4083
    %v4085 = vlaneseq
    %v4086 = vshrl.u32 %v4085, 7
    %v4087 = vsub.s32 2, %v4086
    %v4088 = vrot.slane %v3995, %v4087
    %v4089 = vlaneseq
    %v4090 = vshrl.u32 %v4089, 7
    %v4091 = vsub.s32 3, %v4090
    %v4092 = vrot.slane %v3995, %v4091
    %v4093 = vlaneseq
    %v4094 = vshrl.u32 %v4093, 7
    %v4095 = vsub.s32 4, %v4094
    %v4096 = vrot.slane %v3995, %v4095
    %v4097 = vlaneseq
    %v4098 = vshrl.u32 %v4097, 7
    %v4099 = vsub.s32 5, %v4098
    %v4100 = vrot.slane %v3995, %v4099
    %v4101 = vlaneseq
    %v4102 = vshrl.u32 %v4101, 7
    %v4103 = vsub.s32 6, %v4102
    %v4104 = vrot.slane %v3995, %v4103
    %v4105 = vlaneseq
    %v4106 = vshrl.u32 %v4105, 7
    %v4107 = vsub.s32 7, %v4106
    %v4108 = vrot.slane %v3995, %v4107
    %v4109 = vlaneseq
    %v4110 = vshrl.u32 %v4109, 7
    %v4111 = vsub.s32 0, %v4110
    %v4112 = vrot.slane %v3996, %v4111
    %v4113 = vlaneseq
    %v4114 = vshrl.u32 %v4113, 7
    %v4115 = vsub.s32 1, %v4114
    %v4116 = vrot.slane %v3996, %v4115
    %v4117 = vlaneseq
    %v4118 = vshrl.u32 %v4117, 7
    %v4119 = vsub.s32 2, %v4118
    %v4120 = vrot.slane %v3996, %v4119
    %v4121 = vlaneseq
    %v4122 = vshrl.u32 %v4121, 7
    %v4123 = vsub.s32 3, %v4122
    %v4124 = vrot.slane %v3996, %v4123
    %v4125 = vlaneseq
    %v4126 = vshrl.u32 %v4125, 7
    %v4127 = vsub.s32 4, %v4126
    %v4128 = vrot.slane %v3996, %v4127
    %v4129 = vlaneseq
    %v4130 = vshrl.u32 %v4129, 7
    %v4131 = vsub.s32 5, %v4130
    %v4132 = vrot.slane %v3996, %v4131
    %v4133 = vlaneseq
    %v4134 = vshrl.u32 %v4133, 7
    %v4135 = vsub.s32 6, %v4134
    %v4136 = vrot.slane %v3996, %v4135
    %v4137 = vlaneseq
    %v4138 = vshrl.u32 %v4137, 7
    %v4139 = vsub.s32 7, %v4138
    %v4140 = vrot.slane %v3996, %v4139
    %v4141 = vlaneseq
    %v4142 = vshrl.u32 %v4141, 7
    %v4143 = vsub.s32 0, %v4142
    %v4144 = vrot.slane %v3997, %v4143
    %v4145 = vlaneseq
    %v4146 = vshrl.u32 %v4145, 7
    %v4147 = vsub.s32 1, %v4146
    %v4148 = vrot.slane %v3997, %v4147
    %v4149 = vlaneseq
    %v4150 = vshrl.u32 %v4149, 7
    %v4151 = vsub.s32 2, %v4150
    %v4152 = vrot.slane %v3997, %v4151
    %v4153 = vlaneseq
    %v4154 = vshrl.u32 %v4153, 7
    %v4155 = vsub.s32 3, %v4154
    %v4156 = vrot.slane %v3997, %v4155
    %v4157 = vlaneseq
    %v4158 = vshrl.u32 %v4157, 7
    %v4159 = vsub.s32 4, %v4158
    %v4160 = vrot.slane %v3997, %v4159
    %v4161 = vlaneseq
    %v4162 = vshrl.u32 %v4161, 7
    %v4163 = vsub.s32 5, %v4162
    %v4164 = vrot.slane %v3997, %v4163
    %v4165 = vlaneseq
    %v4166 = vshrl.u32 %v4165, 7
    %v4167 = vsub.s32 6, %v4166
    %v4168 = vrot.slane %v3997, %v4167
    %v4169 = vlaneseq
    %v4170 = vshrl.u32 %v4169, 7
    %v4171 = vsub.s32 7, %v4170
    %v4172 = vrot.slane %v3997, %v4171
    %v4173 = vlaneseq
    %v4174 = vshrl.u32 %v4173, 7
    %v4175 = vsub.s32 0, %v4174
    %v4176 = vrot.slane %v3998, %v4175
    %v4177 = vlaneseq
    %v4178 = vshrl.u32 %v4177, 7
    %v4179 = vsub.s32 1, %v4178
    %v4180 = vrot.slane %v3998, %v4179
    %v4181 = vlaneseq
    %v4182 = vshrl.u32 %v4181, 7
    %v4183 = vsub.s32 2, %v4182
    %v4184 = vrot.slane %v3998, %v4183
    %v4185 = vlaneseq
    %v4186 = vshrl.u32 %v4185, 7
    %v4187 = vsub.s32 3, %v4186
    %v4188 = vrot.slane %v3998, %v4187
    %v4189 = vlaneseq
    %v4190 = vshrl.u32 %v4189, 7
    %v4191 = vsub.s32 4, %v4190
    %v4192 = vrot.slane %v3998, %v4191
    %v4193 = vlaneseq
    %v4194 = vshrl.u32 %v4193, 7
    %v4195 = vsub.s32 5, %v4194
    %v4196 = vrot.slane %v3998, %v4195
    %v4197 = vlaneseq
    %v4198 = vshrl.u32 %v4197, 7
    %v4199 = vsub.s32 6, %v4198
    %v4200 = vrot.slane %v3998, %v4199
    %v4201 = vlaneseq
    %v4202 = vshrl.u32 %v4201, 7
    %v4203 = vsub.s32 7, %v4202
    %v4204 = vrot.slane %v3998, %v4203
    %v4205 = vlaneseq
    %v4206 = vshrl.u32 %v4205, 7
    %v4207 = vsub.s32 0, %v4206
    %v4208 = vrot.slane %v3999, %v4207
    %v4209 = vlaneseq
    %v4210 = vshrl.u32 %v4209, 7
    %v4211 = vsub.s32 1, %v4210
    %v4212 = vrot.slane %v3999, %v4211
    %v4213 = vlaneseq
    %v4214 = vshrl.u32 %v4213, 7
    %v4215 = vsub.s32 2, %v4214
    %v4216 = vrot.slane %v3999, %v4215
    %v4217 = vlaneseq
    %v4218 = vshrl.u32 %v4217, 7
    %v4219 = vsub.s32 3, %v4218
    %v4220 = vrot.slane %v3999, %v4219
    %v4221 = vlaneseq
    %v4222 = vshrl.u32 %v4221, 7
    %v4223 = vsub.s32 4, %v4222
    %v4224 = vrot.slane %v3999, %v4223
    %v4225 = vlaneseq
    %v4226 = vshrl.u32 %v4225, 7
    %v4227 = vsub.s32 5, %v4226
    %v4228 = vrot.slane %v3999, %v4227
    %v4229 = vlaneseq
    %v4230 = vshrl.u32 %v4229, 7
    %v4231 = vsub.s32 6, %v4230
    %v4232 = vrot.slane %v3999, %v4231
    %v4233 = vlaneseq
    %v4234 = vshrl.u32 %v4233, 7
    %v4235 = vsub.s32 7, %v4234
    %v4236 = vrot.slane %v3999, %v4235
    %v4237 = vlaneseq
    %v4238 = vshrl.u32 %v4237, 7
    %v4239 = vsub.s32 0, %v4238
    %v4240 = vrot.slane %v4000, %v4239
    %v4241 = vlaneseq
    %v4242 = vshrl.u32 %v4241, 7
    %v4243 = vsub.s32 1, %v4242
    %v4244 = vrot.slane %v4000, %v4243
    %v4245 = vlaneseq
    %v4246 = vshrl.u32 %v4245, 7
    %v4247 = vsub.s32 2, %v4246
    %v4248 = vrot.slane %v4000, %v4247
    %v4249 = vlaneseq
    %v4250 = vshrl.u32 %v4249, 7
    %v4251 = vsub.s32 3, %v4250
    %v4252 = vrot.slane %v4000, %v4251
    %v4253 = vlaneseq
    %v4254 = vshrl.u32 %v4253, 7
    %v4255 = vsub.s32 4, %v4254
    %v4256 = vrot.slane %v4000, %v4255
    %v4257 = vlaneseq
    %v4258 = vshrl.u32 %v4257, 7
    %v4259 = vsub.s32 5, %v4258
    %v4260 = vrot.slane %v4000, %v4259
    %v4261 = vlaneseq
    %v4262 = vshrl.u32 %v4261, 7
    %v4263 = vsub.s32 6, %v4262
    %v4264 = vrot.slane %v4000, %v4263
    %v4265 = vlaneseq
    %v4266 = vshrl.u32 %v4265, 7
    %v4267 = vsub.s32 7, %v4266
    %v4268 = vrot.slane %v4000, %v4267
    %v4269 = vlaneseq
    %v4270 = vshrl.u32 %v4269, 7
    %v4271 = vsub.s32 0, %v4270
    %v4272 = vrot.slane %v4001, %v4271
    %v4273 = vlaneseq
    %v4274 = vshrl.u32 %v4273, 7
    %v4275 = vsub.s32 1, %v4274
    %v4276 = vrot.slane %v4001, %v4275
    %v4277 = vlaneseq
    %v4278 = vshrl.u32 %v4277, 7
    %v4279 = vsub.s32 2, %v4278
    %v4280 = vrot.slane %v4001, %v4279
    %v4281 = vlaneseq
    %v4282 = vshrl.u32 %v4281, 7
    %v4283 = vsub.s32 3, %v4282
    %v4284 = vrot.slane %v4001, %v4283
    %v4285 = vlaneseq
    %v4286 = vshrl.u32 %v4285, 7
    %v4287 = vsub.s32 4, %v4286
    %v4288 = vrot.slane %v4001, %v4287
    %v4289 = vlaneseq
    %v4290 = vshrl.u32 %v4289, 7
    %v4291 = vsub.s32 5, %v4290
    %v4292 = vrot.slane %v4001, %v4291
    %v4293 = vlaneseq
    %v4294 = vshrl.u32 %v4293, 7
    %v4295 = vsub.s32 6, %v4294
    %v4296 = vrot.slane %v4001, %v4295
    %v4297 = vlaneseq
    %v4298 = vshrl.u32 %v4297, 7
    %v4299 = vsub.s32 7, %v4298
    %v4300 = vrot.slane %v4001, %v4299
    %v4301 = vlaneseq
    %v4302 = vshrl.u32 %v4301, 7
    %v4303 = vsub.s32 0, %v4302
    %v4304 = vrot.slane %v4002, %v4303
    %4378 = vmatprep.subr.bf16.mxu0 %v3848
    %4379 = vmatpush1.bf16.msra.mxu0 %v3847
    %4380 = vmatprep.subr.bf16.mxu0 %v3921
    %4381 = vmatpush1.bf16.msra.mxu0 %v3920
    %4382 = vmatprep.subr.bf16.mxu0 0
    %4383 = vmatpush1.bf16.msra.mxu0 0
    %4384 = vmatprep.subr.bf16.mxu0 0
    %4385 = vmatpush1.bf16.msra.mxu0 0
    %4386 = vmatprep.subr.bf16.mxu0 0
    %4387 = vmatpush1.bf16.msra.mxu0 0
    %4388 = vmatprep.subr.bf16.mxu0 0
    %4389 = vmatpush1.bf16.msra.mxu0 0
    %4390 = vmatprep.subr.bf16.mxu0 0
    %4391 = vmatpush1.bf16.msra.mxu0 0
    %4392 = vmatprep.subr.bf16.mxu0 0
    %4393 = vmatpush1.bf16.msra.mxu0 0
    %4394 = vmatprep.subr.bf16.mxu0 0
    %4395 = vmatpush1.bf16.msra.mxu0 0
    %4396 = vmatprep.subr.bf16.mxu0 0
    %4397 = vmatpush1.bf16.msra.mxu0 0
    %4398 = vmatprep.subr.bf16.mxu0 0
    %4399 = vmatpush1.bf16.msra.mxu0 0
    %4400 = vmatprep.subr.bf16.mxu0 0
    %4401 = vmatpush1.bf16.msra.mxu0 0
    %4402 = vmatprep.subr.bf16.mxu0 0
    %4403 = vmatpush1.bf16.msra.mxu0 0
    %4404 = vmatprep.subr.bf16.mxu0 0
    %4405 = vmatpush1.bf16.msra.mxu0 0
    %4406 = vmatprep.subr.bf16.mxu0 0
    %4407 = vmatpush1.bf16.msra.mxu0 0
    %4408 = vmatprep.subr.bf16.mxu0 0
    %4409 = vmatpush1.bf16.msra.mxu0 0
    %4410 = vmatprep.mubr.bf16.mxu0 0
    %4411 = vmatmul.mubr.bf16.gmra.mrb[0].mxu0 %v1465
    %v4412 = vpop.f32.mrb[0].mxu0
    %v4413 = vadd.f32 %v4016, %v4412
    %v4414 = vpop.f32.mrb[0].mxu0
    %v4415 = vadd.f32 %v4020, %v4414
    %v4416 = vpop.f32.mrb[0].mxu0
    %v4417 = vpop.f32.mrb[0].mxu0
    %4418 = vdwg.mxu0
    %4419 = vmatprep.subr.bf16.mxu0 %v3850
    %4420 = vmatpush1.bf16.msra.mxu0 %v3849
    %4421 = vmatprep.subr.bf16.mxu0 %v3923
    %4422 = vmatpush1.bf16.msra.mxu0 %v3922
    %4423 = vmatprep.subr.bf16.mxu0 0
    %4424 = vmatpush1.bf16.msra.mxu0 0
    %4425 = vmatprep.subr.bf16.mxu0 0
    %4426 = vmatpush1.bf16.msra.mxu0 0
    %4427 = vmatprep.subr.bf16.mxu0 0
    %4428 = vmatpush1.bf16.msra.mxu0 0
    %4429 = vmatprep.subr.bf16.mxu0 0
    %4430 = vmatpush1.bf16.msra.mxu0 0
    %4431 = vmatprep.subr.bf16.mxu0 0
    %4432 = vmatpush1.bf16.msra.mxu0 0
    %4433 = vmatprep.subr.bf16.mxu0 0
    %4434 = vmatpush1.bf16.msra.mxu0 0
    %4435 = vmatprep.subr.bf16.mxu0 0
    %4436 = vmatpush1.bf16.msra.mxu0 0
    %4437 = vmatprep.subr.bf16.mxu0 0
    %4438 = vmatpush1.bf16.msra.mxu0 0
    %4439 = vmatprep.subr.bf16.mxu0 0
    %4440 = vmatpush1.bf16.msra.mxu0 0
    %4441 = vmatprep.subr.bf16.mxu0 0
    %4442 = vmatpush1.bf16.msra.mxu0 0
    %4443 = vmatprep.subr.bf16.mxu0 0
    %4444 = vmatpush1.bf16.msra.mxu0 0
    %4445 = vmatprep.subr.bf16.mxu0 0
    %4446 = vmatpush1.bf16.msra.mxu0 0
    %4447 = vmatprep.subr.bf16.mxu0 0
    %4448 = vmatpush1.bf16.msra.mxu0 0
    %4449 = vmatprep.subr.bf16.mxu0 0
    %4450 = vmatpush1.bf16.msra.mxu0 0
    %4451 = vmatprep.mubr.bf16.mxu0 0
    %4452 = vmatmul.mubr.bf16.gmra.mrb[0].mxu0 %v1465
    %v4453 = vpop.f32.mrb[0].mxu0
    %v4454 = vadd.f32 %v4024, %v4453
    %v4455 = vpop.f32.mrb[0].mxu0
    %v4456 = vadd.f32 %v4028, %v4455
    %v4457 = vpop.f32.mrb[0].mxu0
    %v4458 = vpop.f32.mrb[0].mxu0
    %4459 = vdwg.mxu0
    %4460 = vmatprep.subr.bf16.mxu0 %v3852
    %4461 = vmatpush1.bf16.msra.mxu0 %v3851
    %4462 = vmatprep.subr.bf16.mxu0 %v3925
    %4463 = vmatpush1.bf16.msra.mxu0 %v3924
    %4464 = vmatprep.subr.bf16.mxu0 0
    %4465 = vmatpush1.bf16.msra.mxu0 0
    %4466 = vmatprep.subr.bf16.mxu0 0
    %4467 = vmatpush1.bf16.msra.mxu0 0
    %4468 = vmatprep.subr.bf16.mxu0 0
    %4469 = vmatpush1.bf16.msra.mxu0 0
    %4470 = vmatprep.subr.bf16.mxu0 0
    %4471 = vmatpush1.bf16.msra.mxu0 0
    %4472 = vmatprep.subr.bf16.mxu0 0
    %4473 = vmatpush1.bf16.msra.mxu0 0
    %4474 = vmatprep.subr.bf16.mxu0 0
    %4475 = vmatpush1.bf16.msra.mxu0 0
    %4476 = vmatprep.subr.bf16.mxu0 0
    %4477 = vmatpush1.bf16.msra.mxu0 0
    %4478 = vmatprep.subr.bf16.mxu0 0
    %4479 = vmatpush1.bf16.msra.mxu0 0
    %4480 = vmatprep.subr.bf16.mxu0 0
    %4481 = vmatpush1.bf16.msra.mxu0 0
    %4482 = vmatprep.subr.bf16.mxu0 0
    %4483 = vmatpush1.bf16.msra.mxu0 0
    %4484 = vmatprep.subr.bf16.mxu0 0
    %4485 = vmatpush1.bf16.msra.mxu0 0
    %4486 = vmatprep.subr.bf16.mxu0 0
    %4487 = vmatpush1.bf16.msra.mxu0 0
    %4488 = vmatprep.subr.bf16.mxu0 0
    %4489 = vmatpush1.bf16.msra.mxu0 0
    %4490 = vmatprep.subr.bf16.mxu0 0
    %4491 = vmatpush1.bf16.msra.mxu0 0
    %4492 = vmatprep.mubr.bf16.mxu0 0
    %4493 = vmatmul.mubr.bf16.gmra.mrb[0].mxu0 %v1465
    %v4494 = vpop.f32.mrb[0].mxu0
    %v4495 = vadd.f32 %v4032, %v4494
    %v4496 = vpop.f32.mrb[0].mxu0
    %v4497 = vadd.f32 %v4036, %v4496
    %v4498 = vpop.f32.mrb[0].mxu0
    %v4499 = vpop.f32.mrb[0].mxu0
    %4500 = vdwg.mxu0
    %4501 = vmatprep.subr.bf16.mxu0 %v3854
    %4502 = vmatpush1.bf16.msra.mxu0 %v3853
    %4503 = vmatprep.subr.bf16.mxu0 %v3927
    %4504 = vmatpush1.bf16.msra.mxu0 %v3926
    %4505 = vmatprep.subr.bf16.mxu0 0
    %4506 = vmatpush1.bf16.msra.mxu0 0
    %4507 = vmatprep.subr.bf16.mxu0 0
    %4508 = vmatpush1.bf16.msra.mxu0 0
    %4509 = vmatprep.subr.bf16.mxu0 0
    %4510 = vmatpush1.bf16.msra.mxu0 0
    %4511 = vmatprep.subr.bf16.mxu0 0
    %4512 = vmatpush1.bf16.msra.mxu0 0
    %4513 = vmatprep.subr.bf16.mxu0 0
    %4514 = vmatpush1.bf16.msra.mxu0 0
    %4515 = vmatprep.subr.bf16.mxu0 0
    %4516 = vmatpush1.bf16.msra.mxu0 0
    %4517 = vmatprep.subr.bf16.mxu0 0
    %4518 = vmatpush1.bf16.msra.mxu0 0
    %4519 = vmatprep.subr.bf16.mxu0 0
    %4520 = vmatpush1.bf16.msra.mxu0 0
    %4521 = vmatprep.subr.bf16.mxu0 0
    %4522 = vmatpush1.bf16.msra.mxu0 0
    %4523 = vmatprep.subr.bf16.mxu0 0
    %4524 = vmatpush1.bf16.msra.mxu0 0
    %4525 = vmatprep.subr.bf16.mxu0 0
    %4526 = vmatpush1.bf16.msra.mxu0 0
    %4527 = vmatprep.subr.bf16.mxu0 0
    %4528 = vmatpush1.bf16.msra.mxu0 0
    %4529 = vmatprep.subr.bf16.mxu0 0
    %4530 = vmatpush1.bf16.msra.mxu0 0
    %4531 = vmatprep.subr.bf16.mxu0 0
    %4532 = vmatpush1.bf16.msra.mxu0 0
    %4533 = vmatprep.mubr.bf16.mxu0 0
    %4534 = vmatmul.mubr.bf16.gmra.mrb[0].mxu0 %v1465
    %v4535 = vpop.f32.mrb[0].mxu0
    %v4536 = vadd.f32 %v4040, %v4535
    %v4537 = vpop.f32.mrb[0].mxu0
    %v4538 = vadd.f32 %v4044, %v4537
    %v4539 = vpop.f32.mrb[0].mxu0
    %v4540 = vpop.f32.mrb[0].mxu0
    %4541 = vdwg.mxu0
    %4542 = vmatprep.subr.bf16.mxu0 %v3856
    %4543 = vmatpush1.bf16.msra.mxu0 %v3855
    %4544 = vmatprep.subr.bf16.mxu0 %v3929
    %4545 = vmatpush1.bf16.msra.mxu0 %v3928
    %4546 = vmatprep.subr.bf16.mxu0 0
    %4547 = vmatpush1.bf16.msra.mxu0 0
    %4548 = vmatprep.subr.bf16.mxu0 0
    %4549 = vmatpush1.bf16.msra.mxu0 0
    %4550 = vmatprep.subr.bf16.mxu0 0
    %4551 = vmatpush1.bf16.msra.mxu0 0
    %4552 = vmatprep.subr.bf16.mxu0 0
    %4553 = vmatpush1.bf16.msra.mxu0 0
    %4554 = vmatprep.subr.bf16.mxu0 0
    %4555 = vmatpush1.bf16.msra.mxu0 0
    %4556 = vmatprep.subr.bf16.mxu0 0
    %4557 = vmatpush1.bf16.msra.mxu0 0
    %4558 = vmatprep.subr.bf16.mxu0 0
    %4559 = vmatpush1.bf16.msra.mxu0 0
    %4560 = vmatprep.subr.bf16.mxu0 0
    %4561 = vmatpush1.bf16.msra.mxu0 0
    %4562 = vmatprep.subr.bf16.mxu0 0
    %4563 = vmatpush1.bf16.msra.mxu0 0
    %4564 = vmatprep.subr.bf16.mxu0 0
    %4565 = vmatpush1.bf16.msra.mxu0 0
    %4566 = vmatprep.subr.bf16.mxu0 0
    %4567 = vmatpush1.bf16.msra.mxu0 0
    %4568 = vmatprep.subr.bf16.mxu0 0
    %4569 = vmatpush1.bf16.msra.mxu0 0
    %4570 = vmatprep.subr.bf16.mxu0 0
    %4571 = vmatpush1.bf16.msra.mxu0 0
    %4572 = vmatprep.subr.bf16.mxu0 0
    %4573 = vmatpush1.bf16.msra.mxu0 0
    %4574 = vmatprep.mubr.bf16.mxu0 0
    %4575 = vmatmul.mubr.bf16.gmra.mrb[0].mxu0 %v1465
    %v4576 = vpop.f32.mrb[0].mxu0
    %v4577 = vadd.f32 %v4048, %v4576
    %v4578 = vpop.f32.mrb[0].mxu0
    %v4579 = vadd.f32 %v4052, %v4578
    %v4580 = vpop.f32.mrb[0].mxu0
    %v4581 = vpop.f32.mrb[0].mxu0
    %4582 = vdwg.mxu0
    %4583 = vmatprep.subr.bf16.mxu0 %v3858
    %4584 = vmatpush1.bf16.msra.mxu0 %v3857
    %4585 = vmatprep.subr.bf16.mxu0 %v3931
    %4586 = vmatpush1.bf16.msra.mxu0 %v3930
    %4587 = vmatprep.subr.bf16.mxu0 0
    %4588 = vmatpush1.bf16.msra.mxu0 0
    %4589 = vmatprep.subr.bf16.mxu0 0
    %4590 = vmatpush1.bf16.msra.mxu0 0
    %4591 = vmatprep.subr.bf16.mxu0 0
    %4592 = vmatpush1.bf16.msra.mxu0 0
    %4593 = vmatprep.subr.bf16.mxu0 0
    %4594 = vmatpush1.bf16.msra.mxu0 0
    %4595 = vmatprep.subr.bf16.mxu0 0
    %4596 = vmatpush1.bf16.msra.mxu0 0
    %4597 = vmatprep.subr.bf16.mxu0 0
    %4598 = vmatpush1.bf16.msra.mxu0 0
    %4599 = vmatprep.subr.bf16.mxu0 0
    %4600 = vmatpush1.bf16.msra.mxu0 0
    %4601 = vmatprep.subr.bf16.mxu0 0
    %4602 = vmatpush1.bf16.msra.mxu0 0
    %4603 = vmatprep.subr.bf16.mxu0 0
    %4604 = vmatpush1.bf16.msra.mxu0 0
    %4605 = vmatprep.subr.bf16.mxu0 0
    %4606 = vmatpush1.bf16.msra.mxu0 0
    %4607 = vmatprep.subr.bf16.mxu0 0
    %4608 = vmatpush1.bf16.msra.mxu0 0
    %4609 = vmatprep.subr.bf16.mxu0 0
    %4610 = vmatpush1.bf16.msra.mxu0 0
    %4611 = vmatprep.subr.bf16.mxu0 0
    %4612 = vmatpush1.bf16.msra.mxu0 0
    %4613 = vmatprep.subr.bf16.mxu0 0
    %4614 = vmatpush1.bf16.msra.mxu0 0
    %4615 = vmatprep.mubr.bf16.mxu0 0
    %4616 = vmatmul.mubr.bf16.gmra.mrb[0].mxu0 %v1465
    %v4617 = vpop.f32.mrb[0].mxu0
    %v4618 = vadd.f32 %v4056, %v4617
    %v4619 = vpop.f32.mrb[0].mxu0
    %v4620 = vadd.f32 %v4060, %v4619
    %v4621 = vpop.f32.mrb[0].mxu0
    %v4622 = vpop.f32.mrb[0].mxu0
    %4623 = vdwg.mxu0
    %4624 = vmatprep.subr.bf16.mxu0 %v3860
    %4625 = vmatpush1.bf16.msra.mxu0 %v3859
    %4626 = vmatprep.subr.bf16.mxu0 %v3933
    %4627 = vmatpush1.bf16.msra.mxu0 %v3932
    %4628 = vmatprep.subr.bf16.mxu0 0
    %4629 = vmatpush1.bf16.msra.mxu0 0
    %4630 = vmatprep.subr.bf16.mxu0 0
    %4631 = vmatpush1.bf16.msra.mxu0 0
    %4632 = vmatprep.subr.bf16.mxu0 0
    %4633 = vmatpush1.bf16.msra.mxu0 0
    %4634 = vmatprep.subr.bf16.mxu0 0
    %4635 = vmatpush1.bf16.msra.mxu0 0
    %4636 = vmatprep.subr.bf16.mxu0 0
    %4637 = vmatpush1.bf16.msra.mxu0 0
    %4638 = vmatprep.subr.bf16.mxu0 0
    %4639 = vmatpush1.bf16.msra.mxu0 0
    %4640 = vmatprep.subr.bf16.mxu0 0
    %4641 = vmatpush1.bf16.msra.mxu0 0
    %4642 = vmatprep.subr.bf16.mxu0 0
    %4643 = vmatpush1.bf16.msra.mxu0 0
    %4644 = vmatprep.subr.bf16.mxu0 0
    %4645 = vmatpush1.bf16.msra.mxu0 0
    %4646 = vmatprep.subr.bf16.mxu0 0
    %4647 = vmatpush1.bf16.msra.mxu0 0
    %4648 = vmatprep.subr.bf16.mxu0 0
    %4649 = vmatpush1.bf16.msra.mxu0 0
    %4650 = vmatprep.subr.bf16.mxu0 0
    %4651 = vmatpush1.bf16.msra.mxu0 0
    %4652 = vmatprep.subr.bf16.mxu0 0
    %4653 = vmatpush1.bf16.msra.mxu0 0
    %4654 = vmatprep.subr.bf16.mxu0 0
    %4655 = vmatpush1.bf16.msra.mxu0 0
    %4656 = vmatprep.mubr.bf16.mxu0 0
    %4657 = vmatmul.mubr.bf16.gmra.mrb[0].mxu0 %v1465
    %v4658 = vpop.f32.mrb[0].mxu0
    %v4659 = vadd.f32 %v4064, %v4658
    %v4660 = vpop.f32.mrb[0].mxu0
    %v4661 = vadd.f32 %v4068, %v4660
    %v4662 = vpop.f32.mrb[0].mxu0
    %v4663 = vpop.f32.mrb[0].mxu0
    %4664 = vdwg.mxu0
    %4665 = vmatprep.subr.bf16.mxu0 %v3862
    %4666 = vmatpush1.bf16.msra.mxu0 %v3861
    %4667 = vmatprep.subr.bf16.mxu0 %v3935
    %4668 = vmatpush1.bf16.msra.mxu0 %v3934
    %4669 = vmatprep.subr.bf16.mxu0 0
    %4670 = vmatpush1.bf16.msra.mxu0 0
    %4671 = vmatprep.subr.bf16.mxu0 0
    %4672 = vmatpush1.bf16.msra.mxu0 0
    %4673 = vmatprep.subr.bf16.mxu0 0
    %4674 = vmatpush1.bf16.msra.mxu0 0
    %4675 = vmatprep.subr.bf16.mxu0 0
    %4676 = vmatpush1.bf16.msra.mxu0 0
    %4677 = vmatprep.subr.bf16.mxu0 0
    %4678 = vmatpush1.bf16.msra.mxu0 0
    %4679 = vmatprep.subr.bf16.mxu0 0
    %4680 = vmatpush1.bf16.msra.mxu0 0
    %4681 = vmatprep.subr.bf16.mxu0 0
    %4682 = vmatpush1.bf16.msra.mxu0 0
    %4683 = vmatprep.subr.bf16.mxu0 0
    %4684 = vmatpush1.bf16.msra.mxu0 0
    %4685 = vmatprep.subr.bf16.mxu0 0
    %4686 = vmatpush1.bf16.msra.mxu0 0
    %4687 = vmatprep.subr.bf16.mxu0 0
    %4688 = vmatpush1.bf16.msra.mxu0 0
    %4689 = vmatprep.subr.bf16.mxu0 0
    %4690 = vmatpush1.bf16.msra.mxu0 0
    %4691 = vmatprep.subr.bf16.mxu0 0
    %4692 = vmatpush1.bf16.msra.mxu0 0
    %4693 = vmatprep.subr.bf16.mxu0 0
    %4694 = vmatpush1.bf16.msra.mxu0 0
    %4695 = vmatprep.subr.bf16.mxu0 0
    %4696 = vmatpush1.bf16.msra.mxu0 0
    %4697 = vmatprep.mubr.bf16.mxu0 0
    %4698 = vmatmul.mubr.bf16.gmra.mrb[0].mxu0 %v1465
    %v4699 = vpop.f32.mrb[0].mxu0
    %v4700 = vadd.f32 %v4072, %v4699
    %v4701 = vpop.f32.mrb[0].mxu0
    %v4702 = vadd.f32 %v4076, %v4701
    %v4703 = vpop.f32.mrb[0].mxu0
    %v4704 = vpop.f32.mrb[0].mxu0
    %4705 = vdwg.mxu0
    %4706 = vmatprep.subr.bf16.mxu0 %v3864
    %4707 = vmatpush1.bf16.msra.mxu0 %v3863
    %4708 = vmatprep.subr.bf16.mxu0 %v3937
    %4709 = vmatpush1.bf16.msra.mxu0 %v3936
    %4710 = vmatprep.subr.bf16.mxu0 0
    %4711 = vmatpush1.bf16.msra.mxu0 0
    %4712 = vmatprep.subr.bf16.mxu0 0
    %4713 = vmatpush1.bf16.msra.mxu0 0
    %4714 = vmatprep.subr.bf16.mxu0 0
    %4715 = vmatpush1.bf16.msra.mxu0 0
    %4716 = vmatprep.subr.bf16.mxu0 0
    %4717 = vmatpush1.bf16.msra.mxu0 0
    %4718 = vmatprep.subr.bf16.mxu0 0
    %4719 = vmatpush1.bf16.msra.mxu0 0
    %4720 = vmatprep.subr.bf16.mxu0 0
    %4721 = vmatpush1.bf16.msra.mxu0 0
    %4722 = vmatprep.subr.bf16.mxu0 0
    %4723 = vmatpush1.bf16.msra.mxu0 0
    %4724 = vmatprep.subr.bf16.mxu0 0
    %4725 = vmatpush1.bf16.msra.mxu0 0
    %4726 = vmatprep.subr.bf16.mxu0 0
    %4727 = vmatpush1.bf16.msra.mxu0 0
    %4728 = vmatprep.subr.bf16.mxu0 0
    %4729 = vmatpush1.bf16.msra.mxu0 0
    %4730 = vmatprep.subr.bf16.mxu0 0
    %4731 = vmatpush1.bf16.msra.mxu0 0
    %4732 = vmatprep.subr.bf16.mxu0 0
    %4733 = vmatpush1.bf16.msra.mxu0 0
    %4734 = vmatprep.subr.bf16.mxu0 0
    %4735 = vmatpush1.bf16.msra.mxu0 0
    %4736 = vmatprep.subr.bf16.mxu0 0
    %4737 = vmatpush1.bf16.msra.mxu0 0
    %4738 = vmatprep.mubr.bf16.mxu0 0
    %4739 = vmatmul.mubr.bf16.gmra.mrb[0].mxu0 %v1465
    %v4740 = vpop.f32.mrb[0].mxu0
    %v4741 = vadd.f32 %v4080, %v4740
    %v4742 = vpop.f32.mrb[0].mxu0
    %v4743 = vadd.f32 %v4084, %v4742
    %v4744 = vpop.f32.mrb[0].mxu0
    %v4745 = vpop.f32.mrb[0].mxu0
    %4746 = vdwg.mxu0
    %4747 = vmatprep.subr.bf16.mxu0 %v3866
    %4748 = vmatpush1.bf16.msra.mxu0 %v3865
    %4749 = vmatprep.subr.bf16.mxu0 %v3939
    %4750 = vmatpush1.bf16.msra.mxu0 %v3938
    %4751 = vmatprep.subr.bf16.mxu0 0
    %4752 = vmatpush1.bf16.msra.mxu0 0
    %4753 = vmatprep.subr.bf16.mxu0 0
    %4754 = vmatpush1.bf16.msra.mxu0 0
    %4755 = vmatprep.subr.bf16.mxu0 0
    %4756 = vmatpush1.bf16.msra.mxu0 0
    %4757 = vmatprep.subr.bf16.mxu0 0
    %4758 = vmatpush1.bf16.msra.mxu0 0
    %4759 = vmatprep.subr.bf16.mxu0 0
    %4760 = vmatpush1.bf16.msra.mxu0 0
    %4761 = vmatprep.subr.bf16.mxu0 0
    %4762 = vmatpush1.bf16.msra.mxu0 0
    %4763 = vmatprep.subr.bf16.mxu0 0
    %4764 = vmatpush1.bf16.msra.mxu0 0
    %4765 = vmatprep.subr.bf16.mxu0 0
    %4766 = vmatpush1.bf16.msra.mxu0 0
    %4767 = vmatprep.subr.bf16.mxu0 0
    %4768 = vmatpush1.bf16.msra.mxu0 0
    %4769 = vmatprep.subr.bf16.mxu0 0
    %4770 = vmatpush1.bf16.msra.mxu0 0
    %4771 = vmatprep.subr.bf16.mxu0 0
    %4772 = vmatpush1.bf16.msra.mxu0 0
    %4773 = vmatprep.subr.bf16.mxu0 0
    %4774 = vmatpush1.bf16.msra.mxu0 0
    %4775 = vmatprep.subr.bf16.mxu0 0
    %4776 = vmatpush1.bf16.msra.mxu0 0
    %4777 = vmatprep.subr.bf16.mxu0 0
    %4778 = vmatpush1.bf16.msra.mxu0 0
    %4779 = vmatprep.mubr.bf16.mxu0 0
    %4780 = vmatmul.mubr.bf16.gmra.mrb[0].mxu0 %v1465
    %v4781 = vpop.f32.mrb[0].mxu0
    %v4782 = vadd.f32 %v4088, %v4781
    %v4783 = vpop.f32.mrb[0].mxu0
    %v4784 = vadd.f32 %v4092, %v4783
    %v4785 = vpop.f32.mrb[0].mxu0
    %v4786 = vpop.f32.mrb[0].mxu0
    %4787 = vdwg.mxu0
    %4788 = vmatprep.subr.bf16.mxu0 %v3868
    %4789 = vmatpush1.bf16.msra.mxu0 %v3867
    %4790 = vmatprep.subr.bf16.mxu0 %v3941
    %4791 = vmatpush1.bf16.msra.mxu0 %v3940
    %4792 = vmatprep.subr.bf16.mxu0 0
    %4793 = vmatpush1.bf16.msra.mxu0 0
    %4794 = vmatprep.subr.bf16.mxu0 0
    %4795 = vmatpush1.bf16.msra.mxu0 0
    %4796 = vmatprep.subr.bf16.mxu0 0
    %4797 = vmatpush1.bf16.msra.mxu0 0
    %4798 = vmatprep.subr.bf16.mxu0 0
    %4799 = vmatpush1.bf16.msra.mxu0 0
    %4800 = vmatprep.subr.bf16.mxu0 0
    %4801 = vmatpush1.bf16.msra.mxu0 0
    %4802 = vmatprep.subr.bf16.mxu0 0
    %4803 = vmatpush1.bf16.msra.mxu0 0
    %4804 = vmatprep.subr.bf16.mxu0 0
    %4805 = vmatpush1.bf16.msra.mxu0 0
    %4806 = vmatprep.subr.bf16.mxu0 0
    %4807 = vmatpush1.bf16.msra.mxu0 0
    %4808 = vmatprep.subr.bf16.mxu0 0
    %4809 = vmatpush1.bf16.msra.mxu0 0
    %4810 = vmatprep.subr.bf16.mxu0 0
    %4811 = vmatpush1.bf16.msra.mxu0 0
    %4812 = vmatprep.subr.bf16.mxu0 0
    %4813 = vmatpush1.bf16.msra.mxu0 0
    %4814 = vmatprep.subr.bf16.mxu0 0
    %4815 = vmatpush1.bf16.msra.mxu0 0
    %4816 = vmatprep.subr.bf16.mxu0 0
    %4817 = vmatpush1.bf16.msra.mxu0 0
    %4818 = vmatprep.subr.bf16.mxu0 0
    %4819 = vmatpush1.bf16.msra.mxu0 0
    %4820 = vmatprep.mubr.bf16.mxu0 0
    %4821 = vmatmul.mubr.bf16.gmra.mrb[0].mxu0 %v1465
    %v4822 = vpop.f32.mrb[0].mxu0
    %v4823 = vadd.f32 %v4096, %v4822
    %v4824 = vpop.f32.mrb[0].mxu0
    %v4825 = vadd.f32 %v4100, %v4824
    %v4826 = vpop.f32.mrb[0].mxu0
    %v4827 = vpop.f32.mrb[0].mxu0
    %4828 = vdwg.mxu0
    %4829 = vmatprep.subr.bf16.mxu0 %v3870
    %4830 = vmatpush1.bf16.msra.mxu0 %v3869
    %4831 = vmatprep.subr.bf16.mxu0 %v3943
    %4832 = vmatpush1.bf16.msra.mxu0 %v3942
    %4833 = vmatprep.subr.bf16.mxu0 0
    %4834 = vmatpush1.bf16.msra.mxu0 0
    %4835 = vmatprep.subr.bf16.mxu0 0
    %4836 = vmatpush1.bf16.msra.mxu0 0
    %4837 = vmatprep.subr.bf16.mxu0 0
    %4838 = vmatpush1.bf16.msra.mxu0 0
    %4839 = vmatprep.subr.bf16.mxu0 0
    %4840 = vmatpush1.bf16.msra.mxu0 0
    %4841 = vmatprep.subr.bf16.mxu0 0
    %4842 = vmatpush1.bf16.msra.mxu0 0
    %4843 = vmatprep.subr.bf16.mxu0 0
    %4844 = vmatpush1.bf16.msra.mxu0 0
    %4845 = vmatprep.subr.bf16.mxu0 0
    %4846 = vmatpush1.bf16.msra.mxu0 0
    %4847 = vmatprep.subr.bf16.mxu0 0
    %4848 = vmatpush1.bf16.msra.mxu0 0
    %4849 = vmatprep.subr.bf16.mxu0 0
    %4850 = vmatpush1.bf16.msra.mxu0 0
    %4851 = vmatprep.subr.bf16.mxu0 0
    %4852 = vmatpush1.bf16.msra.mxu0 0
    %4853 = vmatprep.subr.bf16.mxu0 0
    %4854 = vmatpush1.bf16.msra.mxu0 0
    %4855 = vmatprep.subr.bf16.mxu0 0
    %4856 = vmatpush1.bf16.msra.mxu0 0
    %4857 = vmatprep.subr.bf16.mxu0 0
    %4858 = vmatpush1.bf16.msra.mxu0 0
    %4859 = vmatprep.subr.bf16.mxu0 0
    %4860 = vmatpush1.bf16.msra.mxu0 0
    %4861 = vmatprep.mubr.bf16.mxu0 0
    %4862 = vmatmul.mubr.bf16.gmra.mrb[0].mxu0 %v1465
    %v4863 = vpop.f32.mrb[0].mxu0
    %v4864 = vadd.f32 %v4104, %v4863
    %v4865 = vpop.f32.mrb[0].mxu0
    %v4866 = vadd.f32 %v4108, %v4865
    %v4867 = vpop.f32.mrb[0].mxu0
    %v4868 = vpop.f32.mrb[0].mxu0
    %4869 = vdwg.mxu0
    %4870 = vmatprep.subr.bf16.mxu0 %v3872
    %4871 = vmatpush1.bf16.msra.mxu0 %v3871
    %4872 = vmatprep.subr.bf16.mxu0 %v3945
    %4873 = vmatpush1.bf16.msra.mxu0 %v3944
    %4874 = vmatprep.subr.bf16.mxu0 0
    %4875 = vmatpush1.bf16.msra.mxu0 0
    %4876 = vmatprep.subr.bf16.mxu0 0
    %4877 = vmatpush1.bf16.msra.mxu0 0
    %4878 = vmatprep.subr.bf16.mxu0 0
    %4879 = vmatpush1.bf16.msra.mxu0 0
    %4880 = vmatprep.subr.bf16.mxu0 0
    %4881 = vmatpush1.bf16.msra.mxu0 0
    %4882 = vmatprep.subr.bf16.mxu0 0
    %4883 = vmatpush1.bf16.msra.mxu0 0
    %4884 = vmatprep.subr.bf16.mxu0 0
    %4885 = vmatpush1.bf16.msra.mxu0 0
    %4886 = vmatprep.subr.bf16.mxu0 0
    %4887 = vmatpush1.bf16.msra.mxu0 0
    %4888 = vmatprep.subr.bf16.mxu0 0
    %4889 = vmatpush1.bf16.msra.mxu0 0
    %4890 = vmatprep.subr.bf16.mxu0 0
    %4891 = vmatpush1.bf16.msra.mxu0 0
    %4892 = vmatprep.subr.bf16.mxu0 0
    %4893 = vmatpush1.bf16.msra.mxu0 0
    %4894 = vmatprep.subr.bf16.mxu0 0
    %4895 = vmatpush1.bf16.msra.mxu0 0
    %4896 = vmatprep.subr.bf16.mxu0 0
    %4897 = vmatpush1.bf16.msra.mxu0 0
    %4898 = vmatprep.subr.bf16.mxu0 0
    %4899 = vmatpush1.bf16.msra.mxu0 0
    %4900 = vmatprep.subr.bf16.mxu0 0
    %4901 = vmatpush1.bf16.msra.mxu0 0
    %4902 = vmatprep.mubr.bf16.mxu0 0
    %4903 = vmatmul.mubr.bf16.gmra.mrb[0].mxu0 %v1465
    %v4904 = vpop.f32.mrb[0].mxu0
    %v4905 = vadd.f32 %v4112, %v4904
    %v4906 = vpop.f32.mrb[0].mxu0
    %v4907 = vadd.f32 %v4116, %v4906
    %v4908 = vpop.f32.mrb[0].mxu0
    %v4909 = vpop.f32.mrb[0].mxu0
    %4910 = vdwg.mxu0
    %4911 = vmatprep.subr.bf16.mxu0 %v3874
    %4912 = vmatpush1.bf16.msra.mxu0 %v3873
    %4913 = vmatprep.subr.bf16.mxu0 %v3947
    %4914 = vmatpush1.bf16.msra.mxu0 %v3946
    %4915 = vmatprep.subr.bf16.mxu0 0
    %4916 = vmatpush1.bf16.msra.mxu0 0
    %4917 = vmatprep.subr.bf16.mxu0 0
    %4918 = vmatpush1.bf16.msra.mxu0 0
    %4919 = vmatprep.subr.bf16.mxu0 0
    %4920 = vmatpush1.bf16.msra.mxu0 0
    %4921 = vmatprep.subr.bf16.mxu0 0
    %4922 = vmatpush1.bf16.msra.mxu0 0
    %4923 = vmatprep.subr.bf16.mxu0 0
    %4924 = vmatpush1.bf16.msra.mxu0 0
    %4925 = vmatprep.subr.bf16.mxu0 0
    %4926 = vmatpush1.bf16.msra.mxu0 0
    %4927 = vmatprep.subr.bf16.mxu0 0
    %4928 = vmatpush1.bf16.msra.mxu0 0
    %4929 = vmatprep.subr.bf16.mxu0 0
    %4930 = vmatpush1.bf16.msra.mxu0 0
    %4931 = vmatprep.subr.bf16.mxu0 0
    %4932 = vmatpush1.bf16.msra.mxu0 0
    %4933 = vmatprep.subr.bf16.mxu0 0
    %4934 = vmatpush1.bf16.msra.mxu0 0
    %4935 = vmatprep.subr.bf16.mxu0 0
    %4936 = vmatpush1.bf16.msra.mxu0 0
    %4937 = vmatprep.subr.bf16.mxu0 0
    %4938 = vmatpush1.bf16.msra.mxu0 0
    %4939 = vmatprep.subr.bf16.mxu0 0
    %4940 = vmatpush1.bf16.msra.mxu0 0
    %4941 = vmatprep.subr.bf16.mxu0 0
    %4942 = vmatpush1.bf16.msra.mxu0 0
    %4943 = vmatprep.mubr.bf16.mxu0 0
    %4944 = vmatmul.mubr.bf16.gmra.mrb[0].mxu0 %v1465
    %v4945 = vpop.f32.mrb[0].mxu0
    %v4946 = vadd.f32 %v4120, %v4945
    %v4947 = vpop.f32.mrb[0].mxu0
    %v4948 = vadd.f32 %v4124, %v4947
    %v4949 = vpop.f32.mrb[0].mxu0
    %v4950 = vpop.f32.mrb[0].mxu0
    %4951 = vdwg.mxu0
    %4952 = vmatprep.subr.bf16.mxu0 %v3876
    %4953 = vmatpush1.bf16.msra.mxu0 %v3875
    %4954 = vmatprep.subr.bf16.mxu0 %v3949
    %4955 = vmatpush1.bf16.msra.mxu0 %v3948
    %4956 = vmatprep.subr.bf16.mxu0 0
    %4957 = vmatpush1.bf16.msra.mxu0 0
    %4958 = vmatprep.subr.bf16.mxu0 0
    %4959 = vmatpush1.bf16.msra.mxu0 0
    %4960 = vmatprep.subr.bf16.mxu0 0
    %4961 = vmatpush1.bf16.msra.mxu0 0
    %4962 = vmatprep.subr.bf16.mxu0 0
    %4963 = vmatpush1.bf16.msra.mxu0 0
    %4964 = vmatprep.subr.bf16.mxu0 0
    %4965 = vmatpush1.bf16.msra.mxu0 0
    %4966 = vmatprep.subr.bf16.mxu0 0
    %4967 = vmatpush1.bf16.msra.mxu0 0
    %4968 = vmatprep.subr.bf16.mxu0 0
    %4969 = vmatpush1.bf16.msra.mxu0 0
    %4970 = vmatprep.subr.bf16.mxu0 0
    %4971 = vmatpush1.bf16.msra.mxu0 0
    %4972 = vmatprep.subr.bf16.mxu0 0
    %4973 = vmatpush1.bf16.msra.mxu0 0
    %4974 = vmatprep.subr.bf16.mxu0 0
    %4975 = vmatpush1.bf16.msra.mxu0 0
    %4976 = vmatprep.subr.bf16.mxu0 0
    %4977 = vmatpush1.bf16.msra.mxu0 0
    %4978 = vmatprep.subr.bf16.mxu0 0
    %4979 = vmatpush1.bf16.msra.mxu0 0
    %4980 = vmatprep.subr.bf16.mxu0 0
    %4981 = vmatpush1.bf16.msra.mxu0 0
    %4982 = vmatprep.subr.bf16.mxu0 0
    %4983 = vmatpush1.bf16.msra.mxu0 0
    %4984 = vmatprep.mubr.bf16.mxu0 0
    %4985 = vmatmul.mubr.bf16.gmra.mrb[0].mxu0 %v1465
    %v4986 = vpop.f32.mrb[0].mxu0
    %v4987 = vadd.f32 %v4128, %v4986
    %v4988 = vpop.f32.mrb[0].mxu0
    %v4989 = vadd.f32 %v4132, %v4988
    %v4990 = vpop.f32.mrb[0].mxu0
    %v4991 = vpop.f32.mrb[0].mxu0
    %4992 = vdwg.mxu0
    %4993 = vmatprep.subr.bf16.mxu0 %v3878
    %4994 = vmatpush1.bf16.msra.mxu0 %v3877
    %4995 = vmatprep.subr.bf16.mxu0 %v3951
    %4996 = vmatpush1.bf16.msra.mxu0 %v3950
    %4997 = vmatprep.subr.bf16.mxu0 0
    %4998 = vmatpush1.bf16.msra.mxu0 0
    %4999 = vmatprep.subr.bf16.mxu0 0
    %5000 = vmatpush1.bf16.msra.mxu0 0
    %5001 = vmatprep.subr.bf16.mxu0 0
    %5002 = vmatpush1.bf16.msra.mxu0 0
    %5003 = vmatprep.subr.bf16.mxu0 0
    %5004 = vmatpush1.bf16.msra.mxu0 0
    %5005 = vmatprep.subr.bf16.mxu0 0
    %5006 = vmatpush1.bf16.msra.mxu0 0
    %5007 = vmatprep.subr.bf16.mxu0 0
    %5008 = vmatpush1.bf16.msra.mxu0 0
    %5009 = vmatprep.subr.bf16.mxu0 0
    %5010 = vmatpush1.bf16.msra.mxu0 0
    %5011 = vmatprep.subr.bf16.mxu0 0
    %5012 = vmatpush1.bf16.msra.mxu0 0
    %5013 = vmatprep.subr.bf16.mxu0 0
    %5014 = vmatpush1.bf16.msra.mxu0 0
    %5015 = vmatprep.subr.bf16.mxu0 0
    %5016 = vmatpush1.bf16.msra.mxu0 0
    %5017 = vmatprep.subr.bf16.mxu0 0
    %5018 = vmatpush1.bf16.msra.mxu0 0
    %5019 = vmatprep.subr.bf16.mxu0 0
    %5020 = vmatpush1.bf16.msra.mxu0 0
    %5021 = vmatprep.subr.bf16.mxu0 0
    %5022 = vmatpush1.bf16.msra.mxu0 0
    %5023 = vmatprep.subr.bf16.mxu0 0
    %5024 = vmatpush1.bf16.msra.mxu0 0
    %5025 = vmatprep.mubr.bf16.mxu0 0
    %5026 = vmatmul.mubr.bf16.gmra.mrb[0].mxu0 %v1465
    %v5027 = vpop.f32.mrb[0].mxu0
    %v5028 = vadd.f32 %v4136, %v5027
    %v5029 = vpop.f32.mrb[0].mxu0
    %v5030 = vadd.f32 %v4140, %v5029
    %v5031 = vpop.f32.mrb[0].mxu0
    %v5032 = vpop.f32.mrb[0].mxu0
    %5033 = vdwg.mxu0
    %5034 = vmatprep.subr.bf16.mxu0 %v3880
    %5035 = vmatpush1.bf16.msra.mxu0 %v3879
    %5036 = vmatprep.subr.bf16.mxu0 %v3953
    %5037 = vmatpush1.bf16.msra.mxu0 %v3952
    %5038 = vmatprep.subr.bf16.mxu0 0
    %5039 = vmatpush1.bf16.msra.mxu0 0
    %5040 = vmatprep.subr.bf16.mxu0 0
    %5041 = vmatpush1.bf16.msra.mxu0 0
    %5042 = vmatprep.subr.bf16.mxu0 0
    %5043 = vmatpush1.bf16.msra.mxu0 0
    %5044 = vmatprep.subr.bf16.mxu0 0
    %5045 = vmatpush1.bf16.msra.mxu0 0
    %5046 = vmatprep.subr.bf16.mxu0 0
    %5047 = vmatpush1.bf16.msra.mxu0 0
    %5048 = vmatprep.subr.bf16.mxu0 0
    %5049 = vmatpush1.bf16.msra.mxu0 0
    %5050 = vmatprep.subr.bf16.mxu0 0
    %5051 = vmatpush1.bf16.msra.mxu0 0
    %5052 = vmatprep.subr.bf16.mxu0 0
    %5053 = vmatpush1.bf16.msra.mxu0 0
    %5054 = vmatprep.subr.bf16.mxu0 0
    %5055 = vmatpush1.bf16.msra.mxu0 0
    %5056 = vmatprep.subr.bf16.mxu0 0
    %5057 = vmatpush1.bf16.msra.mxu0 0
    %5058 = vmatprep.subr.bf16.mxu0 0
    %5059 = vmatpush1.bf16.msra.mxu0 0
    %5060 = vmatprep.subr.bf16.mxu0 0
    %5061 = vmatpush1.bf16.msra.mxu0 0
    %5062 = vmatprep.subr.bf16.mxu0 0
    %5063 = vmatpush1.bf16.msra.mxu0 0
    %5064 = vmatprep.subr.bf16.mxu0 0
    %5065 = vmatpush1.bf16.msra.mxu0 0
    %5066 = vmatprep.mubr.bf16.mxu0 0
    %5067 = vmatmul.mubr.bf16.gmra.mrb[0].mxu0 %v1465
    %v5068 = vpop.f32.mrb[0].mxu0
    %v5069 = vadd.f32 %v4144, %v5068
    %v5070 = vpop.f32.mrb[0].mxu0
    %v5071 = vadd.f32 %v4148, %v5070
    %v5072 = vpop.f32.mrb[0].mxu0
    %v5073 = vpop.f32.mrb[0].mxu0
    %5074 = vdwg.mxu0
    %5075 = vmatprep.subr.bf16.mxu0 %v3882
    %5076 = vmatpush1.bf16.msra.mxu0 %v3881
    %5077 = vmatprep.subr.bf16.mxu0 %v3955
    %5078 = vmatpush1.bf16.msra.mxu0 %v3954
    %5079 = vmatprep.subr.bf16.mxu0 0
    %5080 = vmatpush1.bf16.msra.mxu0 0
    %5081 = vmatprep.subr.bf16.mxu0 0
    %5082 = vmatpush1.bf16.msra.mxu0 0
    %5083 = vmatprep.subr.bf16.mxu0 0
    %5084 = vmatpush1.bf16.msra.mxu0 0
    %5085 = vmatprep.subr.bf16.mxu0 0
    %5086 = vmatpush1.bf16.msra.mxu0 0
    %5087 = vmatprep.subr.bf16.mxu0 0
    %5088 = vmatpush1.bf16.msra.mxu0 0
    %5089 = vmatprep.subr.bf16.mxu0 0
    %5090 = vmatpush1.bf16.msra.mxu0 0
    %5091 = vmatprep.subr.bf16.mxu0 0
    %5092 = vmatpush1.bf16.msra.mxu0 0
    %5093 = vmatprep.subr.bf16.mxu0 0
    %5094 = vmatpush1.bf16.msra.mxu0 0
    %5095 = vmatprep.subr.bf16.mxu0 0
    %5096 = vmatpush1.bf16.msra.mxu0 0
    %5097 = vmatprep.subr.bf16.mxu0 0
    %5098 = vmatpush1.bf16.msra.mxu0 0
    %5099 = vmatprep.subr.bf16.mxu0 0
    %5100 = vmatpush1.bf16.msra.mxu0 0
    %5101 = vmatprep.subr.bf16.mxu0 0
    %5102 = vmatpush1.bf16.msra.mxu0 0
    %5103 = vmatprep.subr.bf16.mxu0 0
    %5104 = vmatpush1.bf16.msra.mxu0 0
    %5105 = vmatprep.subr.bf16.mxu0 0
    %5106 = vmatpush1.bf16.msra.mxu0 0
    %5107 = vmatprep.mubr.bf16.mxu0 0
    %5108 = vmatmul.mubr.bf16.gmra.mrb[0].mxu0 %v1465
    %v5109 = vpop.f32.mrb[0].mxu0
    %v5110 = vadd.f32 %v4152, %v5109
    %v5111 = vpop.f32.mrb[0].mxu0
    %v5112 = vadd.f32 %v4156, %v5111
    %v5113 = vpop.f32.mrb[0].mxu0
    %v5114 = vpop.f32.mrb[0].mxu0
    %5115 = vdwg.mxu0
    %5116 = vmatprep.subr.bf16.mxu0 %v3884
    %5117 = vmatpush1.bf16.msra.mxu0 %v3883
    %5118 = vmatprep.subr.bf16.mxu0 %v3957
    %5119 = vmatpush1.bf16.msra.mxu0 %v3956
    %5120 = vmatprep.subr.bf16.mxu0 0
    %5121 = vmatpush1.bf16.msra.mxu0 0
    %5122 = vmatprep.subr.bf16.mxu0 0
    %5123 = vmatpush1.bf16.msra.mxu0 0
    %5124 = vmatprep.subr.bf16.mxu0 0
    %5125 = vmatpush1.bf16.msra.mxu0 0
    %5126 = vmatprep.subr.bf16.mxu0 0
    %5127 = vmatpush1.bf16.msra.mxu0 0
    %5128 = vmatprep.subr.bf16.mxu0 0
    %5129 = vmatpush1.bf16.msra.mxu0 0
    %5130 = vmatprep.subr.bf16.mxu0 0
    %5131 = vmatpush1.bf16.msra.mxu0 0
    %5132 = vmatprep.subr.bf16.mxu0 0
    %5133 = vmatpush1.bf16.msra.mxu0 0
    %5134 = vmatprep.subr.bf16.mxu0 0
    %5135 = vmatpush1.bf16.msra.mxu0 0
    %5136 = vmatprep.subr.bf16.mxu0 0
    %5137 = vmatpush1.bf16.msra.mxu0 0
    %5138 = vmatprep.subr.bf16.mxu0 0
    %5139 = vmatpush1.bf16.msra.mxu0 0
    %5140 = vmatprep.subr.bf16.mxu0 0
    %5141 = vmatpush1.bf16.msra.mxu0 0
    %5142 = vmatprep.subr.bf16.mxu0 0
    %5143 = vmatpush1.bf16.msra.mxu0 0
    %5144 = vmatprep.subr.bf16.mxu0 0
    %5145 = vmatpush1.bf16.msra.mxu0 0
    %5146 = vmatprep.subr.bf16.mxu0 0
    %5147 = vmatpush1.bf16.msra.mxu0 0
    %5148 = vmatprep.mubr.bf16.mxu0 0
    %5149 = vmatmul.mubr.bf16.gmra.mrb[0].mxu0 %v1465
    %v5150 = vpop.f32.mrb[0].mxu0
    %v5151 = vadd.f32 %v4160, %v5150
    %v5152 = vpop.f32.mrb[0].mxu0
    %v5153 = vadd.f32 %v4164, %v5152
    %v5154 = vpop.f32.mrb[0].mxu0
    %v5155 = vpop.f32.mrb[0].mxu0
    %5156 = vdwg.mxu0
    %5157 = vmatprep.subr.bf16.mxu0 %v3886
    %5158 = vmatpush1.bf16.msra.mxu0 %v3885
    %5159 = vmatprep.subr.bf16.mxu0 %v3959
    %5160 = vmatpush1.bf16.msra.mxu0 %v3958
    %5161 = vmatprep.subr.bf16.mxu0 0
    %5162 = vmatpush1.bf16.msra.mxu0 0
    %5163 = vmatprep.subr.bf16.mxu0 0
    %5164 = vmatpush1.bf16.msra.mxu0 0
    %5165 = vmatprep.subr.bf16.mxu0 0
    %5166 = vmatpush1.bf16.msra.mxu0 0
    %5167 = vmatprep.subr.bf16.mxu0 0
    %5168 = vmatpush1.bf16.msra.mxu0 0
    %5169 = vmatprep.subr.bf16.mxu0 0
    %5170 = vmatpush1.bf16.msra.mxu0 0
    %5171 = vmatprep.subr.bf16.mxu0 0
    %5172 = vmatpush1.bf16.msra.mxu0 0
    %5173 = vmatprep.subr.bf16.mxu0 0
    %5174 = vmatpush1.bf16.msra.mxu0 0
    %5175 = vmatprep.subr.bf16.mxu0 0
    %5176 = vmatpush1.bf16.msra.mxu0 0
    %5177 = vmatprep.subr.bf16.mxu0 0
    %5178 = vmatpush1.bf16.msra.mxu0 0
    %5179 = vmatprep.subr.bf16.mxu0 0
    %5180 = vmatpush1.bf16.msra.mxu0 0
    %5181 = vmatprep.subr.bf16.mxu0 0
    %5182 = vmatpush1.bf16.msra.mxu0 0
    %5183 = vmatprep.subr.bf16.mxu0 0
    %5184 = vmatpush1.bf16.msra.mxu0 0
    %5185 = vmatprep.subr.bf16.mxu0 0
    %5186 = vmatpush1.bf16.msra.mxu0 0
    %5187 = vmatprep.subr.bf16.mxu0 0
    %5188 = vmatpush1.bf16.msra.mxu0 0
    %5189 = vmatprep.mubr.bf16.mxu0 0
    %5190 = vmatmul.mubr.bf16.gmra.mrb[0].mxu0 %v1465
    %v5191 = vpop.f32.mrb[0].mxu0
    %v5192 = vadd.f32 %v4168, %v5191
    %v5193 = vpop.f32.mrb[0].mxu0
    %v5194 = vadd.f32 %v4172, %v5193
    %v5195 = vpop.f32.mrb[0].mxu0
    %v5196 = vpop.f32.mrb[0].mxu0
    %5197 = vdwg.mxu0
    %5198 = vmatprep.subr.bf16.mxu0 %v3888
    %5199 = vmatpush1.bf16.msra.mxu0 %v3887
    %5200 = vmatprep.subr.bf16.mxu0 %v3961
    %5201 = vmatpush1.bf16.msra.mxu0 %v3960
    %5202 = vmatprep.subr.bf16.mxu0 0
    %5203 = vmatpush1.bf16.msra.mxu0 0
    %5204 = vmatprep.subr.bf16.mxu0 0
    %5205 = vmatpush1.bf16.msra.mxu0 0
    %5206 = vmatprep.subr.bf16.mxu0 0
    %5207 = vmatpush1.bf16.msra.mxu0 0
    %5208 = vmatprep.subr.bf16.mxu0 0
    %5209 = vmatpush1.bf16.msra.mxu0 0
    %5210 = vmatprep.subr.bf16.mxu0 0
    %5211 = vmatpush1.bf16.msra.mxu0 0
    %5212 = vmatprep.subr.bf16.mxu0 0
    %5213 = vmatpush1.bf16.msra.mxu0 0
    %5214 = vmatprep.subr.bf16.mxu0 0
    %5215 = vmatpush1.bf16.msra.mxu0 0
    %5216 = vmatprep.subr.bf16.mxu0 0
    %5217 = vmatpush1.bf16.msra.mxu0 0
    %5218 = vmatprep.subr.bf16.mxu0 0
    %5219 = vmatpush1.bf16.msra.mxu0 0
    %5220 = vmatprep.subr.bf16.mxu0 0
    %5221 = vmatpush1.bf16.msra.mxu0 0
    %5222 = vmatprep.subr.bf16.mxu0 0
    %5223 = vmatpush1.bf16.msra.mxu0 0
    %5224 = vmatprep.subr.bf16.mxu0 0
    %5225 = vmatpush1.bf16.msra.mxu0 0
    %5226 = vmatprep.subr.bf16.mxu0 0
    %5227 = vmatpush1.bf16.msra.mxu0 0
    %5228 = vmatprep.subr.bf16.mxu0 0
    %5229 = vmatpush1.bf16.msra.mxu0 0
    %5230 = vmatprep.mubr.bf16.mxu0 0
    %5231 = vmatmul.mubr.bf16.gmra.mrb[0].mxu0 %v1465
    %v5232 = vpop.f32.mrb[0].mxu0
    %v5233 = vadd.f32 %v4176, %v5232
    %v5234 = vpop.f32.mrb[0].mxu0
    %v5235 = vadd.f32 %v4180, %v5234
    %v5236 = vpop.f32.mrb[0].mxu0
    %v5237 = vpop.f32.mrb[0].mxu0
    %5238 = vdwg.mxu0
    %5239 = vmatprep.subr.bf16.mxu0 %v3890
    %5240 = vmatpush1.bf16.msra.mxu0 %v3889
    %5241 = vmatprep.subr.bf16.mxu0 %v3963
    %5242 = vmatpush1.bf16.msra.mxu0 %v3962
    %5243 = vmatprep.subr.bf16.mxu0 0
    %5244 = vmatpush1.bf16.msra.mxu0 0
    %5245 = vmatprep.subr.bf16.mxu0 0
    %5246 = vmatpush1.bf16.msra.mxu0 0
    %5247 = vmatprep.subr.bf16.mxu0 0
    %5248 = vmatpush1.bf16.msra.mxu0 0
    %5249 = vmatprep.subr.bf16.mxu0 0
    %5250 = vmatpush1.bf16.msra.mxu0 0
    %5251 = vmatprep.subr.bf16.mxu0 0
    %5252 = vmatpush1.bf16.msra.mxu0 0
    %5253 = vmatprep.subr.bf16.mxu0 0
    %5254 = vmatpush1.bf16.msra.mxu0 0
    %5255 = vmatprep.subr.bf16.mxu0 0
    %5256 = vmatpush1.bf16.msra.mxu0 0
    %5257 = vmatprep.subr.bf16.mxu0 0
    %5258 = vmatpush1.bf16.msra.mxu0 0
    %5259 = vmatprep.subr.bf16.mxu0 0
    %5260 = vmatpush1.bf16.msra.mxu0 0
    %5261 = vmatprep.subr.bf16.mxu0 0
    %5262 = vmatpush1.bf16.msra.mxu0 0
    %5263 = vmatprep.subr.bf16.mxu0 0
    %5264 = vmatpush1.bf16.msra.mxu0 0
    %5265 = vmatprep.subr.bf16.mxu0 0
    %5266 = vmatpush1.bf16.msra.mxu0 0
    %5267 = vmatprep.subr.bf16.mxu0 0
    %5268 = vmatpush1.bf16.msra.mxu0 0
    %5269 = vmatprep.subr.bf16.mxu0 0
    %5270 = vmatpush1.bf16.msra.mxu0 0
    %5271 = vmatprep.mubr.bf16.mxu0 0
    %5272 = vmatmul.mubr.bf16.gmra.mrb[0].mxu0 %v1465
    %v5273 = vpop.f32.mrb[0].mxu0
    %v5274 = vadd.f32 %v4184, %v5273
    %v5275 = vpop.f32.mrb[0].mxu0
    %v5276 = vadd.f32 %v4188, %v5275
    %v5277 = vpop.f32.mrb[0].mxu0
    %v5278 = vpop.f32.mrb[0].mxu0
    %5279 = vdwg.mxu0
    %5280 = vmatprep.subr.bf16.mxu0 %v3892
    %5281 = vmatpush1.bf16.msra.mxu0 %v3891
    %5282 = vmatprep.subr.bf16.mxu0 %v3965
    %5283 = vmatpush1.bf16.msra.mxu0 %v3964
    %5284 = vmatprep.subr.bf16.mxu0 0
    %5285 = vmatpush1.bf16.msra.mxu0 0
    %5286 = vmatprep.subr.bf16.mxu0 0
    %5287 = vmatpush1.bf16.msra.mxu0 0
    %5288 = vmatprep.subr.bf16.mxu0 0
    %5289 = vmatpush1.bf16.msra.mxu0 0
    %5290 = vmatprep.subr.bf16.mxu0 0
    %5291 = vmatpush1.bf16.msra.mxu0 0
    %5292 = vmatprep.subr.bf16.mxu0 0
    %5293 = vmatpush1.bf16.msra.mxu0 0
    %5294 = vmatprep.subr.bf16.mxu0 0
    %5295 = vmatpush1.bf16.msra.mxu0 0
    %5296 = vmatprep.subr.bf16.mxu0 0
    %5297 = vmatpush1.bf16.msra.mxu0 0
    %5298 = vmatprep.subr.bf16.mxu0 0
    %5299 = vmatpush1.bf16.msra.mxu0 0
    %5300 = vmatprep.subr.bf16.mxu0 0
    %5301 = vmatpush1.bf16.msra.mxu0 0
    %5302 = vmatprep.subr.bf16.mxu0 0
    %5303 = vmatpush1.bf16.msra.mxu0 0
    %5304 = vmatprep.subr.bf16.mxu0 0
    %5305 = vmatpush1.bf16.msra.mxu0 0
    %5306 = vmatprep.subr.bf16.mxu0 0
    %5307 = vmatpush1.bf16.msra.mxu0 0
    %5308 = vmatprep.subr.bf16.mxu0 0
    %5309 = vmatpush1.bf16.msra.mxu0 0
    %5310 = vmatprep.subr.bf16.mxu0 0
    %5311 = vmatpush1.bf16.msra.mxu0 0
    %5312 = vmatprep.mubr.bf16.mxu0 0
    %5313 = vmatmul.mubr.bf16.gmra.mrb[0].mxu0 %v1465
    %v5314 = vpop.f32.mrb[0].mxu0
    %v5315 = vadd.f32 %v4192, %v5314
    %v5316 = vpop.f32.mrb[0].mxu0
    %v5317 = vadd.f32 %v4196, %v5316
    %v5318 = vpop.f32.mrb[0].mxu0
    %v5319 = vpop.f32.mrb[0].mxu0
    %5320 = vdwg.mxu0
    %5321 = vmatprep.subr.bf16.mxu0 %v3894
    %5322 = vmatpush1.bf16.msra.mxu0 %v3893
    %5323 = vmatprep.subr.bf16.mxu0 %v3967
    %5324 = vmatpush1.bf16.msra.mxu0 %v3966
    %5325 = vmatprep.subr.bf16.mxu0 0
    %5326 = vmatpush1.bf16.msra.mxu0 0
    %5327 = vmatprep.subr.bf16.mxu0 0
    %5328 = vmatpush1.bf16.msra.mxu0 0
    %5329 = vmatprep.subr.bf16.mxu0 0
    %5330 = vmatpush1.bf16.msra.mxu0 0
    %5331 = vmatprep.subr.bf16.mxu0 0
    %5332 = vmatpush1.bf16.msra.mxu0 0
    %5333 = vmatprep.subr.bf16.mxu0 0
    %5334 = vmatpush1.bf16.msra.mxu0 0
    %5335 = vmatprep.subr.bf16.mxu0 0
    %5336 = vmatpush1.bf16.msra.mxu0 0
    %5337 = vmatprep.subr.bf16.mxu0 0
    %5338 = vmatpush1.bf16.msra.mxu0 0
    %5339 = vmatprep.subr.bf16.mxu0 0
    %5340 = vmatpush1.bf16.msra.mxu0 0
    %5341 = vmatprep.subr.bf16.mxu0 0
    %5342 = vmatpush1.bf16.msra.mxu0 0
    %5343 = vmatprep.subr.bf16.mxu0 0
    %5344 = vmatpush1.bf16.msra.mxu0 0
    %5345 = vmatprep.subr.bf16.mxu0 0
    %5346 = vmatpush1.bf16.msra.mxu0 0
    %5347 = vmatprep.subr.bf16.mxu0 0
    %5348 = vmatpush1.bf16.msra.mxu0 0
    %5349 = vmatprep.subr.bf16.mxu0 0
    %5350 = vmatpush1.bf16.msra.mxu0 0
    %5351 = vmatprep.subr.bf16.mxu0 0
    %5352 = vmatpush1.bf16.msra.mxu0 0
    %5353 = vmatprep.mubr.bf16.mxu0 0
    %5354 = vmatmul.mubr.bf16.gmra.mrb[0].mxu0 %v1465
    %v5355 = vpop.f32.mrb[0].mxu0
    %v5356 = vadd.f32 %v4200, %v5355
    %v5357 = vpop.f32.mrb[0].mxu0
    %v5358 = vadd.f32 %v4204, %v5357
    %v5359 = vpop.f32.mrb[0].mxu0
    %v5360 = vpop.f32.mrb[0].mxu0
    %5361 = vdwg.mxu0
    %5362 = vmatprep.subr.bf16.mxu0 %v3896
    %5363 = vmatpush1.bf16.msra.mxu0 %v3895
    %5364 = vmatprep.subr.bf16.mxu0 %v3969
    %5365 = vmatpush1.bf16.msra.mxu0 %v3968
    %5366 = vmatprep.subr.bf16.mxu0 0
    %5367 = vmatpush1.bf16.msra.mxu0 0
    %5368 = vmatprep.subr.bf16.mxu0 0
    %5369 = vmatpush1.bf16.msra.mxu0 0
    %5370 = vmatprep.subr.bf16.mxu0 0
    %5371 = vmatpush1.bf16.msra.mxu0 0
    %5372 = vmatprep.subr.bf16.mxu0 0
    %5373 = vmatpush1.bf16.msra.mxu0 0
    %5374 = vmatprep.subr.bf16.mxu0 0
    %5375 = vmatpush1.bf16.msra.mxu0 0
    %5376 = vmatprep.subr.bf16.mxu0 0
    %5377 = vmatpush1.bf16.msra.mxu0 0
    %5378 = vmatprep.subr.bf16.mxu0 0
    %5379 = vmatpush1.bf16.msra.mxu0 0
    %5380 = vmatprep.subr.bf16.mxu0 0
    %5381 = vmatpush1.bf16.msra.mxu0 0
    %5382 = vmatprep.subr.bf16.mxu0 0
    %5383 = vmatpush1.bf16.msra.mxu0 0
    %5384 = vmatprep.subr.bf16.mxu0 0
    %5385 = vmatpush1.bf16.msra.mxu0 0
    %5386 = vmatprep.subr.bf16.mxu0 0
    %5387 = vmatpush1.bf16.msra.mxu0 0
    %5388 = vmatprep.subr.bf16.mxu0 0
    %5389 = vmatpush1.bf16.msra.mxu0 0
    %5390 = vmatprep.subr.bf16.mxu0 0
    %5391 = vmatpush1.bf16.msra.mxu0 0
    %5392 = vmatprep.subr.bf16.mxu0 0
    %5393 = vmatpush1.bf16.msra.mxu0 0
    %5394 = vmatprep.mubr.bf16.mxu0 0
    %5395 = vmatmul.mubr.bf16.gmra.mrb[0].mxu0 %v1465
    %v5396 = vpop.f32.mrb[0].mxu0
    %v5397 = vadd.f32 %v4208, %v5396
    %v5398 = vpop.f32.mrb[0].mxu0
    %v5399 = vadd.f32 %v4212, %v5398
    %v5400 = vpop.f32.mrb[0].mxu0
    %v5401 = vpop.f32.mrb[0].mxu0
    %5402 = vdwg.mxu0
    %5403 = vmatprep.subr.bf16.mxu0 %v3898
    %5404 = vmatpush1.bf16.msra.mxu0 %v3897
    %5405 = vmatprep.subr.bf16.mxu0 %v3971
    %5406 = vmatpush1.bf16.msra.mxu0 %v3970
    %5407 = vmatprep.subr.bf16.mxu0 0
    %5408 = vmatpush1.bf16.msra.mxu0 0
    %5409 = vmatprep.subr.bf16.mxu0 0
    %5410 = vmatpush1.bf16.msra.mxu0 0
    %5411 = vmatprep.subr.bf16.mxu0 0
    %5412 = vmatpush1.bf16.msra.mxu0 0
    %5413 = vmatprep.subr.bf16.mxu0 0
    %5414 = vmatpush1.bf16.msra.mxu0 0
    %5415 = vmatprep.subr.bf16.mxu0 0
    %5416 = vmatpush1.bf16.msra.mxu0 0
    %5417 = vmatprep.subr.bf16.mxu0 0
    %5418 = vmatpush1.bf16.msra.mxu0 0
    %5419 = vmatprep.subr.bf16.mxu0 0
    %5420 = vmatpush1.bf16.msra.mxu0 0
    %5421 = vmatprep.subr.bf16.mxu0 0
    %5422 = vmatpush1.bf16.msra.mxu0 0
    %5423 = vmatprep.subr.bf16.mxu0 0
    %5424 = vmatpush1.bf16.msra.mxu0 0
    %5425 = vmatprep.subr.bf16.mxu0 0
    %5426 = vmatpush1.bf16.msra.mxu0 0
    %5427 = vmatprep.subr.bf16.mxu0 0
    %5428 = vmatpush1.bf16.msra.mxu0 0
    %5429 = vmatprep.subr.bf16.mxu0 0
    %5430 = vmatpush1.bf16.msra.mxu0 0
    %5431 = vmatprep.subr.bf16.mxu0 0
    %5432 = vmatpush1.bf16.msra.mxu0 0
    %5433 = vmatprep.subr.bf16.mxu0 0
    %5434 = vmatpush1.bf16.msra.mxu0 0
    %5435 = vmatprep.mubr.bf16.mxu0 0
    %5436 = vmatmul.mubr.bf16.gmra.mrb[0].mxu0 %v1465
    %v5437 = vpop.f32.mrb[0].mxu0
    %v5438 = vadd.f32 %v4216, %v5437
    %v5439 = vpop.f32.mrb[0].mxu0
    %v5440 = vadd.f32 %v4220, %v5439
    %v5441 = vpop.f32.mrb[0].mxu0
    %v5442 = vpop.f32.mrb[0].mxu0
    %5443 = vdwg.mxu0
    %5444 = vmatprep.subr.bf16.mxu0 %v3900
    %5445 = vmatpush1.bf16.msra.mxu0 %v3899
    %5446 = vmatprep.subr.bf16.mxu0 %v3973
    %5447 = vmatpush1.bf16.msra.mxu0 %v3972
    %5448 = vmatprep.subr.bf16.mxu0 0
    %5449 = vmatpush1.bf16.msra.mxu0 0
    %5450 = vmatprep.subr.bf16.mxu0 0
    %5451 = vmatpush1.bf16.msra.mxu0 0
    %5452 = vmatprep.subr.bf16.mxu0 0
    %5453 = vmatpush1.bf16.msra.mxu0 0
    %5454 = vmatprep.subr.bf16.mxu0 0
    %5455 = vmatpush1.bf16.msra.mxu0 0
    %5456 = vmatprep.subr.bf16.mxu0 0
    %5457 = vmatpush1.bf16.msra.mxu0 0
    %5458 = vmatprep.subr.bf16.mxu0 0
    %5459 = vmatpush1.bf16.msra.mxu0 0
    %5460 = vmatprep.subr.bf16.mxu0 0
    %5461 = vmatpush1.bf16.msra.mxu0 0
    %5462 = vmatprep.subr.bf16.mxu0 0
    %5463 = vmatpush1.bf16.msra.mxu0 0
    %5464 = vmatprep.subr.bf16.mxu0 0
    %5465 = vmatpush1.bf16.msra.mxu0 0
    %5466 = vmatprep.subr.bf16.mxu0 0
    %5467 = vmatpush1.bf16.msra.mxu0 0
    %5468 = vmatprep.subr.bf16.mxu0 0
    %5469 = vmatpush1.bf16.msra.mxu0 0
    %5470 = vmatprep.subr.bf16.mxu0 0
    %5471 = vmatpush1.bf16.msra.mxu0 0
    %5472 = vmatprep.subr.bf16.mxu0 0
    %5473 = vmatpush1.bf16.msra.mxu0 0
    %5474 = vmatprep.subr.bf16.mxu0 0
    %5475 = vmatpush1.bf16.msra.mxu0 0
    %5476 = vmatprep.mubr.bf16.mxu0 0
    %5477 = vmatmul.mubr.bf16.gmra.mrb[0].mxu0 %v1465
    %v5478 = vpop.f32.mrb[0].mxu0
    %v5479 = vadd.f32 %v4224, %v5478
    %v5480 = vpop.f32.mrb[0].mxu0
    %v5481 = vadd.f32 %v4228, %v5480
    %v5482 = vpop.f32.mrb[0].mxu0
    %v5483 = vpop.f32.mrb[0].mxu0
    %5484 = vdwg.mxu0
    %5485 = vmatprep.subr.bf16.mxu0 %v3902
    %5486 = vmatpush1.bf16.msra.mxu0 %v3901
    %5487 = vmatprep.subr.bf16.mxu0 %v3975
    %5488 = vmatpush1.bf16.msra.mxu0 %v3974
    %5489 = vmatprep.subr.bf16.mxu0 0
    %5490 = vmatpush1.bf16.msra.mxu0 0
    %5491 = vmatprep.subr.bf16.mxu0 0
    %5492 = vmatpush1.bf16.msra.mxu0 0
    %5493 = vmatprep.subr.bf16.mxu0 0
    %5494 = vmatpush1.bf16.msra.mxu0 0
    %5495 = vmatprep.subr.bf16.mxu0 0
    %5496 = vmatpush1.bf16.msra.mxu0 0
    %5497 = vmatprep.subr.bf16.mxu0 0
    %5498 = vmatpush1.bf16.msra.mxu0 0
    %5499 = vmatprep.subr.bf16.mxu0 0
    %5500 = vmatpush1.bf16.msra.mxu0 0
    %5501 = vmatprep.subr.bf16.mxu0 0
    %5502 = vmatpush1.bf16.msra.mxu0 0
    %5503 = vmatprep.subr.bf16.mxu0 0
    %5504 = vmatpush1.bf16.msra.mxu0 0
    %5505 = vmatprep.subr.bf16.mxu0 0
    %5506 = vmatpush1.bf16.msra.mxu0 0
    %5507 = vmatprep.subr.bf16.mxu0 0
    %5508 = vmatpush1.bf16.msra.mxu0 0
    %5509 = vmatprep.subr.bf16.mxu0 0
    %5510 = vmatpush1.bf16.msra.mxu0 0
    %5511 = vmatprep.subr.bf16.mxu0 0
    %5512 = vmatpush1.bf16.msra.mxu0 0
    %5513 = vmatprep.subr.bf16.mxu0 0
    %5514 = vmatpush1.bf16.msra.mxu0 0
    %5515 = vmatprep.subr.bf16.mxu0 0
    %5516 = vmatpush1.bf16.msra.mxu0 0
    %5517 = vmatprep.mubr.bf16.mxu0 0
    %5518 = vmatmul.mubr.bf16.gmra.mrb[0].mxu0 %v1465
    %v5519 = vpop.f32.mrb[0].mxu0
    %v5520 = vadd.f32 %v4232, %v5519
    %v5521 = vpop.f32.mrb[0].mxu0
    %v5522 = vadd.f32 %v4236, %v5521
    %v5523 = vpop.f32.mrb[0].mxu0
    %v5524 = vpop.f32.mrb[0].mxu0
    %5525 = vdwg.mxu0
    %5526 = vmatprep.subr.bf16.mxu0 %v3904
    %5527 = vmatpush1.bf16.msra.mxu0 %v3903
    %5528 = vmatprep.subr.bf16.mxu0 %v3977
    %5529 = vmatpush1.bf16.msra.mxu0 %v3976
    %5530 = vmatprep.subr.bf16.mxu0 0
    %5531 = vmatpush1.bf16.msra.mxu0 0
    %5532 = vmatprep.subr.bf16.mxu0 0
    %5533 = vmatpush1.bf16.msra.mxu0 0
    %5534 = vmatprep.subr.bf16.mxu0 0
    %5535 = vmatpush1.bf16.msra.mxu0 0
    %5536 = vmatprep.subr.bf16.mxu0 0
    %5537 = vmatpush1.bf16.msra.mxu0 0
    %5538 = vmatprep.subr.bf16.mxu0 0
    %5539 = vmatpush1.bf16.msra.mxu0 0
    %5540 = vmatprep.subr.bf16.mxu0 0
    %5541 = vmatpush1.bf16.msra.mxu0 0
    %5542 = vmatprep.subr.bf16.mxu0 0
    %5543 = vmatpush1.bf16.msra.mxu0 0
    %5544 = vmatprep.subr.bf16.mxu0 0
    %5545 = vmatpush1.bf16.msra.mxu0 0
    %5546 = vmatprep.subr.bf16.mxu0 0
    %5547 = vmatpush1.bf16.msra.mxu0 0
    %5548 = vmatprep.subr.bf16.mxu0 0
    %5549 = vmatpush1.bf16.msra.mxu0 0
    %5550 = vmatprep.subr.bf16.mxu0 0
    %5551 = vmatpush1.bf16.msra.mxu0 0
    %5552 = vmatprep.subr.bf16.mxu0 0
    %5553 = vmatpush1.bf16.msra.mxu0 0
    %5554 = vmatprep.subr.bf16.mxu0 0
    %5555 = vmatpush1.bf16.msra.mxu0 0
    %5556 = vmatprep.subr.bf16.mxu0 0
    %5557 = vmatpush1.bf16.msra.mxu0 0
    %5558 = vmatprep.mubr.bf16.mxu0 0
    %5559 = vmatmul.mubr.bf16.gmra.mrb[0].mxu0 %v1465
    %v5560 = vpop.f32.mrb[0].mxu0
    %v5561 = vadd.f32 %v4240, %v5560
    %v5562 = vpop.f32.mrb[0].mxu0
    %v5563 = vadd.f32 %v4244, %v5562
    %v5564 = vpop.f32.mrb[0].mxu0
    %v5565 = vpop.f32.mrb[0].mxu0
    %5566 = vdwg.mxu0
    %5567 = vmatprep.subr.bf16.mxu0 %v3906
    %5568 = vmatpush1.bf16.msra.mxu0 %v3905
    %5569 = vmatprep.subr.bf16.mxu0 %v3979
    %5570 = vmatpush1.bf16.msra.mxu0 %v3978
    %5571 = vmatprep.subr.bf16.mxu0 0
    %5572 = vmatpush1.bf16.msra.mxu0 0
    %5573 = vmatprep.subr.bf16.mxu0 0
    %5574 = vmatpush1.bf16.msra.mxu0 0
    %5575 = vmatprep.subr.bf16.mxu0 0
    %5576 = vmatpush1.bf16.msra.mxu0 0
    %5577 = vmatprep.subr.bf16.mxu0 0
    %5578 = vmatpush1.bf16.msra.mxu0 0
    %5579 = vmatprep.subr.bf16.mxu0 0
    %5580 = vmatpush1.bf16.msra.mxu0 0
    %5581 = vmatprep.subr.bf16.mxu0 0
    %5582 = vmatpush1.bf16.msra.mxu0 0
    %5583 = vmatprep.subr.bf16.mxu0 0
    %5584 = vmatpush1.bf16.msra.mxu0 0
    %5585 = vmatprep.subr.bf16.mxu0 0
    %5586 = vmatpush1.bf16.msra.mxu0 0
    %5587 = vmatprep.subr.bf16.mxu0 0
    %5588 = vmatpush1.bf16.msra.mxu0 0
    %5589 = vmatprep.subr.bf16.mxu0 0
    %5590 = vmatpush1.bf16.msra.mxu0 0
    %5591 = vmatprep.subr.bf16.mxu0 0
    %5592 = vmatpush1.bf16.msra.mxu0 0
    %5593 = vmatprep.subr.bf16.mxu0 0
    %5594 = vmatpush1.bf16.msra.mxu0 0
    %5595 = vmatprep.subr.bf16.mxu0 0
    %5596 = vmatpush1.bf16.msra.mxu0 0
    %5597 = vmatprep.subr.bf16.mxu0 0
    %5598 = vmatpush1.bf16.msra.mxu0 0
    %5599 = vmatprep.mubr.bf16.mxu0 0
    %5600 = vmatmul.mubr.bf16.gmra.mrb[0].mxu0 %v1465
    %v5601 = vpop.f32.mrb[0].mxu0
    %v5602 = vadd.f32 %v4248, %v5601
    %v5603 = vpop.f32.mrb[0].mxu0
    %v5604 = vadd.f32 %v4252, %v5603
    %v5605 = vpop.f32.mrb[0].mxu0
    %v5606 = vpop.f32.mrb[0].mxu0
    %5607 = vdwg.mxu0
    %5608 = vmatprep.subr.bf16.mxu0 %v3908
    %5609 = vmatpush1.bf16.msra.mxu0 %v3907
    %5610 = vmatprep.subr.bf16.mxu0 %v3981
    %5611 = vmatpush1.bf16.msra.mxu0 %v3980
    %5612 = vmatprep.subr.bf16.mxu0 0
    %5613 = vmatpush1.bf16.msra.mxu0 0
    %5614 = vmatprep.subr.bf16.mxu0 0
    %5615 = vmatpush1.bf16.msra.mxu0 0
    %5616 = vmatprep.subr.bf16.mxu0 0
    %5617 = vmatpush1.bf16.msra.mxu0 0
    %5618 = vmatprep.subr.bf16.mxu0 0
    %5619 = vmatpush1.bf16.msra.mxu0 0
    %5620 = vmatprep.subr.bf16.mxu0 0
    %5621 = vmatpush1.bf16.msra.mxu0 0
    %5622 = vmatprep.subr.bf16.mxu0 0
    %5623 = vmatpush1.bf16.msra.mxu0 0
    %5624 = vmatprep.subr.bf16.mxu0 0
    %5625 = vmatpush1.bf16.msra.mxu0 0
    %5626 = vmatprep.subr.bf16.mxu0 0
    %5627 = vmatpush1.bf16.msra.mxu0 0
    %5628 = vmatprep.subr.bf16.mxu0 0
    %5629 = vmatpush1.bf16.msra.mxu0 0
    %5630 = vmatprep.subr.bf16.mxu0 0
    %5631 = vmatpush1.bf16.msra.mxu0 0
    %5632 = vmatprep.subr.bf16.mxu0 0
    %5633 = vmatpush1.bf16.msra.mxu0 0
    %5634 = vmatprep.subr.bf16.mxu0 0
    %5635 = vmatpush1.bf16.msra.mxu0 0
    %5636 = vmatprep.subr.bf16.mxu0 0
    %5637 = vmatpush1.bf16.msra.mxu0 0
    %5638 = vmatprep.subr.bf16.mxu0 0
    %5639 = vmatpush1.bf16.msra.mxu0 0
    %5640 = vmatprep.mubr.bf16.mxu0 0
    %5641 = vmatmul.mubr.bf16.gmra.mrb[0].mxu0 %v1465
    %v5642 = vpop.f32.mrb[0].mxu0
    %v5643 = vadd.f32 %v4256, %v5642
    %v5644 = vpop.f32.mrb[0].mxu0
    %v5645 = vadd.f32 %v4260, %v5644
    %v5646 = vpop.f32.mrb[0].mxu0
    %v5647 = vpop.f32.mrb[0].mxu0
    %5648 = vdwg.mxu0
    %5649 = vmatprep.subr.bf16.mxu0 %v3910
    %5650 = vmatpush1.bf16.msra.mxu0 %v3909
    %5651 = vmatprep.subr.bf16.mxu0 %v3983
    %5652 = vmatpush1.bf16.msra.mxu0 %v3982
    %5653 = vmatprep.subr.bf16.mxu0 0
    %5654 = vmatpush1.bf16.msra.mxu0 0
    %5655 = vmatprep.subr.bf16.mxu0 0
    %5656 = vmatpush1.bf16.msra.mxu0 0
    %5657 = vmatprep.subr.bf16.mxu0 0
    %5658 = vmatpush1.bf16.msra.mxu0 0
    %5659 = vmatprep.subr.bf16.mxu0 0
    %5660 = vmatpush1.bf16.msra.mxu0 0
    %5661 = vmatprep.subr.bf16.mxu0 0
    %5662 = vmatpush1.bf16.msra.mxu0 0
    %5663 = vmatprep.subr.bf16.mxu0 0
    %5664 = vmatpush1.bf16.msra.mxu0 0
    %5665 = vmatprep.subr.bf16.mxu0 0
    %5666 = vmatpush1.bf16.msra.mxu0 0
    %5667 = vmatprep.subr.bf16.mxu0 0
    %5668 = vmatpush1.bf16.msra.mxu0 0
    %5669 = vmatprep.subr.bf16.mxu0 0
    %5670 = vmatpush1.bf16.msra.mxu0 0
    %5671 = vmatprep.subr.bf16.mxu0 0
    %5672 = vmatpush1.bf16.msra.mxu0 0
    %5673 = vmatprep.subr.bf16.mxu0 0
    %5674 = vmatpush1.bf16.msra.mxu0 0
    %5675 = vmatprep.subr.bf16.mxu0 0
    %5676 = vmatpush1.bf16.msra.mxu0 0
    %5677 = vmatprep.subr.bf16.mxu0 0
    %5678 = vmatpush1.bf16.msra.mxu0 0
    %5679 = vmatprep.subr.bf16.mxu0 0
    %5680 = vmatpush1.bf16.msra.mxu0 0
    %5681 = vmatprep.mubr.bf16.mxu0 0
    %5682 = vmatmul.mubr.bf16.gmra.mrb[0].mxu0 %v1465
    %v5683 = vpop.f32.mrb[0].mxu0
    %v5684 = vadd.f32 %v4264, %v5683
    %v5685 = vpop.f32.mrb[0].mxu0
    %v5686 = vadd.f32 %v4268, %v5685
    %v5687 = vpop.f32.mrb[0].mxu0
    %v5688 = vpop.f32.mrb[0].mxu0
    %5689 = vdwg.mxu0
    %5690 = vmatprep.subr.bf16.mxu0 %v3912
    %5691 = vmatpush1.bf16.msra.mxu0 %v3911
    %5692 = vmatprep.subr.bf16.mxu0 %v3985
    %5693 = vmatpush1.bf16.msra.mxu0 %v3984
    %5694 = vmatprep.subr.bf16.mxu0 0
    %5695 = vmatpush1.bf16.msra.mxu0 0
    %5696 = vmatprep.subr.bf16.mxu0 0
    %5697 = vmatpush1.bf16.msra.mxu0 0
    %5698 = vmatprep.subr.bf16.mxu0 0
    %5699 = vmatpush1.bf16.msra.mxu0 0
    %5700 = vmatprep.subr.bf16.mxu0 0
    %5701 = vmatpush1.bf16.msra.mxu0 0
    %5702 = vmatprep.subr.bf16.mxu0 0
    %5703 = vmatpush1.bf16.msra.mxu0 0
    %5704 = vmatprep.subr.bf16.mxu0 0
    %5705 = vmatpush1.bf16.msra.mxu0 0
    %5706 = vmatprep.subr.bf16.mxu0 0
    %5707 = vmatpush1.bf16.msra.mxu0 0
    %5708 = vmatprep.subr.bf16.mxu0 0
    %5709 = vmatpush1.bf16.msra.mxu0 0
    %5710 = vmatprep.subr.bf16.mxu0 0
    %5711 = vmatpush1.bf16.msra.mxu0 0
    %5712 = vmatprep.subr.bf16.mxu0 0
    %5713 = vmatpush1.bf16.msra.mxu0 0
    %5714 = vmatprep.subr.bf16.mxu0 0
    %5715 = vmatpush1.bf16.msra.mxu0 0
    %5716 = vmatprep.subr.bf16.mxu0 0
    %5717 = vmatpush1.bf16.msra.mxu0 0
    %5718 = vmatprep.subr.bf16.mxu0 0
    %5719 = vmatpush1.bf16.msra.mxu0 0
    %5720 = vmatprep.subr.bf16.mxu0 0
    %5721 = vmatpush1.bf16.msra.mxu0 0
    %5722 = vmatprep.mubr.bf16.mxu0 0
    %5723 = vmatmul.mubr.bf16.gmra.mrb[0].mxu0 %v1465
    %v5724 = vpop.f32.mrb[0].mxu0
    %v5725 = vadd.f32 %v4272, %v5724
    %v5726 = vpop.f32.mrb[0].mxu0
    %v5727 = vadd.f32 %v4276, %v5726
    %v5728 = vpop.f32.mrb[0].mxu0
    %v5729 = vpop.f32.mrb[0].mxu0
    %5730 = vdwg.mxu0
    %5731 = vmatprep.subr.bf16.mxu0 %v3914
    %5732 = vmatpush1.bf16.msra.mxu0 %v3913
    %5733 = vmatprep.subr.bf16.mxu0 %v3987
    %5734 = vmatpush1.bf16.msra.mxu0 %v3986
    %5735 = vmatprep.subr.bf16.mxu0 0
    %5736 = vmatpush1.bf16.msra.mxu0 0
    %5737 = vmatprep.subr.bf16.mxu0 0
    %5738 = vmatpush1.bf16.msra.mxu0 0
    %5739 = vmatprep.subr.bf16.mxu0 0
    %5740 = vmatpush1.bf16.msra.mxu0 0
    %5741 = vmatprep.subr.bf16.mxu0 0
    %5742 = vmatpush1.bf16.msra.mxu0 0
    %5743 = vmatprep.subr.bf16.mxu0 0
    %5744 = vmatpush1.bf16.msra.mxu0 0
    %5745 = vmatprep.subr.bf16.mxu0 0
    %5746 = vmatpush1.bf16.msra.mxu0 0
    %5747 = vmatprep.subr.bf16.mxu0 0
    %5748 = vmatpush1.bf16.msra.mxu0 0
    %5749 = vmatprep.subr.bf16.mxu0 0
    %5750 = vmatpush1.bf16.msra.mxu0 0
    %5751 = vmatprep.subr.bf16.mxu0 0
    %5752 = vmatpush1.bf16.msra.mxu0 0
    %5753 = vmatprep.subr.bf16.mxu0 0
    %5754 = vmatpush1.bf16.msra.mxu0 0
    %5755 = vmatprep.subr.bf16.mxu0 0
    %5756 = vmatpush1.bf16.msra.mxu0 0
    %5757 = vmatprep.subr.bf16.mxu0 0
    %5758 = vmatpush1.bf16.msra.mxu0 0
    %5759 = vmatprep.subr.bf16.mxu0 0
    %5760 = vmatpush1.bf16.msra.mxu0 0
    %5761 = vmatprep.subr.bf16.mxu0 0
    %5762 = vmatpush1.bf16.msra.mxu0 0
    %5763 = vmatprep.mubr.bf16.mxu0 0
    %5764 = vmatmul.mubr.bf16.gmra.mrb[0].mxu0 %v1465
    %v5765 = vpop.f32.mrb[0].mxu0
    %v5766 = vadd.f32 %v4280, %v5765
    %v5767 = vpop.f32.mrb[0].mxu0
    %v5768 = vadd.f32 %v4284, %v5767
    %v5769 = vpop.f32.mrb[0].mxu0
    %v5770 = vpop.f32.mrb[0].mxu0
    %5771 = vdwg.mxu0
    %5772 = vmatprep.subr.bf16.mxu0 %v3916
    %5773 = vmatpush1.bf16.msra.mxu0 %v3915
    %5774 = vmatprep.subr.bf16.mxu0 %v3989
    %5775 = vmatpush1.bf16.msra.mxu0 %v3988
    %5776 = vmatprep.subr.bf16.mxu0 0
    %5777 = vmatpush1.bf16.msra.mxu0 0
    %5778 = vmatprep.subr.bf16.mxu0 0
    %5779 = vmatpush1.bf16.msra.mxu0 0
    %5780 = vmatprep.subr.bf16.mxu0 0
    %5781 = vmatpush1.bf16.msra.mxu0 0
    %5782 = vmatprep.subr.bf16.mxu0 0
    %5783 = vmatpush1.bf16.msra.mxu0 0
    %5784 = vmatprep.subr.bf16.mxu0 0
    %5785 = vmatpush1.bf16.msra.mxu0 0
    %5786 = vmatprep.subr.bf16.mxu0 0
    %5787 = vmatpush1.bf16.msra.mxu0 0
    %5788 = vmatprep.subr.bf16.mxu0 0
    %5789 = vmatpush1.bf16.msra.mxu0 0
    %5790 = vmatprep.subr.bf16.mxu0 0
    %5791 = vmatpush1.bf16.msra.mxu0 0
    %5792 = vmatprep.subr.bf16.mxu0 0
    %5793 = vmatpush1.bf16.msra.mxu0 0
    %5794 = vmatprep.subr.bf16.mxu0 0
    %5795 = vmatpush1.bf16.msra.mxu0 0
    %5796 = vmatprep.subr.bf16.mxu0 0
    %5797 = vmatpush1.bf16.msra.mxu0 0
    %5798 = vmatprep.subr.bf16.mxu0 0
    %5799 = vmatpush1.bf16.msra.mxu0 0
    %5800 = vmatprep.subr.bf16.mxu0 0
    %5801 = vmatpush1.bf16.msra.mxu0 0
    %5802 = vmatprep.subr.bf16.mxu0 0
    %5803 = vmatpush1.bf16.msra.mxu0 0
    %5804 = vmatprep.mubr.bf16.mxu0 0
    %5805 = vmatmul.mubr.bf16.gmra.mrb[0].mxu0 %v1465
    %v5806 = vpop.f32.mrb[0].mxu0
    %v5807 = vadd.f32 %v4288, %v5806
    %v5808 = vpop.f32.mrb[0].mxu0
    %v5809 = vadd.f32 %v4292, %v5808
    %v5810 = vpop.f32.mrb[0].mxu0
    %v5811 = vpop.f32.mrb[0].mxu0
    %5812 = vdwg.mxu0
    %5813 = vmatprep.subr.bf16.mxu0 %v3918
    %5814 = vmatpush1.bf16.msra.mxu0 %v3917
    %5815 = vmatprep.subr.bf16.mxu0 %v3991
    %5816 = vmatpush1.bf16.msra.mxu0 %v3990
    %5817 = vmatprep.subr.bf16.mxu0 0
    %5818 = vmatpush1.bf16.msra.mxu0 0
    %5819 = vmatprep.subr.bf16.mxu0 0
    %5820 = vmatpush1.bf16.msra.mxu0 0
    %5821 = vmatprep.subr.bf16.mxu0 0
    %5822 = vmatpush1.bf16.msra.mxu0 0
    %5823 = vmatprep.subr.bf16.mxu0 0
    %5824 = vmatpush1.bf16.msra.mxu0 0
    %5825 = vmatprep.subr.bf16.mxu0 0
    %5826 = vmatpush1.bf16.msra.mxu0 0
    %5827 = vmatprep.subr.bf16.mxu0 0
    %5828 = vmatpush1.bf16.msra.mxu0 0
    %5829 = vmatprep.subr.bf16.mxu0 0
    %5830 = vmatpush1.bf16.msra.mxu0 0
    %5831 = vmatprep.subr.bf16.mxu0 0
    %5832 = vmatpush1.bf16.msra.mxu0 0
    %5833 = vmatprep.subr.bf16.mxu0 0
    %5834 = vmatpush1.bf16.msra.mxu0 0
    %5835 = vmatprep.subr.bf16.mxu0 0
    %5836 = vmatpush1.bf16.msra.mxu0 0
    %5837 = vmatprep.subr.bf16.mxu0 0
    %5838 = vmatpush1.bf16.msra.mxu0 0
    %5839 = vmatprep.subr.bf16.mxu0 0
    %5840 = vmatpush1.bf16.msra.mxu0 0
    %5841 = vmatprep.subr.bf16.mxu0 0
    %5842 = vmatpush1.bf16.msra.mxu0 0
    %5843 = vmatprep.subr.bf16.mxu0 0
    %5844 = vmatpush1.bf16.msra.mxu0 0
    %5845 = vmatprep.mubr.bf16.mxu0 0
    %5846 = vmatmul.mubr.bf16.gmra.mrb[0].mxu0 %v1465
    %v5847 = vpop.f32.mrb[0].mxu0
    %v5848 = vadd.f32 %v4296, %v5847
    %v5849 = vpop.f32.mrb[0].mxu0
    %v5850 = vadd.f32 %v4300, %v5849
    %v5851 = vpop.f32.mrb[0].mxu0
    %v5852 = vpop.f32.mrb[0].mxu0
    %5853 = vdwg.mxu0
    %5854 = vmatprep.subr.bf16.mxu0 0
    %5855 = vmatpush1.bf16.msra.mxu0 %v3919
    %5856 = vmatprep.subr.bf16.mxu0 0
    %5857 = vmatpush1.bf16.msra.mxu0 %v3992
    %5858 = vmatprep.subr.bf16.mxu0 0
    %5859 = vmatpush1.bf16.msra.mxu0 0
    %5860 = vmatprep.subr.bf16.mxu0 0
    %5861 = vmatpush1.bf16.msra.mxu0 0
    %5862 = vmatprep.subr.bf16.mxu0 0
    %5863 = vmatpush1.bf16.msra.mxu0 0
    %5864 = vmatprep.subr.bf16.mxu0 0
    %5865 = vmatpush1.bf16.msra.mxu0 0
    %5866 = vmatprep.subr.bf16.mxu0 0
    %5867 = vmatpush1.bf16.msra.mxu0 0
    %5868 = vmatprep.subr.bf16.mxu0 0
    %5869 = vmatpush1.bf16.msra.mxu0 0
    %5870 = vmatprep.subr.bf16.mxu0 0
    %5871 = vmatpush1.bf16.msra.mxu0 0
    %5872 = vmatprep.subr.bf16.mxu0 0
    %5873 = vmatpush1.bf16.msra.mxu0 0
    %5874 = vmatprep.subr.bf16.mxu0 0
    %5875 = vmatpush1.bf16.msra.mxu0 0
    %5876 = vmatprep.subr.bf16.mxu0 0
    %5877 = vmatpush1.bf16.msra.mxu0 0
    %5878 = vmatprep.subr.bf16.mxu0 0
    %5879 = vmatpush1.bf16.msra.mxu0 0
    %5880 = vmatprep.subr.bf16.mxu0 0
    %5881 = vmatpush1.bf16.msra.mxu0 0
    %5882 = vmatprep.subr.bf16.mxu0 0
    %5883 = vmatpush1.bf16.msra.mxu0 0
    %5884 = vmatprep.subr.bf16.mxu0 0
    %5885 = vmatpush1.bf16.msra.mxu0 0
    %5886 = vmatprep.mubr.bf16.mxu0 0
    %5887 = vmatmul.mubr.bf16.gmra.mrb[0].mxu0 %v1465
    %v5888 = vpop.f32.mrb[0].mxu0
    %v5889 = vadd.f32 %v4304, %v5888
    %v5890 = vpop.f32.mrb[0].mxu0
    %v5891 = vpop.f32.mrb[0].mxu0
    %v5892 = vpop.f32.mrb[0].mxu0
    %5893 = vdwg.mxu0
    %v5894 = vxor.u32 %v4413, 2147483648
    %v5895 = vxor.u32 %v4415, 2147483648
    %v5896 = vxor.u32 %v4454, 2147483648
    %v5897 = vxor.u32 %v4456, 2147483648
    %v5898 = vxor.u32 %v4495, 2147483648
    %v5899 = vxor.u32 %v4497, 2147483648
    %v5900 = vxor.u32 %v4536, 2147483648
    %v5901 = vxor.u32 %v4538, 2147483648
    %v5902 = vxor.u32 %v4577, 2147483648
    %v5903 = vxor.u32 %v4579, 2147483648
    %v5904 = vxor.u32 %v4618, 2147483648
    %v5905 = vxor.u32 %v4620, 2147483648
    %v5906 = vxor.u32 %v4659, 2147483648
    %v5907 = vxor.u32 %v4661, 2147483648
    %v5908 = vxor.u32 %v4700, 2147483648
    %v5909 = vxor.u32 %v4702, 2147483648
    %v5910 = vxor.u32 %v4741, 2147483648
    %v5911 = vxor.u32 %v4743, 2147483648
    %v5912 = vxor.u32 %v4782, 2147483648
    %v5913 = vxor.u32 %v4784, 2147483648
    %v5914 = vxor.u32 %v4823, 2147483648
    %v5915 = vxor.u32 %v4825, 2147483648
    %v5916 = vxor.u32 %v4864, 2147483648
    %v5917 = vxor.u32 %v4866, 2147483648
    %v5918 = vxor.u32 %v4905, 2147483648
    %v5919 = vxor.u32 %v4907, 2147483648
    %v5920 = vxor.u32 %v4946, 2147483648
    %v5921 = vxor.u32 %v4948, 2147483648
    %v5922 = vxor.u32 %v4987, 2147483648
    %v5923 = vxor.u32 %v4989, 2147483648
    %v5924 = vxor.u32 %v5028, 2147483648
    %v5925 = vxor.u32 %v5030, 2147483648
    %v5926 = vxor.u32 %v5069, 2147483648
    %v5927 = vxor.u32 %v5071, 2147483648
    %v5928 = vxor.u32 %v5110, 2147483648
    %v5929 = vxor.u32 %v5112, 2147483648
    %v5930 = vxor.u32 %v5151, 2147483648
    %v5931 = vxor.u32 %v5153, 2147483648
    %v5932 = vxor.u32 %v5192, 2147483648
    %v5933 = vxor.u32 %v5194, 2147483648
    %v5934 = vxor.u32 %v5233, 2147483648
    %v5935 = vxor.u32 %v5235, 2147483648
    %v5936 = vxor.u32 %v5274, 2147483648
    %v5937 = vxor.u32 %v5276, 2147483648
    %v5938 = vxor.u32 %v5315, 2147483648
    %v5939 = vxor.u32 %v5317, 2147483648
    %v5940 = vxor.u32 %v5356, 2147483648
    %v5941 = vxor.u32 %v5358, 2147483648
    %v5942 = vxor.u32 %v5397, 2147483648
    %v5943 = vxor.u32 %v5399, 2147483648
    %v5944 = vxor.u32 %v5438, 2147483648
    %v5945 = vxor.u32 %v5440, 2147483648
    %v5946 = vxor.u32 %v5479, 2147483648
    %v5947 = vxor.u32 %v5481, 2147483648
    %v5948 = vxor.u32 %v5520, 2147483648
    %v5949 = vxor.u32 %v5522, 2147483648
    %v5950 = vxor.u32 %v5561, 2147483648
    %v5951 = vxor.u32 %v5563, 2147483648
    %v5952 = vxor.u32 %v5602, 2147483648
    %v5953 = vxor.u32 %v5604, 2147483648
    %v5954 = vxor.u32 %v5643, 2147483648
    %v5955 = vxor.u32 %v5645, 2147483648
    %v5956 = vxor.u32 %v5684, 2147483648
    %v5957 = vxor.u32 %v5686, 2147483648
    %v5958 = vxor.u32 %v5725, 2147483648
    %v5959 = vxor.u32 %v5727, 2147483648
    %v5960 = vxor.u32 %v5766, 2147483648
    %v5961 = vxor.u32 %v5768, 2147483648
    %v5962 = vxor.u32 %v5807, 2147483648
    %v5963 = vxor.u32 %v5809, 2147483648
    %v5964 = vxor.u32 %v5848, 2147483648
    %v5965 = vxor.u32 %v5850, 2147483648
    %v5966 = vxor.u32 %v5889, 2147483648
    %v5967 = vmul.f32 %v5894, 1.442695
    %v5968 = vpow.pop %v5967
    %v5969 = vmul.f32 %v5895, 1.442695
    %v5970 = vpow.pop %v5969
    %v5971 = vmul.f32 %v5896, 1.442695
    %v5972 = vpow.pop %v5971
    %v5973 = vmul.f32 %v5897, 1.442695
    %v5974 = vpow.pop %v5973
    %v5975 = vmul.f32 %v5898, 1.442695
    %v5976 = vpow.pop %v5975
    %v5977 = vmul.f32 %v5899, 1.442695
    %v5978 = vpow.pop %v5977
    %v5979 = vmul.f32 %v5900, 1.442695
    %v5980 = vpow.pop %v5979
    %v5981 = vmul.f32 %v5901, 1.442695
    %v5982 = vpow.pop %v5981
    %v5983 = vmul.f32 %v5902, 1.442695
    %v5984 = vpow.pop %v5983
    %v5985 = vmul.f32 %v5903, 1.442695
    %v5986 = vpow.pop %v5985
    %v5987 = vmul.f32 %v5904, 1.442695
    %v5988 = vpow.pop %v5987
    %v5989 = vmul.f32 %v5905, 1.442695
    %v5990 = vpow.pop %v5989
    %v5991 = vmul.f32 %v5906, 1.442695
    %v5992 = vpow.pop %v5991
    %v5993 = vmul.f32 %v5907, 1.442695
    %v5994 = vpow.pop %v5993
    %v5995 = vmul.f32 %v5908, 1.442695
    %v5996 = vpow.pop %v5995
    %v5997 = vmul.f32 %v5909, 1.442695
    %v5998 = vpow.pop %v5997
    %v5999 = vmul.f32 %v5910, 1.442695
    %v6000 = vpow.pop %v5999
    %v6001 = vmul.f32 %v5911, 1.442695
    %v6002 = vpow.pop %v6001
    %v6003 = vmul.f32 %v5912, 1.442695
    %v6004 = vpow.pop %v6003
    %v6005 = vmul.f32 %v5913, 1.442695
    %v6006 = vpow.pop %v6005
    %v6007 = vmul.f32 %v5914, 1.442695
    %v6008 = vpow.pop %v6007
    %v6009 = vmul.f32 %v5915, 1.442695
    %v6010 = vpow.pop %v6009
    %v6011 = vmul.f32 %v5916, 1.442695
    %v6012 = vpow.pop %v6011
    %v6013 = vmul.f32 %v5917, 1.442695
    %v6014 = vpow.pop %v6013
    %v6015 = vmul.f32 %v5918, 1.442695
    %v6016 = vpow.pop %v6015
    %v6017 = vmul.f32 %v5919, 1.442695
    %v6018 = vpow.pop %v6017
    %v6019 = vmul.f32 %v5920, 1.442695
    %v6020 = vpow.pop %v6019
    %v6021 = vmul.f32 %v5921, 1.442695
    %v6022 = vpow.pop %v6021
    %v6023 = vmul.f32 %v5922, 1.442695
    %v6024 = vpow.pop %v6023
    %v6025 = vmul.f32 %v5923, 1.442695
    %v6026 = vpow.pop %v6025
    %v6027 = vmul.f32 %v5924, 1.442695
    %v6028 = vpow.pop %v6027
    %v6029 = vmul.f32 %v5925, 1.442695
    %v6030 = vpow.pop %v6029
    %v6031 = vmul.f32 %v5926, 1.442695
    %v6032 = vpow.pop %v6031
    %v6033 = vmul.f32 %v5927, 1.442695
    %v6034 = vpow.pop %v6033
    %v6035 = vmul.f32 %v5928, 1.442695
    %v6036 = vpow.pop %v6035
    %v6037 = vmul.f32 %v5929, 1.442695
    %v6038 = vpow.pop %v6037
    %v6039 = vmul.f32 %v5930, 1.442695
    %v6040 = vpow.pop %v6039
    %v6041 = vmul.f32 %v5931, 1.442695
    %v6042 = vpow.pop %v6041
    %v6043 = vmul.f32 %v5932, 1.442695
    %v6044 = vpow.pop %v6043
    %v6045 = vmul.f32 %v5933, 1.442695
    %v6046 = vpow.pop %v6045
    %v6047 = vmul.f32 %v5934, 1.442695
    %v6048 = vpow.pop %v6047
    %v6049 = vmul.f32 %v5935, 1.442695
    %v6050 = vpow.pop %v6049
    %v6051 = vmul.f32 %v5936, 1.442695
    %v6052 = vpow.pop %v6051
    %v6053 = vmul.f32 %v5937, 1.442695
    %v6054 = vpow.pop %v6053
    %v6055 = vmul.f32 %v5938, 1.442695
    %v6056 = vpow.pop %v6055
    %v6057 = vmul.f32 %v5939, 1.442695
    %v6058 = vpow.pop %v6057
    %v6059 = vmul.f32 %v5940, 1.442695
    %v6060 = vpow.pop %v6059
    %v6061 = vmul.f32 %v5941, 1.442695
    %v6062 = vpow.pop %v6061
    %v6063 = vmul.f32 %v5942, 1.442695
    %v6064 = vpow.pop %v6063
    %v6065 = vmul.f32 %v5943, 1.442695
    %v6066 = vpow.pop %v6065
    %v6067 = vmul.f32 %v5944, 1.442695
    %v6068 = vpow.pop %v6067
    %v6069 = vmul.f32 %v5945, 1.442695
    %v6070 = vpow.pop %v6069
    %v6071 = vmul.f32 %v5946, 1.442695
    %v6072 = vpow.pop %v6071
    %v6073 = vmul.f32 %v5947, 1.442695
    %v6074 = vpow.pop %v6073
    %v6075 = vmul.f32 %v5948, 1.442695
    %v6076 = vpow.pop %v6075
    %v6077 = vmul.f32 %v5949, 1.442695
    %v6078 = vpow.pop %v6077
    %v6079 = vmul.f32 %v5950, 1.442695
    %v6080 = vpow.pop %v6079
    %v6081 = vmul.f32 %v5951, 1.442695
    %v6082 = vpow.pop %v6081
    %v6083 = vmul.f32 %v5952, 1.442695
    %v6084 = vpow.pop %v6083
    %v6085 = vmul.f32 %v5953, 1.442695
    %v6086 = vpow.pop %v6085
    %v6087 = vmul.f32 %v5954, 1.442695
    %v6088 = vpow.pop %v6087
    %v6089 = vmul.f32 %v5955, 1.442695
    %v6090 = vpow.pop %v6089
    %v6091 = vmul.f32 %v5956, 1.442695
    %v6092 = vpow.pop %v6091
    %v6093 = vmul.f32 %v5957, 1.442695
    %v6094 = vpow.pop %v6093
    %v6095 = vmul.f32 %v5958, 1.442695
    %v6096 = vpow.pop %v6095
    %v6097 = vmul.f32 %v5959, 1.442695
    %v6098 = vpow.pop %v6097
    %v6099 = vmul.f32 %v5960, 1.442695
    %v6100 = vpow.pop %v6099
    %v6101 = vmul.f32 %v5961, 1.442695
    %v6102 = vpow.pop %v6101
    %v6103 = vmul.f32 %v5962, 1.442695
    %v6104 = vpow.pop %v6103
    %v6105 = vmul.f32 %v5963, 1.442695
    %v6106 = vpow.pop %v6105
    %v6107 = vmul.f32 %v5964, 1.442695
    %v6108 = vpow.pop %v6107
    %v6109 = vmul.f32 %v5965, 1.442695
    %v6110 = vpow.pop %v6109
    %v6111 = vmul.f32 %v5966, 1.442695
    %v6112 = vpow.pop %v6111
    %v6113 = vadd.f32 %v5968, 1.0
    %v6114 = vadd.f32 %v5970, 1.0
    %v6115 = vadd.f32 %v5972, 1.0
    %v6116 = vadd.f32 %v5974, 1.0
    %v6117 = vadd.f32 %v5976, 1.0
    %v6118 = vadd.f32 %v5978, 1.0
    %v6119 = vadd.f32 %v5980, 1.0
    %v6120 = vadd.f32 %v5982, 1.0
    %v6121 = vadd.f32 %v5984, 1.0
    %v6122 = vadd.f32 %v5986, 1.0
    %v6123 = vadd.f32 %v5988, 1.0
    %v6124 = vadd.f32 %v5990, 1.0
    %v6125 = vadd.f32 %v5992, 1.0
    %v6126 = vadd.f32 %v5994, 1.0
    %v6127 = vadd.f32 %v5996, 1.0
    %v6128 = vadd.f32 %v5998, 1.0
    %v6129 = vadd.f32 %v6000, 1.0
    %v6130 = vadd.f32 %v6002, 1.0
    %v6131 = vadd.f32 %v6004, 1.0
    %v6132 = vadd.f32 %v6006, 1.0
    %v6133 = vadd.f32 %v6008, 1.0
    %v6134 = vadd.f32 %v6010, 1.0
    %v6135 = vadd.f32 %v6012, 1.0
    %v6136 = vadd.f32 %v6014, 1.0
    %v6137 = vadd.f32 %v6016, 1.0
    %v6138 = vadd.f32 %v6018, 1.0
    %v6139 = vadd.f32 %v6020, 1.0
    %v6140 = vadd.f32 %v6022, 1.0
    %v6141 = vadd.f32 %v6024, 1.0
    %v6142 = vadd.f32 %v6026, 1.0
    %v6143 = vadd.f32 %v6028, 1.0
    %v6144 = vadd.f32 %v6030, 1.0
    %v6145 = vadd.f32 %v6032, 1.0
    %v6146 = vadd.f32 %v6034, 1.0
    %v6147 = vadd.f32 %v6036, 1.0
    %v6148 = vadd.f32 %v6038, 1.0
    %v6149 = vadd.f32 %v6040, 1.0
    %v6150 = vadd.f32 %v6042, 1.0
    %v6151 = vadd.f32 %v6044, 1.0
    %v6152 = vadd.f32 %v6046, 1.0
    %v6153 = vadd.f32 %v6048, 1.0
    %v6154 = vadd.f32 %v6050, 1.0
    %v6155 = vadd.f32 %v6052, 1.0
    %v6156 = vadd.f32 %v6054, 1.0
    %v6157 = vadd.f32 %v6056, 1.0
    %v6158 = vadd.f32 %v6058, 1.0
    %v6159 = vadd.f32 %v6060, 1.0
    %v6160 = vadd.f32 %v6062, 1.0
    %v6161 = vadd.f32 %v6064, 1.0
    %v6162 = vadd.f32 %v6066, 1.0
    %v6163 = vadd.f32 %v6068, 1.0
    %v6164 = vadd.f32 %v6070, 1.0
    %v6165 = vadd.f32 %v6072, 1.0
    %v6166 = vadd.f32 %v6074, 1.0
    %v6167 = vadd.f32 %v6076, 1.0
    %v6168 = vadd.f32 %v6078, 1.0
    %v6169 = vadd.f32 %v6080, 1.0
    %v6170 = vadd.f32 %v6082, 1.0
    %v6171 = vadd.f32 %v6084, 1.0
    %v6172 = vadd.f32 %v6086, 1.0
    %v6173 = vadd.f32 %v6088, 1.0
    %v6174 = vadd.f32 %v6090, 1.0
    %v6175 = vadd.f32 %v6092, 1.0
    %v6176 = vadd.f32 %v6094, 1.0
    %v6177 = vadd.f32 %v6096, 1.0
    %v6178 = vadd.f32 %v6098, 1.0
    %v6179 = vadd.f32 %v6100, 1.0
    %v6180 = vadd.f32 %v6102, 1.0
    %v6181 = vadd.f32 %v6104, 1.0
    %v6182 = vadd.f32 %v6106, 1.0
    %v6183 = vadd.f32 %v6108, 1.0
    %v6184 = vadd.f32 %v6110, 1.0
    %v6185 = vadd.f32 %v6112, 1.0
    %v6186 = vrcp.pop %v6113
    %v6187 = vmul.f32 1.0, %v6186
    %v6188 = vrcp.pop %v6114
    %v6189 = vmul.f32 1.0, %v6188
    %v6190 = vrcp.pop %v6115
    %v6191 = vmul.f32 1.0, %v6190
    %v6192 = vrcp.pop %v6116
    %v6193 = vmul.f32 1.0, %v6192
    %v6194 = vrcp.pop %v6117
    %v6195 = vmul.f32 1.0, %v6194
    %v6196 = vrcp.pop %v6118
    %v6197 = vmul.f32 1.0, %v6196
    %v6198 = vrcp.pop %v6119
    %v6199 = vmul.f32 1.0, %v6198
    %v6200 = vrcp.pop %v6120
    %v6201 = vmul.f32 1.0, %v6200
    %v6202 = vrcp.pop %v6121
    %v6203 = vmul.f32 1.0, %v6202
    %v6204 = vrcp.pop %v6122
    %v6205 = vmul.f32 1.0, %v6204
    %v6206 = vrcp.pop %v6123
    %v6207 = vmul.f32 1.0, %v6206
    %v6208 = vrcp.pop %v6124
    %v6209 = vmul.f32 1.0, %v6208
    %v6210 = vrcp.pop %v6125
    %v6211 = vmul.f32 1.0, %v6210
    %v6212 = vrcp.pop %v6126
    %v6213 = vmul.f32 1.0, %v6212
    %v6214 = vrcp.pop %v6127
    %v6215 = vmul.f32 1.0, %v6214
    %v6216 = vrcp.pop %v6128
    %v6217 = vmul.f32 1.0, %v6216
    %v6218 = vrcp.pop %v6129
    %v6219 = vmul.f32 1.0, %v6218
    %v6220 = vrcp.pop %v6130
    %v6221 = vmul.f32 1.0, %v6220
    %v6222 = vrcp.pop %v6131
    %v6223 = vmul.f32 1.0, %v6222
    %v6224 = vrcp.pop %v6132
    %v6225 = vmul.f32 1.0, %v6224
    %v6226 = vrcp.pop %v6133
    %v6227 = vmul.f32 1.0, %v6226
    %v6228 = vrcp.pop %v6134
    %v6229 = vmul.f32 1.0, %v6228
    %v6230 = vrcp.pop %v6135
    %v6231 = vmul.f32 1.0, %v6230
    %v6232 = vrcp.pop %v6136
    %v6233 = vmul.f32 1.0, %v6232
    %v6234 = vrcp.pop %v6137
    %v6235 = vmul.f32 1.0, %v6234
    %v6236 = vrcp.pop %v6138
    %v6237 = vmul.f32 1.0, %v6236
    %v6238 = vrcp.pop %v6139
    %v6239 = vmul.f32 1.0, %v6238
    %v6240 = vrcp.pop %v6140
    %v6241 = vmul.f32 1.0, %v6240
    %v6242 = vrcp.pop %v6141
    %v6243 = vmul.f32 1.0, %v6242
    %v6244 = vrcp.pop %v6142
    %v6245 = vmul.f32 1.0, %v6244
    %v6246 = vrcp.pop %v6143
    %v6247 = vmul.f32 1.0, %v6246
    %v6248 = vrcp.pop %v6144
    %v6249 = vmul.f32 1.0, %v6248
    %v6250 = vrcp.pop %v6145
    %v6251 = vmul.f32 1.0, %v6250
    %v6252 = vrcp.pop %v6146
    %v6253 = vmul.f32 1.0, %v6252
    %v6254 = vrcp.pop %v6147
    %v6255 = vmul.f32 1.0, %v6254
    %v6256 = vrcp.pop %v6148
    %v6257 = vmul.f32 1.0, %v6256
    %v6258 = vrcp.pop %v6149
    %v6259 = vmul.f32 1.0, %v6258
    %v6260 = vrcp.pop %v6150
    %v6261 = vmul.f32 1.0, %v6260
    %v6262 = vrcp.pop %v6151
    %v6263 = vmul.f32 1.0, %v6262
    %v6264 = vrcp.pop %v6152
    %v6265 = vmul.f32 1.0, %v6264
    %v6266 = vrcp.pop %v6153
    %v6267 = vmul.f32 1.0, %v6266
    %v6268 = vrcp.pop %v6154
    %v6269 = vmul.f32 1.0, %v6268
    %v6270 = vrcp.pop %v6155
    %v6271 = vmul.f32 1.0, %v6270
    %v6272 = vrcp.pop %v6156
    %v6273 = vmul.f32 1.0, %v6272
    %v6274 = vrcp.pop %v6157
    %v6275 = vmul.f32 1.0, %v6274
    %v6276 = vrcp.pop %v6158
    %v6277 = vmul.f32 1.0, %v6276
    %v6278 = vrcp.pop %v6159
    %v6279 = vmul.f32 1.0, %v6278
    %v6280 = vrcp.pop %v6160
    %v6281 = vmul.f32 1.0, %v6280
    %v6282 = vrcp.pop %v6161
    %v6283 = vmul.f32 1.0, %v6282
    %v6284 = vrcp.pop %v6162
    %v6285 = vmul.f32 1.0, %v6284
    %v6286 = vrcp.pop %v6163
    %v6287 = vmul.f32 1.0, %v6286
    %v6288 = vrcp.pop %v6164
    %v6289 = vmul.f32 1.0, %v6288
    %v6290 = vrcp.pop %v6165
    %v6291 = vmul.f32 1.0, %v6290
    %v6292 = vrcp.pop %v6166
    %v6293 = vmul.f32 1.0, %v6292
    %v6294 = vrcp.pop %v6167
    %v6295 = vmul.f32 1.0, %v6294
    %v6296 = vrcp.pop %v6168
    %v6297 = vmul.f32 1.0, %v6296
    %v6298 = vrcp.pop %v6169
    %v6299 = vmul.f32 1.0, %v6298
    %v6300 = vrcp.pop %v6170
    %v6301 = vmul.f32 1.0, %v6300
    %v6302 = vrcp.pop %v6171
    %v6303 = vmul.f32 1.0, %v6302
    %v6304 = vrcp.pop %v6172
    %v6305 = vmul.f32 1.0, %v6304
    %v6306 = vrcp.pop %v6173
    %v6307 = vmul.f32 1.0, %v6306
    %v6308 = vrcp.pop %v6174
    %v6309 = vmul.f32 1.0, %v6308
    %v6310 = vrcp.pop %v6175
    %v6311 = vmul.f32 1.0, %v6310
    %v6312 = vrcp.pop %v6176
    %v6313 = vmul.f32 1.0, %v6312
    %v6314 = vrcp.pop %v6177
    %v6315 = vmul.f32 1.0, %v6314
    %v6316 = vrcp.pop %v6178
    %v6317 = vmul.f32 1.0, %v6316
    %v6318 = vrcp.pop %v6179
    %v6319 = vmul.f32 1.0, %v6318
    %v6320 = vrcp.pop %v6180
    %v6321 = vmul.f32 1.0, %v6320
    %v6322 = vrcp.pop %v6181
    %v6323 = vmul.f32 1.0, %v6322
    %v6324 = vrcp.pop %v6182
    %v6325 = vmul.f32 1.0, %v6324
    %v6326 = vrcp.pop %v6183
    %v6327 = vmul.f32 1.0, %v6326
    %v6328 = vrcp.pop %v6184
    %v6329 = vmul.f32 1.0, %v6328
    %v6330 = vrcp.pop %v6185
    %v6331 = vmul.f32 1.0, %v6330
    %v6405 = vcombine.low %v6187, %v6189
    %v6406 = vcombine.low %v6191, %v6193
    %v6408 = vunpack.c.l.s4 1983009808
    %v6409 = vunpack.c.0.s8 %v6408
    %v6410 = vlaneseq
    %v6411 = vshrl.u32 %v6410, 7
    %v6412 = vsub.s32 %v6409, %v6411
    %v6413 = vrot.slane %v6405, %v6412
    %v6415 = vunpack.c.l.s4 1983009808
    %v6416 = vunpack.c.0.s8 %v6415
    %v6417 = vlaneseq
    %v6418 = vshrl.u32 %v6417, 7
    %v6419 = vsub.s32 %v6416, %v6418
    %v6420 = vrot.slane %v6406, %v6419
    %v6421 = vcombine.low %v6413, %v6420
    %v6422 = vcombine.low %v6195, %v6197
    %v6423 = vcombine.low %v6199, %v6201
    %v6425 = vunpack.c.l.s4 1983009808
    %v6426 = vunpack.c.0.s8 %v6425
    %v6427 = vlaneseq
    %v6428 = vshrl.u32 %v6427, 7
    %v6429 = vsub.s32 %v6426, %v6428
    %v6430 = vrot.slane %v6422, %v6429
    %v6432 = vunpack.c.l.s4 1983009808
    %v6433 = vunpack.c.0.s8 %v6432
    %v6434 = vlaneseq
    %v6435 = vshrl.u32 %v6434, 7
    %v6436 = vsub.s32 %v6433, %v6435
    %v6437 = vrot.slane %v6423, %v6436
    %v6438 = vcombine.low %v6430, %v6437
    %v6439 = vcombine.low %v6203, %v6205
    %v6440 = vcombine.low %v6207, %v6209
    %v6442 = vunpack.c.l.s4 1983009808
    %v6443 = vunpack.c.0.s8 %v6442
    %v6444 = vlaneseq
    %v6445 = vshrl.u32 %v6444, 7
    %v6446 = vsub.s32 %v6443, %v6445
    %v6447 = vrot.slane %v6439, %v6446
    %v6449 = vunpack.c.l.s4 1983009808
    %v6450 = vunpack.c.0.s8 %v6449
    %v6451 = vlaneseq
    %v6452 = vshrl.u32 %v6451, 7
    %v6453 = vsub.s32 %v6450, %v6452
    %v6454 = vrot.slane %v6440, %v6453
    %v6455 = vcombine.low %v6447, %v6454
    %v6456 = vcombine.low %v6211, %v6213
    %v6457 = vcombine.low %v6215, %v6217
    %v6459 = vunpack.c.l.s4 1983009808
    %v6460 = vunpack.c.0.s8 %v6459
    %v6461 = vlaneseq
    %v6462 = vshrl.u32 %v6461, 7
    %v6463 = vsub.s32 %v6460, %v6462
    %v6464 = vrot.slane %v6456, %v6463
    %v6466 = vunpack.c.l.s4 1983009808
    %v6467 = vunpack.c.0.s8 %v6466
    %v6468 = vlaneseq
    %v6469 = vshrl.u32 %v6468, 7
    %v6470 = vsub.s32 %v6467, %v6469
    %v6471 = vrot.slane %v6457, %v6470
    %v6472 = vcombine.low %v6464, %v6471
    %v6473 = vcombine.low %v6219, %v6221
    %v6474 = vcombine.low %v6223, %v6225
    %v6476 = vunpack.c.l.s4 1983009808
    %v6477 = vunpack.c.0.s8 %v6476
    %v6478 = vlaneseq
    %v6479 = vshrl.u32 %v6478, 7
    %v6480 = vsub.s32 %v6477, %v6479
    %v6481 = vrot.slane %v6473, %v6480
    %v6483 = vunpack.c.l.s4 1983009808
    %v6484 = vunpack.c.0.s8 %v6483
    %v6485 = vlaneseq
    %v6486 = vshrl.u32 %v6485, 7
    %v6487 = vsub.s32 %v6484, %v6486
    %v6488 = vrot.slane %v6474, %v6487
    %v6489 = vcombine.low %v6481, %v6488
    %v6490 = vcombine.low %v6227, %v6229
    %v6491 = vcombine.low %v6231, %v6233
    %v6493 = vunpack.c.l.s4 1983009808
    %v6494 = vunpack.c.0.s8 %v6493
    %v6495 = vlaneseq
    %v6496 = vshrl.u32 %v6495, 7
    %v6497 = vsub.s32 %v6494, %v6496
    %v6498 = vrot.slane %v6490, %v6497
    %v6500 = vunpack.c.l.s4 1983009808
    %v6501 = vunpack.c.0.s8 %v6500
    %v6502 = vlaneseq
    %v6503 = vshrl.u32 %v6502, 7
    %v6504 = vsub.s32 %v6501, %v6503
    %v6505 = vrot.slane %v6491, %v6504
    %v6506 = vcombine.low %v6498, %v6505
    %v6507 = vcombine.low %v6235, %v6237
    %v6508 = vcombine.low %v6239, %v6241
    %v6510 = vunpack.c.l.s4 1983009808
    %v6511 = vunpack.c.0.s8 %v6510
    %v6512 = vlaneseq
    %v6513 = vshrl.u32 %v6512, 7
    %v6514 = vsub.s32 %v6511, %v6513
    %v6515 = vrot.slane %v6507, %v6514
    %v6517 = vunpack.c.l.s4 1983009808
    %v6518 = vunpack.c.0.s8 %v6517
    %v6519 = vlaneseq
    %v6520 = vshrl.u32 %v6519, 7
    %v6521 = vsub.s32 %v6518, %v6520
    %v6522 = vrot.slane %v6508, %v6521
    %v6523 = vcombine.low %v6515, %v6522
    %v6524 = vcombine.low %v6243, %v6245
    %v6525 = vcombine.low %v6247, %v6249
    %v6527 = vunpack.c.l.s4 1983009808
    %v6528 = vunpack.c.0.s8 %v6527
    %v6529 = vlaneseq
    %v6530 = vshrl.u32 %v6529, 7
    %v6531 = vsub.s32 %v6528, %v6530
    %v6532 = vrot.slane %v6524, %v6531
    %v6534 = vunpack.c.l.s4 1983009808
    %v6535 = vunpack.c.0.s8 %v6534
    %v6536 = vlaneseq
    %v6537 = vshrl.u32 %v6536, 7
    %v6538 = vsub.s32 %v6535, %v6537
    %v6539 = vrot.slane %v6525, %v6538
    %v6540 = vcombine.low %v6532, %v6539
    %v6541 = vcombine.low %v6251, %v6253
    %v6542 = vcombine.low %v6255, %v6257
    %v6544 = vunpack.c.l.s4 1983009808
    %v6545 = vunpack.c.0.s8 %v6544
    %v6546 = vlaneseq
    %v6547 = vshrl.u32 %v6546, 7
    %v6548 = vsub.s32 %v6545, %v6547
    %v6549 = vrot.slane %v6541, %v6548
    %v6551 = vunpack.c.l.s4 1983009808
    %v6552 = vunpack.c.0.s8 %v6551
    %v6553 = vlaneseq
    %v6554 = vshrl.u32 %v6553, 7
    %v6555 = vsub.s32 %v6552, %v6554
    %v6556 = vrot.slane %v6542, %v6555
    %v6557 = vcombine.low %v6549, %v6556
    %v6558 = vcombine.low %v6259, %v6261
    %v6559 = vcombine.low %v6263, %v6265
    %v6561 = vunpack.c.l.s4 1983009808
    %v6562 = vunpack.c.0.s8 %v6561
    %v6563 = vlaneseq
    %v6564 = vshrl.u32 %v6563, 7
    %v6565 = vsub.s32 %v6562, %v6564
    %v6566 = vrot.slane %v6558, %v6565
    %v6568 = vunpack.c.l.s4 1983009808
    %v6569 = vunpack.c.0.s8 %v6568
    %v6570 = vlaneseq
    %v6571 = vshrl.u32 %v6570, 7
    %v6572 = vsub.s32 %v6569, %v6571
    %v6573 = vrot.slane %v6559, %v6572
    %v6574 = vcombine.low %v6566, %v6573
    %v6575 = vcombine.low %v6267, %v6269
    %v6576 = vcombine.low %v6271, %v6273
    %v6578 = vunpack.c.l.s4 1983009808
    %v6579 = vunpack.c.0.s8 %v6578
    %v6580 = vlaneseq
    %v6581 = vshrl.u32 %v6580, 7
    %v6582 = vsub.s32 %v6579, %v6581
    %v6583 = vrot.slane %v6575, %v6582
    %v6585 = vunpack.c.l.s4 1983009808
    %v6586 = vunpack.c.0.s8 %v6585
    %v6587 = vlaneseq
    %v6588 = vshrl.u32 %v6587, 7
    %v6589 = vsub.s32 %v6586, %v6588
    %v6590 = vrot.slane %v6576, %v6589
    %v6591 = vcombine.low %v6583, %v6590
    %v6592 = vcombine.low %v6275, %v6277
    %v6593 = vcombine.low %v6279, %v6281
    %v6595 = vunpack.c.l.s4 1983009808
    %v6596 = vunpack.c.0.s8 %v6595
    %v6597 = vlaneseq
    %v6598 = vshrl.u32 %v6597, 7
    %v6599 = vsub.s32 %v6596, %v6598
    %v6600 = vrot.slane %v6592, %v6599
    %v6602 = vunpack.c.l.s4 1983009808
    %v6603 = vunpack.c.0.s8 %v6602
    %v6604 = vlaneseq
    %v6605 = vshrl.u32 %v6604, 7
    %v6606 = vsub.s32 %v6603, %v6605
    %v6607 = vrot.slane %v6593, %v6606
    %v6608 = vcombine.low %v6600, %v6607
    %v6609 = vcombine.low %v6283, %v6285
    %v6610 = vcombine.low %v6287, %v6289
    %v6612 = vunpack.c.l.s4 1983009808
    %v6613 = vunpack.c.0.s8 %v6612
    %v6614 = vlaneseq
    %v6615 = vshrl.u32 %v6614, 7
    %v6616 = vsub.s32 %v6613, %v6615
    %v6617 = vrot.slane %v6609, %v6616
    %v6619 = vunpack.c.l.s4 1983009808
    %v6620 = vunpack.c.0.s8 %v6619
    %v6621 = vlaneseq
    %v6622 = vshrl.u32 %v6621, 7
    %v6623 = vsub.s32 %v6620, %v6622
    %v6624 = vrot.slane %v6610, %v6623
    %v6625 = vcombine.low %v6617, %v6624
    %v6626 = vcombine.low %v6291, %v6293
    %v6627 = vcombine.low %v6295, %v6297
    %v6629 = vunpack.c.l.s4 1983009808
    %v6630 = vunpack.c.0.s8 %v6629
    %v6631 = vlaneseq
    %v6632 = vshrl.u32 %v6631, 7
    %v6633 = vsub.s32 %v6630, %v6632
    %v6634 = vrot.slane %v6626, %v6633
    %v6636 = vunpack.c.l.s4 1983009808
    %v6637 = vunpack.c.0.s8 %v6636
    %v6638 = vlaneseq
    %v6639 = vshrl.u32 %v6638, 7
    %v6640 = vsub.s32 %v6637, %v6639
    %v6641 = vrot.slane %v6627, %v6640
    %v6642 = vcombine.low %v6634, %v6641
    %v6643 = vcombine.low %v6299, %v6301
    %v6644 = vcombine.low %v6303, %v6305
    %v6646 = vunpack.c.l.s4 1983009808
    %v6647 = vunpack.c.0.s8 %v6646
    %v6648 = vlaneseq
    %v6649 = vshrl.u32 %v6648, 7
    %v6650 = vsub.s32 %v6647, %v6649
    %v6651 = vrot.slane %v6643, %v6650
    %v6653 = vunpack.c.l.s4 1983009808
    %v6654 = vunpack.c.0.s8 %v6653
    %v6655 = vlaneseq
    %v6656 = vshrl.u32 %v6655, 7
    %v6657 = vsub.s32 %v6654, %v6656
    %v6658 = vrot.slane %v6644, %v6657
    %v6659 = vcombine.low %v6651, %v6658
    %v6660 = vcombine.low %v6307, %v6309
    %v6661 = vcombine.low %v6311, %v6313
    %v6663 = vunpack.c.l.s4 1983009808
    %v6664 = vunpack.c.0.s8 %v6663
    %v6665 = vlaneseq
    %v6666 = vshrl.u32 %v6665, 7
    %v6667 = vsub.s32 %v6664, %v6666
    %v6668 = vrot.slane %v6660, %v6667
    %v6670 = vunpack.c.l.s4 1983009808
    %v6671 = vunpack.c.0.s8 %v6670
    %v6672 = vlaneseq
    %v6673 = vshrl.u32 %v6672, 7
    %v6674 = vsub.s32 %v6671, %v6673
    %v6675 = vrot.slane %v6661, %v6674
    %v6676 = vcombine.low %v6668, %v6675
    %v6677 = vcombine.low %v6315, %v6317
    %v6678 = vcombine.low %v6319, %v6321
    %v6680 = vunpack.c.l.s4 1983009808
    %v6681 = vunpack.c.0.s8 %v6680
    %v6682 = vlaneseq
    %v6683 = vshrl.u32 %v6682, 7
    %v6684 = vsub.s32 %v6681, %v6683
    %v6685 = vrot.slane %v6677, %v6684
    %v6687 = vunpack.c.l.s4 1983009808
    %v6688 = vunpack.c.0.s8 %v6687
    %v6689 = vlaneseq
    %v6690 = vshrl.u32 %v6689, 7
    %v6691 = vsub.s32 %v6688, %v6690
    %v6692 = vrot.slane %v6678, %v6691
    %v6693 = vcombine.low %v6685, %v6692
    %v6694 = vcombine.low %v6323, %v6325
    %v6695 = vcombine.low %v6327, %v6329
    %v6697 = vunpack.c.l.s4 1983009808
    %v6698 = vunpack.c.0.s8 %v6697
    %v6699 = vlaneseq
    %v6700 = vshrl.u32 %v6699, 7
    %v6701 = vsub.s32 %v6698, %v6700
    %v6702 = vrot.slane %v6694, %v6701
    %v6704 = vunpack.c.l.s4 1983009808
    %v6705 = vunpack.c.0.s8 %v6704
    %v6706 = vlaneseq
    %v6707 = vshrl.u32 %v6706, 7
    %v6708 = vsub.s32 %v6705, %v6707
    %v6709 = vrot.slane %v6695, %v6708
    %v6710 = vcombine.low %v6702, %v6709
    %v6712 = vunpack.c.l.s4 1983009808
    %v6713 = vunpack.c.0.s8 %v6712
    %v6714 = vlaneseq
    %v6715 = vshrl.u32 %v6714, 7
    %v6716 = vsub.s32 %v6713, %v6715
    %v6717 = vrot.slane %v6331, %v6716
    %6737 = vst [vmem:[%s5 + $0x92] sm:$0xff] %v6421
    %6738 = vst [vmem:[%s5 + $0x9a] sm:$0xff] %v6438
    %6739 = vst [vmem:[%s5 + $0xa2] sm:$0xff] %v6455
    %6740 = vst [vmem:[%s5 + $0xaa] sm:$0xff] %v6472
    %6741 = vst [vmem:[%s5 + $0xb2] sm:$0xff] %v6489
    %6742 = vst [vmem:[%s5 + $0xba] sm:$0xff] %v6506
    %6743 = vst [vmem:[%s5 + $0xc2] sm:$0xff] %v6523
    %6744 = vst [vmem:[%s5 + $0xca] sm:$0xff] %v6540
    %6745 = vst [vmem:[%s5 + $0xd2] sm:$0xff] %v6557
    %6746 = vst [vmem:[%s5 + $0xda] sm:$0xff] %v6574
    %6747 = vst [vmem:[%s5 + $0xe2] sm:$0xff] %v6591
    %6748 = vst [vmem:[%s5 + $0xea] sm:$0xff] %v6608
    %6749 = vst [vmem:[%s5 + $0xf2] sm:$0xff] %v6625
    %6750 = vst [vmem:[%s5 + $0xfa] sm:$0xff] %v6642
    %6751 = vst [vmem:[%s5 + $0x102] sm:$0xff] %v6659
    %6752 = vst [vmem:[%s5 + $0x10a] sm:$0xff] %v6676
    %6753 = vst [vmem:[%s5 + $0x112] sm:$0xff] %v6693
    %6754 = vst [vmem:[%s5 + $0x11a] sm:$0xff] %v6710
    %6755 = vst [vmem:[%s5 + $0x122] sm:$0x3] %v6717
    // Predicated region
    $region26: #{forward.1} parent=1 // pred_check
      _
    $region27: #{forward.1} parent=1 // pred_check_branch
      %6757 = sbr.rel (0) target = $region29
    $region28: #{forward.1} parent=1 // pred_region
      _
    $region29: #{forward.1} parent=1 // pred_fallthru
      _
    // Predicated region
    $region30: #{forward.1} parent=1 // pred_check
      _
    $region31: #{forward.1} parent=1 // pred_check_branch
      %6759 = sbr.rel (0) target = $region33
    $region32: #{forward.1} parent=1 // pred_region
      _
    $region33: #{forward.1} parent=1 // pred_fallthru
      _
    %6760 = vsyncpa [#allocation6], 1
    %6761 = vsyncpa [#allocation8], 1
  %6762 = vsyncmov [#allocation3]
  %s6763 = vpop.sfrf %6762
  %p6764 = scmp.eq.s32.totalorder %s6763, 0
  %p6765 = pneg %p6764
  %6767 = shalt.err (%p6765)
  %s6768 = scalar_lea.sflag [#allocation3], 1
  %6769 = vsyncmov %s6768
  %s6770 = vpop.sfrf %6769
  %p6771 = scmp.eq.s32.totalorder %s6770, 0
  %p6772 = pneg %p6771
  %6774 = shalt.err (%p6772)

</llo_original>
